<compile_context>
chip_gen: v7x
topology: tpu7x:2x2x1
jax: 0.10.0
libtpu: 0.0.40
codegen_flags: <defaults>
</compile_context>

<pallas_src>
import functools

import jax
import jax.numpy as jnp
from jax.experimental import pallas as pl
from jax.experimental.pallas import tpu as pltpu


GROUPS_PER_STEP = 8   # view-groups per grid step -> dense (8,128) FC/store tiles
CPAD = 128            # conv feature channels zero-padded to one 128-lane slab
NPAD = 128            # classes zero-padded to one 128-lane slab


# --------------------------------------------------------------------------
# Fused kernel, one grid step per batch of G view-groups (G*V images).
#   xc_ref : (G*V*HW, 9*C_in)  bf16 im2col rows for all images of this step
#   w1_ref : (9*C_in, CPAD)    bf16 flattened conv weight (C_out padded to 128)
#   b1_ref : (1, CPAD)         f32 conv bias
#   w2_ref : (CPAD, NPAD)      bf16 FC weight, 1/HW GAP scale pre-folded in
#   b2_ref : (1, NPAD)         f32 FC bias
#   out_ref: (G, NPAD)         f32 lane-dense logits (one row per group)
# --------------------------------------------------------------------------
def make_fused_kernel(G, V, HW):
    def kernel(xc_ref, w1_ref, b1_ref, w2_ref, b2_ref, out_ref):
        # conv3x3 as ONE bf16 MXU matmul (K = 9*C_in) over all G*V images
        acts = jnp.dot(xc_ref[...], w1_ref[...],
                       preferred_element_type=jnp.float32)        # (G*V*HW, CPAD) f32
        acts = jnp.maximum(acts + b1_ref[...], 0.0)               # bias + ReLU (f32)
        # global-average-pool per image as a plain sum (1/HW folded into w2);
        # leading-dim splits are layout-free.
        pooled = jnp.sum(acts.reshape(G * V, HW, CPAD), axis=1)   # (G*V, CPAD)
        # element-wise max over the views of each group
        fmax = jnp.max(pooled.reshape(G, V, CPAD), axis=1)        # (G, CPAD)
        # net_2: Linear(C_feat, nclasses) as a dense (G,128)@(128,128) bf16 matmul
        logits = jnp.dot(fmax.astype(w2_ref.dtype), w2_ref[...],
                         preferred_element_type=jnp.float32) + b2_ref[...]  # (G, NPAD)
        out_ref[...] = logits

    return kernel


def prepare_mvcnn_params(conv_w, conv_b, fc_w, fc_b, H, W):
    """Pad / cast / fold weights ONCE (hoisted out of the per-forward path).

    * C_feat and nclasses zero-padded to 128 lanes (lane-dense MXU tiles;
      padded channels carry zero weight/bias so ReLU/max/FC padding is inert).
    * matmul operands cast to bf16 (accumulation stays f32 in-kernel).
    * 1/(H*W) global-average-pool scale folded into the FC weight.
    """
    kh, kw, C_in, C_feat = conv_w.shape
    nclasses = fc_w.shape[-1]
    K = kh * kw * C_in
    inv_hw = 1.0 / float(H * W)

    w1 = jnp.zeros((K, CPAD), jnp.float32).at[:, :C_feat].set(
        conv_w.reshape(K, C_feat))
    b1 = jnp.zeros((1, CPAD), jnp.float32).at[0, :C_feat].set(conv_b)
    w2 = jnp.zeros((CPAD, NPAD), jnp.float32).at[:C_feat, :nclasses].set(
        fc_w * inv_hw)
    b2 = jnp.zeros((1, NPAD), jnp.float32).at[0, :nclasses].set(fc_b)

    params = dict(w1=w1.astype(jnp.bfloat16), b1=b1,
                  w2=w2.astype(jnp.bfloat16), b2=b2)
    static = dict(kh=kh, kw=kw, nclasses=nclasses)
    return params, static


@functools.partial(jax.jit, static_argnames=("num_views", "kh", "kw", "nclasses"))
def mvcnn_forward(x_nchw, w1, b1, w2, b2, *, num_views, kh, kw, nclasses):
    """x_nchw: (N, C_in, H, W) with N = B * num_views."""
    N, C_in, H, W = x_nchw.shape
    B = N // num_views
    V, HW = num_views, H * W
    K = kh * kw * C_in

    # ---- wrapper-side layout plumbing (no compute): NCHW->NHWC, pad, im2col ----
    # TODO(synk): accept NHWC directly / move im2col in-kernel for real backbones.
    x_nhwc = jnp.transpose(x_nchw, (0, 2, 3, 1))
    x_p = jnp.pad(x_nhwc, ((0, 0), (1, 1), (1, 1), (0, 0)))
    taps = [x_p[:, dy:dy + H, dx:dx + W, :] for dy in range(kh) for dx in range(kw)]
    # column order (tap, ci) matches conv_w.reshape(kh*kw*C_in, C_feat) row order;
    # emitted in bf16 so the streamed xcol halves its HBM bytes.
    xcol = jnp.stack(taps, axis=3).reshape(N * HW, K).astype(jnp.bfloat16)

    # ---- batch G view-groups per grid step (dense (8,128) FC / output tiles) ----
    G = min(GROUPS_PER_STEP, B)
    B_pad = ((B + G - 1) // G) * G
    if B_pad != B:
        xcol = jnp.pad(xcol, ((0, (B_pad - B) * V * HW), (0, 0)))
    n_steps = B_pad // G   # keep >= 2 so both v7x TensorCores get work

    out_p = pl.pallas_call(
        make_fused_kernel(G, V, HW),
        out_shape=jax.ShapeDtypeStruct((B_pad, NPAD), jnp.float32),
        grid=(n_steps,),
        in_specs=[
            pl.BlockSpec((G * V * HW, K), lambda g: (g, 0)),   # streamed im2col rows
            pl.BlockSpec((K, CPAD), lambda g: (0, 0)),         # resident weights
            pl.BlockSpec((1, CPAD), lambda g: (0, 0)),
            pl.BlockSpec((CPAD, NPAD), lambda g: (0, 0)),
            pl.BlockSpec((1, NPAD), lambda g: (0, 0)),
        ],
        out_specs=pl.BlockSpec((G, NPAD), lambda g: (g, 0)),
        compiler_params=pltpu.CompilerParams(
            dimension_semantics=("parallel",)),
    )(xcol, w1, b1, w2, b2)

    # trim the lane / group padding
    return out_p[:B, :nclasses]


# Pure-JAX f32 reference for the correctness check.
def mvcnn_reference(x_nchw, conv_w, conv_b, fc_w, fc_b, num_views):
    N, C_in, H, W = x_nchw.shape
    C_out = conv_w.shape[-1]
    B = N // num_views
    x_nhwc = jnp.transpose(x_nchw, (0, 2, 3, 1))
    y = jax.lax.conv_general_dilated(
        x_nhwc, conv_w, window_strides=(1, 1), padding="SAME",
        dimension_numbers=("NHWC", "HWIO", "NHWC"))
    y = jnp.maximum(y + conv_b, 0.0)
    y = jnp.mean(y, axis=(1, 2))                          # (N, C_out) GAP
    y = y.reshape(B, num_views, C_out).max(axis=1)        # view max
    return y @ fc_w + fc_b


if __name__ == "__main__":
    # B=16 view-groups of num_views=4 -> N=64 images, grid of 2 steps x 8 groups.
    B, num_views = 16, 4
    N = B * num_views
    C_in, H, W = 4, 16, 16
    C_feat = 32
    nclasses = 10

    key = jax.random.PRNGKey(0)
    kx, kw1, kb1, kw2, kb2 = jax.random.split(key, 5)

    x = jax.random.normal(kx, (N, C_in, H, W), jnp.float32)
    conv_w = jax.random.normal(kw1, (3, 3, C_in, C_feat), jnp.float32) * 0.1
    conv_b = jax.random.normal(kb1, (C_feat,), jnp.float32) * 0.05
    fc_w = jax.random.normal(kw2, (C_feat, nclasses), jnp.float32) * 0.1
    fc_b = jax.random.normal(kb2, (nclasses,), jnp.float32) * 0.05

    # one-time weight prep (padding / bf16 cast / GAP-scale fold), then forward
    params, static = prepare_mvcnn_params(conv_w, conv_b, fc_w, fc_b, H, W)
    out = mvcnn_forward(x, params["w1"], params["b1"], params["w2"], params["b2"],
                        num_views=num_views, **static)
    out = jax.block_until_ready(out)

    ref = mvcnn_reference(x, conv_w, conv_b, fc_w, fc_b, num_views)
    assert out.shape == (B, nclasses)
    # bf16 matmul operands -> relaxed tolerance
    assert jnp.max(jnp.abs(out - ref)) < 2e-2, "mismatch vs reference"

    print("KERNEL_OK")
</pallas_src>

<mosaic_0001>
module attributes {stable_mosaic.version = 11 : i64} {
  func.func @kernel(%arg0: i32, %arg1: memref<8192x36xbf16, #tpu.memory_space<vmem>>, %arg2: memref<36x128xbf16, #tpu.memory_space<vmem>>, %arg3: memref<1x128xf32, #tpu.memory_space<vmem>>, %arg4: memref<128x128xbf16, #tpu.memory_space<vmem>>, %arg5: memref<1x128xf32, #tpu.memory_space<vmem>>, %arg6: memref<8x128xf32, #tpu.memory_space<vmem>>) attributes {dimension_semantics = [#tpu.dimension_semantics<parallel>], iteration_bounds = array<i64: 2>, scalar_prefetch = 0 : i64, scratch_operands = 0 : i64, tpu.core_type = #tpu.core_type<tc>, window_params = [{transform_indices = @transform_0, window_bounds = array<i64: 8192, 36>}, {pipeline_mode = #tpu.pipeline_mode<synchronous>, transform_indices = @transform_1, window_bounds = array<i64: 36, 128>}, {pipeline_mode = #tpu.pipeline_mode<synchronous>, transform_indices = @transform_2, window_bounds = array<i64: 1, 128>}, {pipeline_mode = #tpu.pipeline_mode<synchronous>, transform_indices = @transform_3, window_bounds = array<i64: 128, 128>}, {pipeline_mode = #tpu.pipeline_mode<synchronous>, transform_indices = @transform_4, window_bounds = array<i64: 1, 128>}, {transform_indices = @transform_5, window_bounds = array<i64: 8, 128>}]} {
    %c0 = arith.constant 0 : index
    %c0_0 = arith.constant 0 : index
    %0 = vector.load %arg1[%c0, %c0_0] : memref<8192x36xbf16, #tpu.memory_space<vmem>>, vector<8192x36xbf16>
    %c0_1 = arith.constant 0 : index
    %c0_2 = arith.constant 0 : index
    %1 = vector.load %arg2[%c0_1, %c0_2] : memref<36x128xbf16, #tpu.memory_space<vmem>>, vector<36x128xbf16>
    %cst = arith.constant dense<0.000000e+00> : vector<8192x128xf32>
    %2 = tpu.matmul %0, %1, %cst {dimension_numbers = #tpu.dot_dimension_numbers<[1], [0], [0], [1], [0, 0, 1, 1], [], []>} : vector<8192x36xbf16>, vector<36x128xbf16>, vector<8192x128xf32> -> vector<8192x128xf32>
    %c0_3 = arith.constant 0 : index
    %c0_4 = arith.constant 0 : index
    %3 = vector.load %arg3[%c0_3, %c0_4] : memref<1x128xf32, #tpu.memory_space<vmem>>, vector<1x128xf32>
    %4 = vector.broadcast %3 : vector<1x128xf32> to vector<8192x128xf32>
    %5 = arith.addf %2, %4 : vector<8192x128xf32>
    %cst_5 = arith.constant 0.000000e+00 : f32
    %6 = vector.broadcast %cst_5 : f32 to vector<8192x128xf32>
    %7 = arith.maximumf %5, %6 : vector<8192x128xf32>
    %8 = vector.shape_cast %7 : vector<8192x128xf32> to vector<32x256x128xf32>
    %cst_6 = arith.constant dense<0.000000e+00> : vector<32x128xf32>
    %9 = vector.multi_reduction <add>, %8, %cst_6 [1] : vector<32x256x128xf32> to vector<32x128xf32>
    %10 = vector.shape_cast %9 : vector<32x128xf32> to vector<8x4x128xf32>
    %cst_7 = arith.constant dense<0xFF800000> : vector<8x128xf32>
    %11 = vector.multi_reduction <maximumf>, %10, %cst_7 [1] : vector<8x4x128xf32> to vector<8x128xf32>
    %12 = arith.truncf %11 : vector<8x128xf32> to vector<8x128xbf16>
    %c0_8 = arith.constant 0 : index
    %c0_9 = arith.constant 0 : index
    %13 = vector.load %arg4[%c0_8, %c0_9] : memref<128x128xbf16, #tpu.memory_space<vmem>>, vector<128x128xbf16>
    %cst_10 = arith.constant dense<0.000000e+00> : vector<8x128xf32>
    %14 = tpu.matmul %12, %13, %cst_10 {dimension_numbers = #tpu.dot_dimension_numbers<[1], [0], [0], [1], [0, 0, 1, 1], [], []>} : vector<8x128xbf16>, vector<128x128xbf16>, vector<8x128xf32> -> vector<8x128xf32>
    %c0_11 = arith.constant 0 : index
    %c0_12 = arith.constant 0 : index
    %15 = vector.load %arg5[%c0_11, %c0_12] : memref<1x128xf32, #tpu.memory_space<vmem>>, vector<1x128xf32>
    %16 = vector.broadcast %15 : vector<1x128xf32> to vector<8x128xf32>
    %17 = arith.addf %14, %16 : vector<8x128xf32>
    %c0_13 = arith.constant 0 : index
    %c0_14 = arith.constant 0 : index
    %18 = vector.load %arg6[%c0_13, %c0_14] : memref<8x128xf32, #tpu.memory_space<vmem>>, vector<8x128xf32>
    tpu.vector_store %arg6[%c0_13, %c0_14], %17 {strides = array<i32>} : memref<8x128xf32, #tpu.memory_space<vmem>>, vector<8x128xf32>,
    return
  }
  func.func @transform_0(%arg0: i32) -> (i32, i32) {
    %c0_i32 = arith.constant 0 : i32
    %c0_i32_0 = arith.constant 0 : i32
    return %arg0, %c0_i32 : i32, i32
  }
  func.func @transform_1(%arg0: i32) -> (i32, i32) {
    %c0_i32 = arith.constant 0 : i32
    %c0_i32_0 = arith.constant 0 : i32
    %c0_i32_1 = arith.constant 0 : i32
    return %c0_i32, %c0_i32_0 : i32, i32
  }
  func.func @transform_2(%arg0: i32) -> (i32, i32) {
    %c0_i32 = arith.constant 0 : i32
    %c0_i32_0 = arith.constant 0 : i32
    %c0_i32_1 = arith.constant 0 : i32
    return %c0_i32, %c0_i32_0 : i32, i32
  }
  func.func @transform_3(%arg0: i32) -> (i32, i32) {
    %c0_i32 = arith.constant 0 : i32
    %c0_i32_0 = arith.constant 0 : i32
    %c0_i32_1 = arith.constant 0 : i32
    return %c0_i32, %c0_i32_0 : i32, i32
  }
  func.func @transform_4(%arg0: i32) -> (i32, i32) {
    %c0_i32 = arith.constant 0 : i32
    %c0_i32_0 = arith.constant 0 : i32
    %c0_i32_1 = arith.constant 0 : i32
    return %c0_i32, %c0_i32_0 : i32, i32
  }
  func.func @transform_5(%arg0: i32) -> (i32, i32) {
    %c0_i32 = arith.constant 0 : i32
    %c0_i32_0 = arith.constant 0 : i32
    return %arg0, %c0_i32 : i32, i32
  }
}

</mosaic_0001>

<llo_original>
// kernel: mvcnn_forward.1
$region0: #{mvcnn_forward.1}
  #allocation0 [shape = 'u32[]', space=smem, size = 0x4, offset = 0x4, fixed_abs, tag = 'smem constant byte address 0x4 - core index']
  #allocation1 [shape = 'u32[144,128]{1,0:T(1,128)}', space=vmem, size = 0x12000, scoped, tag = 'internal scratch']
  %s0 = inlined_call_operand.vmem [shape: bf16[16384,36], index: 0, kind: input, shape index: {}]
  %s1 = inlined_call_operand.vmem [shape: bf16[36,128], index: 1, kind: input, shape index: {}]
  %s2 = inlined_call_operand.vmem [shape: f32[1,128], index: 2, kind: input, shape index: {}]
  %s3 = inlined_call_operand.vmem [shape: bf16[128,128], index: 3, kind: input, shape index: {}]
  %s4 = inlined_call_operand.vmem [shape: f32[1,128], index: 4, kind: input, shape index: {}]
  %s5 = inlined_call_operand.hbm [shape: f32[16,128], index: 5, kind: output, shape index: {}]
  %s6 = sld [smem:[#allocation0]]
  $region53: #{mvcnn_forward.1} parent=0
    _
  %s8 = ssub.s32 1, %s6
  %s9 = scalar_select 0, %s8, %s6
  $region1: #{mvcnn_forward.1} parent=0
    #allocation2 [shape = 'u8[8192]{0}', space=vmem, size = 0x2000, scoped, tag = 'output window, operand 0']
    #allocation3 [shape = 's32[2]{0}', space=sflag, size = 0x8, scoped, tag = 'scoped memory for mvcnn_forward.1']
    %10 = vsyncpa [#allocation3], 0
    %s11 = scalar_lea.sflag [#allocation3], 1
    %12 = vsyncpa %s11, 0
    loop: start=0, step=1, limit=4
    $region2: #{mvcnn_forward.1} parent=1 // loop_pre_header
      _
    $region3: #{mvcnn_forward.1} parent=1 // loop_header
      %s14 = sphi 0, %s18
      %p15 = scmp.ge.s32.totalorder %s14, 4
      %s24 = sphi 0, %s26
      %s27 = sphi 0, %s24
      %s28 = sphi 0, %s27
      %s44 = sphi 0, %s28
      %s48 = sphi 0, %s48
      %s50 = sphi 0, %s48
      %s51 = sphi 0, %s50
      %s65 = sphi 0, %s51
      %s69 = sphi 0, %s69
      %s71 = sphi 0, %s69
      %s72 = sphi 0, %s71
      %s86 = sphi 0, %s72
      %s90 = sphi 0, %s90
      %s92 = sphi 0, %s90
      %s93 = sphi 0, %s92
      %s107 = sphi 0, %s93
      %s111 = sphi 0, %s111
      %s113 = sphi 0, %s111
      %s114 = sphi 0, %s113
      %s128 = sphi 0, %s114
      %s134 = sphi 0, %s136
      %s137 = sphi 0, %s134
      %s138 = sphi 0, %s137
      %s154 = sphi 0, %s138
    $region4: #{mvcnn_forward.1} parent=1 // loop_header_branch
      %17 = sbr.rel (%p15) target = $region8
    $region5: #{mvcnn_forward.1} parent=1 // loop_body
      %s19 = ssub.s32 %s14, 1
      %s20 = ssub.s32 %s14, 2
      %s21 = sadd.s32 %s14, 1
      %s22 = ssub.s32 %s14, %s21
      %p23 = scmp.eq.s32.totalorder %s22, 0
      %s25 = sadd.s32 %s24, 1
      %s26 = scalar_select %p23, %s24, %s25
      %p29 = pneg %p23
      %p30 = scmp.eq.s32.totalorder %s14, 1
      %p31 = por %p29, %p30
      %p32 = scmp.ne.s32.totalorder %s24, %s27
      %p33 = scmp.eq.s32.totalorder %s14, 0
      %p34 = por %p32, %p33
      %p35 = scmp.ne.s32.totalorder %s24, %s27
      %p36 = scmp.eq.s32.totalorder %s19, 1
      %p37 = por %p35, %p36
      %p38 = scmp.ne.s32.totalorder %s27, %s28
      %p39 = scmp.eq.s32.totalorder %s19, 0
      %p40 = por %p38, %p39
      %p41 = scmp.ne.s32.totalorder %s27, %s28
      %p42 = scmp.eq.s32.totalorder %s20, 1
      %p43 = por %p41, %p42
      %p45 = scmp.ne.s32.totalorder %s28, %s44
      %p46 = scmp.eq.s32.totalorder %s20, 0
      %p47 = por %p45, %p46
      %s49 = sadd.s32 %s48, 1
      %p52 = scmp.eq.s32.totalorder %s14, 1
      %p53 = scmp.ne.s32.totalorder %s48, %s50
      %p54 = scmp.eq.s32.totalorder %s14, 0
      %p55 = por %p53, %p54
      %p56 = scmp.ne.s32.totalorder %s48, %s50
      %p57 = scmp.eq.s32.totalorder %s19, 1
      %p58 = por %p56, %p57
      %p59 = scmp.ne.s32.totalorder %s50, %s51
      %p60 = scmp.eq.s32.totalorder %s19, 0
      %p61 = por %p59, %p60
      %p62 = scmp.ne.s32.totalorder %s50, %s51
      %p63 = scmp.eq.s32.totalorder %s20, 1
      %p64 = por %p62, %p63
      %p66 = scmp.ne.s32.totalorder %s51, %s65
      %p67 = scmp.eq.s32.totalorder %s20, 0
      %p68 = por %p66, %p67
      %s70 = sadd.s32 %s69, 1
      %p73 = scmp.eq.s32.totalorder %s14, 1
      %p74 = scmp.ne.s32.totalorder %s69, %s71
      %p75 = scmp.eq.s32.totalorder %s14, 0
      %p76 = por %p74, %p75
      %p77 = scmp.ne.s32.totalorder %s69, %s71
      %p78 = scmp.eq.s32.totalorder %s19, 1
      %p79 = por %p77, %p78
      %p80 = scmp.ne.s32.totalorder %s71, %s72
      %p81 = scmp.eq.s32.totalorder %s19, 0
      %p82 = por %p80, %p81
      %p83 = scmp.ne.s32.totalorder %s71, %s72
      %p84 = scmp.eq.s32.totalorder %s20, 1
      %p85 = por %p83, %p84
      %p87 = scmp.ne.s32.totalorder %s72, %s86
      %p88 = scmp.eq.s32.totalorder %s20, 0
      %p89 = por %p87, %p88
      %s91 = sadd.s32 %s90, 1
      %p94 = scmp.eq.s32.totalorder %s14, 1
      %p95 = scmp.ne.s32.totalorder %s90, %s92
      %p96 = scmp.eq.s32.totalorder %s14, 0
      %p97 = por %p95, %p96
      %p98 = scmp.ne.s32.totalorder %s90, %s92
      %p99 = scmp.eq.s32.totalorder %s19, 1
      %p100 = por %p98, %p99
      %p101 = scmp.ne.s32.totalorder %s92, %s93
      %p102 = scmp.eq.s32.totalorder %s19, 0
      %p103 = por %p101, %p102
      %p104 = scmp.ne.s32.totalorder %s92, %s93
      %p105 = scmp.eq.s32.totalorder %s20, 1
      %p106 = por %p104, %p105
      %p108 = scmp.ne.s32.totalorder %s93, %s107
      %p109 = scmp.eq.s32.totalorder %s20, 0
      %p110 = por %p108, %p109
      %s112 = sadd.s32 %s111, 1
      %p115 = scmp.eq.s32.totalorder %s14, 1
      %p116 = scmp.ne.s32.totalorder %s111, %s113
      %p117 = scmp.eq.s32.totalorder %s14, 0
      %p118 = por %p116, %p117
      %p119 = scmp.ne.s32.totalorder %s111, %s113
      %p120 = scmp.eq.s32.totalorder %s19, 1
      %p121 = por %p119, %p120
      %p122 = scmp.ne.s32.totalorder %s113, %s114
      %p123 = scmp.eq.s32.totalorder %s19, 0
      %p124 = por %p122, %p123
      %p125 = scmp.ne.s32.totalorder %s113, %s114
      %p126 = scmp.eq.s32.totalorder %s20, 1
      %p127 = por %p125, %p126
      %p129 = scmp.ne.s32.totalorder %s114, %s128
      %p130 = scmp.eq.s32.totalorder %s20, 0
      %p131 = por %p129, %p130
      %s132 = ssub.s32 %s14, %s21
      %p133 = scmp.eq.s32.totalorder %s132, 0
      %s135 = sadd.s32 %s134, 1
      %s136 = scalar_select %p133, %s134, %s135
      %p139 = pneg %p133
      %p140 = scmp.eq.s32.totalorder %s14, 1
      %p141 = por %p139, %p140
      %p142 = scmp.ne.s32.totalorder %s134, %s137
      %p143 = scmp.eq.s32.totalorder %s14, 0
      %p144 = por %p142, %p143
      %p145 = scmp.ne.s32.totalorder %s134, %s137
      %p146 = scmp.eq.s32.totalorder %s19, 1
      %p147 = por %p145, %p146
      %p148 = scmp.ne.s32.totalorder %s137, %s138
      %p149 = scmp.eq.s32.totalorder %s19, 0
      %p150 = por %p148, %p149
      %p151 = scmp.ne.s32.totalorder %s137, %s138
      %p152 = scmp.eq.s32.totalorder %s20, 1
      %p153 = por %p151, %p152
      %p155 = scmp.ne.s32.totalorder %s138, %s154
      %p156 = scmp.eq.s32.totalorder %s20, 0
      %p157 = por %p155, %p156
      %p158 = scmp.le.s32.totalorder 1, %s14
      %p159 = scmp.lt.s32.totalorder %s14, 3
      %p160 = pnand %p158, %p159
      %p161 = pneg %p160
      // Predicated region
      $region9: #{mvcnn_forward.1} parent=5 // pred_check
        _
      $region10: #{mvcnn_forward.1} parent=5 // pred_check_branch
        %163 = sbr.rel (%p160) target = $region12
      $region11: #{mvcnn_forward.1} parent=5 // pred_region
        %s164 = ssub.s32 %s14, 1
        // Predicated region
        $region13: #{mvcnn_forward.1} parent=11 // pred_check
          %p165 = pneg %p61
        $region14: #{mvcnn_forward.1} parent=11 // pred_check_branch
          %167 = sbr.rel (%p165) target = $region16
        $region15: #{mvcnn_forward.1} parent=11 // pred_region
          _
        $region16: #{mvcnn_forward.1} parent=11 // pred_fallthru
          _
        // Predicated region
        $region17: #{mvcnn_forward.1} parent=11 // pred_check
          %p168 = pneg %p82
        $region18: #{mvcnn_forward.1} parent=11 // pred_check_branch
          %170 = sbr.rel (%p168) target = $region20
        $region19: #{mvcnn_forward.1} parent=11 // pred_region
          _
        $region20: #{mvcnn_forward.1} parent=11 // pred_fallthru
          _
        // Predicated region
        $region21: #{mvcnn_forward.1} parent=11 // pred_check
          %p171 = pneg %p103
        $region22: #{mvcnn_forward.1} parent=11 // pred_check_branch
          %173 = sbr.rel (%p171) target = $region24
        $region23: #{mvcnn_forward.1} parent=11 // pred_region
          _
        $region24: #{mvcnn_forward.1} parent=11 // pred_fallthru
          _
        // Predicated region
        $region25: #{mvcnn_forward.1} parent=11 // pred_check
          %p174 = pneg %p124
        $region26: #{mvcnn_forward.1} parent=11 // pred_check_branch
          %176 = sbr.rel (%p174) target = $region28
        $region27: #{mvcnn_forward.1} parent=11 // pred_region
          _
        $region28: #{mvcnn_forward.1} parent=11 // pred_fallthru
          _
      $region12: #{mvcnn_forward.1} parent=5 // pred_fallthru
        _
      %p177 = scmp.lt.s32.totalorder %s14, 2
      // Predicated region
      $region29: #{mvcnn_forward.1} parent=5 // pred_check
        %p178 = pneg %p177
      $region30: #{mvcnn_forward.1} parent=5 // pred_check_branch
        %180 = sbr.rel (%p178) target = $region32
      $region31: #{mvcnn_forward.1} parent=5 // pred_region
        // Predicated region
        $region33: #{mvcnn_forward.1} parent=31 // pred_check
          %p181 = pneg %p34
        $region34: #{mvcnn_forward.1} parent=31 // pred_check_branch
          %183 = sbr.rel (%p181) target = $region36
        $region35: #{mvcnn_forward.1} parent=31 // pred_region
          %s184 = smul.u32 1024, %s14
          %p185 = scmp.lt.s32.totalorder %s184, 2047
          %s186 = scalar_select %p185, %s184, 2047
          %s187 = smul.addr %s186, 4
          %s188 = scalar_lea.vmem %s0, %s187
          %s189 = smul.u32 1024, %s14
        $region36: #{mvcnn_forward.1} parent=31 // pred_fallthru
          _
      $region32: #{mvcnn_forward.1} parent=5 // pred_fallthru
        _
      %p190 = scmp.le.s32.totalorder 1, %s14
      %p191 = scmp.lt.s32.totalorder %s14, 3
      %p192 = pnand %p190, %p191
      %p193 = pneg %p192
      // Predicated region
      $region37: #{mvcnn_forward.1} parent=5 // pred_check
        _
      $region38: #{mvcnn_forward.1} parent=5 // pred_check_branch
        %195 = sbr.rel (%p192) target = $region40
      $region39: #{mvcnn_forward.1} parent=5 // pred_region
        %s196 = ssub.s32 %s14, 1
        %s197 = smul.u32 1024, %s19
        %p198 = scmp.lt.s32.totalorder %s197, 2047
        %s199 = scalar_select %p198, %s197, 2047
        %s200 = smul.addr %s199, 4
        %s201 = scalar_lea.vmem %s0, %s200
        %p202 = pneg %p40
        %p203 = pneg %p37
        %p204 = pneg %p61
        %p205 = pneg %p58
        %p206 = pneg %p82
        %p207 = pneg %p79
        %p208 = pneg %p103
        %p209 = pneg %p100
        %p210 = pneg %p124
        %p211 = pneg %p121
        %p212 = pneg %p150
        %p213 = pneg %p147
        %s214 = sand.u32 %s137, 1
        %s215 = scalar_lea.sflag [#allocation3], %s214
        %s216 = sand.u32 %s137, 1
        %s217 = smul.addr %s216, 8
        %s218 = scalar_lea.vmem [#allocation2], %s217
        %s219 = smul.u32 1024, %s19
        %p220 = scmp.lt.s32.totalorder %s219, 2047
        %s221 = scalar_select %p220, %s219, 2047
        %s222 = smul.addr %s221, 4
        %s223 = scalar_lea.vmem %s0, %s222
        %s224 = smul.u32 1024, %s19
        %v226 = vld [vmem:[%s223] sm:$0xf]
        %v227 = vld [vmem:[%s223 + $0x4] sm:$0xf]
        %v228 = vld [vmem:[%s223 + $0x8] sm:$0xf]
        %v229 = vld [vmem:[%s223 + $0xc] sm:$0xf]
        %v230 = vld [vmem:[%s223 + $0x10] sm:$0xf]
        %v231 = vld [vmem:[%s223 + $0x14] sm:$0xf]
        %v232 = vld [vmem:[%s223 + $0x18] sm:$0xf]
        %v233 = vld [vmem:[%s223 + $0x1c] sm:$0xf]
        %v234 = vld [vmem:[%s223 + $0x20] sm:$0xf]
        %v235 = vld [vmem:[%s223 + $0x24] sm:$0xf]
        %v236 = vld [vmem:[%s223 + $0x28] sm:$0xf]
        %v237 = vld [vmem:[%s223 + $0x2c] sm:$0xf]
        %v238 = vld [vmem:[%s223 + $0x30] sm:$0xf]
        %v239 = vld [vmem:[%s223 + $0x34] sm:$0xf]
        %v240 = vld [vmem:[%s223 + $0x38] sm:$0xf]
        %v241 = vld [vmem:[%s223 + $0x3c] sm:$0xf]
        %v242 = vld [vmem:[%s223 + $0x40] sm:$0xf]
        %v243 = vld [vmem:[%s223 + $0x44] sm:$0xf]
        %v244 = vld [vmem:[%s223 + $0x48] sm:$0xf]
        %v245 = vld [vmem:[%s223 + $0x4c] sm:$0xf]
        %v246 = vld [vmem:[%s223 + $0x50] sm:$0xf]
        %v247 = vld [vmem:[%s223 + $0x54] sm:$0xf]
        %v248 = vld [vmem:[%s223 + $0x58] sm:$0xf]
        %v249 = vld [vmem:[%s223 + $0x5c] sm:$0xf]
        %v250 = vld [vmem:[%s223 + $0x60] sm:$0xf]
        %v251 = vld [vmem:[%s223 + $0x64] sm:$0xf]
        %v252 = vld [vmem:[%s223 + $0x68] sm:$0xf]
        %v253 = vld [vmem:[%s223 + $0x6c] sm:$0xf]
        %v254 = vld [vmem:[%s223 + $0x70] sm:$0xf]
        %v255 = vld [vmem:[%s223 + $0x74] sm:$0xf]
        %v256 = vld [vmem:[%s223 + $0x78] sm:$0xf]
        %v257 = vld [vmem:[%s223 + $0x7c] sm:$0xf]
        %v258 = vld [vmem:[%s223 + $0x80] sm:$0xf]
        %v259 = vld [vmem:[%s223 + $0x84] sm:$0xf]
        %v260 = vld [vmem:[%s223 + $0x88] sm:$0xf]
        %v261 = vld [vmem:[%s223 + $0x8c] sm:$0xf]
        %v262 = vld [vmem:[%s223 + $0x90] sm:$0xf]
        %v263 = vld [vmem:[%s223 + $0x94] sm:$0xf]
        %v264 = vld [vmem:[%s223 + $0x98] sm:$0xf]
        %v265 = vld [vmem:[%s223 + $0x9c] sm:$0xf]
        %v266 = vld [vmem:[%s223 + $0xa0] sm:$0xf]
        %v267 = vld [vmem:[%s223 + $0xa4] sm:$0xf]
        %v268 = vld [vmem:[%s223 + $0xa8] sm:$0xf]
        %v269 = vld [vmem:[%s223 + $0xac] sm:$0xf]
        %v270 = vld [vmem:[%s223 + $0xb0] sm:$0xf]
        %v271 = vld [vmem:[%s223 + $0xb4] sm:$0xf]
        %v272 = vld [vmem:[%s223 + $0xb8] sm:$0xf]
        %v273 = vld [vmem:[%s223 + $0xbc] sm:$0xf]
        %v274 = vld [vmem:[%s223 + $0xc0] sm:$0xf]
        %v275 = vld [vmem:[%s223 + $0xc4] sm:$0xf]
        %v276 = vld [vmem:[%s223 + $0xc8] sm:$0xf]
        %v277 = vld [vmem:[%s223 + $0xcc] sm:$0xf]
        %v278 = vld [vmem:[%s223 + $0xd0] sm:$0xf]
        %v279 = vld [vmem:[%s223 + $0xd4] sm:$0xf]
        %v280 = vld [vmem:[%s223 + $0xd8] sm:$0xf]
        %v281 = vld [vmem:[%s223 + $0xdc] sm:$0xf]
        %v282 = vld [vmem:[%s223 + $0xe0] sm:$0xf]
        %v283 = vld [vmem:[%s223 + $0xe4] sm:$0xf]
        %v284 = vld [vmem:[%s223 + $0xe8] sm:$0xf]
        %v285 = vld [vmem:[%s223 + $0xec] sm:$0xf]
        %v286 = vld [vmem:[%s223 + $0xf0] sm:$0xf]
        %v287 = vld [vmem:[%s223 + $0xf4] sm:$0xf]
        %v288 = vld [vmem:[%s223 + $0xf8] sm:$0xf]
        %v289 = vld [vmem:[%s223 + $0xfc] sm:$0xf]
        %v290 = vld [vmem:[%s223 + $0x100] sm:$0xf]
        %v291 = vld [vmem:[%s223 + $0x104] sm:$0xf]
        %v292 = vld [vmem:[%s223 + $0x108] sm:$0xf]
        %v293 = vld [vmem:[%s223 + $0x10c] sm:$0xf]
        %v294 = vld [vmem:[%s223 + $0x110] sm:$0xf]
        %v295 = vld [vmem:[%s223 + $0x114] sm:$0xf]
        %v296 = vld [vmem:[%s223 + $0x118] sm:$0xf]
        %v297 = vld [vmem:[%s223 + $0x11c] sm:$0xf]
        %v298 = vld [vmem:[%s223 + $0x120] sm:$0xf]
        %v299 = vld [vmem:[%s223 + $0x124] sm:$0xf]
        %v300 = vld [vmem:[%s223 + $0x128] sm:$0xf]
        %v301 = vld [vmem:[%s223 + $0x12c] sm:$0xf]
        %v302 = vld [vmem:[%s223 + $0x130] sm:$0xf]
        %v303 = vld [vmem:[%s223 + $0x134] sm:$0xf]
        %v304 = vld [vmem:[%s223 + $0x138] sm:$0xf]
        %v305 = vld [vmem:[%s223 + $0x13c] sm:$0xf]
        %v306 = vld [vmem:[%s223 + $0x140] sm:$0xf]
        %v307 = vld [vmem:[%s223 + $0x144] sm:$0xf]
        %v308 = vld [vmem:[%s223 + $0x148] sm:$0xf]
        %v309 = vld [vmem:[%s223 + $0x14c] sm:$0xf]
        %v310 = vld [vmem:[%s223 + $0x150] sm:$0xf]
        %v311 = vld [vmem:[%s223 + $0x154] sm:$0xf]
        %v312 = vld [vmem:[%s223 + $0x158] sm:$0xf]
        %v313 = vld [vmem:[%s223 + $0x15c] sm:$0xf]
        %v314 = vld [vmem:[%s223 + $0x160] sm:$0xf]
        %v315 = vld [vmem:[%s223 + $0x164] sm:$0xf]
        %v316 = vld [vmem:[%s223 + $0x168] sm:$0xf]
        %v317 = vld [vmem:[%s223 + $0x16c] sm:$0xf]
        %v318 = vld [vmem:[%s223 + $0x170] sm:$0xf]
        %v319 = vld [vmem:[%s223 + $0x174] sm:$0xf]
        %v320 = vld [vmem:[%s223 + $0x178] sm:$0xf]
        %v321 = vld [vmem:[%s223 + $0x17c] sm:$0xf]
        %v322 = vld [vmem:[%s223 + $0x180] sm:$0xf]
        %v323 = vld [vmem:[%s223 + $0x184] sm:$0xf]
        %v324 = vld [vmem:[%s223 + $0x188] sm:$0xf]
        %v325 = vld [vmem:[%s223 + $0x18c] sm:$0xf]
        %v326 = vld [vmem:[%s223 + $0x190] sm:$0xf]
        %v327 = vld [vmem:[%s223 + $0x194] sm:$0xf]
        %v328 = vld [vmem:[%s223 + $0x198] sm:$0xf]
        %v329 = vld [vmem:[%s223 + $0x19c] sm:$0xf]
        %v330 = vld [vmem:[%s223 + $0x1a0] sm:$0xf]
        %v331 = vld [vmem:[%s223 + $0x1a4] sm:$0xf]
        %v332 = vld [vmem:[%s223 + $0x1a8] sm:$0xf]
        %v333 = vld [vmem:[%s223 + $0x1ac] sm:$0xf]
        %v334 = vld [vmem:[%s223 + $0x1b0] sm:$0xf]
        %v335 = vld [vmem:[%s223 + $0x1b4] sm:$0xf]
        %v336 = vld [vmem:[%s223 + $0x1b8] sm:$0xf]
        %v337 = vld [vmem:[%s223 + $0x1bc] sm:$0xf]
        %v338 = vld [vmem:[%s223 + $0x1c0] sm:$0xf]
        %v339 = vld [vmem:[%s223 + $0x1c4] sm:$0xf]
        %v340 = vld [vmem:[%s223 + $0x1c8] sm:$0xf]
        %v341 = vld [vmem:[%s223 + $0x1cc] sm:$0xf]
        %v342 = vld [vmem:[%s223 + $0x1d0] sm:$0xf]
        %v343 = vld [vmem:[%s223 + $0x1d4] sm:$0xf]
        %v344 = vld [vmem:[%s223 + $0x1d8] sm:$0xf]
        %v345 = vld [vmem:[%s223 + $0x1dc] sm:$0xf]
        %v346 = vld [vmem:[%s223 + $0x1e0] sm:$0xf]
        %v347 = vld [vmem:[%s223 + $0x1e4] sm:$0xf]
        %v348 = vld [vmem:[%s223 + $0x1e8] sm:$0xf]
        %v349 = vld [vmem:[%s223 + $0x1ec] sm:$0xf]
        %v350 = vld [vmem:[%s223 + $0x1f0] sm:$0xf]
        %v351 = vld [vmem:[%s223 + $0x1f4] sm:$0xf]
        %v352 = vld [vmem:[%s223 + $0x1f8] sm:$0xf]
        %v353 = vld [vmem:[%s223 + $0x1fc] sm:$0xf]
        %v354 = vld [vmem:[%s223 + $0x200] sm:$0xf]
        %v355 = vld [vmem:[%s223 + $0x204] sm:$0xf]
        %v356 = vld [vmem:[%s223 + $0x208] sm:$0xf]
        %v357 = vld [vmem:[%s223 + $0x20c] sm:$0xf]
        %v358 = vld [vmem:[%s223 + $0x210] sm:$0xf]
        %v359 = vld [vmem:[%s223 + $0x214] sm:$0xf]
        %v360 = vld [vmem:[%s223 + $0x218] sm:$0xf]
        %v361 = vld [vmem:[%s223 + $0x21c] sm:$0xf]
        %v362 = vld [vmem:[%s223 + $0x220] sm:$0xf]
        %v363 = vld [vmem:[%s223 + $0x224] sm:$0xf]
        %v364 = vld [vmem:[%s223 + $0x228] sm:$0xf]
        %v365 = vld [vmem:[%s223 + $0x22c] sm:$0xf]
        %v366 = vld [vmem:[%s223 + $0x230] sm:$0xf]
        %v367 = vld [vmem:[%s223 + $0x234] sm:$0xf]
        %v368 = vld [vmem:[%s223 + $0x238] sm:$0xf]
        %v369 = vld [vmem:[%s223 + $0x23c] sm:$0xf]
        %v370 = vld [vmem:[%s223 + $0x240] sm:$0xf]
        %v371 = vld [vmem:[%s223 + $0x244] sm:$0xf]
        %v372 = vld [vmem:[%s223 + $0x248] sm:$0xf]
        %v373 = vld [vmem:[%s223 + $0x24c] sm:$0xf]
        %v374 = vld [vmem:[%s223 + $0x250] sm:$0xf]
        %v375 = vld [vmem:[%s223 + $0x254] sm:$0xf]
        %v376 = vld [vmem:[%s223 + $0x258] sm:$0xf]
        %v377 = vld [vmem:[%s223 + $0x25c] sm:$0xf]
        %v378 = vld [vmem:[%s223 + $0x260] sm:$0xf]
        %v379 = vld [vmem:[%s223 + $0x264] sm:$0xf]
        %v380 = vld [vmem:[%s223 + $0x268] sm:$0xf]
        %v381 = vld [vmem:[%s223 + $0x26c] sm:$0xf]
        %v382 = vld [vmem:[%s223 + $0x270] sm:$0xf]
        %v383 = vld [vmem:[%s223 + $0x274] sm:$0xf]
        %v384 = vld [vmem:[%s223 + $0x278] sm:$0xf]
        %v385 = vld [vmem:[%s223 + $0x27c] sm:$0xf]
        %v386 = vld [vmem:[%s223 + $0x280] sm:$0xf]
        %v387 = vld [vmem:[%s223 + $0x284] sm:$0xf]
        %v388 = vld [vmem:[%s223 + $0x288] sm:$0xf]
        %v389 = vld [vmem:[%s223 + $0x28c] sm:$0xf]
        %v390 = vld [vmem:[%s223 + $0x290] sm:$0xf]
        %v391 = vld [vmem:[%s223 + $0x294] sm:$0xf]
        %v392 = vld [vmem:[%s223 + $0x298] sm:$0xf]
        %v393 = vld [vmem:[%s223 + $0x29c] sm:$0xf]
        %v394 = vld [vmem:[%s223 + $0x2a0] sm:$0xf]
        %v395 = vld [vmem:[%s223 + $0x2a4] sm:$0xf]
        %v396 = vld [vmem:[%s223 + $0x2a8] sm:$0xf]
        %v397 = vld [vmem:[%s223 + $0x2ac] sm:$0xf]
        %v398 = vld [vmem:[%s223 + $0x2b0] sm:$0xf]
        %v399 = vld [vmem:[%s223 + $0x2b4] sm:$0xf]
        %v400 = vld [vmem:[%s223 + $0x2b8] sm:$0xf]
        %v401 = vld [vmem:[%s223 + $0x2bc] sm:$0xf]
        %v402 = vld [vmem:[%s223 + $0x2c0] sm:$0xf]
        %v403 = vld [vmem:[%s223 + $0x2c4] sm:$0xf]
        %v404 = vld [vmem:[%s223 + $0x2c8] sm:$0xf]
        %v405 = vld [vmem:[%s223 + $0x2cc] sm:$0xf]
        %v406 = vld [vmem:[%s223 + $0x2d0] sm:$0xf]
        %v407 = vld [vmem:[%s223 + $0x2d4] sm:$0xf]
        %v408 = vld [vmem:[%s223 + $0x2d8] sm:$0xf]
        %v409 = vld [vmem:[%s223 + $0x2dc] sm:$0xf]
        %v410 = vld [vmem:[%s223 + $0x2e0] sm:$0xf]
        %v411 = vld [vmem:[%s223 + $0x2e4] sm:$0xf]
        %v412 = vld [vmem:[%s223 + $0x2e8] sm:$0xf]
        %v413 = vld [vmem:[%s223 + $0x2ec] sm:$0xf]
        %v414 = vld [vmem:[%s223 + $0x2f0] sm:$0xf]
        %v415 = vld [vmem:[%s223 + $0x2f4] sm:$0xf]
        %v416 = vld [vmem:[%s223 + $0x2f8] sm:$0xf]
        %v417 = vld [vmem:[%s223 + $0x2fc] sm:$0xf]
        %v418 = vld [vmem:[%s223 + $0x300] sm:$0xf]
        %v419 = vld [vmem:[%s223 + $0x304] sm:$0xf]
        %v420 = vld [vmem:[%s223 + $0x308] sm:$0xf]
        %v421 = vld [vmem:[%s223 + $0x30c] sm:$0xf]
        %v422 = vld [vmem:[%s223 + $0x310] sm:$0xf]
        %v423 = vld [vmem:[%s223 + $0x314] sm:$0xf]
        %v424 = vld [vmem:[%s223 + $0x318] sm:$0xf]
        %v425 = vld [vmem:[%s223 + $0x31c] sm:$0xf]
        %v426 = vld [vmem:[%s223 + $0x320] sm:$0xf]
        %v427 = vld [vmem:[%s223 + $0x324] sm:$0xf]
        %v428 = vld [vmem:[%s223 + $0x328] sm:$0xf]
        %v429 = vld [vmem:[%s223 + $0x32c] sm:$0xf]
        %v430 = vld [vmem:[%s223 + $0x330] sm:$0xf]
        %v431 = vld [vmem:[%s223 + $0x334] sm:$0xf]
        %v432 = vld [vmem:[%s223 + $0x338] sm:$0xf]
        %v433 = vld [vmem:[%s223 + $0x33c] sm:$0xf]
        %v434 = vld [vmem:[%s223 + $0x340] sm:$0xf]
        %v435 = vld [vmem:[%s223 + $0x344] sm:$0xf]
        %v436 = vld [vmem:[%s223 + $0x348] sm:$0xf]
        %v437 = vld [vmem:[%s223 + $0x34c] sm:$0xf]
        %v438 = vld [vmem:[%s223 + $0x350] sm:$0xf]
        %v439 = vld [vmem:[%s223 + $0x354] sm:$0xf]
        %v440 = vld [vmem:[%s223 + $0x358] sm:$0xf]
        %v441 = vld [vmem:[%s223 + $0x35c] sm:$0xf]
        %v442 = vld [vmem:[%s223 + $0x360] sm:$0xf]
        %v443 = vld [vmem:[%s223 + $0x364] sm:$0xf]
        %v444 = vld [vmem:[%s223 + $0x368] sm:$0xf]
        %v445 = vld [vmem:[%s223 + $0x36c] sm:$0xf]
        %v446 = vld [vmem:[%s223 + $0x370] sm:$0xf]
        %v447 = vld [vmem:[%s223 + $0x374] sm:$0xf]
        %v448 = vld [vmem:[%s223 + $0x378] sm:$0xf]
        %v449 = vld [vmem:[%s223 + $0x37c] sm:$0xf]
        %v450 = vld [vmem:[%s223 + $0x380] sm:$0xf]
        %v451 = vld [vmem:[%s223 + $0x384] sm:$0xf]
        %v452 = vld [vmem:[%s223 + $0x388] sm:$0xf]
        %v453 = vld [vmem:[%s223 + $0x38c] sm:$0xf]
        %v454 = vld [vmem:[%s223 + $0x390] sm:$0xf]
        %v455 = vld [vmem:[%s223 + $0x394] sm:$0xf]
        %v456 = vld [vmem:[%s223 + $0x398] sm:$0xf]
        %v457 = vld [vmem:[%s223 + $0x39c] sm:$0xf]
        %v458 = vld [vmem:[%s223 + $0x3a0] sm:$0xf]
        %v459 = vld [vmem:[%s223 + $0x3a4] sm:$0xf]
        %v460 = vld [vmem:[%s223 + $0x3a8] sm:$0xf]
        %v461 = vld [vmem:[%s223 + $0x3ac] sm:$0xf]
        %v462 = vld [vmem:[%s223 + $0x3b0] sm:$0xf]
        %v463 = vld [vmem:[%s223 + $0x3b4] sm:$0xf]
        %v464 = vld [vmem:[%s223 + $0x3b8] sm:$0xf]
        %v465 = vld [vmem:[%s223 + $0x3bc] sm:$0xf]
        %v466 = vld [vmem:[%s223 + $0x3c0] sm:$0xf]
        %v467 = vld [vmem:[%s223 + $0x3c4] sm:$0xf]
        %v468 = vld [vmem:[%s223 + $0x3c8] sm:$0xf]
        %v469 = vld [vmem:[%s223 + $0x3cc] sm:$0xf]
        %v470 = vld [vmem:[%s223 + $0x3d0] sm:$0xf]
        %v471 = vld [vmem:[%s223 + $0x3d4] sm:$0xf]
        %v472 = vld [vmem:[%s223 + $0x3d8] sm:$0xf]
        %v473 = vld [vmem:[%s223 + $0x3dc] sm:$0xf]
        %v474 = vld [vmem:[%s223 + $0x3e0] sm:$0xf]
        %v475 = vld [vmem:[%s223 + $0x3e4] sm:$0xf]
        %v476 = vld [vmem:[%s223 + $0x3e8] sm:$0xf]
        %v477 = vld [vmem:[%s223 + $0x3ec] sm:$0xf]
        %v478 = vld [vmem:[%s223 + $0x3f0] sm:$0xf]
        %v479 = vld [vmem:[%s223 + $0x3f4] sm:$0xf]
        %v480 = vld [vmem:[%s223 + $0x3f8] sm:$0xf]
        %v481 = vld [vmem:[%s223 + $0x3fc] sm:$0xf]
        %v482 = vld [vmem:[%s223 + $0x400] sm:$0xf]
        %v483 = vld [vmem:[%s223 + $0x404] sm:$0xf]
        %v484 = vld [vmem:[%s223 + $0x408] sm:$0xf]
        %v485 = vld [vmem:[%s223 + $0x40c] sm:$0xf]
        %v486 = vld [vmem:[%s223 + $0x410] sm:$0xf]
        %v487 = vld [vmem:[%s223 + $0x414] sm:$0xf]
        %v488 = vld [vmem:[%s223 + $0x418] sm:$0xf]
        %v489 = vld [vmem:[%s223 + $0x41c] sm:$0xf]
        %v490 = vld [vmem:[%s223 + $0x420] sm:$0xf]
        %v491 = vld [vmem:[%s223 + $0x424] sm:$0xf]
        %v492 = vld [vmem:[%s223 + $0x428] sm:$0xf]
        %v493 = vld [vmem:[%s223 + $0x42c] sm:$0xf]
        %v494 = vld [vmem:[%s223 + $0x430] sm:$0xf]
        %v495 = vld [vmem:[%s223 + $0x434] sm:$0xf]
        %v496 = vld [vmem:[%s223 + $0x438] sm:$0xf]
        %v497 = vld [vmem:[%s223 + $0x43c] sm:$0xf]
        %v498 = vld [vmem:[%s223 + $0x440] sm:$0xf]
        %v499 = vld [vmem:[%s223 + $0x444] sm:$0xf]
        %v500 = vld [vmem:[%s223 + $0x448] sm:$0xf]
        %v501 = vld [vmem:[%s223 + $0x44c] sm:$0xf]
        %v502 = vld [vmem:[%s223 + $0x450] sm:$0xf]
        %v503 = vld [vmem:[%s223 + $0x454] sm:$0xf]
        %v504 = vld [vmem:[%s223 + $0x458] sm:$0xf]
        %v505 = vld [vmem:[%s223 + $0x45c] sm:$0xf]
        %v506 = vld [vmem:[%s223 + $0x460] sm:$0xf]
        %v507 = vld [vmem:[%s223 + $0x464] sm:$0xf]
        %v508 = vld [vmem:[%s223 + $0x468] sm:$0xf]
        %v509 = vld [vmem:[%s223 + $0x46c] sm:$0xf]
        %v510 = vld [vmem:[%s223 + $0x470] sm:$0xf]
        %v511 = vld [vmem:[%s223 + $0x474] sm:$0xf]
        %v512 = vld [vmem:[%s223 + $0x478] sm:$0xf]
        %v513 = vld [vmem:[%s223 + $0x47c] sm:$0xf]
        %v514 = vld [vmem:[%s223 + $0x480] sm:$0xf]
        %v515 = vld [vmem:[%s223 + $0x484] sm:$0xf]
        %v516 = vld [vmem:[%s223 + $0x488] sm:$0xf]
        %v517 = vld [vmem:[%s223 + $0x48c] sm:$0xf]
        %v518 = vld [vmem:[%s223 + $0x490] sm:$0xf]
        %v519 = vld [vmem:[%s223 + $0x494] sm:$0xf]
        %v520 = vld [vmem:[%s223 + $0x498] sm:$0xf]
        %v521 = vld [vmem:[%s223 + $0x49c] sm:$0xf]
        %v522 = vld [vmem:[%s223 + $0x4a0] sm:$0xf]
        %v523 = vld [vmem:[%s223 + $0x4a4] sm:$0xf]
        %v524 = vld [vmem:[%s223 + $0x4a8] sm:$0xf]
        %v525 = vld [vmem:[%s223 + $0x4ac] sm:$0xf]
        %v526 = vld [vmem:[%s223 + $0x4b0] sm:$0xf]
        %v527 = vld [vmem:[%s223 + $0x4b4] sm:$0xf]
        %v528 = vld [vmem:[%s223 + $0x4b8] sm:$0xf]
        %v529 = vld [vmem:[%s223 + $0x4bc] sm:$0xf]
        %v530 = vld [vmem:[%s223 + $0x4c0] sm:$0xf]
        %v531 = vld [vmem:[%s223 + $0x4c4] sm:$0xf]
        %v532 = vld [vmem:[%s223 + $0x4c8] sm:$0xf]
        %v533 = vld [vmem:[%s223 + $0x4cc] sm:$0xf]
        %v534 = vld [vmem:[%s223 + $0x4d0] sm:$0xf]
        %v535 = vld [vmem:[%s223 + $0x4d4] sm:$0xf]
        %v536 = vld [vmem:[%s223 + $0x4d8] sm:$0xf]
        %v537 = vld [vmem:[%s223 + $0x4dc] sm:$0xf]
        %v538 = vld [vmem:[%s223 + $0x4e0] sm:$0xf]
        %v539 = vld [vmem:[%s223 + $0x4e4] sm:$0xf]
        %v540 = vld [vmem:[%s223 + $0x4e8] sm:$0xf]
        %v541 = vld [vmem:[%s223 + $0x4ec] sm:$0xf]
        %v542 = vld [vmem:[%s223 + $0x4f0] sm:$0xf]
        %v543 = vld [vmem:[%s223 + $0x4f4] sm:$0xf]
        %v544 = vld [vmem:[%s223 + $0x4f8] sm:$0xf]
        %v545 = vld [vmem:[%s223 + $0x4fc] sm:$0xf]
        %v546 = vld [vmem:[%s223 + $0x500] sm:$0xf]
        %v547 = vld [vmem:[%s223 + $0x504] sm:$0xf]
        %v548 = vld [vmem:[%s223 + $0x508] sm:$0xf]
        %v549 = vld [vmem:[%s223 + $0x50c] sm:$0xf]
        %v550 = vld [vmem:[%s223 + $0x510] sm:$0xf]
        %v551 = vld [vmem:[%s223 + $0x514] sm:$0xf]
        %v552 = vld [vmem:[%s223 + $0x518] sm:$0xf]
        %v553 = vld [vmem:[%s223 + $0x51c] sm:$0xf]
        %v554 = vld [vmem:[%s223 + $0x520] sm:$0xf]
        %v555 = vld [vmem:[%s223 + $0x524] sm:$0xf]
        %v556 = vld [vmem:[%s223 + $0x528] sm:$0xf]
        %v557 = vld [vmem:[%s223 + $0x52c] sm:$0xf]
        %v558 = vld [vmem:[%s223 + $0x530] sm:$0xf]
        %v559 = vld [vmem:[%s223 + $0x534] sm:$0xf]
        %v560 = vld [vmem:[%s223 + $0x538] sm:$0xf]
        %v561 = vld [vmem:[%s223 + $0x53c] sm:$0xf]
        %v562 = vld [vmem:[%s223 + $0x540] sm:$0xf]
        %v563 = vld [vmem:[%s223 + $0x544] sm:$0xf]
        %v564 = vld [vmem:[%s223 + $0x548] sm:$0xf]
        %v565 = vld [vmem:[%s223 + $0x54c] sm:$0xf]
        %v566 = vld [vmem:[%s223 + $0x550] sm:$0xf]
        %v567 = vld [vmem:[%s223 + $0x554] sm:$0xf]
        %v568 = vld [vmem:[%s223 + $0x558] sm:$0xf]
        %v569 = vld [vmem:[%s223 + $0x55c] sm:$0xf]
        %v570 = vld [vmem:[%s223 + $0x560] sm:$0xf]
        %v571 = vld [vmem:[%s223 + $0x564] sm:$0xf]
        %v572 = vld [vmem:[%s223 + $0x568] sm:$0xf]
        %v573 = vld [vmem:[%s223 + $0x56c] sm:$0xf]
        %v574 = vld [vmem:[%s223 + $0x570] sm:$0xf]
        %v575 = vld [vmem:[%s223 + $0x574] sm:$0xf]
        %v576 = vld [vmem:[%s223 + $0x578] sm:$0xf]
        %v577 = vld [vmem:[%s223 + $0x57c] sm:$0xf]
        %v578 = vld [vmem:[%s223 + $0x580] sm:$0xf]
        %v579 = vld [vmem:[%s223 + $0x584] sm:$0xf]
        %v580 = vld [vmem:[%s223 + $0x588] sm:$0xf]
        %v581 = vld [vmem:[%s223 + $0x58c] sm:$0xf]
        %v582 = vld [vmem:[%s223 + $0x590] sm:$0xf]
        %v583 = vld [vmem:[%s223 + $0x594] sm:$0xf]
        %v584 = vld [vmem:[%s223 + $0x598] sm:$0xf]
        %v585 = vld [vmem:[%s223 + $0x59c] sm:$0xf]
        %v586 = vld [vmem:[%s223 + $0x5a0] sm:$0xf]
        %v587 = vld [vmem:[%s223 + $0x5a4] sm:$0xf]
        %v588 = vld [vmem:[%s223 + $0x5a8] sm:$0xf]
        %v589 = vld [vmem:[%s223 + $0x5ac] sm:$0xf]
        %v590 = vld [vmem:[%s223 + $0x5b0] sm:$0xf]
        %v591 = vld [vmem:[%s223 + $0x5b4] sm:$0xf]
        %v592 = vld [vmem:[%s223 + $0x5b8] sm:$0xf]
        %v593 = vld [vmem:[%s223 + $0x5bc] sm:$0xf]
        %v594 = vld [vmem:[%s223 + $0x5c0] sm:$0xf]
        %v595 = vld [vmem:[%s223 + $0x5c4] sm:$0xf]
        %v596 = vld [vmem:[%s223 + $0x5c8] sm:$0xf]
        %v597 = vld [vmem:[%s223 + $0x5cc] sm:$0xf]
        %v598 = vld [vmem:[%s223 + $0x5d0] sm:$0xf]
        %v599 = vld [vmem:[%s223 + $0x5d4] sm:$0xf]
        %v600 = vld [vmem:[%s223 + $0x5d8] sm:$0xf]
        %v601 = vld [vmem:[%s223 + $0x5dc] sm:$0xf]
        %v602 = vld [vmem:[%s223 + $0x5e0] sm:$0xf]
        %v603 = vld [vmem:[%s223 + $0x5e4] sm:$0xf]
        %v604 = vld [vmem:[%s223 + $0x5e8] sm:$0xf]
        %v605 = vld [vmem:[%s223 + $0x5ec] sm:$0xf]
        %v606 = vld [vmem:[%s223 + $0x5f0] sm:$0xf]
        %v607 = vld [vmem:[%s223 + $0x5f4] sm:$0xf]
        %v608 = vld [vmem:[%s223 + $0x5f8] sm:$0xf]
        %v609 = vld [vmem:[%s223 + $0x5fc] sm:$0xf]
        %v610 = vld [vmem:[%s223 + $0x600] sm:$0xf]
        %v611 = vld [vmem:[%s223 + $0x604] sm:$0xf]
        %v612 = vld [vmem:[%s223 + $0x608] sm:$0xf]
        %v613 = vld [vmem:[%s223 + $0x60c] sm:$0xf]
        %v614 = vld [vmem:[%s223 + $0x610] sm:$0xf]
        %v615 = vld [vmem:[%s223 + $0x614] sm:$0xf]
        %v616 = vld [vmem:[%s223 + $0x618] sm:$0xf]
        %v617 = vld [vmem:[%s223 + $0x61c] sm:$0xf]
        %v618 = vld [vmem:[%s223 + $0x620] sm:$0xf]
        %v619 = vld [vmem:[%s223 + $0x624] sm:$0xf]
        %v620 = vld [vmem:[%s223 + $0x628] sm:$0xf]
        %v621 = vld [vmem:[%s223 + $0x62c] sm:$0xf]
        %v622 = vld [vmem:[%s223 + $0x630] sm:$0xf]
        %v623 = vld [vmem:[%s223 + $0x634] sm:$0xf]
        %v624 = vld [vmem:[%s223 + $0x638] sm:$0xf]
        %v625 = vld [vmem:[%s223 + $0x63c] sm:$0xf]
        %v626 = vld [vmem:[%s223 + $0x640] sm:$0xf]
        %v627 = vld [vmem:[%s223 + $0x644] sm:$0xf]
        %v628 = vld [vmem:[%s223 + $0x648] sm:$0xf]
        %v629 = vld [vmem:[%s223 + $0x64c] sm:$0xf]
        %v630 = vld [vmem:[%s223 + $0x650] sm:$0xf]
        %v631 = vld [vmem:[%s223 + $0x654] sm:$0xf]
        %v632 = vld [vmem:[%s223 + $0x658] sm:$0xf]
        %v633 = vld [vmem:[%s223 + $0x65c] sm:$0xf]
        %v634 = vld [vmem:[%s223 + $0x660] sm:$0xf]
        %v635 = vld [vmem:[%s223 + $0x664] sm:$0xf]
        %v636 = vld [vmem:[%s223 + $0x668] sm:$0xf]
        %v637 = vld [vmem:[%s223 + $0x66c] sm:$0xf]
        %v638 = vld [vmem:[%s223 + $0x670] sm:$0xf]
        %v639 = vld [vmem:[%s223 + $0x674] sm:$0xf]
        %v640 = vld [vmem:[%s223 + $0x678] sm:$0xf]
        %v641 = vld [vmem:[%s223 + $0x67c] sm:$0xf]
        %v642 = vld [vmem:[%s223 + $0x680] sm:$0xf]
        %v643 = vld [vmem:[%s223 + $0x684] sm:$0xf]
        %v644 = vld [vmem:[%s223 + $0x688] sm:$0xf]
        %v645 = vld [vmem:[%s223 + $0x68c] sm:$0xf]
        %v646 = vld [vmem:[%s223 + $0x690] sm:$0xf]
        %v647 = vld [vmem:[%s223 + $0x694] sm:$0xf]
        %v648 = vld [vmem:[%s223 + $0x698] sm:$0xf]
        %v649 = vld [vmem:[%s223 + $0x69c] sm:$0xf]
        %v650 = vld [vmem:[%s223 + $0x6a0] sm:$0xf]
        %v651 = vld [vmem:[%s223 + $0x6a4] sm:$0xf]
        %v652 = vld [vmem:[%s223 + $0x6a8] sm:$0xf]
        %v653 = vld [vmem:[%s223 + $0x6ac] sm:$0xf]
        %v654 = vld [vmem:[%s223 + $0x6b0] sm:$0xf]
        %v655 = vld [vmem:[%s223 + $0x6b4] sm:$0xf]
        %v656 = vld [vmem:[%s223 + $0x6b8] sm:$0xf]
        %v657 = vld [vmem:[%s223 + $0x6bc] sm:$0xf]
        %v658 = vld [vmem:[%s223 + $0x6c0] sm:$0xf]
        %v659 = vld [vmem:[%s223 + $0x6c4] sm:$0xf]
        %v660 = vld [vmem:[%s223 + $0x6c8] sm:$0xf]
        %v661 = vld [vmem:[%s223 + $0x6cc] sm:$0xf]
        %v662 = vld [vmem:[%s223 + $0x6d0] sm:$0xf]
        %v663 = vld [vmem:[%s223 + $0x6d4] sm:$0xf]
        %v664 = vld [vmem:[%s223 + $0x6d8] sm:$0xf]
        %v665 = vld [vmem:[%s223 + $0x6dc] sm:$0xf]
        %v666 = vld [vmem:[%s223 + $0x6e0] sm:$0xf]
        %v667 = vld [vmem:[%s223 + $0x6e4] sm:$0xf]
        %v668 = vld [vmem:[%s223 + $0x6e8] sm:$0xf]
        %v669 = vld [vmem:[%s223 + $0x6ec] sm:$0xf]
        %v670 = vld [vmem:[%s223 + $0x6f0] sm:$0xf]
        %v671 = vld [vmem:[%s223 + $0x6f4] sm:$0xf]
        %v672 = vld [vmem:[%s223 + $0x6f8] sm:$0xf]
        %v673 = vld [vmem:[%s223 + $0x6fc] sm:$0xf]
        %v674 = vld [vmem:[%s223 + $0x700] sm:$0xf]
        %v675 = vld [vmem:[%s223 + $0x704] sm:$0xf]
        %v676 = vld [vmem:[%s223 + $0x708] sm:$0xf]
        %v677 = vld [vmem:[%s223 + $0x70c] sm:$0xf]
        %v678 = vld [vmem:[%s223 + $0x710] sm:$0xf]
        %v679 = vld [vmem:[%s223 + $0x714] sm:$0xf]
        %v680 = vld [vmem:[%s223 + $0x718] sm:$0xf]
        %v681 = vld [vmem:[%s223 + $0x71c] sm:$0xf]
        %v682 = vld [vmem:[%s223 + $0x720] sm:$0xf]
        %v683 = vld [vmem:[%s223 + $0x724] sm:$0xf]
        %v684 = vld [vmem:[%s223 + $0x728] sm:$0xf]
        %v685 = vld [vmem:[%s223 + $0x72c] sm:$0xf]
        %v686 = vld [vmem:[%s223 + $0x730] sm:$0xf]
        %v687 = vld [vmem:[%s223 + $0x734] sm:$0xf]
        %v688 = vld [vmem:[%s223 + $0x738] sm:$0xf]
        %v689 = vld [vmem:[%s223 + $0x73c] sm:$0xf]
        %v690 = vld [vmem:[%s223 + $0x740] sm:$0xf]
        %v691 = vld [vmem:[%s223 + $0x744] sm:$0xf]
        %v692 = vld [vmem:[%s223 + $0x748] sm:$0xf]
        %v693 = vld [vmem:[%s223 + $0x74c] sm:$0xf]
        %v694 = vld [vmem:[%s223 + $0x750] sm:$0xf]
        %v695 = vld [vmem:[%s223 + $0x754] sm:$0xf]
        %v696 = vld [vmem:[%s223 + $0x758] sm:$0xf]
        %v697 = vld [vmem:[%s223 + $0x75c] sm:$0xf]
        %v698 = vld [vmem:[%s223 + $0x760] sm:$0xf]
        %v699 = vld [vmem:[%s223 + $0x764] sm:$0xf]
        %v700 = vld [vmem:[%s223 + $0x768] sm:$0xf]
        %v701 = vld [vmem:[%s223 + $0x76c] sm:$0xf]
        %v702 = vld [vmem:[%s223 + $0x770] sm:$0xf]
        %v703 = vld [vmem:[%s223 + $0x774] sm:$0xf]
        %v704 = vld [vmem:[%s223 + $0x778] sm:$0xf]
        %v705 = vld [vmem:[%s223 + $0x77c] sm:$0xf]
        %v706 = vld [vmem:[%s223 + $0x780] sm:$0xf]
        %v707 = vld [vmem:[%s223 + $0x784] sm:$0xf]
        %v708 = vld [vmem:[%s223 + $0x788] sm:$0xf]
        %v709 = vld [vmem:[%s223 + $0x78c] sm:$0xf]
        %v710 = vld [vmem:[%s223 + $0x790] sm:$0xf]
        %v711 = vld [vmem:[%s223 + $0x794] sm:$0xf]
        %v712 = vld [vmem:[%s223 + $0x798] sm:$0xf]
        %v713 = vld [vmem:[%s223 + $0x79c] sm:$0xf]
        %v714 = vld [vmem:[%s223 + $0x7a0] sm:$0xf]
        %v715 = vld [vmem:[%s223 + $0x7a4] sm:$0xf]
        %v716 = vld [vmem:[%s223 + $0x7a8] sm:$0xf]
        %v717 = vld [vmem:[%s223 + $0x7ac] sm:$0xf]
        %v718 = vld [vmem:[%s223 + $0x7b0] sm:$0xf]
        %v719 = vld [vmem:[%s223 + $0x7b4] sm:$0xf]
        %v720 = vld [vmem:[%s223 + $0x7b8] sm:$0xf]
        %v721 = vld [vmem:[%s223 + $0x7bc] sm:$0xf]
        %v722 = vld [vmem:[%s223 + $0x7c0] sm:$0xf]
        %v723 = vld [vmem:[%s223 + $0x7c4] sm:$0xf]
        %v724 = vld [vmem:[%s223 + $0x7c8] sm:$0xf]
        %v725 = vld [vmem:[%s223 + $0x7cc] sm:$0xf]
        %v726 = vld [vmem:[%s223 + $0x7d0] sm:$0xf]
        %v727 = vld [vmem:[%s223 + $0x7d4] sm:$0xf]
        %v728 = vld [vmem:[%s223 + $0x7d8] sm:$0xf]
        %v729 = vld [vmem:[%s223 + $0x7dc] sm:$0xf]
        %v730 = vld [vmem:[%s223 + $0x7e0] sm:$0xf]
        %v731 = vld [vmem:[%s223 + $0x7e4] sm:$0xf]
        %v732 = vld [vmem:[%s223 + $0x7e8] sm:$0xf]
        %v733 = vld [vmem:[%s223 + $0x7ec] sm:$0xf]
        %v734 = vld [vmem:[%s223 + $0x7f0] sm:$0xf]
        %v735 = vld [vmem:[%s223 + $0x7f4] sm:$0xf]
        %v736 = vld [vmem:[%s223 + $0x7f8] sm:$0xf]
        %v737 = vld [vmem:[%s223 + $0x7fc] sm:$0xf]
        %v738 = vld [vmem:[%s223 + $0x800] sm:$0xf]
        %v739 = vld [vmem:[%s223 + $0x804] sm:$0xf]
        %v740 = vld [vmem:[%s223 + $0x808] sm:$0xf]
        %v741 = vld [vmem:[%s223 + $0x80c] sm:$0xf]
        %v742 = vld [vmem:[%s223 + $0x810] sm:$0xf]
        %v743 = vld [vmem:[%s223 + $0x814] sm:$0xf]
        %v744 = vld [vmem:[%s223 + $0x818] sm:$0xf]
        %v745 = vld [vmem:[%s223 + $0x81c] sm:$0xf]
        %v746 = vld [vmem:[%s223 + $0x820] sm:$0xf]
        %v747 = vld [vmem:[%s223 + $0x824] sm:$0xf]
        %v748 = vld [vmem:[%s223 + $0x828] sm:$0xf]
        %v749 = vld [vmem:[%s223 + $0x82c] sm:$0xf]
        %v750 = vld [vmem:[%s223 + $0x830] sm:$0xf]
        %v751 = vld [vmem:[%s223 + $0x834] sm:$0xf]
        %v752 = vld [vmem:[%s223 + $0x838] sm:$0xf]
        %v753 = vld [vmem:[%s223 + $0x83c] sm:$0xf]
        %v754 = vld [vmem:[%s223 + $0x840] sm:$0xf]
        %v755 = vld [vmem:[%s223 + $0x844] sm:$0xf]
        %v756 = vld [vmem:[%s223 + $0x848] sm:$0xf]
        %v757 = vld [vmem:[%s223 + $0x84c] sm:$0xf]
        %v758 = vld [vmem:[%s223 + $0x850] sm:$0xf]
        %v759 = vld [vmem:[%s223 + $0x854] sm:$0xf]
        %v760 = vld [vmem:[%s223 + $0x858] sm:$0xf]
        %v761 = vld [vmem:[%s223 + $0x85c] sm:$0xf]
        %v762 = vld [vmem:[%s223 + $0x860] sm:$0xf]
        %v763 = vld [vmem:[%s223 + $0x864] sm:$0xf]
        %v764 = vld [vmem:[%s223 + $0x868] sm:$0xf]
        %v765 = vld [vmem:[%s223 + $0x86c] sm:$0xf]
        %v766 = vld [vmem:[%s223 + $0x870] sm:$0xf]
        %v767 = vld [vmem:[%s223 + $0x874] sm:$0xf]
        %v768 = vld [vmem:[%s223 + $0x878] sm:$0xf]
        %v769 = vld [vmem:[%s223 + $0x87c] sm:$0xf]
        %v770 = vld [vmem:[%s223 + $0x880] sm:$0xf]
        %v771 = vld [vmem:[%s223 + $0x884] sm:$0xf]
        %v772 = vld [vmem:[%s223 + $0x888] sm:$0xf]
        %v773 = vld [vmem:[%s223 + $0x88c] sm:$0xf]
        %v774 = vld [vmem:[%s223 + $0x890] sm:$0xf]
        %v775 = vld [vmem:[%s223 + $0x894] sm:$0xf]
        %v776 = vld [vmem:[%s223 + $0x898] sm:$0xf]
        %v777 = vld [vmem:[%s223 + $0x89c] sm:$0xf]
        %v778 = vld [vmem:[%s223 + $0x8a0] sm:$0xf]
        %v779 = vld [vmem:[%s223 + $0x8a4] sm:$0xf]
        %v780 = vld [vmem:[%s223 + $0x8a8] sm:$0xf]
        %v781 = vld [vmem:[%s223 + $0x8ac] sm:$0xf]
        %v782 = vld [vmem:[%s223 + $0x8b0] sm:$0xf]
        %v783 = vld [vmem:[%s223 + $0x8b4] sm:$0xf]
        %v784 = vld [vmem:[%s223 + $0x8b8] sm:$0xf]
        %v785 = vld [vmem:[%s223 + $0x8bc] sm:$0xf]
        %v786 = vld [vmem:[%s223 + $0x8c0] sm:$0xf]
        %v787 = vld [vmem:[%s223 + $0x8c4] sm:$0xf]
        %v788 = vld [vmem:[%s223 + $0x8c8] sm:$0xf]
        %v789 = vld [vmem:[%s223 + $0x8cc] sm:$0xf]
        %v790 = vld [vmem:[%s223 + $0x8d0] sm:$0xf]
        %v791 = vld [vmem:[%s223 + $0x8d4] sm:$0xf]
        %v792 = vld [vmem:[%s223 + $0x8d8] sm:$0xf]
        %v793 = vld [vmem:[%s223 + $0x8dc] sm:$0xf]
        %v794 = vld [vmem:[%s223 + $0x8e0] sm:$0xf]
        %v795 = vld [vmem:[%s223 + $0x8e4] sm:$0xf]
        %v796 = vld [vmem:[%s223 + $0x8e8] sm:$0xf]
        %v797 = vld [vmem:[%s223 + $0x8ec] sm:$0xf]
        %v798 = vld [vmem:[%s223 + $0x8f0] sm:$0xf]
        %v799 = vld [vmem:[%s223 + $0x8f4] sm:$0xf]
        %v800 = vld [vmem:[%s223 + $0x8f8] sm:$0xf]
        %v801 = vld [vmem:[%s223 + $0x8fc] sm:$0xf]
        %v802 = vld [vmem:[%s223 + $0x900] sm:$0xf]
        %v803 = vld [vmem:[%s223 + $0x904] sm:$0xf]
        %v804 = vld [vmem:[%s223 + $0x908] sm:$0xf]
        %v805 = vld [vmem:[%s223 + $0x90c] sm:$0xf]
        %v806 = vld [vmem:[%s223 + $0x910] sm:$0xf]
        %v807 = vld [vmem:[%s223 + $0x914] sm:$0xf]
        %v808 = vld [vmem:[%s223 + $0x918] sm:$0xf]
        %v809 = vld [vmem:[%s223 + $0x91c] sm:$0xf]
        %v810 = vld [vmem:[%s223 + $0x920] sm:$0xf]
        %v811 = vld [vmem:[%s223 + $0x924] sm:$0xf]
        %v812 = vld [vmem:[%s223 + $0x928] sm:$0xf]
        %v813 = vld [vmem:[%s223 + $0x92c] sm:$0xf]
        %v814 = vld [vmem:[%s223 + $0x930] sm:$0xf]
        %v815 = vld [vmem:[%s223 + $0x934] sm:$0xf]
        %v816 = vld [vmem:[%s223 + $0x938] sm:$0xf]
        %v817 = vld [vmem:[%s223 + $0x93c] sm:$0xf]
        %v818 = vld [vmem:[%s223 + $0x940] sm:$0xf]
        %v819 = vld [vmem:[%s223 + $0x944] sm:$0xf]
        %v820 = vld [vmem:[%s223 + $0x948] sm:$0xf]
        %v821 = vld [vmem:[%s223 + $0x94c] sm:$0xf]
        %v822 = vld [vmem:[%s223 + $0x950] sm:$0xf]
        %v823 = vld [vmem:[%s223 + $0x954] sm:$0xf]
        %v824 = vld [vmem:[%s223 + $0x958] sm:$0xf]
        %v825 = vld [vmem:[%s223 + $0x95c] sm:$0xf]
        %v826 = vld [vmem:[%s223 + $0x960] sm:$0xf]
        %v827 = vld [vmem:[%s223 + $0x964] sm:$0xf]
        %v828 = vld [vmem:[%s223 + $0x968] sm:$0xf]
        %v829 = vld [vmem:[%s223 + $0x96c] sm:$0xf]
        %v830 = vld [vmem:[%s223 + $0x970] sm:$0xf]
        %v831 = vld [vmem:[%s223 + $0x974] sm:$0xf]
        %v832 = vld [vmem:[%s223 + $0x978] sm:$0xf]
        %v833 = vld [vmem:[%s223 + $0x97c] sm:$0xf]
        %v834 = vld [vmem:[%s223 + $0x980] sm:$0xf]
        %v835 = vld [vmem:[%s223 + $0x984] sm:$0xf]
        %v836 = vld [vmem:[%s223 + $0x988] sm:$0xf]
        %v837 = vld [vmem:[%s223 + $0x98c] sm:$0xf]
        %v838 = vld [vmem:[%s223 + $0x990] sm:$0xf]
        %v839 = vld [vmem:[%s223 + $0x994] sm:$0xf]
        %v840 = vld [vmem:[%s223 + $0x998] sm:$0xf]
        %v841 = vld [vmem:[%s223 + $0x99c] sm:$0xf]
        %v842 = vld [vmem:[%s223 + $0x9a0] sm:$0xf]
        %v843 = vld [vmem:[%s223 + $0x9a4] sm:$0xf]
        %v844 = vld [vmem:[%s223 + $0x9a8] sm:$0xf]
        %v845 = vld [vmem:[%s223 + $0x9ac] sm:$0xf]
        %v846 = vld [vmem:[%s223 + $0x9b0] sm:$0xf]
        %v847 = vld [vmem:[%s223 + $0x9b4] sm:$0xf]
        %v848 = vld [vmem:[%s223 + $0x9b8] sm:$0xf]
        %v849 = vld [vmem:[%s223 + $0x9bc] sm:$0xf]
        %v850 = vld [vmem:[%s223 + $0x9c0] sm:$0xf]
        %v851 = vld [vmem:[%s223 + $0x9c4] sm:$0xf]
        %v852 = vld [vmem:[%s223 + $0x9c8] sm:$0xf]
        %v853 = vld [vmem:[%s223 + $0x9cc] sm:$0xf]
        %v854 = vld [vmem:[%s223 + $0x9d0] sm:$0xf]
        %v855 = vld [vmem:[%s223 + $0x9d4] sm:$0xf]
        %v856 = vld [vmem:[%s223 + $0x9d8] sm:$0xf]
        %v857 = vld [vmem:[%s223 + $0x9dc] sm:$0xf]
        %v858 = vld [vmem:[%s223 + $0x9e0] sm:$0xf]
        %v859 = vld [vmem:[%s223 + $0x9e4] sm:$0xf]
        %v860 = vld [vmem:[%s223 + $0x9e8] sm:$0xf]
        %v861 = vld [vmem:[%s223 + $0x9ec] sm:$0xf]
        %v862 = vld [vmem:[%s223 + $0x9f0] sm:$0xf]
        %v863 = vld [vmem:[%s223 + $0x9f4] sm:$0xf]
        %v864 = vld [vmem:[%s223 + $0x9f8] sm:$0xf]
        %v865 = vld [vmem:[%s223 + $0x9fc] sm:$0xf]
        %v866 = vld [vmem:[%s223 + $0xa00] sm:$0xf]
        %v867 = vld [vmem:[%s223 + $0xa04] sm:$0xf]
        %v868 = vld [vmem:[%s223 + $0xa08] sm:$0xf]
        %v869 = vld [vmem:[%s223 + $0xa0c] sm:$0xf]
        %v870 = vld [vmem:[%s223 + $0xa10] sm:$0xf]
        %v871 = vld [vmem:[%s223 + $0xa14] sm:$0xf]
        %v872 = vld [vmem:[%s223 + $0xa18] sm:$0xf]
        %v873 = vld [vmem:[%s223 + $0xa1c] sm:$0xf]
        %v874 = vld [vmem:[%s223 + $0xa20] sm:$0xf]
        %v875 = vld [vmem:[%s223 + $0xa24] sm:$0xf]
        %v876 = vld [vmem:[%s223 + $0xa28] sm:$0xf]
        %v877 = vld [vmem:[%s223 + $0xa2c] sm:$0xf]
        %v878 = vld [vmem:[%s223 + $0xa30] sm:$0xf]
        %v879 = vld [vmem:[%s223 + $0xa34] sm:$0xf]
        %v880 = vld [vmem:[%s223 + $0xa38] sm:$0xf]
        %v881 = vld [vmem:[%s223 + $0xa3c] sm:$0xf]
        %v882 = vld [vmem:[%s223 + $0xa40] sm:$0xf]
        %v883 = vld [vmem:[%s223 + $0xa44] sm:$0xf]
        %v884 = vld [vmem:[%s223 + $0xa48] sm:$0xf]
        %v885 = vld [vmem:[%s223 + $0xa4c] sm:$0xf]
        %v886 = vld [vmem:[%s223 + $0xa50] sm:$0xf]
        %v887 = vld [vmem:[%s223 + $0xa54] sm:$0xf]
        %v888 = vld [vmem:[%s223 + $0xa58] sm:$0xf]
        %v889 = vld [vmem:[%s223 + $0xa5c] sm:$0xf]
        %v890 = vld [vmem:[%s223 + $0xa60] sm:$0xf]
        %v891 = vld [vmem:[%s223 + $0xa64] sm:$0xf]
        %v892 = vld [vmem:[%s223 + $0xa68] sm:$0xf]
        %v893 = vld [vmem:[%s223 + $0xa6c] sm:$0xf]
        %v894 = vld [vmem:[%s223 + $0xa70] sm:$0xf]
        %v895 = vld [vmem:[%s223 + $0xa74] sm:$0xf]
        %v896 = vld [vmem:[%s223 + $0xa78] sm:$0xf]
        %v897 = vld [vmem:[%s223 + $0xa7c] sm:$0xf]
        %v898 = vld [vmem:[%s223 + $0xa80] sm:$0xf]
        %v899 = vld [vmem:[%s223 + $0xa84] sm:$0xf]
        %v900 = vld [vmem:[%s223 + $0xa88] sm:$0xf]
        %v901 = vld [vmem:[%s223 + $0xa8c] sm:$0xf]
        %v902 = vld [vmem:[%s223 + $0xa90] sm:$0xf]
        %v903 = vld [vmem:[%s223 + $0xa94] sm:$0xf]
        %v904 = vld [vmem:[%s223 + $0xa98] sm:$0xf]
        %v905 = vld [vmem:[%s223 + $0xa9c] sm:$0xf]
        %v906 = vld [vmem:[%s223 + $0xaa0] sm:$0xf]
        %v907 = vld [vmem:[%s223 + $0xaa4] sm:$0xf]
        %v908 = vld [vmem:[%s223 + $0xaa8] sm:$0xf]
        %v909 = vld [vmem:[%s223 + $0xaac] sm:$0xf]
        %v910 = vld [vmem:[%s223 + $0xab0] sm:$0xf]
        %v911 = vld [vmem:[%s223 + $0xab4] sm:$0xf]
        %v912 = vld [vmem:[%s223 + $0xab8] sm:$0xf]
        %v913 = vld [vmem:[%s223 + $0xabc] sm:$0xf]
        %v914 = vld [vmem:[%s223 + $0xac0] sm:$0xf]
        %v915 = vld [vmem:[%s223 + $0xac4] sm:$0xf]
        %v916 = vld [vmem:[%s223 + $0xac8] sm:$0xf]
        %v917 = vld [vmem:[%s223 + $0xacc] sm:$0xf]
        %v918 = vld [vmem:[%s223 + $0xad0] sm:$0xf]
        %v919 = vld [vmem:[%s223 + $0xad4] sm:$0xf]
        %v920 = vld [vmem:[%s223 + $0xad8] sm:$0xf]
        %v921 = vld [vmem:[%s223 + $0xadc] sm:$0xf]
        %v922 = vld [vmem:[%s223 + $0xae0] sm:$0xf]
        %v923 = vld [vmem:[%s223 + $0xae4] sm:$0xf]
        %v924 = vld [vmem:[%s223 + $0xae8] sm:$0xf]
        %v925 = vld [vmem:[%s223 + $0xaec] sm:$0xf]
        %v926 = vld [vmem:[%s223 + $0xaf0] sm:$0xf]
        %v927 = vld [vmem:[%s223 + $0xaf4] sm:$0xf]
        %v928 = vld [vmem:[%s223 + $0xaf8] sm:$0xf]
        %v929 = vld [vmem:[%s223 + $0xafc] sm:$0xf]
        %v930 = vld [vmem:[%s223 + $0xb00] sm:$0xf]
        %v931 = vld [vmem:[%s223 + $0xb04] sm:$0xf]
        %v932 = vld [vmem:[%s223 + $0xb08] sm:$0xf]
        %v933 = vld [vmem:[%s223 + $0xb0c] sm:$0xf]
        %v934 = vld [vmem:[%s223 + $0xb10] sm:$0xf]
        %v935 = vld [vmem:[%s223 + $0xb14] sm:$0xf]
        %v936 = vld [vmem:[%s223 + $0xb18] sm:$0xf]
        %v937 = vld [vmem:[%s223 + $0xb1c] sm:$0xf]
        %v938 = vld [vmem:[%s223 + $0xb20] sm:$0xf]
        %v939 = vld [vmem:[%s223 + $0xb24] sm:$0xf]
        %v940 = vld [vmem:[%s223 + $0xb28] sm:$0xf]
        %v941 = vld [vmem:[%s223 + $0xb2c] sm:$0xf]
        %v942 = vld [vmem:[%s223 + $0xb30] sm:$0xf]
        %v943 = vld [vmem:[%s223 + $0xb34] sm:$0xf]
        %v944 = vld [vmem:[%s223 + $0xb38] sm:$0xf]
        %v945 = vld [vmem:[%s223 + $0xb3c] sm:$0xf]
        %v946 = vld [vmem:[%s223 + $0xb40] sm:$0xf]
        %v947 = vld [vmem:[%s223 + $0xb44] sm:$0xf]
        %v948 = vld [vmem:[%s223 + $0xb48] sm:$0xf]
        %v949 = vld [vmem:[%s223 + $0xb4c] sm:$0xf]
        %v950 = vld [vmem:[%s223 + $0xb50] sm:$0xf]
        %v951 = vld [vmem:[%s223 + $0xb54] sm:$0xf]
        %v952 = vld [vmem:[%s223 + $0xb58] sm:$0xf]
        %v953 = vld [vmem:[%s223 + $0xb5c] sm:$0xf]
        %v954 = vld [vmem:[%s223 + $0xb60] sm:$0xf]
        %v955 = vld [vmem:[%s223 + $0xb64] sm:$0xf]
        %v956 = vld [vmem:[%s223 + $0xb68] sm:$0xf]
        %v957 = vld [vmem:[%s223 + $0xb6c] sm:$0xf]
        %v958 = vld [vmem:[%s223 + $0xb70] sm:$0xf]
        %v959 = vld [vmem:[%s223 + $0xb74] sm:$0xf]
        %v960 = vld [vmem:[%s223 + $0xb78] sm:$0xf]
        %v961 = vld [vmem:[%s223 + $0xb7c] sm:$0xf]
        %v962 = vld [vmem:[%s223 + $0xb80] sm:$0xf]
        %v963 = vld [vmem:[%s223 + $0xb84] sm:$0xf]
        %v964 = vld [vmem:[%s223 + $0xb88] sm:$0xf]
        %v965 = vld [vmem:[%s223 + $0xb8c] sm:$0xf]
        %v966 = vld [vmem:[%s223 + $0xb90] sm:$0xf]
        %v967 = vld [vmem:[%s223 + $0xb94] sm:$0xf]
        %v968 = vld [vmem:[%s223 + $0xb98] sm:$0xf]
        %v969 = vld [vmem:[%s223 + $0xb9c] sm:$0xf]
        %v970 = vld [vmem:[%s223 + $0xba0] sm:$0xf]
        %v971 = vld [vmem:[%s223 + $0xba4] sm:$0xf]
        %v972 = vld [vmem:[%s223 + $0xba8] sm:$0xf]
        %v973 = vld [vmem:[%s223 + $0xbac] sm:$0xf]
        %v974 = vld [vmem:[%s223 + $0xbb0] sm:$0xf]
        %v975 = vld [vmem:[%s223 + $0xbb4] sm:$0xf]
        %v976 = vld [vmem:[%s223 + $0xbb8] sm:$0xf]
        %v977 = vld [vmem:[%s223 + $0xbbc] sm:$0xf]
        %v978 = vld [vmem:[%s223 + $0xbc0] sm:$0xf]
        %v979 = vld [vmem:[%s223 + $0xbc4] sm:$0xf]
        %v980 = vld [vmem:[%s223 + $0xbc8] sm:$0xf]
        %v981 = vld [vmem:[%s223 + $0xbcc] sm:$0xf]
        %v982 = vld [vmem:[%s223 + $0xbd0] sm:$0xf]
        %v983 = vld [vmem:[%s223 + $0xbd4] sm:$0xf]
        %v984 = vld [vmem:[%s223 + $0xbd8] sm:$0xf]
        %v985 = vld [vmem:[%s223 + $0xbdc] sm:$0xf]
        %v986 = vld [vmem:[%s223 + $0xbe0] sm:$0xf]
        %v987 = vld [vmem:[%s223 + $0xbe4] sm:$0xf]
        %v988 = vld [vmem:[%s223 + $0xbe8] sm:$0xf]
        %v989 = vld [vmem:[%s223 + $0xbec] sm:$0xf]
        %v990 = vld [vmem:[%s223 + $0xbf0] sm:$0xf]
        %v991 = vld [vmem:[%s223 + $0xbf4] sm:$0xf]
        %v992 = vld [vmem:[%s223 + $0xbf8] sm:$0xf]
        %v993 = vld [vmem:[%s223 + $0xbfc] sm:$0xf]
        %v994 = vld [vmem:[%s223 + $0xc00] sm:$0xf]
        %v995 = vld [vmem:[%s223 + $0xc04] sm:$0xf]
        %v996 = vld [vmem:[%s223 + $0xc08] sm:$0xf]
        %v997 = vld [vmem:[%s223 + $0xc0c] sm:$0xf]
        %v998 = vld [vmem:[%s223 + $0xc10] sm:$0xf]
        %v999 = vld [vmem:[%s223 + $0xc14] sm:$0xf]
        %v1000 = vld [vmem:[%s223 + $0xc18] sm:$0xf]
        %v1001 = vld [vmem:[%s223 + $0xc1c] sm:$0xf]
        %v1002 = vld [vmem:[%s223 + $0xc20] sm:$0xf]
        %v1003 = vld [vmem:[%s223 + $0xc24] sm:$0xf]
        %v1004 = vld [vmem:[%s223 + $0xc28] sm:$0xf]
        %v1005 = vld [vmem:[%s223 + $0xc2c] sm:$0xf]
        %v1006 = vld [vmem:[%s223 + $0xc30] sm:$0xf]
        %v1007 = vld [vmem:[%s223 + $0xc34] sm:$0xf]
        %v1008 = vld [vmem:[%s223 + $0xc38] sm:$0xf]
        %v1009 = vld [vmem:[%s223 + $0xc3c] sm:$0xf]
        %v1010 = vld [vmem:[%s223 + $0xc40] sm:$0xf]
        %v1011 = vld [vmem:[%s223 + $0xc44] sm:$0xf]
        %v1012 = vld [vmem:[%s223 + $0xc48] sm:$0xf]
        %v1013 = vld [vmem:[%s223 + $0xc4c] sm:$0xf]
        %v1014 = vld [vmem:[%s223 + $0xc50] sm:$0xf]
        %v1015 = vld [vmem:[%s223 + $0xc54] sm:$0xf]
        %v1016 = vld [vmem:[%s223 + $0xc58] sm:$0xf]
        %v1017 = vld [vmem:[%s223 + $0xc5c] sm:$0xf]
        %v1018 = vld [vmem:[%s223 + $0xc60] sm:$0xf]
        %v1019 = vld [vmem:[%s223 + $0xc64] sm:$0xf]
        %v1020 = vld [vmem:[%s223 + $0xc68] sm:$0xf]
        %v1021 = vld [vmem:[%s223 + $0xc6c] sm:$0xf]
        %v1022 = vld [vmem:[%s223 + $0xc70] sm:$0xf]
        %v1023 = vld [vmem:[%s223 + $0xc74] sm:$0xf]
        %v1024 = vld [vmem:[%s223 + $0xc78] sm:$0xf]
        %v1025 = vld [vmem:[%s223 + $0xc7c] sm:$0xf]
        %v1026 = vld [vmem:[%s223 + $0xc80] sm:$0xf]
        %v1027 = vld [vmem:[%s223 + $0xc84] sm:$0xf]
        %v1028 = vld [vmem:[%s223 + $0xc88] sm:$0xf]
        %v1029 = vld [vmem:[%s223 + $0xc8c] sm:$0xf]
        %v1030 = vld [vmem:[%s223 + $0xc90] sm:$0xf]
        %v1031 = vld [vmem:[%s223 + $0xc94] sm:$0xf]
        %v1032 = vld [vmem:[%s223 + $0xc98] sm:$0xf]
        %v1033 = vld [vmem:[%s223 + $0xc9c] sm:$0xf]
        %v1034 = vld [vmem:[%s223 + $0xca0] sm:$0xf]
        %v1035 = vld [vmem:[%s223 + $0xca4] sm:$0xf]
        %v1036 = vld [vmem:[%s223 + $0xca8] sm:$0xf]
        %v1037 = vld [vmem:[%s223 + $0xcac] sm:$0xf]
        %v1038 = vld [vmem:[%s223 + $0xcb0] sm:$0xf]
        %v1039 = vld [vmem:[%s223 + $0xcb4] sm:$0xf]
        %v1040 = vld [vmem:[%s223 + $0xcb8] sm:$0xf]
        %v1041 = vld [vmem:[%s223 + $0xcbc] sm:$0xf]
        %v1042 = vld [vmem:[%s223 + $0xcc0] sm:$0xf]
        %v1043 = vld [vmem:[%s223 + $0xcc4] sm:$0xf]
        %v1044 = vld [vmem:[%s223 + $0xcc8] sm:$0xf]
        %v1045 = vld [vmem:[%s223 + $0xccc] sm:$0xf]
        %v1046 = vld [vmem:[%s223 + $0xcd0] sm:$0xf]
        %v1047 = vld [vmem:[%s223 + $0xcd4] sm:$0xf]
        %v1048 = vld [vmem:[%s223 + $0xcd8] sm:$0xf]
        %v1049 = vld [vmem:[%s223 + $0xcdc] sm:$0xf]
        %v1050 = vld [vmem:[%s223 + $0xce0] sm:$0xf]
        %v1051 = vld [vmem:[%s223 + $0xce4] sm:$0xf]
        %v1052 = vld [vmem:[%s223 + $0xce8] sm:$0xf]
        %v1053 = vld [vmem:[%s223 + $0xcec] sm:$0xf]
        %v1054 = vld [vmem:[%s223 + $0xcf0] sm:$0xf]
        %v1055 = vld [vmem:[%s223 + $0xcf4] sm:$0xf]
        %v1056 = vld [vmem:[%s223 + $0xcf8] sm:$0xf]
        %v1057 = vld [vmem:[%s223 + $0xcfc] sm:$0xf]
        %v1058 = vld [vmem:[%s223 + $0xd00] sm:$0xf]
        %v1059 = vld [vmem:[%s223 + $0xd04] sm:$0xf]
        %v1060 = vld [vmem:[%s223 + $0xd08] sm:$0xf]
        %v1061 = vld [vmem:[%s223 + $0xd0c] sm:$0xf]
        %v1062 = vld [vmem:[%s223 + $0xd10] sm:$0xf]
        %v1063 = vld [vmem:[%s223 + $0xd14] sm:$0xf]
        %v1064 = vld [vmem:[%s223 + $0xd18] sm:$0xf]
        %v1065 = vld [vmem:[%s223 + $0xd1c] sm:$0xf]
        %v1066 = vld [vmem:[%s223 + $0xd20] sm:$0xf]
        %v1067 = vld [vmem:[%s223 + $0xd24] sm:$0xf]
        %v1068 = vld [vmem:[%s223 + $0xd28] sm:$0xf]
        %v1069 = vld [vmem:[%s223 + $0xd2c] sm:$0xf]
        %v1070 = vld [vmem:[%s223 + $0xd30] sm:$0xf]
        %v1071 = vld [vmem:[%s223 + $0xd34] sm:$0xf]
        %v1072 = vld [vmem:[%s223 + $0xd38] sm:$0xf]
        %v1073 = vld [vmem:[%s223 + $0xd3c] sm:$0xf]
        %v1074 = vld [vmem:[%s223 + $0xd40] sm:$0xf]
        %v1075 = vld [vmem:[%s223 + $0xd44] sm:$0xf]
        %v1076 = vld [vmem:[%s223 + $0xd48] sm:$0xf]
        %v1077 = vld [vmem:[%s223 + $0xd4c] sm:$0xf]
        %v1078 = vld [vmem:[%s223 + $0xd50] sm:$0xf]
        %v1079 = vld [vmem:[%s223 + $0xd54] sm:$0xf]
        %v1080 = vld [vmem:[%s223 + $0xd58] sm:$0xf]
        %v1081 = vld [vmem:[%s223 + $0xd5c] sm:$0xf]
        %v1082 = vld [vmem:[%s223 + $0xd60] sm:$0xf]
        %v1083 = vld [vmem:[%s223 + $0xd64] sm:$0xf]
        %v1084 = vld [vmem:[%s223 + $0xd68] sm:$0xf]
        %v1085 = vld [vmem:[%s223 + $0xd6c] sm:$0xf]
        %v1086 = vld [vmem:[%s223 + $0xd70] sm:$0xf]
        %v1087 = vld [vmem:[%s223 + $0xd74] sm:$0xf]
        %v1088 = vld [vmem:[%s223 + $0xd78] sm:$0xf]
        %v1089 = vld [vmem:[%s223 + $0xd7c] sm:$0xf]
        %v1090 = vld [vmem:[%s223 + $0xd80] sm:$0xf]
        %v1091 = vld [vmem:[%s223 + $0xd84] sm:$0xf]
        %v1092 = vld [vmem:[%s223 + $0xd88] sm:$0xf]
        %v1093 = vld [vmem:[%s223 + $0xd8c] sm:$0xf]
        %v1094 = vld [vmem:[%s223 + $0xd90] sm:$0xf]
        %v1095 = vld [vmem:[%s223 + $0xd94] sm:$0xf]
        %v1096 = vld [vmem:[%s223 + $0xd98] sm:$0xf]
        %v1097 = vld [vmem:[%s223 + $0xd9c] sm:$0xf]
        %v1098 = vld [vmem:[%s223 + $0xda0] sm:$0xf]
        %v1099 = vld [vmem:[%s223 + $0xda4] sm:$0xf]
        %v1100 = vld [vmem:[%s223 + $0xda8] sm:$0xf]
        %v1101 = vld [vmem:[%s223 + $0xdac] sm:$0xf]
        %v1102 = vld [vmem:[%s223 + $0xdb0] sm:$0xf]
        %v1103 = vld [vmem:[%s223 + $0xdb4] sm:$0xf]
        %v1104 = vld [vmem:[%s223 + $0xdb8] sm:$0xf]
        %v1105 = vld [vmem:[%s223 + $0xdbc] sm:$0xf]
        %v1106 = vld [vmem:[%s223 + $0xdc0] sm:$0xf]
        %v1107 = vld [vmem:[%s223 + $0xdc4] sm:$0xf]
        %v1108 = vld [vmem:[%s223 + $0xdc8] sm:$0xf]
        %v1109 = vld [vmem:[%s223 + $0xdcc] sm:$0xf]
        %v1110 = vld [vmem:[%s223 + $0xdd0] sm:$0xf]
        %v1111 = vld [vmem:[%s223 + $0xdd4] sm:$0xf]
        %v1112 = vld [vmem:[%s223 + $0xdd8] sm:$0xf]
        %v1113 = vld [vmem:[%s223 + $0xddc] sm:$0xf]
        %v1114 = vld [vmem:[%s223 + $0xde0] sm:$0xf]
        %v1115 = vld [vmem:[%s223 + $0xde4] sm:$0xf]
        %v1116 = vld [vmem:[%s223 + $0xde8] sm:$0xf]
        %v1117 = vld [vmem:[%s223 + $0xdec] sm:$0xf]
        %v1118 = vld [vmem:[%s223 + $0xdf0] sm:$0xf]
        %v1119 = vld [vmem:[%s223 + $0xdf4] sm:$0xf]
        %v1120 = vld [vmem:[%s223 + $0xdf8] sm:$0xf]
        %v1121 = vld [vmem:[%s223 + $0xdfc] sm:$0xf]
        %v1122 = vld [vmem:[%s223 + $0xe00] sm:$0xf]
        %v1123 = vld [vmem:[%s223 + $0xe04] sm:$0xf]
        %v1124 = vld [vmem:[%s223 + $0xe08] sm:$0xf]
        %v1125 = vld [vmem:[%s223 + $0xe0c] sm:$0xf]
        %v1126 = vld [vmem:[%s223 + $0xe10] sm:$0xf]
        %v1127 = vld [vmem:[%s223 + $0xe14] sm:$0xf]
        %v1128 = vld [vmem:[%s223 + $0xe18] sm:$0xf]
        %v1129 = vld [vmem:[%s223 + $0xe1c] sm:$0xf]
        %v1130 = vld [vmem:[%s223 + $0xe20] sm:$0xf]
        %v1131 = vld [vmem:[%s223 + $0xe24] sm:$0xf]
        %v1132 = vld [vmem:[%s223 + $0xe28] sm:$0xf]
        %v1133 = vld [vmem:[%s223 + $0xe2c] sm:$0xf]
        %v1134 = vld [vmem:[%s223 + $0xe30] sm:$0xf]
        %v1135 = vld [vmem:[%s223 + $0xe34] sm:$0xf]
        %v1136 = vld [vmem:[%s223 + $0xe38] sm:$0xf]
        %v1137 = vld [vmem:[%s223 + $0xe3c] sm:$0xf]
        %v1138 = vld [vmem:[%s223 + $0xe40] sm:$0xf]
        %v1139 = vld [vmem:[%s223 + $0xe44] sm:$0xf]
        %v1140 = vld [vmem:[%s223 + $0xe48] sm:$0xf]
        %v1141 = vld [vmem:[%s223 + $0xe4c] sm:$0xf]
        %v1142 = vld [vmem:[%s223 + $0xe50] sm:$0xf]
        %v1143 = vld [vmem:[%s223 + $0xe54] sm:$0xf]
        %v1144 = vld [vmem:[%s223 + $0xe58] sm:$0xf]
        %v1145 = vld [vmem:[%s223 + $0xe5c] sm:$0xf]
        %v1146 = vld [vmem:[%s223 + $0xe60] sm:$0xf]
        %v1147 = vld [vmem:[%s223 + $0xe64] sm:$0xf]
        %v1148 = vld [vmem:[%s223 + $0xe68] sm:$0xf]
        %v1149 = vld [vmem:[%s223 + $0xe6c] sm:$0xf]
        %v1150 = vld [vmem:[%s223 + $0xe70] sm:$0xf]
        %v1151 = vld [vmem:[%s223 + $0xe74] sm:$0xf]
        %v1152 = vld [vmem:[%s223 + $0xe78] sm:$0xf]
        %v1153 = vld [vmem:[%s223 + $0xe7c] sm:$0xf]
        %v1154 = vld [vmem:[%s223 + $0xe80] sm:$0xf]
        %v1155 = vld [vmem:[%s223 + $0xe84] sm:$0xf]
        %v1156 = vld [vmem:[%s223 + $0xe88] sm:$0xf]
        %v1157 = vld [vmem:[%s223 + $0xe8c] sm:$0xf]
        %v1158 = vld [vmem:[%s223 + $0xe90] sm:$0xf]
        %v1159 = vld [vmem:[%s223 + $0xe94] sm:$0xf]
        %v1160 = vld [vmem:[%s223 + $0xe98] sm:$0xf]
        %v1161 = vld [vmem:[%s223 + $0xe9c] sm:$0xf]
        %v1162 = vld [vmem:[%s223 + $0xea0] sm:$0xf]
        %v1163 = vld [vmem:[%s223 + $0xea4] sm:$0xf]
        %v1164 = vld [vmem:[%s223 + $0xea8] sm:$0xf]
        %v1165 = vld [vmem:[%s223 + $0xeac] sm:$0xf]
        %v1166 = vld [vmem:[%s223 + $0xeb0] sm:$0xf]
        %v1167 = vld [vmem:[%s223 + $0xeb4] sm:$0xf]
        %v1168 = vld [vmem:[%s223 + $0xeb8] sm:$0xf]
        %v1169 = vld [vmem:[%s223 + $0xebc] sm:$0xf]
        %v1170 = vld [vmem:[%s223 + $0xec0] sm:$0xf]
        %v1171 = vld [vmem:[%s223 + $0xec4] sm:$0xf]
        %v1172 = vld [vmem:[%s223 + $0xec8] sm:$0xf]
        %v1173 = vld [vmem:[%s223 + $0xecc] sm:$0xf]
        %v1174 = vld [vmem:[%s223 + $0xed0] sm:$0xf]
        %v1175 = vld [vmem:[%s223 + $0xed4] sm:$0xf]
        %v1176 = vld [vmem:[%s223 + $0xed8] sm:$0xf]
        %v1177 = vld [vmem:[%s223 + $0xedc] sm:$0xf]
        %v1178 = vld [vmem:[%s223 + $0xee0] sm:$0xf]
        %v1179 = vld [vmem:[%s223 + $0xee4] sm:$0xf]
        %v1180 = vld [vmem:[%s223 + $0xee8] sm:$0xf]
        %v1181 = vld [vmem:[%s223 + $0xeec] sm:$0xf]
        %v1182 = vld [vmem:[%s223 + $0xef0] sm:$0xf]
        %v1183 = vld [vmem:[%s223 + $0xef4] sm:$0xf]
        %v1184 = vld [vmem:[%s223 + $0xef8] sm:$0xf]
        %v1185 = vld [vmem:[%s223 + $0xefc] sm:$0xf]
        %v1186 = vld [vmem:[%s223 + $0xf00] sm:$0xf]
        %v1187 = vld [vmem:[%s223 + $0xf04] sm:$0xf]
        %v1188 = vld [vmem:[%s223 + $0xf08] sm:$0xf]
        %v1189 = vld [vmem:[%s223 + $0xf0c] sm:$0xf]
        %v1190 = vld [vmem:[%s223 + $0xf10] sm:$0xf]
        %v1191 = vld [vmem:[%s223 + $0xf14] sm:$0xf]
        %v1192 = vld [vmem:[%s223 + $0xf18] sm:$0xf]
        %v1193 = vld [vmem:[%s223 + $0xf1c] sm:$0xf]
        %v1194 = vld [vmem:[%s223 + $0xf20] sm:$0xf]
        %v1195 = vld [vmem:[%s223 + $0xf24] sm:$0xf]
        %v1196 = vld [vmem:[%s223 + $0xf28] sm:$0xf]
        %v1197 = vld [vmem:[%s223 + $0xf2c] sm:$0xf]
        %v1198 = vld [vmem:[%s223 + $0xf30] sm:$0xf]
        %v1199 = vld [vmem:[%s223 + $0xf34] sm:$0xf]
        %v1200 = vld [vmem:[%s223 + $0xf38] sm:$0xf]
        %v1201 = vld [vmem:[%s223 + $0xf3c] sm:$0xf]
        %v1202 = vld [vmem:[%s223 + $0xf40] sm:$0xf]
        %v1203 = vld [vmem:[%s223 + $0xf44] sm:$0xf]
        %v1204 = vld [vmem:[%s223 + $0xf48] sm:$0xf]
        %v1205 = vld [vmem:[%s223 + $0xf4c] sm:$0xf]
        %v1206 = vld [vmem:[%s223 + $0xf50] sm:$0xf]
        %v1207 = vld [vmem:[%s223 + $0xf54] sm:$0xf]
        %v1208 = vld [vmem:[%s223 + $0xf58] sm:$0xf]
        %v1209 = vld [vmem:[%s223 + $0xf5c] sm:$0xf]
        %v1210 = vld [vmem:[%s223 + $0xf60] sm:$0xf]
        %v1211 = vld [vmem:[%s223 + $0xf64] sm:$0xf]
        %v1212 = vld [vmem:[%s223 + $0xf68] sm:$0xf]
        %v1213 = vld [vmem:[%s223 + $0xf6c] sm:$0xf]
        %v1214 = vld [vmem:[%s223 + $0xf70] sm:$0xf]
        %v1215 = vld [vmem:[%s223 + $0xf74] sm:$0xf]
        %v1216 = vld [vmem:[%s223 + $0xf78] sm:$0xf]
        %v1217 = vld [vmem:[%s223 + $0xf7c] sm:$0xf]
        %v1218 = vld [vmem:[%s223 + $0xf80] sm:$0xf]
        %v1219 = vld [vmem:[%s223 + $0xf84] sm:$0xf]
        %v1220 = vld [vmem:[%s223 + $0xf88] sm:$0xf]
        %v1221 = vld [vmem:[%s223 + $0xf8c] sm:$0xf]
        %v1222 = vld [vmem:[%s223 + $0xf90] sm:$0xf]
        %v1223 = vld [vmem:[%s223 + $0xf94] sm:$0xf]
        %v1224 = vld [vmem:[%s223 + $0xf98] sm:$0xf]
        %v1225 = vld [vmem:[%s223 + $0xf9c] sm:$0xf]
        %v1226 = vld [vmem:[%s223 + $0xfa0] sm:$0xf]
        %v1227 = vld [vmem:[%s223 + $0xfa4] sm:$0xf]
        %v1228 = vld [vmem:[%s223 + $0xfa8] sm:$0xf]
        %v1229 = vld [vmem:[%s223 + $0xfac] sm:$0xf]
        %v1230 = vld [vmem:[%s223 + $0xfb0] sm:$0xf]
        %v1231 = vld [vmem:[%s223 + $0xfb4] sm:$0xf]
        %v1232 = vld [vmem:[%s223 + $0xfb8] sm:$0xf]
        %v1233 = vld [vmem:[%s223 + $0xfbc] sm:$0xf]
        %v1234 = vld [vmem:[%s223 + $0xfc0] sm:$0xf]
        %v1235 = vld [vmem:[%s223 + $0xfc4] sm:$0xf]
        %v1236 = vld [vmem:[%s223 + $0xfc8] sm:$0xf]
        %v1237 = vld [vmem:[%s223 + $0xfcc] sm:$0xf]
        %v1238 = vld [vmem:[%s223 + $0xfd0] sm:$0xf]
        %v1239 = vld [vmem:[%s223 + $0xfd4] sm:$0xf]
        %v1240 = vld [vmem:[%s223 + $0xfd8] sm:$0xf]
        %v1241 = vld [vmem:[%s223 + $0xfdc] sm:$0xf]
        %v1242 = vld [vmem:[%s223 + $0xfe0] sm:$0xf]
        %v1243 = vld [vmem:[%s223 + $0xfe4] sm:$0xf]
        %v1244 = vld [vmem:[%s223 + $0xfe8] sm:$0xf]
        %v1245 = vld [vmem:[%s223 + $0xfec] sm:$0xf]
        %v1246 = vld [vmem:[%s223 + $0xff0] sm:$0xf]
        %v1247 = vld [vmem:[%s223 + $0xff4] sm:$0xf]
        %v1248 = vld [vmem:[%s223 + $0xff8] sm:$0xf]
        %v1249 = vld [vmem:[%s223 + $0xffc] sm:$0xf]
        %v1250 = vld [vmem:[%s1] sm:$0xf]
        %v1251 = vld [vmem:[%s1 + $0x4] sm:$0xf]
        %v1252 = vld [vmem:[%s1 + $0x8] sm:$0xf]
        %v1253 = vld [vmem:[%s1 + $0xc] sm:$0xf]
        %v1254 = vld [vmem:[%s1 + $0x10] sm:$0x3]
        %v1255 = vld [vmem:[%s2] sm:$0x1]
        %v1257 = vlaneseq
        %v1258 = vshrl.u32 %v1257, 7
        %v1259 = vsub.s32 0, %v1258
        %v1260 = vrot.slane %v1255, %v1259
        %v2286 = vunpack.c.l.b16 %v226
        %v2287 = vunpack.c.l.b16 %v227
        %v2288 = vunpack.c.l.b16 %v228
        %v2289 = vunpack.c.l.b16 %v229
        %v2290 = vunpack.c.l.b16 %v230
        %v2291 = vunpack.c.l.b16 %v231
        %v2292 = vunpack.c.l.b16 %v232
        %v2293 = vunpack.c.l.b16 %v233
        %v2294 = vunpack.c.l.b16 %v234
        %v2295 = vunpack.c.l.b16 %v235
        %v2296 = vunpack.c.l.b16 %v236
        %v2297 = vunpack.c.l.b16 %v237
        %v2298 = vunpack.c.l.b16 %v238
        %v2299 = vunpack.c.l.b16 %v239
        %v2300 = vunpack.c.l.b16 %v240
        %v2301 = vunpack.c.l.b16 %v241
        %v2302 = vunpack.c.l.b16 %v242
        %v2303 = vunpack.c.l.b16 %v243
        %v2304 = vunpack.c.l.b16 %v244
        %v2305 = vunpack.c.l.b16 %v245
        %v2306 = vunpack.c.l.b16 %v246
        %v2307 = vunpack.c.l.b16 %v247
        %v2308 = vunpack.c.l.b16 %v248
        %v2309 = vunpack.c.l.b16 %v249
        %v2310 = vunpack.c.l.b16 %v250
        %v2311 = vunpack.c.l.b16 %v251
        %v2312 = vunpack.c.l.b16 %v252
        %v2313 = vunpack.c.l.b16 %v253
        %v2314 = vunpack.c.l.b16 %v254
        %v2315 = vunpack.c.l.b16 %v255
        %v2316 = vunpack.c.l.b16 %v256
        %v2317 = vunpack.c.l.b16 %v257
        %v2318 = vunpack.c.l.b16 %v258
        %v2319 = vunpack.c.l.b16 %v259
        %v2320 = vunpack.c.l.b16 %v260
        %v2321 = vunpack.c.l.b16 %v261
        %v2322 = vunpack.c.l.b16 %v262
        %v2323 = vunpack.c.l.b16 %v263
        %v2324 = vunpack.c.l.b16 %v264
        %v2325 = vunpack.c.l.b16 %v265
        %v2326 = vunpack.c.l.b16 %v266
        %v2327 = vunpack.c.l.b16 %v267
        %v2328 = vunpack.c.l.b16 %v268
        %v2329 = vunpack.c.l.b16 %v269
        %v2330 = vunpack.c.l.b16 %v270
        %v2331 = vunpack.c.l.b16 %v271
        %v2332 = vunpack.c.l.b16 %v272
        %v2333 = vunpack.c.l.b16 %v273
        %v2334 = vunpack.c.l.b16 %v274
        %v2335 = vunpack.c.l.b16 %v275
        %v2336 = vunpack.c.l.b16 %v276
        %v2337 = vunpack.c.l.b16 %v277
        %v2338 = vunpack.c.l.b16 %v278
        %v2339 = vunpack.c.l.b16 %v279
        %v2340 = vunpack.c.l.b16 %v280
        %v2341 = vunpack.c.l.b16 %v281
        %v2342 = vunpack.c.l.b16 %v282
        %v2343 = vunpack.c.l.b16 %v283
        %v2344 = vunpack.c.l.b16 %v284
        %v2345 = vunpack.c.l.b16 %v285
        %v2346 = vunpack.c.l.b16 %v286
        %v2347 = vunpack.c.l.b16 %v287
        %v2348 = vunpack.c.l.b16 %v288
        %v2349 = vunpack.c.l.b16 %v289
        %v2350 = vunpack.c.l.b16 %v290
        %v2351 = vunpack.c.l.b16 %v291
        %v2352 = vunpack.c.l.b16 %v292
        %v2353 = vunpack.c.l.b16 %v293
        %v2354 = vunpack.c.l.b16 %v294
        %v2355 = vunpack.c.l.b16 %v295
        %v2356 = vunpack.c.l.b16 %v296
        %v2357 = vunpack.c.l.b16 %v297
        %v2358 = vunpack.c.l.b16 %v298
        %v2359 = vunpack.c.l.b16 %v299
        %v2360 = vunpack.c.l.b16 %v300
        %v2361 = vunpack.c.l.b16 %v301
        %v2362 = vunpack.c.l.b16 %v302
        %v2363 = vunpack.c.l.b16 %v303
        %v2364 = vunpack.c.l.b16 %v304
        %v2365 = vunpack.c.l.b16 %v305
        %v2366 = vunpack.c.l.b16 %v306
        %v2367 = vunpack.c.l.b16 %v307
        %v2368 = vunpack.c.l.b16 %v308
        %v2369 = vunpack.c.l.b16 %v309
        %v2370 = vunpack.c.l.b16 %v310
        %v2371 = vunpack.c.l.b16 %v311
        %v2372 = vunpack.c.l.b16 %v312
        %v2373 = vunpack.c.l.b16 %v313
        %v2374 = vunpack.c.l.b16 %v314
        %v2375 = vunpack.c.l.b16 %v315
        %v2376 = vunpack.c.l.b16 %v316
        %v2377 = vunpack.c.l.b16 %v317
        %v2378 = vunpack.c.l.b16 %v318
        %v2379 = vunpack.c.l.b16 %v319
        %v2380 = vunpack.c.l.b16 %v320
        %v2381 = vunpack.c.l.b16 %v321
        %v2382 = vunpack.c.l.b16 %v322
        %v2383 = vunpack.c.l.b16 %v323
        %v2384 = vunpack.c.l.b16 %v324
        %v2385 = vunpack.c.l.b16 %v325
        %v2386 = vunpack.c.l.b16 %v326
        %v2387 = vunpack.c.l.b16 %v327
        %v2388 = vunpack.c.l.b16 %v328
        %v2389 = vunpack.c.l.b16 %v329
        %v2390 = vunpack.c.l.b16 %v330
        %v2391 = vunpack.c.l.b16 %v331
        %v2392 = vunpack.c.l.b16 %v332
        %v2393 = vunpack.c.l.b16 %v333
        %v2394 = vunpack.c.l.b16 %v334
        %v2395 = vunpack.c.l.b16 %v335
        %v2396 = vunpack.c.l.b16 %v336
        %v2397 = vunpack.c.l.b16 %v337
        %v2398 = vunpack.c.l.b16 %v338
        %v2399 = vunpack.c.l.b16 %v339
        %v2400 = vunpack.c.l.b16 %v340
        %v2401 = vunpack.c.l.b16 %v341
        %v2402 = vunpack.c.l.b16 %v342
        %v2403 = vunpack.c.l.b16 %v343
        %v2404 = vunpack.c.l.b16 %v344
        %v2405 = vunpack.c.l.b16 %v345
        %v2406 = vunpack.c.l.b16 %v346
        %v2407 = vunpack.c.l.b16 %v347
        %v2408 = vunpack.c.l.b16 %v348
        %v2409 = vunpack.c.l.b16 %v349
        %v2410 = vunpack.c.l.b16 %v350
        %v2411 = vunpack.c.l.b16 %v351
        %v2412 = vunpack.c.l.b16 %v352
        %v2413 = vunpack.c.l.b16 %v353
        %v2414 = vunpack.c.l.b16 %v354
        %v2415 = vunpack.c.l.b16 %v355
        %v2416 = vunpack.c.l.b16 %v356
        %v2417 = vunpack.c.l.b16 %v357
        %v2418 = vunpack.c.l.b16 %v358
        %v2419 = vunpack.c.l.b16 %v359
        %v2420 = vunpack.c.l.b16 %v360
        %v2421 = vunpack.c.l.b16 %v361
        %v2422 = vunpack.c.l.b16 %v362
        %v2423 = vunpack.c.l.b16 %v363
        %v2424 = vunpack.c.l.b16 %v364
        %v2425 = vunpack.c.l.b16 %v365
        %v2426 = vunpack.c.l.b16 %v366
        %v2427 = vunpack.c.l.b16 %v367
        %v2428 = vunpack.c.l.b16 %v368
        %v2429 = vunpack.c.l.b16 %v369
        %v2430 = vunpack.c.l.b16 %v370
        %v2431 = vunpack.c.l.b16 %v371
        %v2432 = vunpack.c.l.b16 %v372
        %v2433 = vunpack.c.l.b16 %v373
        %v2434 = vunpack.c.l.b16 %v374
        %v2435 = vunpack.c.l.b16 %v375
        %v2436 = vunpack.c.l.b16 %v376
        %v2437 = vunpack.c.l.b16 %v377
        %v2438 = vunpack.c.l.b16 %v378
        %v2439 = vunpack.c.l.b16 %v379
        %v2440 = vunpack.c.l.b16 %v380
        %v2441 = vunpack.c.l.b16 %v381
        %v2442 = vunpack.c.l.b16 %v382
        %v2443 = vunpack.c.l.b16 %v383
        %v2444 = vunpack.c.l.b16 %v384
        %v2445 = vunpack.c.l.b16 %v385
        %v2446 = vunpack.c.l.b16 %v386
        %v2447 = vunpack.c.l.b16 %v387
        %v2448 = vunpack.c.l.b16 %v388
        %v2449 = vunpack.c.l.b16 %v389
        %v2450 = vunpack.c.l.b16 %v390
        %v2451 = vunpack.c.l.b16 %v391
        %v2452 = vunpack.c.l.b16 %v392
        %v2453 = vunpack.c.l.b16 %v393
        %v2454 = vunpack.c.l.b16 %v394
        %v2455 = vunpack.c.l.b16 %v395
        %v2456 = vunpack.c.l.b16 %v396
        %v2457 = vunpack.c.l.b16 %v397
        %v2458 = vunpack.c.l.b16 %v398
        %v2459 = vunpack.c.l.b16 %v399
        %v2460 = vunpack.c.l.b16 %v400
        %v2461 = vunpack.c.l.b16 %v401
        %v2462 = vunpack.c.l.b16 %v402
        %v2463 = vunpack.c.l.b16 %v403
        %v2464 = vunpack.c.l.b16 %v404
        %v2465 = vunpack.c.l.b16 %v405
        %v2466 = vunpack.c.l.b16 %v406
        %v2467 = vunpack.c.l.b16 %v407
        %v2468 = vunpack.c.l.b16 %v408
        %v2469 = vunpack.c.l.b16 %v409
        %v2470 = vunpack.c.l.b16 %v410
        %v2471 = vunpack.c.l.b16 %v411
        %v2472 = vunpack.c.l.b16 %v412
        %v2473 = vunpack.c.l.b16 %v413
        %v2474 = vunpack.c.l.b16 %v414
        %v2475 = vunpack.c.l.b16 %v415
        %v2476 = vunpack.c.l.b16 %v416
        %v2477 = vunpack.c.l.b16 %v417
        %v2478 = vunpack.c.l.b16 %v418
        %v2479 = vunpack.c.l.b16 %v419
        %v2480 = vunpack.c.l.b16 %v420
        %v2481 = vunpack.c.l.b16 %v421
        %v2482 = vunpack.c.l.b16 %v422
        %v2483 = vunpack.c.l.b16 %v423
        %v2484 = vunpack.c.l.b16 %v424
        %v2485 = vunpack.c.l.b16 %v425
        %v2486 = vunpack.c.l.b16 %v426
        %v2487 = vunpack.c.l.b16 %v427
        %v2488 = vunpack.c.l.b16 %v428
        %v2489 = vunpack.c.l.b16 %v429
        %v2490 = vunpack.c.l.b16 %v430
        %v2491 = vunpack.c.l.b16 %v431
        %v2492 = vunpack.c.l.b16 %v432
        %v2493 = vunpack.c.l.b16 %v433
        %v2494 = vunpack.c.l.b16 %v434
        %v2495 = vunpack.c.l.b16 %v435
        %v2496 = vunpack.c.l.b16 %v436
        %v2497 = vunpack.c.l.b16 %v437
        %v2498 = vunpack.c.l.b16 %v438
        %v2499 = vunpack.c.l.b16 %v439
        %v2500 = vunpack.c.l.b16 %v440
        %v2501 = vunpack.c.l.b16 %v441
        %v2502 = vunpack.c.l.b16 %v442
        %v2503 = vunpack.c.l.b16 %v443
        %v2504 = vunpack.c.l.b16 %v444
        %v2505 = vunpack.c.l.b16 %v445
        %v2506 = vunpack.c.l.b16 %v446
        %v2507 = vunpack.c.l.b16 %v447
        %v2508 = vunpack.c.l.b16 %v448
        %v2509 = vunpack.c.l.b16 %v449
        %v2510 = vunpack.c.l.b16 %v450
        %v2511 = vunpack.c.l.b16 %v451
        %v2512 = vunpack.c.l.b16 %v452
        %v2513 = vunpack.c.l.b16 %v453
        %v2514 = vunpack.c.l.b16 %v454
        %v2515 = vunpack.c.l.b16 %v455
        %v2516 = vunpack.c.l.b16 %v456
        %v2517 = vunpack.c.l.b16 %v457
        %v2518 = vunpack.c.l.b16 %v458
        %v2519 = vunpack.c.l.b16 %v459
        %v2520 = vunpack.c.l.b16 %v460
        %v2521 = vunpack.c.l.b16 %v461
        %v2522 = vunpack.c.l.b16 %v462
        %v2523 = vunpack.c.l.b16 %v463
        %v2524 = vunpack.c.l.b16 %v464
        %v2525 = vunpack.c.l.b16 %v465
        %v2526 = vunpack.c.l.b16 %v466
        %v2527 = vunpack.c.l.b16 %v467
        %v2528 = vunpack.c.l.b16 %v468
        %v2529 = vunpack.c.l.b16 %v469
        %v2530 = vunpack.c.l.b16 %v470
        %v2531 = vunpack.c.l.b16 %v471
        %v2532 = vunpack.c.l.b16 %v472
        %v2533 = vunpack.c.l.b16 %v473
        %v2534 = vunpack.c.l.b16 %v474
        %v2535 = vunpack.c.l.b16 %v475
        %v2536 = vunpack.c.l.b16 %v476
        %v2537 = vunpack.c.l.b16 %v477
        %v2538 = vunpack.c.l.b16 %v478
        %v2539 = vunpack.c.l.b16 %v479
        %v2540 = vunpack.c.l.b16 %v480
        %v2541 = vunpack.c.l.b16 %v481
        %v2542 = vunpack.c.l.b16 %v482
        %v2543 = vunpack.c.l.b16 %v483
        %v2544 = vunpack.c.l.b16 %v484
        %v2545 = vunpack.c.l.b16 %v485
        %v2546 = vunpack.c.l.b16 %v486
        %v2547 = vunpack.c.l.b16 %v487
        %v2548 = vunpack.c.l.b16 %v488
        %v2549 = vunpack.c.l.b16 %v489
        %v2550 = vunpack.c.l.b16 %v490
        %v2551 = vunpack.c.l.b16 %v491
        %v2552 = vunpack.c.l.b16 %v492
        %v2553 = vunpack.c.l.b16 %v493
        %v2554 = vunpack.c.l.b16 %v494
        %v2555 = vunpack.c.l.b16 %v495
        %v2556 = vunpack.c.l.b16 %v496
        %v2557 = vunpack.c.l.b16 %v497
        %v2558 = vunpack.c.l.b16 %v498
        %v2559 = vunpack.c.l.b16 %v499
        %v2560 = vunpack.c.l.b16 %v500
        %v2561 = vunpack.c.l.b16 %v501
        %v2562 = vunpack.c.l.b16 %v502
        %v2563 = vunpack.c.l.b16 %v503
        %v2564 = vunpack.c.l.b16 %v504
        %v2565 = vunpack.c.l.b16 %v505
        %v2566 = vunpack.c.l.b16 %v506
        %v2567 = vunpack.c.l.b16 %v507
        %v2568 = vunpack.c.l.b16 %v508
        %v2569 = vunpack.c.l.b16 %v509
        %v2570 = vunpack.c.l.b16 %v510
        %v2571 = vunpack.c.l.b16 %v511
        %v2572 = vunpack.c.l.b16 %v512
        %v2573 = vunpack.c.l.b16 %v513
        %v2574 = vunpack.c.l.b16 %v514
        %v2575 = vunpack.c.l.b16 %v515
        %v2576 = vunpack.c.l.b16 %v516
        %v2577 = vunpack.c.l.b16 %v517
        %v2578 = vunpack.c.l.b16 %v518
        %v2579 = vunpack.c.l.b16 %v519
        %v2580 = vunpack.c.l.b16 %v520
        %v2581 = vunpack.c.l.b16 %v521
        %v2582 = vunpack.c.l.b16 %v522
        %v2583 = vunpack.c.l.b16 %v523
        %v2584 = vunpack.c.l.b16 %v524
        %v2585 = vunpack.c.l.b16 %v525
        %v2586 = vunpack.c.l.b16 %v526
        %v2587 = vunpack.c.l.b16 %v527
        %v2588 = vunpack.c.l.b16 %v528
        %v2589 = vunpack.c.l.b16 %v529
        %v2590 = vunpack.c.l.b16 %v530
        %v2591 = vunpack.c.l.b16 %v531
        %v2592 = vunpack.c.l.b16 %v532
        %v2593 = vunpack.c.l.b16 %v533
        %v2594 = vunpack.c.l.b16 %v534
        %v2595 = vunpack.c.l.b16 %v535
        %v2596 = vunpack.c.l.b16 %v536
        %v2597 = vunpack.c.l.b16 %v537
        %v2598 = vunpack.c.l.b16 %v538
        %v2599 = vunpack.c.l.b16 %v539
        %v2600 = vunpack.c.l.b16 %v540
        %v2601 = vunpack.c.l.b16 %v541
        %v2602 = vunpack.c.l.b16 %v542
        %v2603 = vunpack.c.l.b16 %v543
        %v2604 = vunpack.c.l.b16 %v544
        %v2605 = vunpack.c.l.b16 %v545
        %v2606 = vunpack.c.l.b16 %v546
        %v2607 = vunpack.c.l.b16 %v547
        %v2608 = vunpack.c.l.b16 %v548
        %v2609 = vunpack.c.l.b16 %v549
        %v2610 = vunpack.c.l.b16 %v550
        %v2611 = vunpack.c.l.b16 %v551
        %v2612 = vunpack.c.l.b16 %v552
        %v2613 = vunpack.c.l.b16 %v553
        %v2614 = vunpack.c.l.b16 %v554
        %v2615 = vunpack.c.l.b16 %v555
        %v2616 = vunpack.c.l.b16 %v556
        %v2617 = vunpack.c.l.b16 %v557
        %v2618 = vunpack.c.l.b16 %v558
        %v2619 = vunpack.c.l.b16 %v559
        %v2620 = vunpack.c.l.b16 %v560
        %v2621 = vunpack.c.l.b16 %v561
        %v2622 = vunpack.c.l.b16 %v562
        %v2623 = vunpack.c.l.b16 %v563
        %v2624 = vunpack.c.l.b16 %v564
        %v2625 = vunpack.c.l.b16 %v565
        %v2626 = vunpack.c.l.b16 %v566
        %v2627 = vunpack.c.l.b16 %v567
        %v2628 = vunpack.c.l.b16 %v568
        %v2629 = vunpack.c.l.b16 %v569
        %v2630 = vunpack.c.l.b16 %v570
        %v2631 = vunpack.c.l.b16 %v571
        %v2632 = vunpack.c.l.b16 %v572
        %v2633 = vunpack.c.l.b16 %v573
        %v2634 = vunpack.c.l.b16 %v574
        %v2635 = vunpack.c.l.b16 %v575
        %v2636 = vunpack.c.l.b16 %v576
        %v2637 = vunpack.c.l.b16 %v577
        %v2638 = vunpack.c.l.b16 %v578
        %v2639 = vunpack.c.l.b16 %v579
        %v2640 = vunpack.c.l.b16 %v580
        %v2641 = vunpack.c.l.b16 %v581
        %v2642 = vunpack.c.l.b16 %v582
        %v2643 = vunpack.c.l.b16 %v583
        %v2644 = vunpack.c.l.b16 %v584
        %v2645 = vunpack.c.l.b16 %v585
        %v2646 = vunpack.c.l.b16 %v586
        %v2647 = vunpack.c.l.b16 %v587
        %v2648 = vunpack.c.l.b16 %v588
        %v2649 = vunpack.c.l.b16 %v589
        %v2650 = vunpack.c.l.b16 %v590
        %v2651 = vunpack.c.l.b16 %v591
        %v2652 = vunpack.c.l.b16 %v592
        %v2653 = vunpack.c.l.b16 %v593
        %v2654 = vunpack.c.l.b16 %v594
        %v2655 = vunpack.c.l.b16 %v595
        %v2656 = vunpack.c.l.b16 %v596
        %v2657 = vunpack.c.l.b16 %v597
        %v2658 = vunpack.c.l.b16 %v598
        %v2659 = vunpack.c.l.b16 %v599
        %v2660 = vunpack.c.l.b16 %v600
        %v2661 = vunpack.c.l.b16 %v601
        %v2662 = vunpack.c.l.b16 %v602
        %v2663 = vunpack.c.l.b16 %v603
        %v2664 = vunpack.c.l.b16 %v604
        %v2665 = vunpack.c.l.b16 %v605
        %v2666 = vunpack.c.l.b16 %v606
        %v2667 = vunpack.c.l.b16 %v607
        %v2668 = vunpack.c.l.b16 %v608
        %v2669 = vunpack.c.l.b16 %v609
        %v2670 = vunpack.c.l.b16 %v610
        %v2671 = vunpack.c.l.b16 %v611
        %v2672 = vunpack.c.l.b16 %v612
        %v2673 = vunpack.c.l.b16 %v613
        %v2674 = vunpack.c.l.b16 %v614
        %v2675 = vunpack.c.l.b16 %v615
        %v2676 = vunpack.c.l.b16 %v616
        %v2677 = vunpack.c.l.b16 %v617
        %v2678 = vunpack.c.l.b16 %v618
        %v2679 = vunpack.c.l.b16 %v619
        %v2680 = vunpack.c.l.b16 %v620
        %v2681 = vunpack.c.l.b16 %v621
        %v2682 = vunpack.c.l.b16 %v622
        %v2683 = vunpack.c.l.b16 %v623
        %v2684 = vunpack.c.l.b16 %v624
        %v2685 = vunpack.c.l.b16 %v625
        %v2686 = vunpack.c.l.b16 %v626
        %v2687 = vunpack.c.l.b16 %v627
        %v2688 = vunpack.c.l.b16 %v628
        %v2689 = vunpack.c.l.b16 %v629
        %v2690 = vunpack.c.l.b16 %v630
        %v2691 = vunpack.c.l.b16 %v631
        %v2692 = vunpack.c.l.b16 %v632
        %v2693 = vunpack.c.l.b16 %v633
        %v2694 = vunpack.c.l.b16 %v634
        %v2695 = vunpack.c.l.b16 %v635
        %v2696 = vunpack.c.l.b16 %v636
        %v2697 = vunpack.c.l.b16 %v637
        %v2698 = vunpack.c.l.b16 %v638
        %v2699 = vunpack.c.l.b16 %v639
        %v2700 = vunpack.c.l.b16 %v640
        %v2701 = vunpack.c.l.b16 %v641
        %v2702 = vunpack.c.l.b16 %v642
        %v2703 = vunpack.c.l.b16 %v643
        %v2704 = vunpack.c.l.b16 %v644
        %v2705 = vunpack.c.l.b16 %v645
        %v2706 = vunpack.c.l.b16 %v646
        %v2707 = vunpack.c.l.b16 %v647
        %v2708 = vunpack.c.l.b16 %v648
        %v2709 = vunpack.c.l.b16 %v649
        %v2710 = vunpack.c.l.b16 %v650
        %v2711 = vunpack.c.l.b16 %v651
        %v2712 = vunpack.c.l.b16 %v652
        %v2713 = vunpack.c.l.b16 %v653
        %v2714 = vunpack.c.l.b16 %v654
        %v2715 = vunpack.c.l.b16 %v655
        %v2716 = vunpack.c.l.b16 %v656
        %v2717 = vunpack.c.l.b16 %v657
        %v2718 = vunpack.c.l.b16 %v658
        %v2719 = vunpack.c.l.b16 %v659
        %v2720 = vunpack.c.l.b16 %v660
        %v2721 = vunpack.c.l.b16 %v661
        %v2722 = vunpack.c.l.b16 %v662
        %v2723 = vunpack.c.l.b16 %v663
        %v2724 = vunpack.c.l.b16 %v664
        %v2725 = vunpack.c.l.b16 %v665
        %v2726 = vunpack.c.l.b16 %v666
        %v2727 = vunpack.c.l.b16 %v667
        %v2728 = vunpack.c.l.b16 %v668
        %v2729 = vunpack.c.l.b16 %v669
        %v2730 = vunpack.c.l.b16 %v670
        %v2731 = vunpack.c.l.b16 %v671
        %v2732 = vunpack.c.l.b16 %v672
        %v2733 = vunpack.c.l.b16 %v673
        %v2734 = vunpack.c.l.b16 %v674
        %v2735 = vunpack.c.l.b16 %v675
        %v2736 = vunpack.c.l.b16 %v676
        %v2737 = vunpack.c.l.b16 %v677
        %v2738 = vunpack.c.l.b16 %v678
        %v2739 = vunpack.c.l.b16 %v679
        %v2740 = vunpack.c.l.b16 %v680
        %v2741 = vunpack.c.l.b16 %v681
        %v2742 = vunpack.c.l.b16 %v682
        %v2743 = vunpack.c.l.b16 %v683
        %v2744 = vunpack.c.l.b16 %v684
        %v2745 = vunpack.c.l.b16 %v685
        %v2746 = vunpack.c.l.b16 %v686
        %v2747 = vunpack.c.l.b16 %v687
        %v2748 = vunpack.c.l.b16 %v688
        %v2749 = vunpack.c.l.b16 %v689
        %v2750 = vunpack.c.l.b16 %v690
        %v2751 = vunpack.c.l.b16 %v691
        %v2752 = vunpack.c.l.b16 %v692
        %v2753 = vunpack.c.l.b16 %v693
        %v2754 = vunpack.c.l.b16 %v694
        %v2755 = vunpack.c.l.b16 %v695
        %v2756 = vunpack.c.l.b16 %v696
        %v2757 = vunpack.c.l.b16 %v697
        %v2758 = vunpack.c.l.b16 %v698
        %v2759 = vunpack.c.l.b16 %v699
        %v2760 = vunpack.c.l.b16 %v700
        %v2761 = vunpack.c.l.b16 %v701
        %v2762 = vunpack.c.l.b16 %v702
        %v2763 = vunpack.c.l.b16 %v703
        %v2764 = vunpack.c.l.b16 %v704
        %v2765 = vunpack.c.l.b16 %v705
        %v2766 = vunpack.c.l.b16 %v706
        %v2767 = vunpack.c.l.b16 %v707
        %v2768 = vunpack.c.l.b16 %v708
        %v2769 = vunpack.c.l.b16 %v709
        %v2770 = vunpack.c.l.b16 %v710
        %v2771 = vunpack.c.l.b16 %v711
        %v2772 = vunpack.c.l.b16 %v712
        %v2773 = vunpack.c.l.b16 %v713
        %v2774 = vunpack.c.l.b16 %v714
        %v2775 = vunpack.c.l.b16 %v715
        %v2776 = vunpack.c.l.b16 %v716
        %v2777 = vunpack.c.l.b16 %v717
        %v2778 = vunpack.c.l.b16 %v718
        %v2779 = vunpack.c.l.b16 %v719
        %v2780 = vunpack.c.l.b16 %v720
        %v2781 = vunpack.c.l.b16 %v721
        %v2782 = vunpack.c.l.b16 %v722
        %v2783 = vunpack.c.l.b16 %v723
        %v2784 = vunpack.c.l.b16 %v724
        %v2785 = vunpack.c.l.b16 %v725
        %v2786 = vunpack.c.l.b16 %v726
        %v2787 = vunpack.c.l.b16 %v727
        %v2788 = vunpack.c.l.b16 %v728
        %v2789 = vunpack.c.l.b16 %v729
        %v2790 = vunpack.c.l.b16 %v730
        %v2791 = vunpack.c.l.b16 %v731
        %v2792 = vunpack.c.l.b16 %v732
        %v2793 = vunpack.c.l.b16 %v733
        %v2794 = vunpack.c.l.b16 %v734
        %v2795 = vunpack.c.l.b16 %v735
        %v2796 = vunpack.c.l.b16 %v736
        %v2797 = vunpack.c.l.b16 %v737
        %v2798 = vunpack.c.l.b16 %v738
        %v2799 = vunpack.c.l.b16 %v739
        %v2800 = vunpack.c.l.b16 %v740
        %v2801 = vunpack.c.l.b16 %v741
        %v2802 = vunpack.c.l.b16 %v742
        %v2803 = vunpack.c.l.b16 %v743
        %v2804 = vunpack.c.l.b16 %v744
        %v2805 = vunpack.c.l.b16 %v745
        %v2806 = vunpack.c.l.b16 %v746
        %v2807 = vunpack.c.l.b16 %v747
        %v2808 = vunpack.c.l.b16 %v748
        %v2809 = vunpack.c.l.b16 %v749
        %v2810 = vunpack.c.l.b16 %v750
        %v2811 = vunpack.c.l.b16 %v751
        %v2812 = vunpack.c.l.b16 %v752
        %v2813 = vunpack.c.l.b16 %v753
        %v2814 = vunpack.c.l.b16 %v754
        %v2815 = vunpack.c.l.b16 %v755
        %v2816 = vunpack.c.l.b16 %v756
        %v2817 = vunpack.c.l.b16 %v757
        %v2818 = vunpack.c.l.b16 %v758
        %v2819 = vunpack.c.l.b16 %v759
        %v2820 = vunpack.c.l.b16 %v760
        %v2821 = vunpack.c.l.b16 %v761
        %v2822 = vunpack.c.l.b16 %v762
        %v2823 = vunpack.c.l.b16 %v763
        %v2824 = vunpack.c.l.b16 %v764
        %v2825 = vunpack.c.l.b16 %v765
        %v2826 = vunpack.c.l.b16 %v766
        %v2827 = vunpack.c.l.b16 %v767
        %v2828 = vunpack.c.l.b16 %v768
        %v2829 = vunpack.c.l.b16 %v769
        %v2830 = vunpack.c.l.b16 %v770
        %v2831 = vunpack.c.l.b16 %v771
        %v2832 = vunpack.c.l.b16 %v772
        %v2833 = vunpack.c.l.b16 %v773
        %v2834 = vunpack.c.l.b16 %v774
        %v2835 = vunpack.c.l.b16 %v775
        %v2836 = vunpack.c.l.b16 %v776
        %v2837 = vunpack.c.l.b16 %v777
        %v2838 = vunpack.c.l.b16 %v778
        %v2839 = vunpack.c.l.b16 %v779
        %v2840 = vunpack.c.l.b16 %v780
        %v2841 = vunpack.c.l.b16 %v781
        %v2842 = vunpack.c.l.b16 %v782
        %v2843 = vunpack.c.l.b16 %v783
        %v2844 = vunpack.c.l.b16 %v784
        %v2845 = vunpack.c.l.b16 %v785
        %v2846 = vunpack.c.l.b16 %v786
        %v2847 = vunpack.c.l.b16 %v787
        %v2848 = vunpack.c.l.b16 %v788
        %v2849 = vunpack.c.l.b16 %v789
        %v2850 = vunpack.c.l.b16 %v790
        %v2851 = vunpack.c.l.b16 %v791
        %v2852 = vunpack.c.l.b16 %v792
        %v2853 = vunpack.c.l.b16 %v793
        %v2854 = vunpack.c.l.b16 %v794
        %v2855 = vunpack.c.l.b16 %v795
        %v2856 = vunpack.c.l.b16 %v796
        %v2857 = vunpack.c.l.b16 %v797
        %v2858 = vunpack.c.l.b16 %v798
        %v2859 = vunpack.c.l.b16 %v799
        %v2860 = vunpack.c.l.b16 %v800
        %v2861 = vunpack.c.l.b16 %v801
        %v2862 = vunpack.c.l.b16 %v802
        %v2863 = vunpack.c.l.b16 %v803
        %v2864 = vunpack.c.l.b16 %v804
        %v2865 = vunpack.c.l.b16 %v805
        %v2866 = vunpack.c.l.b16 %v806
        %v2867 = vunpack.c.l.b16 %v807
        %v2868 = vunpack.c.l.b16 %v808
        %v2869 = vunpack.c.l.b16 %v809
        %v2870 = vunpack.c.l.b16 %v810
        %v2871 = vunpack.c.l.b16 %v811
        %v2872 = vunpack.c.l.b16 %v812
        %v2873 = vunpack.c.l.b16 %v813
        %v2874 = vunpack.c.l.b16 %v814
        %v2875 = vunpack.c.l.b16 %v815
        %v2876 = vunpack.c.l.b16 %v816
        %v2877 = vunpack.c.l.b16 %v817
        %v2878 = vunpack.c.l.b16 %v818
        %v2879 = vunpack.c.l.b16 %v819
        %v2880 = vunpack.c.l.b16 %v820
        %v2881 = vunpack.c.l.b16 %v821
        %v2882 = vunpack.c.l.b16 %v822
        %v2883 = vunpack.c.l.b16 %v823
        %v2884 = vunpack.c.l.b16 %v824
        %v2885 = vunpack.c.l.b16 %v825
        %v2886 = vunpack.c.l.b16 %v826
        %v2887 = vunpack.c.l.b16 %v827
        %v2888 = vunpack.c.l.b16 %v828
        %v2889 = vunpack.c.l.b16 %v829
        %v2890 = vunpack.c.l.b16 %v830
        %v2891 = vunpack.c.l.b16 %v831
        %v2892 = vunpack.c.l.b16 %v832
        %v2893 = vunpack.c.l.b16 %v833
        %v2894 = vunpack.c.l.b16 %v834
        %v2895 = vunpack.c.l.b16 %v835
        %v2896 = vunpack.c.l.b16 %v836
        %v2897 = vunpack.c.l.b16 %v837
        %v2898 = vunpack.c.l.b16 %v838
        %v2899 = vunpack.c.l.b16 %v839
        %v2900 = vunpack.c.l.b16 %v840
        %v2901 = vunpack.c.l.b16 %v841
        %v2902 = vunpack.c.l.b16 %v842
        %v2903 = vunpack.c.l.b16 %v843
        %v2904 = vunpack.c.l.b16 %v844
        %v2905 = vunpack.c.l.b16 %v845
        %v2906 = vunpack.c.l.b16 %v846
        %v2907 = vunpack.c.l.b16 %v847
        %v2908 = vunpack.c.l.b16 %v848
        %v2909 = vunpack.c.l.b16 %v849
        %v2910 = vunpack.c.l.b16 %v850
        %v2911 = vunpack.c.l.b16 %v851
        %v2912 = vunpack.c.l.b16 %v852
        %v2913 = vunpack.c.l.b16 %v853
        %v2914 = vunpack.c.l.b16 %v854
        %v2915 = vunpack.c.l.b16 %v855
        %v2916 = vunpack.c.l.b16 %v856
        %v2917 = vunpack.c.l.b16 %v857
        %v2918 = vunpack.c.l.b16 %v858
        %v2919 = vunpack.c.l.b16 %v859
        %v2920 = vunpack.c.l.b16 %v860
        %v2921 = vunpack.c.l.b16 %v861
        %v2922 = vunpack.c.l.b16 %v862
        %v2923 = vunpack.c.l.b16 %v863
        %v2924 = vunpack.c.l.b16 %v864
        %v2925 = vunpack.c.l.b16 %v865
        %v2926 = vunpack.c.l.b16 %v866
        %v2927 = vunpack.c.l.b16 %v867
        %v2928 = vunpack.c.l.b16 %v868
        %v2929 = vunpack.c.l.b16 %v869
        %v2930 = vunpack.c.l.b16 %v870
        %v2931 = vunpack.c.l.b16 %v871
        %v2932 = vunpack.c.l.b16 %v872
        %v2933 = vunpack.c.l.b16 %v873
        %v2934 = vunpack.c.l.b16 %v874
        %v2935 = vunpack.c.l.b16 %v875
        %v2936 = vunpack.c.l.b16 %v876
        %v2937 = vunpack.c.l.b16 %v877
        %v2938 = vunpack.c.l.b16 %v878
        %v2939 = vunpack.c.l.b16 %v879
        %v2940 = vunpack.c.l.b16 %v880
        %v2941 = vunpack.c.l.b16 %v881
        %v2942 = vunpack.c.l.b16 %v882
        %v2943 = vunpack.c.l.b16 %v883
        %v2944 = vunpack.c.l.b16 %v884
        %v2945 = vunpack.c.l.b16 %v885
        %v2946 = vunpack.c.l.b16 %v886
        %v2947 = vunpack.c.l.b16 %v887
        %v2948 = vunpack.c.l.b16 %v888
        %v2949 = vunpack.c.l.b16 %v889
        %v2950 = vunpack.c.l.b16 %v890
        %v2951 = vunpack.c.l.b16 %v891
        %v2952 = vunpack.c.l.b16 %v892
        %v2953 = vunpack.c.l.b16 %v893
        %v2954 = vunpack.c.l.b16 %v894
        %v2955 = vunpack.c.l.b16 %v895
        %v2956 = vunpack.c.l.b16 %v896
        %v2957 = vunpack.c.l.b16 %v897
        %v2958 = vunpack.c.l.b16 %v898
        %v2959 = vunpack.c.l.b16 %v899
        %v2960 = vunpack.c.l.b16 %v900
        %v2961 = vunpack.c.l.b16 %v901
        %v2962 = vunpack.c.l.b16 %v902
        %v2963 = vunpack.c.l.b16 %v903
        %v2964 = vunpack.c.l.b16 %v904
        %v2965 = vunpack.c.l.b16 %v905
        %v2966 = vunpack.c.l.b16 %v906
        %v2967 = vunpack.c.l.b16 %v907
        %v2968 = vunpack.c.l.b16 %v908
        %v2969 = vunpack.c.l.b16 %v909
        %v2970 = vunpack.c.l.b16 %v910
        %v2971 = vunpack.c.l.b16 %v911
        %v2972 = vunpack.c.l.b16 %v912
        %v2973 = vunpack.c.l.b16 %v913
        %v2974 = vunpack.c.l.b16 %v914
        %v2975 = vunpack.c.l.b16 %v915
        %v2976 = vunpack.c.l.b16 %v916
        %v2977 = vunpack.c.l.b16 %v917
        %v2978 = vunpack.c.l.b16 %v918
        %v2979 = vunpack.c.l.b16 %v919
        %v2980 = vunpack.c.l.b16 %v920
        %v2981 = vunpack.c.l.b16 %v921
        %v2982 = vunpack.c.l.b16 %v922
        %v2983 = vunpack.c.l.b16 %v923
        %v2984 = vunpack.c.l.b16 %v924
        %v2985 = vunpack.c.l.b16 %v925
        %v2986 = vunpack.c.l.b16 %v926
        %v2987 = vunpack.c.l.b16 %v927
        %v2988 = vunpack.c.l.b16 %v928
        %v2989 = vunpack.c.l.b16 %v929
        %v2990 = vunpack.c.l.b16 %v930
        %v2991 = vunpack.c.l.b16 %v931
        %v2992 = vunpack.c.l.b16 %v932
        %v2993 = vunpack.c.l.b16 %v933
        %v2994 = vunpack.c.l.b16 %v934
        %v2995 = vunpack.c.l.b16 %v935
        %v2996 = vunpack.c.l.b16 %v936
        %v2997 = vunpack.c.l.b16 %v937
        %v2998 = vunpack.c.l.b16 %v938
        %v2999 = vunpack.c.l.b16 %v939
        %v3000 = vunpack.c.l.b16 %v940
        %v3001 = vunpack.c.l.b16 %v941
        %v3002 = vunpack.c.l.b16 %v942
        %v3003 = vunpack.c.l.b16 %v943
        %v3004 = vunpack.c.l.b16 %v944
        %v3005 = vunpack.c.l.b16 %v945
        %v3006 = vunpack.c.l.b16 %v946
        %v3007 = vunpack.c.l.b16 %v947
        %v3008 = vunpack.c.l.b16 %v948
        %v3009 = vunpack.c.l.b16 %v949
        %v3010 = vunpack.c.l.b16 %v950
        %v3011 = vunpack.c.l.b16 %v951
        %v3012 = vunpack.c.l.b16 %v952
        %v3013 = vunpack.c.l.b16 %v953
        %v3014 = vunpack.c.l.b16 %v954
        %v3015 = vunpack.c.l.b16 %v955
        %v3016 = vunpack.c.l.b16 %v956
        %v3017 = vunpack.c.l.b16 %v957
        %v3018 = vunpack.c.l.b16 %v958
        %v3019 = vunpack.c.l.b16 %v959
        %v3020 = vunpack.c.l.b16 %v960
        %v3021 = vunpack.c.l.b16 %v961
        %v3022 = vunpack.c.l.b16 %v962
        %v3023 = vunpack.c.l.b16 %v963
        %v3024 = vunpack.c.l.b16 %v964
        %v3025 = vunpack.c.l.b16 %v965
        %v3026 = vunpack.c.l.b16 %v966
        %v3027 = vunpack.c.l.b16 %v967
        %v3028 = vunpack.c.l.b16 %v968
        %v3029 = vunpack.c.l.b16 %v969
        %v3030 = vunpack.c.l.b16 %v970
        %v3031 = vunpack.c.l.b16 %v971
        %v3032 = vunpack.c.l.b16 %v972
        %v3033 = vunpack.c.l.b16 %v973
        %v3034 = vunpack.c.l.b16 %v974
        %v3035 = vunpack.c.l.b16 %v975
        %v3036 = vunpack.c.l.b16 %v976
        %v3037 = vunpack.c.l.b16 %v977
        %v3038 = vunpack.c.l.b16 %v978
        %v3039 = vunpack.c.l.b16 %v979
        %v3040 = vunpack.c.l.b16 %v980
        %v3041 = vunpack.c.l.b16 %v981
        %v3042 = vunpack.c.l.b16 %v982
        %v3043 = vunpack.c.l.b16 %v983
        %v3044 = vunpack.c.l.b16 %v984
        %v3045 = vunpack.c.l.b16 %v985
        %v3046 = vunpack.c.l.b16 %v986
        %v3047 = vunpack.c.l.b16 %v987
        %v3048 = vunpack.c.l.b16 %v988
        %v3049 = vunpack.c.l.b16 %v989
        %v3050 = vunpack.c.l.b16 %v990
        %v3051 = vunpack.c.l.b16 %v991
        %v3052 = vunpack.c.l.b16 %v992
        %v3053 = vunpack.c.l.b16 %v993
        %v3054 = vunpack.c.l.b16 %v994
        %v3055 = vunpack.c.l.b16 %v995
        %v3056 = vunpack.c.l.b16 %v996
        %v3057 = vunpack.c.l.b16 %v997
        %v3058 = vunpack.c.l.b16 %v998
        %v3059 = vunpack.c.l.b16 %v999
        %v3060 = vunpack.c.l.b16 %v1000
        %v3061 = vunpack.c.l.b16 %v1001
        %v3062 = vunpack.c.l.b16 %v1002
        %v3063 = vunpack.c.l.b16 %v1003
        %v3064 = vunpack.c.l.b16 %v1004
        %v3065 = vunpack.c.l.b16 %v1005
        %v3066 = vunpack.c.l.b16 %v1006
        %v3067 = vunpack.c.l.b16 %v1007
        %v3068 = vunpack.c.l.b16 %v1008
        %v3069 = vunpack.c.l.b16 %v1009
        %v3070 = vunpack.c.l.b16 %v1010
        %v3071 = vunpack.c.l.b16 %v1011
        %v3072 = vunpack.c.l.b16 %v1012
        %v3073 = vunpack.c.l.b16 %v1013
        %v3074 = vunpack.c.l.b16 %v1014
        %v3075 = vunpack.c.l.b16 %v1015
        %v3076 = vunpack.c.l.b16 %v1016
        %v3077 = vunpack.c.l.b16 %v1017
        %v3078 = vunpack.c.l.b16 %v1018
        %v3079 = vunpack.c.l.b16 %v1019
        %v3080 = vunpack.c.l.b16 %v1020
        %v3081 = vunpack.c.l.b16 %v1021
        %v3082 = vunpack.c.l.b16 %v1022
        %v3083 = vunpack.c.l.b16 %v1023
        %v3084 = vunpack.c.l.b16 %v1024
        %v3085 = vunpack.c.l.b16 %v1025
        %v3086 = vunpack.c.l.b16 %v1026
        %v3087 = vunpack.c.l.b16 %v1027
        %v3088 = vunpack.c.l.b16 %v1028
        %v3089 = vunpack.c.l.b16 %v1029
        %v3090 = vunpack.c.l.b16 %v1030
        %v3091 = vunpack.c.l.b16 %v1031
        %v3092 = vunpack.c.l.b16 %v1032
        %v3093 = vunpack.c.l.b16 %v1033
        %v3094 = vunpack.c.l.b16 %v1034
        %v3095 = vunpack.c.l.b16 %v1035
        %v3096 = vunpack.c.l.b16 %v1036
        %v3097 = vunpack.c.l.b16 %v1037
        %v3098 = vunpack.c.l.b16 %v1038
        %v3099 = vunpack.c.l.b16 %v1039
        %v3100 = vunpack.c.l.b16 %v1040
        %v3101 = vunpack.c.l.b16 %v1041
        %v3102 = vunpack.c.l.b16 %v1042
        %v3103 = vunpack.c.l.b16 %v1043
        %v3104 = vunpack.c.l.b16 %v1044
        %v3105 = vunpack.c.l.b16 %v1045
        %v3106 = vunpack.c.l.b16 %v1046
        %v3107 = vunpack.c.l.b16 %v1047
        %v3108 = vunpack.c.l.b16 %v1048
        %v3109 = vunpack.c.l.b16 %v1049
        %v3110 = vunpack.c.l.b16 %v1050
        %v3111 = vunpack.c.l.b16 %v1051
        %v3112 = vunpack.c.l.b16 %v1052
        %v3113 = vunpack.c.l.b16 %v1053
        %v3114 = vunpack.c.l.b16 %v1054
        %v3115 = vunpack.c.l.b16 %v1055
        %v3116 = vunpack.c.l.b16 %v1056
        %v3117 = vunpack.c.l.b16 %v1057
        %v3118 = vunpack.c.l.b16 %v1058
        %v3119 = vunpack.c.l.b16 %v1059
        %v3120 = vunpack.c.l.b16 %v1060
        %v3121 = vunpack.c.l.b16 %v1061
        %v3122 = vunpack.c.l.b16 %v1062
        %v3123 = vunpack.c.l.b16 %v1063
        %v3124 = vunpack.c.l.b16 %v1064
        %v3125 = vunpack.c.l.b16 %v1065
        %v3126 = vunpack.c.l.b16 %v1066
        %v3127 = vunpack.c.l.b16 %v1067
        %v3128 = vunpack.c.l.b16 %v1068
        %v3129 = vunpack.c.l.b16 %v1069
        %v3130 = vunpack.c.l.b16 %v1070
        %v3131 = vunpack.c.l.b16 %v1071
        %v3132 = vunpack.c.l.b16 %v1072
        %v3133 = vunpack.c.l.b16 %v1073
        %v3134 = vunpack.c.l.b16 %v1074
        %v3135 = vunpack.c.l.b16 %v1075
        %v3136 = vunpack.c.l.b16 %v1076
        %v3137 = vunpack.c.l.b16 %v1077
        %v3138 = vunpack.c.l.b16 %v1078
        %v3139 = vunpack.c.l.b16 %v1079
        %v3140 = vunpack.c.l.b16 %v1080
        %v3141 = vunpack.c.l.b16 %v1081
        %v3142 = vunpack.c.l.b16 %v1082
        %v3143 = vunpack.c.l.b16 %v1083
        %v3144 = vunpack.c.l.b16 %v1084
        %v3145 = vunpack.c.l.b16 %v1085
        %v3146 = vunpack.c.l.b16 %v1086
        %v3147 = vunpack.c.l.b16 %v1087
        %v3148 = vunpack.c.l.b16 %v1088
        %v3149 = vunpack.c.l.b16 %v1089
        %v3150 = vunpack.c.l.b16 %v1090
        %v3151 = vunpack.c.l.b16 %v1091
        %v3152 = vunpack.c.l.b16 %v1092
        %v3153 = vunpack.c.l.b16 %v1093
        %v3154 = vunpack.c.l.b16 %v1094
        %v3155 = vunpack.c.l.b16 %v1095
        %v3156 = vunpack.c.l.b16 %v1096
        %v3157 = vunpack.c.l.b16 %v1097
        %v3158 = vunpack.c.l.b16 %v1098
        %v3159 = vunpack.c.l.b16 %v1099
        %v3160 = vunpack.c.l.b16 %v1100
        %v3161 = vunpack.c.l.b16 %v1101
        %v3162 = vunpack.c.l.b16 %v1102
        %v3163 = vunpack.c.l.b16 %v1103
        %v3164 = vunpack.c.l.b16 %v1104
        %v3165 = vunpack.c.l.b16 %v1105
        %v3166 = vunpack.c.l.b16 %v1106
        %v3167 = vunpack.c.l.b16 %v1107
        %v3168 = vunpack.c.l.b16 %v1108
        %v3169 = vunpack.c.l.b16 %v1109
        %v3170 = vunpack.c.l.b16 %v1110
        %v3171 = vunpack.c.l.b16 %v1111
        %v3172 = vunpack.c.l.b16 %v1112
        %v3173 = vunpack.c.l.b16 %v1113
        %v3174 = vunpack.c.l.b16 %v1114
        %v3175 = vunpack.c.l.b16 %v1115
        %v3176 = vunpack.c.l.b16 %v1116
        %v3177 = vunpack.c.l.b16 %v1117
        %v3178 = vunpack.c.l.b16 %v1118
        %v3179 = vunpack.c.l.b16 %v1119
        %v3180 = vunpack.c.l.b16 %v1120
        %v3181 = vunpack.c.l.b16 %v1121
        %v3182 = vunpack.c.l.b16 %v1122
        %v3183 = vunpack.c.l.b16 %v1123
        %v3184 = vunpack.c.l.b16 %v1124
        %v3185 = vunpack.c.l.b16 %v1125
        %v3186 = vunpack.c.l.b16 %v1126
        %v3187 = vunpack.c.l.b16 %v1127
        %v3188 = vunpack.c.l.b16 %v1128
        %v3189 = vunpack.c.l.b16 %v1129
        %v3190 = vunpack.c.l.b16 %v1130
        %v3191 = vunpack.c.l.b16 %v1131
        %v3192 = vunpack.c.l.b16 %v1132
        %v3193 = vunpack.c.l.b16 %v1133
        %v3194 = vunpack.c.l.b16 %v1134
        %v3195 = vunpack.c.l.b16 %v1135
        %v3196 = vunpack.c.l.b16 %v1136
        %v3197 = vunpack.c.l.b16 %v1137
        %v3198 = vunpack.c.l.b16 %v1138
        %v3199 = vunpack.c.l.b16 %v1139
        %v3200 = vunpack.c.l.b16 %v1140
        %v3201 = vunpack.c.l.b16 %v1141
        %v3202 = vunpack.c.l.b16 %v1142
        %v3203 = vunpack.c.l.b16 %v1143
        %v3204 = vunpack.c.l.b16 %v1144
        %v3205 = vunpack.c.l.b16 %v1145
        %v3206 = vunpack.c.l.b16 %v1146
        %v3207 = vunpack.c.l.b16 %v1147
        %v3208 = vunpack.c.l.b16 %v1148
        %v3209 = vunpack.c.l.b16 %v1149
        %v3210 = vunpack.c.l.b16 %v1150
        %v3211 = vunpack.c.l.b16 %v1151
        %v3212 = vunpack.c.l.b16 %v1152
        %v3213 = vunpack.c.l.b16 %v1153
        %v3214 = vunpack.c.l.b16 %v1154
        %v3215 = vunpack.c.l.b16 %v1155
        %v3216 = vunpack.c.l.b16 %v1156
        %v3217 = vunpack.c.l.b16 %v1157
        %v3218 = vunpack.c.l.b16 %v1158
        %v3219 = vunpack.c.l.b16 %v1159
        %v3220 = vunpack.c.l.b16 %v1160
        %v3221 = vunpack.c.l.b16 %v1161
        %v3222 = vunpack.c.l.b16 %v1162
        %v3223 = vunpack.c.l.b16 %v1163
        %v3224 = vunpack.c.l.b16 %v1164
        %v3225 = vunpack.c.l.b16 %v1165
        %v3226 = vunpack.c.l.b16 %v1166
        %v3227 = vunpack.c.l.b16 %v1167
        %v3228 = vunpack.c.l.b16 %v1168
        %v3229 = vunpack.c.l.b16 %v1169
        %v3230 = vunpack.c.l.b16 %v1170
        %v3231 = vunpack.c.l.b16 %v1171
        %v3232 = vunpack.c.l.b16 %v1172
        %v3233 = vunpack.c.l.b16 %v1173
        %v3234 = vunpack.c.l.b16 %v1174
        %v3235 = vunpack.c.l.b16 %v1175
        %v3236 = vunpack.c.l.b16 %v1176
        %v3237 = vunpack.c.l.b16 %v1177
        %v3238 = vunpack.c.l.b16 %v1178
        %v3239 = vunpack.c.l.b16 %v1179
        %v3240 = vunpack.c.l.b16 %v1180
        %v3241 = vunpack.c.l.b16 %v1181
        %v3242 = vunpack.c.l.b16 %v1182
        %v3243 = vunpack.c.l.b16 %v1183
        %v3244 = vunpack.c.l.b16 %v1184
        %v3245 = vunpack.c.l.b16 %v1185
        %v3246 = vunpack.c.l.b16 %v1186
        %v3247 = vunpack.c.l.b16 %v1187
        %v3248 = vunpack.c.l.b16 %v1188
        %v3249 = vunpack.c.l.b16 %v1189
        %v3250 = vunpack.c.l.b16 %v1190
        %v3251 = vunpack.c.l.b16 %v1191
        %v3252 = vunpack.c.l.b16 %v1192
        %v3253 = vunpack.c.l.b16 %v1193
        %v3254 = vunpack.c.l.b16 %v1194
        %v3255 = vunpack.c.l.b16 %v1195
        %v3256 = vunpack.c.l.b16 %v1196
        %v3257 = vunpack.c.l.b16 %v1197
        %v3258 = vunpack.c.l.b16 %v1198
        %v3259 = vunpack.c.l.b16 %v1199
        %v3260 = vunpack.c.l.b16 %v1200
        %v3261 = vunpack.c.l.b16 %v1201
        %v3262 = vunpack.c.l.b16 %v1202
        %v3263 = vunpack.c.l.b16 %v1203
        %v3264 = vunpack.c.l.b16 %v1204
        %v3265 = vunpack.c.l.b16 %v1205
        %v3266 = vunpack.c.l.b16 %v1206
        %v3267 = vunpack.c.l.b16 %v1207
        %v3268 = vunpack.c.l.b16 %v1208
        %v3269 = vunpack.c.l.b16 %v1209
        %v3270 = vunpack.c.l.b16 %v1210
        %v3271 = vunpack.c.l.b16 %v1211
        %v3272 = vunpack.c.l.b16 %v1212
        %v3273 = vunpack.c.l.b16 %v1213
        %v3274 = vunpack.c.l.b16 %v1214
        %v3275 = vunpack.c.l.b16 %v1215
        %v3276 = vunpack.c.l.b16 %v1216
        %v3277 = vunpack.c.l.b16 %v1217
        %v3278 = vunpack.c.l.b16 %v1218
        %v3279 = vunpack.c.l.b16 %v1219
        %v3280 = vunpack.c.l.b16 %v1220
        %v3281 = vunpack.c.l.b16 %v1221
        %v3282 = vunpack.c.l.b16 %v1222
        %v3283 = vunpack.c.l.b16 %v1223
        %v3284 = vunpack.c.l.b16 %v1224
        %v3285 = vunpack.c.l.b16 %v1225
        %v3286 = vunpack.c.l.b16 %v1226
        %v3287 = vunpack.c.l.b16 %v1227
        %v3288 = vunpack.c.l.b16 %v1228
        %v3289 = vunpack.c.l.b16 %v1229
        %v3290 = vunpack.c.l.b16 %v1230
        %v3291 = vunpack.c.l.b16 %v1231
        %v3292 = vunpack.c.l.b16 %v1232
        %v3293 = vunpack.c.l.b16 %v1233
        %v3294 = vunpack.c.l.b16 %v1234
        %v3295 = vunpack.c.l.b16 %v1235
        %v3296 = vunpack.c.l.b16 %v1236
        %v3297 = vunpack.c.l.b16 %v1237
        %v3298 = vunpack.c.l.b16 %v1238
        %v3299 = vunpack.c.l.b16 %v1239
        %v3300 = vunpack.c.l.b16 %v1240
        %v3301 = vunpack.c.l.b16 %v1241
        %v3302 = vunpack.c.l.b16 %v1242
        %v3303 = vunpack.c.l.b16 %v1243
        %v3304 = vunpack.c.l.b16 %v1244
        %v3305 = vunpack.c.l.b16 %v1245
        %v3306 = vunpack.c.l.b16 %v1246
        %v3307 = vunpack.c.l.b16 %v1247
        %v3308 = vunpack.c.l.b16 %v1248
        %v3309 = vunpack.c.l.b16 %v1249
        %v3310 = vpack.c.b16 %v2287, %v2286
        %v3311 = vpack.c.b16 %v2289, %v2288
        %v3312 = vpack.c.b16 %v2291, %v2290
        %v3313 = vpack.c.b16 %v2293, %v2292
        %v3314 = vpack.c.b16 %v2295, %v2294
        %v3315 = vpack.c.b16 %v2297, %v2296
        %v3316 = vpack.c.b16 %v2299, %v2298
        %v3317 = vpack.c.b16 %v2301, %v2300
        %v3318 = vpack.c.b16 %v2303, %v2302
        %v3319 = vpack.c.b16 %v2305, %v2304
        %v3320 = vpack.c.b16 %v2307, %v2306
        %v3321 = vpack.c.b16 %v2309, %v2308
        %v3322 = vpack.c.b16 %v2311, %v2310
        %v3323 = vpack.c.b16 %v2313, %v2312
        %v3324 = vpack.c.b16 %v2315, %v2314
        %v3325 = vpack.c.b16 %v2317, %v2316
        %v3326 = vpack.c.b16 %v2319, %v2318
        %v3327 = vpack.c.b16 %v2321, %v2320
        %v3328 = vpack.c.b16 %v2323, %v2322
        %v3329 = vpack.c.b16 %v2325, %v2324
        %v3330 = vpack.c.b16 %v2327, %v2326
        %v3331 = vpack.c.b16 %v2329, %v2328
        %v3332 = vpack.c.b16 %v2331, %v2330
        %v3333 = vpack.c.b16 %v2333, %v2332
        %v3334 = vpack.c.b16 %v2335, %v2334
        %v3335 = vpack.c.b16 %v2337, %v2336
        %v3336 = vpack.c.b16 %v2339, %v2338
        %v3337 = vpack.c.b16 %v2341, %v2340
        %v3338 = vpack.c.b16 %v2343, %v2342
        %v3339 = vpack.c.b16 %v2345, %v2344
        %v3340 = vpack.c.b16 %v2347, %v2346
        %v3341 = vpack.c.b16 %v2349, %v2348
        %v3342 = vpack.c.b16 %v2351, %v2350
        %v3343 = vpack.c.b16 %v2353, %v2352
        %v3344 = vpack.c.b16 %v2355, %v2354
        %v3345 = vpack.c.b16 %v2357, %v2356
        %v3346 = vpack.c.b16 %v2359, %v2358
        %v3347 = vpack.c.b16 %v2361, %v2360
        %v3348 = vpack.c.b16 %v2363, %v2362
        %v3349 = vpack.c.b16 %v2365, %v2364
        %v3350 = vpack.c.b16 %v2367, %v2366
        %v3351 = vpack.c.b16 %v2369, %v2368
        %v3352 = vpack.c.b16 %v2371, %v2370
        %v3353 = vpack.c.b16 %v2373, %v2372
        %v3354 = vpack.c.b16 %v2375, %v2374
        %v3355 = vpack.c.b16 %v2377, %v2376
        %v3356 = vpack.c.b16 %v2379, %v2378
        %v3357 = vpack.c.b16 %v2381, %v2380
        %v3358 = vpack.c.b16 %v2383, %v2382
        %v3359 = vpack.c.b16 %v2385, %v2384
        %v3360 = vpack.c.b16 %v2387, %v2386
        %v3361 = vpack.c.b16 %v2389, %v2388
        %v3362 = vpack.c.b16 %v2391, %v2390
        %v3363 = vpack.c.b16 %v2393, %v2392
        %v3364 = vpack.c.b16 %v2395, %v2394
        %v3365 = vpack.c.b16 %v2397, %v2396
        %v3366 = vpack.c.b16 %v2399, %v2398
        %v3367 = vpack.c.b16 %v2401, %v2400
        %v3368 = vpack.c.b16 %v2403, %v2402
        %v3369 = vpack.c.b16 %v2405, %v2404
        %v3370 = vpack.c.b16 %v2407, %v2406
        %v3371 = vpack.c.b16 %v2409, %v2408
        %v3372 = vpack.c.b16 %v2411, %v2410
        %v3373 = vpack.c.b16 %v2413, %v2412
        %v3374 = vpack.c.b16 %v2415, %v2414
        %v3375 = vpack.c.b16 %v2417, %v2416
        %v3376 = vpack.c.b16 %v2419, %v2418
        %v3377 = vpack.c.b16 %v2421, %v2420
        %v3378 = vpack.c.b16 %v2423, %v2422
        %v3379 = vpack.c.b16 %v2425, %v2424
        %v3380 = vpack.c.b16 %v2427, %v2426
        %v3381 = vpack.c.b16 %v2429, %v2428
        %v3382 = vpack.c.b16 %v2431, %v2430
        %v3383 = vpack.c.b16 %v2433, %v2432
        %v3384 = vpack.c.b16 %v2435, %v2434
        %v3385 = vpack.c.b16 %v2437, %v2436
        %v3386 = vpack.c.b16 %v2439, %v2438
        %v3387 = vpack.c.b16 %v2441, %v2440
        %v3388 = vpack.c.b16 %v2443, %v2442
        %v3389 = vpack.c.b16 %v2445, %v2444
        %v3390 = vpack.c.b16 %v2447, %v2446
        %v3391 = vpack.c.b16 %v2449, %v2448
        %v3392 = vpack.c.b16 %v2451, %v2450
        %v3393 = vpack.c.b16 %v2453, %v2452
        %v3394 = vpack.c.b16 %v2455, %v2454
        %v3395 = vpack.c.b16 %v2457, %v2456
        %v3396 = vpack.c.b16 %v2459, %v2458
        %v3397 = vpack.c.b16 %v2461, %v2460
        %v3398 = vpack.c.b16 %v2463, %v2462
        %v3399 = vpack.c.b16 %v2465, %v2464
        %v3400 = vpack.c.b16 %v2467, %v2466
        %v3401 = vpack.c.b16 %v2469, %v2468
        %v3402 = vpack.c.b16 %v2471, %v2470
        %v3403 = vpack.c.b16 %v2473, %v2472
        %v3404 = vpack.c.b16 %v2475, %v2474
        %v3405 = vpack.c.b16 %v2477, %v2476
        %v3406 = vpack.c.b16 %v2479, %v2478
        %v3407 = vpack.c.b16 %v2481, %v2480
        %v3408 = vpack.c.b16 %v2483, %v2482
        %v3409 = vpack.c.b16 %v2485, %v2484
        %v3410 = vpack.c.b16 %v2487, %v2486
        %v3411 = vpack.c.b16 %v2489, %v2488
        %v3412 = vpack.c.b16 %v2491, %v2490
        %v3413 = vpack.c.b16 %v2493, %v2492
        %v3414 = vpack.c.b16 %v2495, %v2494
        %v3415 = vpack.c.b16 %v2497, %v2496
        %v3416 = vpack.c.b16 %v2499, %v2498
        %v3417 = vpack.c.b16 %v2501, %v2500
        %v3418 = vpack.c.b16 %v2503, %v2502
        %v3419 = vpack.c.b16 %v2505, %v2504
        %v3420 = vpack.c.b16 %v2507, %v2506
        %v3421 = vpack.c.b16 %v2509, %v2508
        %v3422 = vpack.c.b16 %v2511, %v2510
        %v3423 = vpack.c.b16 %v2513, %v2512
        %v3424 = vpack.c.b16 %v2515, %v2514
        %v3425 = vpack.c.b16 %v2517, %v2516
        %v3426 = vpack.c.b16 %v2519, %v2518
        %v3427 = vpack.c.b16 %v2521, %v2520
        %v3428 = vpack.c.b16 %v2523, %v2522
        %v3429 = vpack.c.b16 %v2525, %v2524
        %v3430 = vpack.c.b16 %v2527, %v2526
        %v3431 = vpack.c.b16 %v2529, %v2528
        %v3432 = vpack.c.b16 %v2531, %v2530
        %v3433 = vpack.c.b16 %v2533, %v2532
        %v3434 = vpack.c.b16 %v2535, %v2534
        %v3435 = vpack.c.b16 %v2537, %v2536
        %v3436 = vpack.c.b16 %v2539, %v2538
        %v3437 = vpack.c.b16 %v2541, %v2540
        %v3438 = vpack.c.b16 %v2543, %v2542
        %v3439 = vpack.c.b16 %v2545, %v2544
        %v3440 = vpack.c.b16 %v2547, %v2546
        %v3441 = vpack.c.b16 %v2549, %v2548
        %v3442 = vpack.c.b16 %v2551, %v2550
        %v3443 = vpack.c.b16 %v2553, %v2552
        %v3444 = vpack.c.b16 %v2555, %v2554
        %v3445 = vpack.c.b16 %v2557, %v2556
        %v3446 = vpack.c.b16 %v2559, %v2558
        %v3447 = vpack.c.b16 %v2561, %v2560
        %v3448 = vpack.c.b16 %v2563, %v2562
        %v3449 = vpack.c.b16 %v2565, %v2564
        %v3450 = vpack.c.b16 %v2567, %v2566
        %v3451 = vpack.c.b16 %v2569, %v2568
        %v3452 = vpack.c.b16 %v2571, %v2570
        %v3453 = vpack.c.b16 %v2573, %v2572
        %v3454 = vpack.c.b16 %v2575, %v2574
        %v3455 = vpack.c.b16 %v2577, %v2576
        %v3456 = vpack.c.b16 %v2579, %v2578
        %v3457 = vpack.c.b16 %v2581, %v2580
        %v3458 = vpack.c.b16 %v2583, %v2582
        %v3459 = vpack.c.b16 %v2585, %v2584
        %v3460 = vpack.c.b16 %v2587, %v2586
        %v3461 = vpack.c.b16 %v2589, %v2588
        %v3462 = vpack.c.b16 %v2591, %v2590
        %v3463 = vpack.c.b16 %v2593, %v2592
        %v3464 = vpack.c.b16 %v2595, %v2594
        %v3465 = vpack.c.b16 %v2597, %v2596
        %v3466 = vpack.c.b16 %v2599, %v2598
        %v3467 = vpack.c.b16 %v2601, %v2600
        %v3468 = vpack.c.b16 %v2603, %v2602
        %v3469 = vpack.c.b16 %v2605, %v2604
        %v3470 = vpack.c.b16 %v2607, %v2606
        %v3471 = vpack.c.b16 %v2609, %v2608
        %v3472 = vpack.c.b16 %v2611, %v2610
        %v3473 = vpack.c.b16 %v2613, %v2612
        %v3474 = vpack.c.b16 %v2615, %v2614
        %v3475 = vpack.c.b16 %v2617, %v2616
        %v3476 = vpack.c.b16 %v2619, %v2618
        %v3477 = vpack.c.b16 %v2621, %v2620
        %v3478 = vpack.c.b16 %v2623, %v2622
        %v3479 = vpack.c.b16 %v2625, %v2624
        %v3480 = vpack.c.b16 %v2627, %v2626
        %v3481 = vpack.c.b16 %v2629, %v2628
        %v3482 = vpack.c.b16 %v2631, %v2630
        %v3483 = vpack.c.b16 %v2633, %v2632
        %v3484 = vpack.c.b16 %v2635, %v2634
        %v3485 = vpack.c.b16 %v2637, %v2636
        %v3486 = vpack.c.b16 %v2639, %v2638
        %v3487 = vpack.c.b16 %v2641, %v2640
        %v3488 = vpack.c.b16 %v2643, %v2642
        %v3489 = vpack.c.b16 %v2645, %v2644
        %v3490 = vpack.c.b16 %v2647, %v2646
        %v3491 = vpack.c.b16 %v2649, %v2648
        %v3492 = vpack.c.b16 %v2651, %v2650
        %v3493 = vpack.c.b16 %v2653, %v2652
        %v3494 = vpack.c.b16 %v2655, %v2654
        %v3495 = vpack.c.b16 %v2657, %v2656
        %v3496 = vpack.c.b16 %v2659, %v2658
        %v3497 = vpack.c.b16 %v2661, %v2660
        %v3498 = vpack.c.b16 %v2663, %v2662
        %v3499 = vpack.c.b16 %v2665, %v2664
        %v3500 = vpack.c.b16 %v2667, %v2666
        %v3501 = vpack.c.b16 %v2669, %v2668
        %v3502 = vpack.c.b16 %v2671, %v2670
        %v3503 = vpack.c.b16 %v2673, %v2672
        %v3504 = vpack.c.b16 %v2675, %v2674
        %v3505 = vpack.c.b16 %v2677, %v2676
        %v3506 = vpack.c.b16 %v2679, %v2678
        %v3507 = vpack.c.b16 %v2681, %v2680
        %v3508 = vpack.c.b16 %v2683, %v2682
        %v3509 = vpack.c.b16 %v2685, %v2684
        %v3510 = vpack.c.b16 %v2687, %v2686
        %v3511 = vpack.c.b16 %v2689, %v2688
        %v3512 = vpack.c.b16 %v2691, %v2690
        %v3513 = vpack.c.b16 %v2693, %v2692
        %v3514 = vpack.c.b16 %v2695, %v2694
        %v3515 = vpack.c.b16 %v2697, %v2696
        %v3516 = vpack.c.b16 %v2699, %v2698
        %v3517 = vpack.c.b16 %v2701, %v2700
        %v3518 = vpack.c.b16 %v2703, %v2702
        %v3519 = vpack.c.b16 %v2705, %v2704
        %v3520 = vpack.c.b16 %v2707, %v2706
        %v3521 = vpack.c.b16 %v2709, %v2708
        %v3522 = vpack.c.b16 %v2711, %v2710
        %v3523 = vpack.c.b16 %v2713, %v2712
        %v3524 = vpack.c.b16 %v2715, %v2714
        %v3525 = vpack.c.b16 %v2717, %v2716
        %v3526 = vpack.c.b16 %v2719, %v2718
        %v3527 = vpack.c.b16 %v2721, %v2720
        %v3528 = vpack.c.b16 %v2723, %v2722
        %v3529 = vpack.c.b16 %v2725, %v2724
        %v3530 = vpack.c.b16 %v2727, %v2726
        %v3531 = vpack.c.b16 %v2729, %v2728
        %v3532 = vpack.c.b16 %v2731, %v2730
        %v3533 = vpack.c.b16 %v2733, %v2732
        %v3534 = vpack.c.b16 %v2735, %v2734
        %v3535 = vpack.c.b16 %v2737, %v2736
        %v3536 = vpack.c.b16 %v2739, %v2738
        %v3537 = vpack.c.b16 %v2741, %v2740
        %v3538 = vpack.c.b16 %v2743, %v2742
        %v3539 = vpack.c.b16 %v2745, %v2744
        %v3540 = vpack.c.b16 %v2747, %v2746
        %v3541 = vpack.c.b16 %v2749, %v2748
        %v3542 = vpack.c.b16 %v2751, %v2750
        %v3543 = vpack.c.b16 %v2753, %v2752
        %v3544 = vpack.c.b16 %v2755, %v2754
        %v3545 = vpack.c.b16 %v2757, %v2756
        %v3546 = vpack.c.b16 %v2759, %v2758
        %v3547 = vpack.c.b16 %v2761, %v2760
        %v3548 = vpack.c.b16 %v2763, %v2762
        %v3549 = vpack.c.b16 %v2765, %v2764
        %v3550 = vpack.c.b16 %v2767, %v2766
        %v3551 = vpack.c.b16 %v2769, %v2768
        %v3552 = vpack.c.b16 %v2771, %v2770
        %v3553 = vpack.c.b16 %v2773, %v2772
        %v3554 = vpack.c.b16 %v2775, %v2774
        %v3555 = vpack.c.b16 %v2777, %v2776
        %v3556 = vpack.c.b16 %v2779, %v2778
        %v3557 = vpack.c.b16 %v2781, %v2780
        %v3558 = vpack.c.b16 %v2783, %v2782
        %v3559 = vpack.c.b16 %v2785, %v2784
        %v3560 = vpack.c.b16 %v2787, %v2786
        %v3561 = vpack.c.b16 %v2789, %v2788
        %v3562 = vpack.c.b16 %v2791, %v2790
        %v3563 = vpack.c.b16 %v2793, %v2792
        %v3564 = vpack.c.b16 %v2795, %v2794
        %v3565 = vpack.c.b16 %v2797, %v2796
        %v3566 = vpack.c.b16 %v2799, %v2798
        %v3567 = vpack.c.b16 %v2801, %v2800
        %v3568 = vpack.c.b16 %v2803, %v2802
        %v3569 = vpack.c.b16 %v2805, %v2804
        %v3570 = vpack.c.b16 %v2807, %v2806
        %v3571 = vpack.c.b16 %v2809, %v2808
        %v3572 = vpack.c.b16 %v2811, %v2810
        %v3573 = vpack.c.b16 %v2813, %v2812
        %v3574 = vpack.c.b16 %v2815, %v2814
        %v3575 = vpack.c.b16 %v2817, %v2816
        %v3576 = vpack.c.b16 %v2819, %v2818
        %v3577 = vpack.c.b16 %v2821, %v2820
        %v3578 = vpack.c.b16 %v2823, %v2822
        %v3579 = vpack.c.b16 %v2825, %v2824
        %v3580 = vpack.c.b16 %v2827, %v2826
        %v3581 = vpack.c.b16 %v2829, %v2828
        %v3582 = vpack.c.b16 %v2831, %v2830
        %v3583 = vpack.c.b16 %v2833, %v2832
        %v3584 = vpack.c.b16 %v2835, %v2834
        %v3585 = vpack.c.b16 %v2837, %v2836
        %v3586 = vpack.c.b16 %v2839, %v2838
        %v3587 = vpack.c.b16 %v2841, %v2840
        %v3588 = vpack.c.b16 %v2843, %v2842
        %v3589 = vpack.c.b16 %v2845, %v2844
        %v3590 = vpack.c.b16 %v2847, %v2846
        %v3591 = vpack.c.b16 %v2849, %v2848
        %v3592 = vpack.c.b16 %v2851, %v2850
        %v3593 = vpack.c.b16 %v2853, %v2852
        %v3594 = vpack.c.b16 %v2855, %v2854
        %v3595 = vpack.c.b16 %v2857, %v2856
        %v3596 = vpack.c.b16 %v2859, %v2858
        %v3597 = vpack.c.b16 %v2861, %v2860
        %v3598 = vpack.c.b16 %v2863, %v2862
        %v3599 = vpack.c.b16 %v2865, %v2864
        %v3600 = vpack.c.b16 %v2867, %v2866
        %v3601 = vpack.c.b16 %v2869, %v2868
        %v3602 = vpack.c.b16 %v2871, %v2870
        %v3603 = vpack.c.b16 %v2873, %v2872
        %v3604 = vpack.c.b16 %v2875, %v2874
        %v3605 = vpack.c.b16 %v2877, %v2876
        %v3606 = vpack.c.b16 %v2879, %v2878
        %v3607 = vpack.c.b16 %v2881, %v2880
        %v3608 = vpack.c.b16 %v2883, %v2882
        %v3609 = vpack.c.b16 %v2885, %v2884
        %v3610 = vpack.c.b16 %v2887, %v2886
        %v3611 = vpack.c.b16 %v2889, %v2888
        %v3612 = vpack.c.b16 %v2891, %v2890
        %v3613 = vpack.c.b16 %v2893, %v2892
        %v3614 = vpack.c.b16 %v2895, %v2894
        %v3615 = vpack.c.b16 %v2897, %v2896
        %v3616 = vpack.c.b16 %v2899, %v2898
        %v3617 = vpack.c.b16 %v2901, %v2900
        %v3618 = vpack.c.b16 %v2903, %v2902
        %v3619 = vpack.c.b16 %v2905, %v2904
        %v3620 = vpack.c.b16 %v2907, %v2906
        %v3621 = vpack.c.b16 %v2909, %v2908
        %v3622 = vpack.c.b16 %v2911, %v2910
        %v3623 = vpack.c.b16 %v2913, %v2912
        %v3624 = vpack.c.b16 %v2915, %v2914
        %v3625 = vpack.c.b16 %v2917, %v2916
        %v3626 = vpack.c.b16 %v2919, %v2918
        %v3627 = vpack.c.b16 %v2921, %v2920
        %v3628 = vpack.c.b16 %v2923, %v2922
        %v3629 = vpack.c.b16 %v2925, %v2924
        %v3630 = vpack.c.b16 %v2927, %v2926
        %v3631 = vpack.c.b16 %v2929, %v2928
        %v3632 = vpack.c.b16 %v2931, %v2930
        %v3633 = vpack.c.b16 %v2933, %v2932
        %v3634 = vpack.c.b16 %v2935, %v2934
        %v3635 = vpack.c.b16 %v2937, %v2936
        %v3636 = vpack.c.b16 %v2939, %v2938
        %v3637 = vpack.c.b16 %v2941, %v2940
        %v3638 = vpack.c.b16 %v2943, %v2942
        %v3639 = vpack.c.b16 %v2945, %v2944
        %v3640 = vpack.c.b16 %v2947, %v2946
        %v3641 = vpack.c.b16 %v2949, %v2948
        %v3642 = vpack.c.b16 %v2951, %v2950
        %v3643 = vpack.c.b16 %v2953, %v2952
        %v3644 = vpack.c.b16 %v2955, %v2954
        %v3645 = vpack.c.b16 %v2957, %v2956
        %v3646 = vpack.c.b16 %v2959, %v2958
        %v3647 = vpack.c.b16 %v2961, %v2960
        %v3648 = vpack.c.b16 %v2963, %v2962
        %v3649 = vpack.c.b16 %v2965, %v2964
        %v3650 = vpack.c.b16 %v2967, %v2966
        %v3651 = vpack.c.b16 %v2969, %v2968
        %v3652 = vpack.c.b16 %v2971, %v2970
        %v3653 = vpack.c.b16 %v2973, %v2972
        %v3654 = vpack.c.b16 %v2975, %v2974
        %v3655 = vpack.c.b16 %v2977, %v2976
        %v3656 = vpack.c.b16 %v2979, %v2978
        %v3657 = vpack.c.b16 %v2981, %v2980
        %v3658 = vpack.c.b16 %v2983, %v2982
        %v3659 = vpack.c.b16 %v2985, %v2984
        %v3660 = vpack.c.b16 %v2987, %v2986
        %v3661 = vpack.c.b16 %v2989, %v2988
        %v3662 = vpack.c.b16 %v2991, %v2990
        %v3663 = vpack.c.b16 %v2993, %v2992
        %v3664 = vpack.c.b16 %v2995, %v2994
        %v3665 = vpack.c.b16 %v2997, %v2996
        %v3666 = vpack.c.b16 %v2999, %v2998
        %v3667 = vpack.c.b16 %v3001, %v3000
        %v3668 = vpack.c.b16 %v3003, %v3002
        %v3669 = vpack.c.b16 %v3005, %v3004
        %v3670 = vpack.c.b16 %v3007, %v3006
        %v3671 = vpack.c.b16 %v3009, %v3008
        %v3672 = vpack.c.b16 %v3011, %v3010
        %v3673 = vpack.c.b16 %v3013, %v3012
        %v3674 = vpack.c.b16 %v3015, %v3014
        %v3675 = vpack.c.b16 %v3017, %v3016
        %v3676 = vpack.c.b16 %v3019, %v3018
        %v3677 = vpack.c.b16 %v3021, %v3020
        %v3678 = vpack.c.b16 %v3023, %v3022
        %v3679 = vpack.c.b16 %v3025, %v3024
        %v3680 = vpack.c.b16 %v3027, %v3026
        %v3681 = vpack.c.b16 %v3029, %v3028
        %v3682 = vpack.c.b16 %v3031, %v3030
        %v3683 = vpack.c.b16 %v3033, %v3032
        %v3684 = vpack.c.b16 %v3035, %v3034
        %v3685 = vpack.c.b16 %v3037, %v3036
        %v3686 = vpack.c.b16 %v3039, %v3038
        %v3687 = vpack.c.b16 %v3041, %v3040
        %v3688 = vpack.c.b16 %v3043, %v3042
        %v3689 = vpack.c.b16 %v3045, %v3044
        %v3690 = vpack.c.b16 %v3047, %v3046
        %v3691 = vpack.c.b16 %v3049, %v3048
        %v3692 = vpack.c.b16 %v3051, %v3050
        %v3693 = vpack.c.b16 %v3053, %v3052
        %v3694 = vpack.c.b16 %v3055, %v3054
        %v3695 = vpack.c.b16 %v3057, %v3056
        %v3696 = vpack.c.b16 %v3059, %v3058
        %v3697 = vpack.c.b16 %v3061, %v3060
        %v3698 = vpack.c.b16 %v3063, %v3062
        %v3699 = vpack.c.b16 %v3065, %v3064
        %v3700 = vpack.c.b16 %v3067, %v3066
        %v3701 = vpack.c.b16 %v3069, %v3068
        %v3702 = vpack.c.b16 %v3071, %v3070
        %v3703 = vpack.c.b16 %v3073, %v3072
        %v3704 = vpack.c.b16 %v3075, %v3074
        %v3705 = vpack.c.b16 %v3077, %v3076
        %v3706 = vpack.c.b16 %v3079, %v3078
        %v3707 = vpack.c.b16 %v3081, %v3080
        %v3708 = vpack.c.b16 %v3083, %v3082
        %v3709 = vpack.c.b16 %v3085, %v3084
        %v3710 = vpack.c.b16 %v3087, %v3086
        %v3711 = vpack.c.b16 %v3089, %v3088
        %v3712 = vpack.c.b16 %v3091, %v3090
        %v3713 = vpack.c.b16 %v3093, %v3092
        %v3714 = vpack.c.b16 %v3095, %v3094
        %v3715 = vpack.c.b16 %v3097, %v3096
        %v3716 = vpack.c.b16 %v3099, %v3098
        %v3717 = vpack.c.b16 %v3101, %v3100
        %v3718 = vpack.c.b16 %v3103, %v3102
        %v3719 = vpack.c.b16 %v3105, %v3104
        %v3720 = vpack.c.b16 %v3107, %v3106
        %v3721 = vpack.c.b16 %v3109, %v3108
        %v3722 = vpack.c.b16 %v3111, %v3110
        %v3723 = vpack.c.b16 %v3113, %v3112
        %v3724 = vpack.c.b16 %v3115, %v3114
        %v3725 = vpack.c.b16 %v3117, %v3116
        %v3726 = vpack.c.b16 %v3119, %v3118
        %v3727 = vpack.c.b16 %v3121, %v3120
        %v3728 = vpack.c.b16 %v3123, %v3122
        %v3729 = vpack.c.b16 %v3125, %v3124
        %v3730 = vpack.c.b16 %v3127, %v3126
        %v3731 = vpack.c.b16 %v3129, %v3128
        %v3732 = vpack.c.b16 %v3131, %v3130
        %v3733 = vpack.c.b16 %v3133, %v3132
        %v3734 = vpack.c.b16 %v3135, %v3134
        %v3735 = vpack.c.b16 %v3137, %v3136
        %v3736 = vpack.c.b16 %v3139, %v3138
        %v3737 = vpack.c.b16 %v3141, %v3140
        %v3738 = vpack.c.b16 %v3143, %v3142
        %v3739 = vpack.c.b16 %v3145, %v3144
        %v3740 = vpack.c.b16 %v3147, %v3146
        %v3741 = vpack.c.b16 %v3149, %v3148
        %v3742 = vpack.c.b16 %v3151, %v3150
        %v3743 = vpack.c.b16 %v3153, %v3152
        %v3744 = vpack.c.b16 %v3155, %v3154
        %v3745 = vpack.c.b16 %v3157, %v3156
        %v3746 = vpack.c.b16 %v3159, %v3158
        %v3747 = vpack.c.b16 %v3161, %v3160
        %v3748 = vpack.c.b16 %v3163, %v3162
        %v3749 = vpack.c.b16 %v3165, %v3164
        %v3750 = vpack.c.b16 %v3167, %v3166
        %v3751 = vpack.c.b16 %v3169, %v3168
        %v3752 = vpack.c.b16 %v3171, %v3170
        %v3753 = vpack.c.b16 %v3173, %v3172
        %v3754 = vpack.c.b16 %v3175, %v3174
        %v3755 = vpack.c.b16 %v3177, %v3176
        %v3756 = vpack.c.b16 %v3179, %v3178
        %v3757 = vpack.c.b16 %v3181, %v3180
        %v3758 = vpack.c.b16 %v3183, %v3182
        %v3759 = vpack.c.b16 %v3185, %v3184
        %v3760 = vpack.c.b16 %v3187, %v3186
        %v3761 = vpack.c.b16 %v3189, %v3188
        %v3762 = vpack.c.b16 %v3191, %v3190
        %v3763 = vpack.c.b16 %v3193, %v3192
        %v3764 = vpack.c.b16 %v3195, %v3194
        %v3765 = vpack.c.b16 %v3197, %v3196
        %v3766 = vpack.c.b16 %v3199, %v3198
        %v3767 = vpack.c.b16 %v3201, %v3200
        %v3768 = vpack.c.b16 %v3203, %v3202
        %v3769 = vpack.c.b16 %v3205, %v3204
        %v3770 = vpack.c.b16 %v3207, %v3206
        %v3771 = vpack.c.b16 %v3209, %v3208
        %v3772 = vpack.c.b16 %v3211, %v3210
        %v3773 = vpack.c.b16 %v3213, %v3212
        %v3774 = vpack.c.b16 %v3215, %v3214
        %v3775 = vpack.c.b16 %v3217, %v3216
        %v3776 = vpack.c.b16 %v3219, %v3218
        %v3777 = vpack.c.b16 %v3221, %v3220
        %v3778 = vpack.c.b16 %v3223, %v3222
        %v3779 = vpack.c.b16 %v3225, %v3224
        %v3780 = vpack.c.b16 %v3227, %v3226
        %v3781 = vpack.c.b16 %v3229, %v3228
        %v3782 = vpack.c.b16 %v3231, %v3230
        %v3783 = vpack.c.b16 %v3233, %v3232
        %v3784 = vpack.c.b16 %v3235, %v3234
        %v3785 = vpack.c.b16 %v3237, %v3236
        %v3786 = vpack.c.b16 %v3239, %v3238
        %v3787 = vpack.c.b16 %v3241, %v3240
        %v3788 = vpack.c.b16 %v3243, %v3242
        %v3789 = vpack.c.b16 %v3245, %v3244
        %v3790 = vpack.c.b16 %v3247, %v3246
        %v3791 = vpack.c.b16 %v3249, %v3248
        %v3792 = vpack.c.b16 %v3251, %v3250
        %v3793 = vpack.c.b16 %v3253, %v3252
        %v3794 = vpack.c.b16 %v3255, %v3254
        %v3795 = vpack.c.b16 %v3257, %v3256
        %v3796 = vpack.c.b16 %v3259, %v3258
        %v3797 = vpack.c.b16 %v3261, %v3260
        %v3798 = vpack.c.b16 %v3263, %v3262
        %v3799 = vpack.c.b16 %v3265, %v3264
        %v3800 = vpack.c.b16 %v3267, %v3266
        %v3801 = vpack.c.b16 %v3269, %v3268
        %v3802 = vpack.c.b16 %v3271, %v3270
        %v3803 = vpack.c.b16 %v3273, %v3272
        %v3804 = vpack.c.b16 %v3275, %v3274
        %v3805 = vpack.c.b16 %v3277, %v3276
        %v3806 = vpack.c.b16 %v3279, %v3278
        %v3807 = vpack.c.b16 %v3281, %v3280
        %v3808 = vpack.c.b16 %v3283, %v3282
        %v3809 = vpack.c.b16 %v3285, %v3284
        %v3810 = vpack.c.b16 %v3287, %v3286
        %v3811 = vpack.c.b16 %v3289, %v3288
        %v3812 = vpack.c.b16 %v3291, %v3290
        %v3813 = vpack.c.b16 %v3293, %v3292
        %v3814 = vpack.c.b16 %v3295, %v3294
        %v3815 = vpack.c.b16 %v3297, %v3296
        %v3816 = vpack.c.b16 %v3299, %v3298
        %v3817 = vpack.c.b16 %v3301, %v3300
        %v3818 = vpack.c.b16 %v3303, %v3302
        %v3819 = vpack.c.b16 %v3305, %v3304
        %v3820 = vpack.c.b16 %v3307, %v3306
        %v3821 = vpack.c.b16 %v3309, %v3308
        %v3827 = vunpack.c.l.b16 %v1250
        %v3828 = vunpack.c.l.b16 %v1251
        %v3829 = vunpack.c.l.b16 %v1252
        %v3830 = vunpack.c.l.b16 %v1253
        %v3831 = vunpack.c.l.b16 %v1254
        %v3832 = vpack.c.b16 %v3828, %v3827
        %v3833 = vpack.c.b16 %v3830, %v3829
        %v3834 = vpack.c.b16 %v3831, %v3831
        %vm3837 = vcmask 293888
        %v3839 = vsel %vm3837, %v3310, 0
        %v3842 = vsel %vm3837, %v3311, 0
        %v3845 = vsel %vm3837, %v3312, 0
        %v3848 = vsel %vm3837, %v3313, 0
        %v3851 = vsel %vm3837, %v3314, 0
        %v3854 = vsel %vm3837, %v3315, 0
        %v3857 = vsel %vm3837, %v3316, 0
        %v3860 = vsel %vm3837, %v3317, 0
        %v3863 = vsel %vm3837, %v3318, 0
        %v3866 = vsel %vm3837, %v3319, 0
        %v3869 = vsel %vm3837, %v3320, 0
        %v3872 = vsel %vm3837, %v3321, 0
        %v3875 = vsel %vm3837, %v3322, 0
        %v3878 = vsel %vm3837, %v3323, 0
        %v3881 = vsel %vm3837, %v3324, 0
        %v3884 = vsel %vm3837, %v3325, 0
        %v3887 = vsel %vm3837, %v3326, 0
        %v3890 = vsel %vm3837, %v3327, 0
        %v3893 = vsel %vm3837, %v3328, 0
        %v3896 = vsel %vm3837, %v3329, 0
        %v3899 = vsel %vm3837, %v3330, 0
        %v3902 = vsel %vm3837, %v3331, 0
        %v3905 = vsel %vm3837, %v3332, 0
        %v3908 = vsel %vm3837, %v3333, 0
        %v3911 = vsel %vm3837, %v3334, 0
        %v3914 = vsel %vm3837, %v3335, 0
        %v3917 = vsel %vm3837, %v3336, 0
        %v3920 = vsel %vm3837, %v3337, 0
        %v3923 = vsel %vm3837, %v3338, 0
        %v3926 = vsel %vm3837, %v3339, 0
        %v3929 = vsel %vm3837, %v3340, 0
        %v3932 = vsel %vm3837, %v3341, 0
        %v3935 = vsel %vm3837, %v3342, 0
        %v3938 = vsel %vm3837, %v3343, 0
        %v3941 = vsel %vm3837, %v3344, 0
        %v3944 = vsel %vm3837, %v3345, 0
        %v3947 = vsel %vm3837, %v3346, 0
        %v3950 = vsel %vm3837, %v3347, 0
        %v3953 = vsel %vm3837, %v3348, 0
        %v3956 = vsel %vm3837, %v3349, 0
        %v3959 = vsel %vm3837, %v3350, 0
        %v3962 = vsel %vm3837, %v3351, 0
        %v3965 = vsel %vm3837, %v3352, 0
        %v3968 = vsel %vm3837, %v3353, 0
        %v3971 = vsel %vm3837, %v3354, 0
        %v3974 = vsel %vm3837, %v3355, 0
        %v3977 = vsel %vm3837, %v3356, 0
        %v3980 = vsel %vm3837, %v3357, 0
        %v3983 = vsel %vm3837, %v3358, 0
        %v3986 = vsel %vm3837, %v3359, 0
        %v3989 = vsel %vm3837, %v3360, 0
        %v3992 = vsel %vm3837, %v3361, 0
        %v3995 = vsel %vm3837, %v3362, 0
        %v3998 = vsel %vm3837, %v3363, 0
        %v4001 = vsel %vm3837, %v3364, 0
        %v4004 = vsel %vm3837, %v3365, 0
        %v4007 = vsel %vm3837, %v3366, 0
        %v4010 = vsel %vm3837, %v3367, 0
        %v4013 = vsel %vm3837, %v3368, 0
        %v4016 = vsel %vm3837, %v3369, 0
        %v4019 = vsel %vm3837, %v3370, 0
        %v4022 = vsel %vm3837, %v3371, 0
        %v4025 = vsel %vm3837, %v3372, 0
        %v4028 = vsel %vm3837, %v3373, 0
        %v4031 = vsel %vm3837, %v3374, 0
        %v4034 = vsel %vm3837, %v3375, 0
        %v4037 = vsel %vm3837, %v3376, 0
        %v4040 = vsel %vm3837, %v3377, 0
        %v4043 = vsel %vm3837, %v3378, 0
        %v4046 = vsel %vm3837, %v3379, 0
        %v4049 = vsel %vm3837, %v3380, 0
        %v4052 = vsel %vm3837, %v3381, 0
        %v4055 = vsel %vm3837, %v3382, 0
        %v4058 = vsel %vm3837, %v3383, 0
        %v4061 = vsel %vm3837, %v3384, 0
        %v4064 = vsel %vm3837, %v3385, 0
        %v4067 = vsel %vm3837, %v3386, 0
        %v4070 = vsel %vm3837, %v3387, 0
        %v4073 = vsel %vm3837, %v3388, 0
        %v4076 = vsel %vm3837, %v3389, 0
        %v4079 = vsel %vm3837, %v3390, 0
        %v4082 = vsel %vm3837, %v3391, 0
        %v4085 = vsel %vm3837, %v3392, 0
        %v4088 = vsel %vm3837, %v3393, 0
        %v4091 = vsel %vm3837, %v3394, 0
        %v4094 = vsel %vm3837, %v3395, 0
        %v4097 = vsel %vm3837, %v3396, 0
        %v4100 = vsel %vm3837, %v3397, 0
        %v4103 = vsel %vm3837, %v3398, 0
        %v4106 = vsel %vm3837, %v3399, 0
        %v4109 = vsel %vm3837, %v3400, 0
        %v4112 = vsel %vm3837, %v3401, 0
        %v4115 = vsel %vm3837, %v3402, 0
        %v4118 = vsel %vm3837, %v3403, 0
        %v4121 = vsel %vm3837, %v3404, 0
        %v4124 = vsel %vm3837, %v3405, 0
        %v4127 = vsel %vm3837, %v3406, 0
        %v4130 = vsel %vm3837, %v3407, 0
        %v4133 = vsel %vm3837, %v3408, 0
        %v4136 = vsel %vm3837, %v3409, 0
        %v4139 = vsel %vm3837, %v3410, 0
        %v4142 = vsel %vm3837, %v3411, 0
        %v4145 = vsel %vm3837, %v3412, 0
        %v4148 = vsel %vm3837, %v3413, 0
        %v4151 = vsel %vm3837, %v3414, 0
        %v4154 = vsel %vm3837, %v3415, 0
        %v4157 = vsel %vm3837, %v3416, 0
        %v4160 = vsel %vm3837, %v3417, 0
        %v4163 = vsel %vm3837, %v3418, 0
        %v4166 = vsel %vm3837, %v3419, 0
        %v4169 = vsel %vm3837, %v3420, 0
        %v4172 = vsel %vm3837, %v3421, 0
        %v4175 = vsel %vm3837, %v3422, 0
        %v4178 = vsel %vm3837, %v3423, 0
        %v4181 = vsel %vm3837, %v3424, 0
        %v4184 = vsel %vm3837, %v3425, 0
        %v4187 = vsel %vm3837, %v3426, 0
        %v4190 = vsel %vm3837, %v3427, 0
        %v4193 = vsel %vm3837, %v3428, 0
        %v4196 = vsel %vm3837, %v3429, 0
        %v4199 = vsel %vm3837, %v3430, 0
        %v4202 = vsel %vm3837, %v3431, 0
        %v4205 = vsel %vm3837, %v3432, 0
        %v4208 = vsel %vm3837, %v3433, 0
        %v4211 = vsel %vm3837, %v3434, 0
        %v4214 = vsel %vm3837, %v3435, 0
        %v4217 = vsel %vm3837, %v3436, 0
        %v4220 = vsel %vm3837, %v3437, 0
        %v4223 = vsel %vm3837, %v3438, 0
        %v4226 = vsel %vm3837, %v3439, 0
        %v4229 = vsel %vm3837, %v3440, 0
        %v4232 = vsel %vm3837, %v3441, 0
        %v4235 = vsel %vm3837, %v3442, 0
        %v4238 = vsel %vm3837, %v3443, 0
        %v4241 = vsel %vm3837, %v3444, 0
        %v4244 = vsel %vm3837, %v3445, 0
        %v4247 = vsel %vm3837, %v3446, 0
        %v4250 = vsel %vm3837, %v3447, 0
        %v4253 = vsel %vm3837, %v3448, 0
        %v4256 = vsel %vm3837, %v3449, 0
        %v4259 = vsel %vm3837, %v3450, 0
        %v4262 = vsel %vm3837, %v3451, 0
        %v4265 = vsel %vm3837, %v3452, 0
        %v4268 = vsel %vm3837, %v3453, 0
        %v4271 = vsel %vm3837, %v3454, 0
        %v4274 = vsel %vm3837, %v3455, 0
        %v4277 = vsel %vm3837, %v3456, 0
        %v4280 = vsel %vm3837, %v3457, 0
        %v4283 = vsel %vm3837, %v3458, 0
        %v4286 = vsel %vm3837, %v3459, 0
        %v4289 = vsel %vm3837, %v3460, 0
        %v4292 = vsel %vm3837, %v3461, 0
        %v4295 = vsel %vm3837, %v3462, 0
        %v4298 = vsel %vm3837, %v3463, 0
        %v4301 = vsel %vm3837, %v3464, 0
        %v4304 = vsel %vm3837, %v3465, 0
        %v4307 = vsel %vm3837, %v3466, 0
        %v4310 = vsel %vm3837, %v3467, 0
        %v4313 = vsel %vm3837, %v3468, 0
        %v4316 = vsel %vm3837, %v3469, 0
        %v4319 = vsel %vm3837, %v3470, 0
        %v4322 = vsel %vm3837, %v3471, 0
        %v4325 = vsel %vm3837, %v3472, 0
        %v4328 = vsel %vm3837, %v3473, 0
        %v4331 = vsel %vm3837, %v3474, 0
        %v4334 = vsel %vm3837, %v3475, 0
        %v4337 = vsel %vm3837, %v3476, 0
        %v4340 = vsel %vm3837, %v3477, 0
        %v4343 = vsel %vm3837, %v3478, 0
        %v4346 = vsel %vm3837, %v3479, 0
        %v4349 = vsel %vm3837, %v3480, 0
        %v4352 = vsel %vm3837, %v3481, 0
        %v4355 = vsel %vm3837, %v3482, 0
        %v4358 = vsel %vm3837, %v3483, 0
        %v4361 = vsel %vm3837, %v3484, 0
        %v4364 = vsel %vm3837, %v3485, 0
        %v4367 = vsel %vm3837, %v3486, 0
        %v4370 = vsel %vm3837, %v3487, 0
        %v4373 = vsel %vm3837, %v3488, 0
        %v4376 = vsel %vm3837, %v3489, 0
        %v4379 = vsel %vm3837, %v3490, 0
        %v4382 = vsel %vm3837, %v3491, 0
        %v4385 = vsel %vm3837, %v3492, 0
        %v4388 = vsel %vm3837, %v3493, 0
        %v4391 = vsel %vm3837, %v3494, 0
        %v4394 = vsel %vm3837, %v3495, 0
        %v4397 = vsel %vm3837, %v3496, 0
        %v4400 = vsel %vm3837, %v3497, 0
        %v4403 = vsel %vm3837, %v3498, 0
        %v4406 = vsel %vm3837, %v3499, 0
        %v4409 = vsel %vm3837, %v3500, 0
        %v4412 = vsel %vm3837, %v3501, 0
        %v4415 = vsel %vm3837, %v3502, 0
        %v4418 = vsel %vm3837, %v3503, 0
        %v4421 = vsel %vm3837, %v3504, 0
        %v4424 = vsel %vm3837, %v3505, 0
        %v4427 = vsel %vm3837, %v3506, 0
        %v4430 = vsel %vm3837, %v3507, 0
        %v4433 = vsel %vm3837, %v3508, 0
        %v4436 = vsel %vm3837, %v3509, 0
        %v4439 = vsel %vm3837, %v3510, 0
        %v4442 = vsel %vm3837, %v3511, 0
        %v4445 = vsel %vm3837, %v3512, 0
        %v4448 = vsel %vm3837, %v3513, 0
        %v4451 = vsel %vm3837, %v3514, 0
        %v4454 = vsel %vm3837, %v3515, 0
        %v4457 = vsel %vm3837, %v3516, 0
        %v4460 = vsel %vm3837, %v3517, 0
        %v4463 = vsel %vm3837, %v3518, 0
        %v4466 = vsel %vm3837, %v3519, 0
        %v4469 = vsel %vm3837, %v3520, 0
        %v4472 = vsel %vm3837, %v3521, 0
        %v4475 = vsel %vm3837, %v3522, 0
        %v4478 = vsel %vm3837, %v3523, 0
        %v4481 = vsel %vm3837, %v3524, 0
        %v4484 = vsel %vm3837, %v3525, 0
        %v4487 = vsel %vm3837, %v3526, 0
        %v4490 = vsel %vm3837, %v3527, 0
        %v4493 = vsel %vm3837, %v3528, 0
        %v4496 = vsel %vm3837, %v3529, 0
        %v4499 = vsel %vm3837, %v3530, 0
        %v4502 = vsel %vm3837, %v3531, 0
        %v4505 = vsel %vm3837, %v3532, 0
        %v4508 = vsel %vm3837, %v3533, 0
        %v4511 = vsel %vm3837, %v3534, 0
        %v4514 = vsel %vm3837, %v3535, 0
        %v4517 = vsel %vm3837, %v3536, 0
        %v4520 = vsel %vm3837, %v3537, 0
        %v4523 = vsel %vm3837, %v3538, 0
        %v4526 = vsel %vm3837, %v3539, 0
        %v4529 = vsel %vm3837, %v3540, 0
        %v4532 = vsel %vm3837, %v3541, 0
        %v4535 = vsel %vm3837, %v3542, 0
        %v4538 = vsel %vm3837, %v3543, 0
        %v4541 = vsel %vm3837, %v3544, 0
        %v4544 = vsel %vm3837, %v3545, 0
        %v4547 = vsel %vm3837, %v3546, 0
        %v4550 = vsel %vm3837, %v3547, 0
        %v4553 = vsel %vm3837, %v3548, 0
        %v4556 = vsel %vm3837, %v3549, 0
        %v4559 = vsel %vm3837, %v3550, 0
        %v4562 = vsel %vm3837, %v3551, 0
        %v4565 = vsel %vm3837, %v3552, 0
        %v4568 = vsel %vm3837, %v3553, 0
        %v4571 = vsel %vm3837, %v3554, 0
        %v4574 = vsel %vm3837, %v3555, 0
        %v4577 = vsel %vm3837, %v3556, 0
        %v4580 = vsel %vm3837, %v3557, 0
        %v4583 = vsel %vm3837, %v3558, 0
        %v4586 = vsel %vm3837, %v3559, 0
        %v4589 = vsel %vm3837, %v3560, 0
        %v4592 = vsel %vm3837, %v3561, 0
        %v4595 = vsel %vm3837, %v3562, 0
        %v4598 = vsel %vm3837, %v3563, 0
        %v4601 = vsel %vm3837, %v3564, 0
        %v4604 = vsel %vm3837, %v3565, 0
        %v4607 = vsel %vm3837, %v3566, 0
        %v4610 = vsel %vm3837, %v3567, 0
        %v4613 = vsel %vm3837, %v3568, 0
        %v4616 = vsel %vm3837, %v3569, 0
        %v4619 = vsel %vm3837, %v3570, 0
        %v4622 = vsel %vm3837, %v3571, 0
        %v4625 = vsel %vm3837, %v3572, 0
        %v4628 = vsel %vm3837, %v3573, 0
        %v4631 = vsel %vm3837, %v3574, 0
        %v4634 = vsel %vm3837, %v3575, 0
        %v4637 = vsel %vm3837, %v3576, 0
        %v4640 = vsel %vm3837, %v3577, 0
        %v4643 = vsel %vm3837, %v3578, 0
        %v4646 = vsel %vm3837, %v3579, 0
        %v4649 = vsel %vm3837, %v3580, 0
        %v4652 = vsel %vm3837, %v3581, 0
        %v4655 = vsel %vm3837, %v3582, 0
        %v4658 = vsel %vm3837, %v3583, 0
        %v4661 = vsel %vm3837, %v3584, 0
        %v4664 = vsel %vm3837, %v3585, 0
        %v4667 = vsel %vm3837, %v3586, 0
        %v4670 = vsel %vm3837, %v3587, 0
        %v4673 = vsel %vm3837, %v3588, 0
        %v4676 = vsel %vm3837, %v3589, 0
        %v4679 = vsel %vm3837, %v3590, 0
        %v4682 = vsel %vm3837, %v3591, 0
        %v4685 = vsel %vm3837, %v3592, 0
        %v4688 = vsel %vm3837, %v3593, 0
        %v4691 = vsel %vm3837, %v3594, 0
        %v4694 = vsel %vm3837, %v3595, 0
        %v4697 = vsel %vm3837, %v3596, 0
        %v4700 = vsel %vm3837, %v3597, 0
        %v4703 = vsel %vm3837, %v3598, 0
        %v4706 = vsel %vm3837, %v3599, 0
        %v4709 = vsel %vm3837, %v3600, 0
        %v4712 = vsel %vm3837, %v3601, 0
        %v4715 = vsel %vm3837, %v3602, 0
        %v4718 = vsel %vm3837, %v3603, 0
        %v4721 = vsel %vm3837, %v3604, 0
        %v4724 = vsel %vm3837, %v3605, 0
        %v4727 = vsel %vm3837, %v3606, 0
        %v4730 = vsel %vm3837, %v3607, 0
        %v4733 = vsel %vm3837, %v3608, 0
        %v4736 = vsel %vm3837, %v3609, 0
        %v4739 = vsel %vm3837, %v3610, 0
        %v4742 = vsel %vm3837, %v3611, 0
        %v4745 = vsel %vm3837, %v3612, 0
        %v4748 = vsel %vm3837, %v3613, 0
        %v4751 = vsel %vm3837, %v3614, 0
        %v4754 = vsel %vm3837, %v3615, 0
        %v4757 = vsel %vm3837, %v3616, 0
        %v4760 = vsel %vm3837, %v3617, 0
        %v4763 = vsel %vm3837, %v3618, 0
        %v4766 = vsel %vm3837, %v3619, 0
        %v4769 = vsel %vm3837, %v3620, 0
        %v4772 = vsel %vm3837, %v3621, 0
        %v4775 = vsel %vm3837, %v3622, 0
        %v4778 = vsel %vm3837, %v3623, 0
        %v4781 = vsel %vm3837, %v3624, 0
        %v4784 = vsel %vm3837, %v3625, 0
        %v4787 = vsel %vm3837, %v3626, 0
        %v4790 = vsel %vm3837, %v3627, 0
        %v4793 = vsel %vm3837, %v3628, 0
        %v4796 = vsel %vm3837, %v3629, 0
        %v4799 = vsel %vm3837, %v3630, 0
        %v4802 = vsel %vm3837, %v3631, 0
        %v4805 = vsel %vm3837, %v3632, 0
        %v4808 = vsel %vm3837, %v3633, 0
        %v4811 = vsel %vm3837, %v3634, 0
        %v4814 = vsel %vm3837, %v3635, 0
        %v4817 = vsel %vm3837, %v3636, 0
        %v4820 = vsel %vm3837, %v3637, 0
        %v4823 = vsel %vm3837, %v3638, 0
        %v4826 = vsel %vm3837, %v3639, 0
        %v4829 = vsel %vm3837, %v3640, 0
        %v4832 = vsel %vm3837, %v3641, 0
        %v4835 = vsel %vm3837, %v3642, 0
        %v4838 = vsel %vm3837, %v3643, 0
        %v4841 = vsel %vm3837, %v3644, 0
        %v4844 = vsel %vm3837, %v3645, 0
        %v4847 = vsel %vm3837, %v3646, 0
        %v4850 = vsel %vm3837, %v3647, 0
        %v4853 = vsel %vm3837, %v3648, 0
        %v4856 = vsel %vm3837, %v3649, 0
        %v4859 = vsel %vm3837, %v3650, 0
        %v4862 = vsel %vm3837, %v3651, 0
        %v4865 = vsel %vm3837, %v3652, 0
        %v4868 = vsel %vm3837, %v3653, 0
        %v4871 = vsel %vm3837, %v3654, 0
        %v4874 = vsel %vm3837, %v3655, 0
        %v4877 = vsel %vm3837, %v3656, 0
        %v4880 = vsel %vm3837, %v3657, 0
        %v4883 = vsel %vm3837, %v3658, 0
        %v4886 = vsel %vm3837, %v3659, 0
        %v4889 = vsel %vm3837, %v3660, 0
        %v4892 = vsel %vm3837, %v3661, 0
        %v4895 = vsel %vm3837, %v3662, 0
        %v4898 = vsel %vm3837, %v3663, 0
        %v4901 = vsel %vm3837, %v3664, 0
        %v4904 = vsel %vm3837, %v3665, 0
        %v4907 = vsel %vm3837, %v3666, 0
        %v4910 = vsel %vm3837, %v3667, 0
        %v4913 = vsel %vm3837, %v3668, 0
        %v4916 = vsel %vm3837, %v3669, 0
        %v4919 = vsel %vm3837, %v3670, 0
        %v4922 = vsel %vm3837, %v3671, 0
        %v4925 = vsel %vm3837, %v3672, 0
        %v4928 = vsel %vm3837, %v3673, 0
        %v4931 = vsel %vm3837, %v3674, 0
        %v4934 = vsel %vm3837, %v3675, 0
        %v4937 = vsel %vm3837, %v3676, 0
        %v4940 = vsel %vm3837, %v3677, 0
        %v4943 = vsel %vm3837, %v3678, 0
        %v4946 = vsel %vm3837, %v3679, 0
        %v4949 = vsel %vm3837, %v3680, 0
        %v4952 = vsel %vm3837, %v3681, 0
        %v4955 = vsel %vm3837, %v3682, 0
        %v4958 = vsel %vm3837, %v3683, 0
        %v4961 = vsel %vm3837, %v3684, 0
        %v4964 = vsel %vm3837, %v3685, 0
        %v4967 = vsel %vm3837, %v3686, 0
        %v4970 = vsel %vm3837, %v3687, 0
        %v4973 = vsel %vm3837, %v3688, 0
        %v4976 = vsel %vm3837, %v3689, 0
        %v4979 = vsel %vm3837, %v3690, 0
        %v4982 = vsel %vm3837, %v3691, 0
        %v4985 = vsel %vm3837, %v3692, 0
        %v4988 = vsel %vm3837, %v3693, 0
        %v4991 = vsel %vm3837, %v3694, 0
        %v4994 = vsel %vm3837, %v3695, 0
        %v4997 = vsel %vm3837, %v3696, 0
        %v5000 = vsel %vm3837, %v3697, 0
        %v5003 = vsel %vm3837, %v3698, 0
        %v5006 = vsel %vm3837, %v3699, 0
        %v5009 = vsel %vm3837, %v3700, 0
        %v5012 = vsel %vm3837, %v3701, 0
        %v5015 = vsel %vm3837, %v3702, 0
        %v5018 = vsel %vm3837, %v3703, 0
        %v5021 = vsel %vm3837, %v3704, 0
        %v5024 = vsel %vm3837, %v3705, 0
        %v5027 = vsel %vm3837, %v3706, 0
        %v5030 = vsel %vm3837, %v3707, 0
        %v5033 = vsel %vm3837, %v3708, 0
        %v5036 = vsel %vm3837, %v3709, 0
        %v5039 = vsel %vm3837, %v3710, 0
        %v5042 = vsel %vm3837, %v3711, 0
        %v5045 = vsel %vm3837, %v3712, 0
        %v5048 = vsel %vm3837, %v3713, 0
        %v5051 = vsel %vm3837, %v3714, 0
        %v5054 = vsel %vm3837, %v3715, 0
        %v5057 = vsel %vm3837, %v3716, 0
        %v5060 = vsel %vm3837, %v3717, 0
        %v5063 = vsel %vm3837, %v3718, 0
        %v5066 = vsel %vm3837, %v3719, 0
        %v5069 = vsel %vm3837, %v3720, 0
        %v5072 = vsel %vm3837, %v3721, 0
        %v5075 = vsel %vm3837, %v3722, 0
        %v5078 = vsel %vm3837, %v3723, 0
        %v5081 = vsel %vm3837, %v3724, 0
        %v5084 = vsel %vm3837, %v3725, 0
        %v5087 = vsel %vm3837, %v3726, 0
        %v5090 = vsel %vm3837, %v3727, 0
        %v5093 = vsel %vm3837, %v3728, 0
        %v5096 = vsel %vm3837, %v3729, 0
        %v5099 = vsel %vm3837, %v3730, 0
        %v5102 = vsel %vm3837, %v3731, 0
        %v5105 = vsel %vm3837, %v3732, 0
        %v5108 = vsel %vm3837, %v3733, 0
        %v5111 = vsel %vm3837, %v3734, 0
        %v5114 = vsel %vm3837, %v3735, 0
        %v5117 = vsel %vm3837, %v3736, 0
        %v5120 = vsel %vm3837, %v3737, 0
        %v5123 = vsel %vm3837, %v3738, 0
        %v5126 = vsel %vm3837, %v3739, 0
        %v5129 = vsel %vm3837, %v3740, 0
        %v5132 = vsel %vm3837, %v3741, 0
        %v5135 = vsel %vm3837, %v3742, 0
        %v5138 = vsel %vm3837, %v3743, 0
        %v5141 = vsel %vm3837, %v3744, 0
        %v5144 = vsel %vm3837, %v3745, 0
        %v5147 = vsel %vm3837, %v3746, 0
        %v5150 = vsel %vm3837, %v3747, 0
        %v5153 = vsel %vm3837, %v3748, 0
        %v5156 = vsel %vm3837, %v3749, 0
        %v5159 = vsel %vm3837, %v3750, 0
        %v5162 = vsel %vm3837, %v3751, 0
        %v5165 = vsel %vm3837, %v3752, 0
        %v5168 = vsel %vm3837, %v3753, 0
        %v5171 = vsel %vm3837, %v3754, 0
        %v5174 = vsel %vm3837, %v3755, 0
        %v5177 = vsel %vm3837, %v3756, 0
        %v5180 = vsel %vm3837, %v3757, 0
        %v5183 = vsel %vm3837, %v3758, 0
        %v5186 = vsel %vm3837, %v3759, 0
        %v5189 = vsel %vm3837, %v3760, 0
        %v5192 = vsel %vm3837, %v3761, 0
        %v5195 = vsel %vm3837, %v3762, 0
        %v5198 = vsel %vm3837, %v3763, 0
        %v5201 = vsel %vm3837, %v3764, 0
        %v5204 = vsel %vm3837, %v3765, 0
        %v5207 = vsel %vm3837, %v3766, 0
        %v5210 = vsel %vm3837, %v3767, 0
        %v5213 = vsel %vm3837, %v3768, 0
        %v5216 = vsel %vm3837, %v3769, 0
        %v5219 = vsel %vm3837, %v3770, 0
        %v5222 = vsel %vm3837, %v3771, 0
        %v5225 = vsel %vm3837, %v3772, 0
        %v5228 = vsel %vm3837, %v3773, 0
        %v5231 = vsel %vm3837, %v3774, 0
        %v5234 = vsel %vm3837, %v3775, 0
        %v5237 = vsel %vm3837, %v3776, 0
        %v5240 = vsel %vm3837, %v3777, 0
        %v5243 = vsel %vm3837, %v3778, 0
        %v5246 = vsel %vm3837, %v3779, 0
        %v5249 = vsel %vm3837, %v3780, 0
        %v5252 = vsel %vm3837, %v3781, 0
        %v5255 = vsel %vm3837, %v3782, 0
        %v5258 = vsel %vm3837, %v3783, 0
        %v5261 = vsel %vm3837, %v3784, 0
        %v5264 = vsel %vm3837, %v3785, 0
        %v5267 = vsel %vm3837, %v3786, 0
        %v5270 = vsel %vm3837, %v3787, 0
        %v5273 = vsel %vm3837, %v3788, 0
        %v5276 = vsel %vm3837, %v3789, 0
        %v5279 = vsel %vm3837, %v3790, 0
        %v5282 = vsel %vm3837, %v3791, 0
        %v5285 = vsel %vm3837, %v3792, 0
        %v5288 = vsel %vm3837, %v3793, 0
        %v5291 = vsel %vm3837, %v3794, 0
        %v5294 = vsel %vm3837, %v3795, 0
        %v5297 = vsel %vm3837, %v3796, 0
        %v5300 = vsel %vm3837, %v3797, 0
        %v5303 = vsel %vm3837, %v3798, 0
        %v5306 = vsel %vm3837, %v3799, 0
        %v5309 = vsel %vm3837, %v3800, 0
        %v5312 = vsel %vm3837, %v3801, 0
        %v5315 = vsel %vm3837, %v3802, 0
        %v5318 = vsel %vm3837, %v3803, 0
        %v5321 = vsel %vm3837, %v3804, 0
        %v5324 = vsel %vm3837, %v3805, 0
        %v5327 = vsel %vm3837, %v3806, 0
        %v5330 = vsel %vm3837, %v3807, 0
        %v5333 = vsel %vm3837, %v3808, 0
        %v5336 = vsel %vm3837, %v3809, 0
        %v5339 = vsel %vm3837, %v3810, 0
        %v5342 = vsel %vm3837, %v3811, 0
        %v5345 = vsel %vm3837, %v3812, 0
        %v5348 = vsel %vm3837, %v3813, 0
        %v5351 = vsel %vm3837, %v3814, 0
        %v5354 = vsel %vm3837, %v3815, 0
        %v5357 = vsel %vm3837, %v3816, 0
        %v5360 = vsel %vm3837, %v3817, 0
        %v5363 = vsel %vm3837, %v3818, 0
        %v5366 = vsel %vm3837, %v3819, 0
        %v5369 = vsel %vm3837, %v3820, 0
        %v5372 = vsel %vm3837, %v3821, 0
        %vm5374 = vcmask 1041408
        %v5376 = vsel %vm5374, %v3834, 0
        %5378 = vmatprep.subr.bf16.mxu0 0
        %5379 = vmatpush1.bf16.msra.mxu0 %v3832
        %5380 = vmatprep.subr.bf16.mxu0 0
        %5381 = vmatpush1.bf16.msra.mxu0 %v3833
        %5382 = vmatprep.subr.bf16.mxu0 0
        %5383 = vmatpush1.bf16.msra.mxu0 %v5376
        %5384 = vmatprep.subr.bf16.mxu0 0
        %5385 = vmatpush1.bf16.msra.mxu0 0
        %5386 = vmatprep.subr.bf16.mxu0 0
        %5387 = vmatpush1.bf16.msra.mxu0 0
        %5388 = vmatprep.subr.bf16.mxu0 0
        %5389 = vmatpush1.bf16.msra.mxu0 0
        %5390 = vmatprep.subr.bf16.mxu0 0
        %5391 = vmatpush1.bf16.msra.mxu0 0
        %5392 = vmatprep.subr.bf16.mxu0 0
        %5393 = vmatpush1.bf16.msra.mxu0 0
        %5394 = vmatprep.subr.bf16.mxu0 0
        %5395 = vmatpush1.bf16.msra.mxu0 0
        %5396 = vmatprep.subr.bf16.mxu0 0
        %5397 = vmatpush1.bf16.msra.mxu0 0
        %5398 = vmatprep.subr.bf16.mxu0 0
        %5399 = vmatpush1.bf16.msra.mxu0 0
        %5400 = vmatprep.subr.bf16.mxu0 0
        %5401 = vmatpush1.bf16.msra.mxu0 0
        %5402 = vmatprep.subr.bf16.mxu0 0
        %5403 = vmatpush1.bf16.msra.mxu0 0
        %5404 = vmatprep.subr.bf16.mxu0 0
        %5405 = vmatpush1.bf16.msra.mxu0 0
        %5406 = vmatprep.subr.bf16.mxu0 0
        %5407 = vmatpush1.bf16.msra.mxu0 0
        %5408 = vmatprep.subr.bf16.mxu0 0
        %5409 = vmatpush1.bf16.msra.mxu0 0
        %5410 = vmatprep.mubr.bf16.mxu0 0
        %5411 = vmatmul.mubr.bf16.gmra.mrb[0].mxu0 %v3839
        %v5412 = vpop.f32.mrb[0].mxu0
        %v5413 = vadd.f32 %v1260, %v5412
        %v5414 = vpop.f32.mrb[0].mxu0
        %v5415 = vpop.f32.mrb[0].mxu0
        %v5416 = vadd.f32 %v1260, %v5415
        %v5417 = vpop.f32.mrb[0].mxu0
        %5418 = vmatprep.mubr.bf16.mxu0 0
        %5419 = vmatmul.mubr.bf16.gmra.mrb[0].mxu0 %v3842
        %v5420 = vpop.f32.mrb[0].mxu0
        %v5421 = vadd.f32 %v1260, %v5420
        %v5422 = vpop.f32.mrb[0].mxu0
        %v5423 = vpop.f32.mrb[0].mxu0
        %v5424 = vadd.f32 %v1260, %v5423
        %v5425 = vpop.f32.mrb[0].mxu0
        %5426 = vmatprep.mubr.bf16.mxu0 0
        %5427 = vmatmul.mubr.bf16.gmra.mrb[0].mxu0 %v3845
        %v5428 = vpop.f32.mrb[0].mxu0
        %v5429 = vadd.f32 %v1260, %v5428
        %v5430 = vpop.f32.mrb[0].mxu0
        %v5431 = vpop.f32.mrb[0].mxu0
        %v5432 = vadd.f32 %v1260, %v5431
        %v5433 = vpop.f32.mrb[0].mxu0
        %5434 = vmatprep.mubr.bf16.mxu0 0
        %5435 = vmatmul.mubr.bf16.gmra.mrb[0].mxu0 %v3848
        %v5436 = vpop.f32.mrb[0].mxu0
        %v5437 = vadd.f32 %v1260, %v5436
        %v5438 = vpop.f32.mrb[0].mxu0
        %v5439 = vpop.f32.mrb[0].mxu0
        %v5440 = vadd.f32 %v1260, %v5439
        %v5441 = vpop.f32.mrb[0].mxu0
        %5442 = vmatprep.mubr.bf16.mxu0 0
        %5443 = vmatmul.mubr.bf16.gmra.mrb[0].mxu0 %v3851
        %v5444 = vpop.f32.mrb[0].mxu0
        %v5445 = vadd.f32 %v1260, %v5444
        %v5446 = vpop.f32.mrb[0].mxu0
        %v5447 = vpop.f32.mrb[0].mxu0
        %v5448 = vadd.f32 %v1260, %v5447
        %v5449 = vpop.f32.mrb[0].mxu0
        %5450 = vmatprep.mubr.bf16.mxu0 0
        %5451 = vmatmul.mubr.bf16.gmra.mrb[0].mxu0 %v3854
        %v5452 = vpop.f32.mrb[0].mxu0
        %v5453 = vadd.f32 %v1260, %v5452
        %v5454 = vpop.f32.mrb[0].mxu0
        %v5455 = vpop.f32.mrb[0].mxu0
        %v5456 = vadd.f32 %v1260, %v5455
        %v5457 = vpop.f32.mrb[0].mxu0
        %5458 = vmatprep.mubr.bf16.mxu0 0
        %5459 = vmatmul.mubr.bf16.gmra.mrb[0].mxu0 %v3857
        %v5460 = vpop.f32.mrb[0].mxu0
        %v5461 = vadd.f32 %v1260, %v5460
        %v5462 = vpop.f32.mrb[0].mxu0
        %v5463 = vpop.f32.mrb[0].mxu0
        %v5464 = vadd.f32 %v1260, %v5463
        %v5465 = vpop.f32.mrb[0].mxu0
        %5466 = vmatprep.mubr.bf16.mxu0 0
        %5467 = vmatmul.mubr.bf16.gmra.mrb[0].mxu0 %v3860
        %v5468 = vpop.f32.mrb[0].mxu0
        %v5469 = vadd.f32 %v1260, %v5468
        %v5470 = vpop.f32.mrb[0].mxu0
        %v5471 = vpop.f32.mrb[0].mxu0
        %v5472 = vadd.f32 %v1260, %v5471
        %v5473 = vpop.f32.mrb[0].mxu0
        %5474 = vmatprep.mubr.bf16.mxu0 0
        %5475 = vmatmul.mubr.bf16.gmra.mrb[0].mxu0 %v3863
        %v5476 = vpop.f32.mrb[0].mxu0
        %v5477 = vadd.f32 %v1260, %v5476
        %v5478 = vpop.f32.mrb[0].mxu0
        %v5479 = vpop.f32.mrb[0].mxu0
        %v5480 = vadd.f32 %v1260, %v5479
        %v5481 = vpop.f32.mrb[0].mxu0
        %5482 = vmatprep.mubr.bf16.mxu0 0
        %5483 = vmatmul.mubr.bf16.gmra.mrb[0].mxu0 %v3866
        %v5484 = vpop.f32.mrb[0].mxu0
        %v5485 = vadd.f32 %v1260, %v5484
        %v5486 = vpop.f32.mrb[0].mxu0
        %v5487 = vpop.f32.mrb[0].mxu0
        %v5488 = vadd.f32 %v1260, %v5487
        %v5489 = vpop.f32.mrb[0].mxu0
        %5490 = vmatprep.mubr.bf16.mxu0 0
        %5491 = vmatmul.mubr.bf16.gmra.mrb[0].mxu0 %v3869
        %v5492 = vpop.f32.mrb[0].mxu0
        %v5493 = vadd.f32 %v1260, %v5492
        %v5494 = vpop.f32.mrb[0].mxu0
        %v5495 = vpop.f32.mrb[0].mxu0
        %v5496 = vadd.f32 %v1260, %v5495
        %v5497 = vpop.f32.mrb[0].mxu0
        %5498 = vmatprep.mubr.bf16.mxu0 0
        %5499 = vmatmul.mubr.bf16.gmra.mrb[0].mxu0 %v3872
        %v5500 = vpop.f32.mrb[0].mxu0
        %v5501 = vadd.f32 %v1260, %v5500
        %v5502 = vpop.f32.mrb[0].mxu0
        %v5503 = vpop.f32.mrb[0].mxu0
        %v5504 = vadd.f32 %v1260, %v5503
        %v5505 = vpop.f32.mrb[0].mxu0
        %5506 = vmatprep.mubr.bf16.mxu0 0
        %5507 = vmatmul.mubr.bf16.gmra.mrb[0].mxu0 %v3875
        %v5508 = vpop.f32.mrb[0].mxu0
        %v5509 = vadd.f32 %v1260, %v5508
        %v5510 = vpop.f32.mrb[0].mxu0
        %v5511 = vpop.f32.mrb[0].mxu0
        %v5512 = vadd.f32 %v1260, %v5511
        %v5513 = vpop.f32.mrb[0].mxu0
        %5514 = vmatprep.mubr.bf16.mxu0 0
        %5515 = vmatmul.mubr.bf16.gmra.mrb[0].mxu0 %v3878
        %v5516 = vpop.f32.mrb[0].mxu0
        %v5517 = vadd.f32 %v1260, %v5516
        %v5518 = vpop.f32.mrb[0].mxu0
        %v5519 = vpop.f32.mrb[0].mxu0
        %v5520 = vadd.f32 %v1260, %v5519
        %v5521 = vpop.f32.mrb[0].mxu0
        %5522 = vmatprep.mubr.bf16.mxu0 0
        %5523 = vmatmul.mubr.bf16.gmra.mrb[0].mxu0 %v3881
        %v5524 = vpop.f32.mrb[0].mxu0
        %v5525 = vadd.f32 %v1260, %v5524
        %v5526 = vpop.f32.mrb[0].mxu0
        %v5527 = vpop.f32.mrb[0].mxu0
        %v5528 = vadd.f32 %v1260, %v5527
        %v5529 = vpop.f32.mrb[0].mxu0
        %5530 = vmatprep.mubr.bf16.mxu0 0
        %5531 = vmatmul.mubr.bf16.gmra.mrb[0].mxu0 %v3884
        %v5532 = vpop.f32.mrb[0].mxu0
        %v5533 = vadd.f32 %v1260, %v5532
        %v5534 = vpop.f32.mrb[0].mxu0
        %v5535 = vpop.f32.mrb[0].mxu0
        %v5536 = vadd.f32 %v1260, %v5535
        %v5537 = vpop.f32.mrb[0].mxu0
        %5538 = vmatprep.mubr.bf16.mxu0 0
        %5539 = vmatmul.mubr.bf16.gmra.mrb[0].mxu0 %v3887
        %v5540 = vpop.f32.mrb[0].mxu0
        %v5541 = vadd.f32 %v1260, %v5540
        %v5542 = vpop.f32.mrb[0].mxu0
        %v5543 = vpop.f32.mrb[0].mxu0
        %v5544 = vadd.f32 %v1260, %v5543
        %v5545 = vpop.f32.mrb[0].mxu0
        %5546 = vmatprep.mubr.bf16.mxu0 0
        %5547 = vmatmul.mubr.bf16.gmra.mrb[0].mxu0 %v3890
        %v5548 = vpop.f32.mrb[0].mxu0
        %v5549 = vadd.f32 %v1260, %v5548
        %v5550 = vpop.f32.mrb[0].mxu0
        %v5551 = vpop.f32.mrb[0].mxu0
        %v5552 = vadd.f32 %v1260, %v5551
        %v5553 = vpop.f32.mrb[0].mxu0
        %5554 = vmatprep.mubr.bf16.mxu0 0
        %5555 = vmatmul.mubr.bf16.gmra.mrb[0].mxu0 %v3893
        %v5556 = vpop.f32.mrb[0].mxu0
        %v5557 = vadd.f32 %v1260, %v5556
        %v5558 = vpop.f32.mrb[0].mxu0
        %v5559 = vpop.f32.mrb[0].mxu0
        %v5560 = vadd.f32 %v1260, %v5559
        %v5561 = vpop.f32.mrb[0].mxu0
        %5562 = vmatprep.mubr.bf16.mxu0 0
        %5563 = vmatmul.mubr.bf16.gmra.mrb[0].mxu0 %v3896
        %v5564 = vpop.f32.mrb[0].mxu0
        %v5565 = vadd.f32 %v1260, %v5564
        %v5566 = vpop.f32.mrb[0].mxu0
        %v5567 = vpop.f32.mrb[0].mxu0
        %v5568 = vadd.f32 %v1260, %v5567
        %v5569 = vpop.f32.mrb[0].mxu0
        %5570 = vmatprep.mubr.bf16.mxu0 0
        %5571 = vmatmul.mubr.bf16.gmra.mrb[0].mxu0 %v3899
        %v5572 = vpop.f32.mrb[0].mxu0
        %v5573 = vadd.f32 %v1260, %v5572
        %v5574 = vpop.f32.mrb[0].mxu0
        %v5575 = vpop.f32.mrb[0].mxu0
        %v5576 = vadd.f32 %v1260, %v5575
        %v5577 = vpop.f32.mrb[0].mxu0
        %5578 = vmatprep.mubr.bf16.mxu0 0
        %5579 = vmatmul.mubr.bf16.gmra.mrb[0].mxu0 %v3902
        %v5580 = vpop.f32.mrb[0].mxu0
        %v5581 = vadd.f32 %v1260, %v5580
        %v5582 = vpop.f32.mrb[0].mxu0
        %v5583 = vpop.f32.mrb[0].mxu0
        %v5584 = vadd.f32 %v1260, %v5583
        %v5585 = vpop.f32.mrb[0].mxu0
        %5586 = vmatprep.mubr.bf16.mxu0 0
        %5587 = vmatmul.mubr.bf16.gmra.mrb[0].mxu0 %v3905
        %v5588 = vpop.f32.mrb[0].mxu0
        %v5589 = vadd.f32 %v1260, %v5588
        %v5590 = vpop.f32.mrb[0].mxu0
        %v5591 = vpop.f32.mrb[0].mxu0
        %v5592 = vadd.f32 %v1260, %v5591
        %v5593 = vpop.f32.mrb[0].mxu0
        %5594 = vmatprep.mubr.bf16.mxu0 0
        %5595 = vmatmul.mubr.bf16.gmra.mrb[0].mxu0 %v3908
        %v5596 = vpop.f32.mrb[0].mxu0
        %v5597 = vadd.f32 %v1260, %v5596
        %v5598 = vpop.f32.mrb[0].mxu0
        %v5599 = vpop.f32.mrb[0].mxu0
        %v5600 = vadd.f32 %v1260, %v5599
        %v5601 = vpop.f32.mrb[0].mxu0
        %5602 = vmatprep.mubr.bf16.mxu0 0
        %5603 = vmatmul.mubr.bf16.gmra.mrb[0].mxu0 %v3911
        %v5604 = vpop.f32.mrb[0].mxu0
        %v5605 = vadd.f32 %v1260, %v5604
        %v5606 = vpop.f32.mrb[0].mxu0
        %v5607 = vpop.f32.mrb[0].mxu0
        %v5608 = vadd.f32 %v1260, %v5607
        %v5609 = vpop.f32.mrb[0].mxu0
        %5610 = vmatprep.mubr.bf16.mxu0 0
        %5611 = vmatmul.mubr.bf16.gmra.mrb[0].mxu0 %v3914
        %v5612 = vpop.f32.mrb[0].mxu0
        %v5613 = vadd.f32 %v1260, %v5612
        %v5614 = vpop.f32.mrb[0].mxu0
        %v5615 = vpop.f32.mrb[0].mxu0
        %v5616 = vadd.f32 %v1260, %v5615
        %v5617 = vpop.f32.mrb[0].mxu0
        %5618 = vmatprep.mubr.bf16.mxu0 0
        %5619 = vmatmul.mubr.bf16.gmra.mrb[0].mxu0 %v3917
        %v5620 = vpop.f32.mrb[0].mxu0
        %v5621 = vadd.f32 %v1260, %v5620
        %v5622 = vpop.f32.mrb[0].mxu0
        %v5623 = vpop.f32.mrb[0].mxu0
        %v5624 = vadd.f32 %v1260, %v5623
        %v5625 = vpop.f32.mrb[0].mxu0
        %5626 = vmatprep.mubr.bf16.mxu0 0
        %5627 = vmatmul.mubr.bf16.gmra.mrb[0].mxu0 %v3920
        %v5628 = vpop.f32.mrb[0].mxu0
        %v5629 = vadd.f32 %v1260, %v5628
        %v5630 = vpop.f32.mrb[0].mxu0
        %v5631 = vpop.f32.mrb[0].mxu0
        %v5632 = vadd.f32 %v1260, %v5631
        %v5633 = vpop.f32.mrb[0].mxu0
        %5634 = vmatprep.mubr.bf16.mxu0 0
        %5635 = vmatmul.mubr.bf16.gmra.mrb[0].mxu0 %v3923
        %v5636 = vpop.f32.mrb[0].mxu0
        %v5637 = vadd.f32 %v1260, %v5636
        %v5638 = vpop.f32.mrb[0].mxu0
        %v5639 = vpop.f32.mrb[0].mxu0
        %v5640 = vadd.f32 %v1260, %v5639
        %v5641 = vpop.f32.mrb[0].mxu0
        %5642 = vmatprep.mubr.bf16.mxu0 0
        %5643 = vmatmul.mubr.bf16.gmra.mrb[0].mxu0 %v3926
        %v5644 = vpop.f32.mrb[0].mxu0
        %v5645 = vadd.f32 %v1260, %v5644
        %v5646 = vpop.f32.mrb[0].mxu0
        %v5647 = vpop.f32.mrb[0].mxu0
        %v5648 = vadd.f32 %v1260, %v5647
        %v5649 = vpop.f32.mrb[0].mxu0
        %5650 = vmatprep.mubr.bf16.mxu0 0
        %5651 = vmatmul.mubr.bf16.gmra.mrb[0].mxu0 %v3929
        %v5652 = vpop.f32.mrb[0].mxu0
        %v5653 = vadd.f32 %v1260, %v5652
        %v5654 = vpop.f32.mrb[0].mxu0
        %v5655 = vpop.f32.mrb[0].mxu0
        %v5656 = vadd.f32 %v1260, %v5655
        %v5657 = vpop.f32.mrb[0].mxu0
        %5658 = vmatprep.mubr.bf16.mxu0 0
        %5659 = vmatmul.mubr.bf16.gmra.mrb[0].mxu0 %v3932
        %v5660 = vpop.f32.mrb[0].mxu0
        %v5661 = vadd.f32 %v1260, %v5660
        %v5662 = vpop.f32.mrb[0].mxu0
        %v5663 = vpop.f32.mrb[0].mxu0
        %v5664 = vadd.f32 %v1260, %v5663
        %v5665 = vpop.f32.mrb[0].mxu0
        %5666 = vmatprep.mubr.bf16.mxu0 0
        %5667 = vmatmul.mubr.bf16.gmra.mrb[0].mxu0 %v3935
        %v5668 = vpop.f32.mrb[0].mxu0
        %v5669 = vadd.f32 %v1260, %v5668
        %v5670 = vpop.f32.mrb[0].mxu0
        %v5671 = vpop.f32.mrb[0].mxu0
        %v5672 = vadd.f32 %v1260, %v5671
        %v5673 = vpop.f32.mrb[0].mxu0
        %5674 = vmatprep.mubr.bf16.mxu0 0
        %5675 = vmatmul.mubr.bf16.gmra.mrb[0].mxu0 %v3938
        %v5676 = vpop.f32.mrb[0].mxu0
        %v5677 = vadd.f32 %v1260, %v5676
        %v5678 = vpop.f32.mrb[0].mxu0
        %v5679 = vpop.f32.mrb[0].mxu0
        %v5680 = vadd.f32 %v1260, %v5679
        %v5681 = vpop.f32.mrb[0].mxu0
        %5682 = vmatprep.mubr.bf16.mxu0 0
        %5683 = vmatmul.mubr.bf16.gmra.mrb[0].mxu0 %v3941
        %v5684 = vpop.f32.mrb[0].mxu0
        %v5685 = vadd.f32 %v1260, %v5684
        %v5686 = vpop.f32.mrb[0].mxu0
        %v5687 = vpop.f32.mrb[0].mxu0
        %v5688 = vadd.f32 %v1260, %v5687
        %v5689 = vpop.f32.mrb[0].mxu0
        %5690 = vmatprep.mubr.bf16.mxu0 0
        %5691 = vmatmul.mubr.bf16.gmra.mrb[0].mxu0 %v3944
        %v5692 = vpop.f32.mrb[0].mxu0
        %v5693 = vadd.f32 %v1260, %v5692
        %v5694 = vpop.f32.mrb[0].mxu0
        %v5695 = vpop.f32.mrb[0].mxu0
        %v5696 = vadd.f32 %v1260, %v5695
        %v5697 = vpop.f32.mrb[0].mxu0
        %5698 = vmatprep.mubr.bf16.mxu0 0
        %5699 = vmatmul.mubr.bf16.gmra.mrb[0].mxu0 %v3947
        %v5700 = vpop.f32.mrb[0].mxu0
        %v5701 = vadd.f32 %v1260, %v5700
        %v5702 = vpop.f32.mrb[0].mxu0
        %v5703 = vpop.f32.mrb[0].mxu0
        %v5704 = vadd.f32 %v1260, %v5703
        %v5705 = vpop.f32.mrb[0].mxu0
        %5706 = vmatprep.mubr.bf16.mxu0 0
        %5707 = vmatmul.mubr.bf16.gmra.mrb[0].mxu0 %v3950
        %v5708 = vpop.f32.mrb[0].mxu0
        %v5709 = vadd.f32 %v1260, %v5708
        %v5710 = vpop.f32.mrb[0].mxu0
        %v5711 = vpop.f32.mrb[0].mxu0
        %v5712 = vadd.f32 %v1260, %v5711
        %v5713 = vpop.f32.mrb[0].mxu0
        %5714 = vmatprep.mubr.bf16.mxu0 0
        %5715 = vmatmul.mubr.bf16.gmra.mrb[0].mxu0 %v3953
        %v5716 = vpop.f32.mrb[0].mxu0
        %v5717 = vadd.f32 %v1260, %v5716
        %v5718 = vpop.f32.mrb[0].mxu0
        %v5719 = vpop.f32.mrb[0].mxu0
        %v5720 = vadd.f32 %v1260, %v5719
        %v5721 = vpop.f32.mrb[0].mxu0
        %5722 = vmatprep.mubr.bf16.mxu0 0
        %5723 = vmatmul.mubr.bf16.gmra.mrb[0].mxu0 %v3956
        %v5724 = vpop.f32.mrb[0].mxu0
        %v5725 = vadd.f32 %v1260, %v5724
        %v5726 = vpop.f32.mrb[0].mxu0
        %v5727 = vpop.f32.mrb[0].mxu0
        %v5728 = vadd.f32 %v1260, %v5727
        %v5729 = vpop.f32.mrb[0].mxu0
        %5730 = vmatprep.mubr.bf16.mxu0 0
        %5731 = vmatmul.mubr.bf16.gmra.mrb[0].mxu0 %v3959
        %v5732 = vpop.f32.mrb[0].mxu0
        %v5733 = vadd.f32 %v1260, %v5732
        %v5734 = vpop.f32.mrb[0].mxu0
        %v5735 = vpop.f32.mrb[0].mxu0
        %v5736 = vadd.f32 %v1260, %v5735
        %v5737 = vpop.f32.mrb[0].mxu0
        %5738 = vmatprep.mubr.bf16.mxu0 0
        %5739 = vmatmul.mubr.bf16.gmra.mrb[0].mxu0 %v3962
        %v5740 = vpop.f32.mrb[0].mxu0
        %v5741 = vadd.f32 %v1260, %v5740
        %v5742 = vpop.f32.mrb[0].mxu0
        %v5743 = vpop.f32.mrb[0].mxu0
        %v5744 = vadd.f32 %v1260, %v5743
        %v5745 = vpop.f32.mrb[0].mxu0
        %5746 = vmatprep.mubr.bf16.mxu0 0
        %5747 = vmatmul.mubr.bf16.gmra.mrb[0].mxu0 %v3965
        %v5748 = vpop.f32.mrb[0].mxu0
        %v5749 = vadd.f32 %v1260, %v5748
        %v5750 = vpop.f32.mrb[0].mxu0
        %v5751 = vpop.f32.mrb[0].mxu0
        %v5752 = vadd.f32 %v1260, %v5751
        %v5753 = vpop.f32.mrb[0].mxu0
        %5754 = vmatprep.mubr.bf16.mxu0 0
        %5755 = vmatmul.mubr.bf16.gmra.mrb[0].mxu0 %v3968
        %v5756 = vpop.f32.mrb[0].mxu0
        %v5757 = vadd.f32 %v1260, %v5756
        %v5758 = vpop.f32.mrb[0].mxu0
        %v5759 = vpop.f32.mrb[0].mxu0
        %v5760 = vadd.f32 %v1260, %v5759
        %v5761 = vpop.f32.mrb[0].mxu0
        %5762 = vmatprep.mubr.bf16.mxu0 0
        %5763 = vmatmul.mubr.bf16.gmra.mrb[0].mxu0 %v3971
        %v5764 = vpop.f32.mrb[0].mxu0
        %v5765 = vadd.f32 %v1260, %v5764
        %v5766 = vpop.f32.mrb[0].mxu0
        %v5767 = vpop.f32.mrb[0].mxu0
        %v5768 = vadd.f32 %v1260, %v5767
        %v5769 = vpop.f32.mrb[0].mxu0
        %5770 = vmatprep.mubr.bf16.mxu0 0
        %5771 = vmatmul.mubr.bf16.gmra.mrb[0].mxu0 %v3974
        %v5772 = vpop.f32.mrb[0].mxu0
        %v5773 = vadd.f32 %v1260, %v5772
        %v5774 = vpop.f32.mrb[0].mxu0
        %v5775 = vpop.f32.mrb[0].mxu0
        %v5776 = vadd.f32 %v1260, %v5775
        %v5777 = vpop.f32.mrb[0].mxu0
        %5778 = vmatprep.mubr.bf16.mxu0 0
        %5779 = vmatmul.mubr.bf16.gmra.mrb[0].mxu0 %v3977
        %v5780 = vpop.f32.mrb[0].mxu0
        %v5781 = vadd.f32 %v1260, %v5780
        %v5782 = vpop.f32.mrb[0].mxu0
        %v5783 = vpop.f32.mrb[0].mxu0
        %v5784 = vadd.f32 %v1260, %v5783
        %v5785 = vpop.f32.mrb[0].mxu0
        %5786 = vmatprep.mubr.bf16.mxu0 0
        %5787 = vmatmul.mubr.bf16.gmra.mrb[0].mxu0 %v3980
        %v5788 = vpop.f32.mrb[0].mxu0
        %v5789 = vadd.f32 %v1260, %v5788
        %v5790 = vpop.f32.mrb[0].mxu0
        %v5791 = vpop.f32.mrb[0].mxu0
        %v5792 = vadd.f32 %v1260, %v5791
        %v5793 = vpop.f32.mrb[0].mxu0
        %5794 = vmatprep.mubr.bf16.mxu0 0
        %5795 = vmatmul.mubr.bf16.gmra.mrb[0].mxu0 %v3983
        %v5796 = vpop.f32.mrb[0].mxu0
        %v5797 = vadd.f32 %v1260, %v5796
        %v5798 = vpop.f32.mrb[0].mxu0
        %v5799 = vpop.f32.mrb[0].mxu0
        %v5800 = vadd.f32 %v1260, %v5799
        %v5801 = vpop.f32.mrb[0].mxu0
        %5802 = vmatprep.mubr.bf16.mxu0 0
        %5803 = vmatmul.mubr.bf16.gmra.mrb[0].mxu0 %v3986
        %v5804 = vpop.f32.mrb[0].mxu0
        %v5805 = vadd.f32 %v1260, %v5804
        %v5806 = vpop.f32.mrb[0].mxu0
        %v5807 = vpop.f32.mrb[0].mxu0
        %v5808 = vadd.f32 %v1260, %v5807
        %v5809 = vpop.f32.mrb[0].mxu0
        %5810 = vmatprep.mubr.bf16.mxu0 0
        %5811 = vmatmul.mubr.bf16.gmra.mrb[0].mxu0 %v3989
        %v5812 = vpop.f32.mrb[0].mxu0
        %v5813 = vadd.f32 %v1260, %v5812
        %v5814 = vpop.f32.mrb[0].mxu0
        %v5815 = vpop.f32.mrb[0].mxu0
        %v5816 = vadd.f32 %v1260, %v5815
        %v5817 = vpop.f32.mrb[0].mxu0
        %5818 = vmatprep.mubr.bf16.mxu0 0
        %5819 = vmatmul.mubr.bf16.gmra.mrb[0].mxu0 %v3992
        %v5820 = vpop.f32.mrb[0].mxu0
        %v5821 = vadd.f32 %v1260, %v5820
        %v5822 = vpop.f32.mrb[0].mxu0
        %v5823 = vpop.f32.mrb[0].mxu0
        %v5824 = vadd.f32 %v1260, %v5823
        %v5825 = vpop.f32.mrb[0].mxu0
        %5826 = vmatprep.mubr.bf16.mxu0 0
        %5827 = vmatmul.mubr.bf16.gmra.mrb[0].mxu0 %v3995
        %v5828 = vpop.f32.mrb[0].mxu0
        %v5829 = vadd.f32 %v1260, %v5828
        %v5830 = vpop.f32.mrb[0].mxu0
        %v5831 = vpop.f32.mrb[0].mxu0
        %v5832 = vadd.f32 %v1260, %v5831
        %v5833 = vpop.f32.mrb[0].mxu0
        %5834 = vmatprep.mubr.bf16.mxu0 0
        %5835 = vmatmul.mubr.bf16.gmra.mrb[0].mxu0 %v3998
        %v5836 = vpop.f32.mrb[0].mxu0
        %v5837 = vadd.f32 %v1260, %v5836
        %v5838 = vpop.f32.mrb[0].mxu0
        %v5839 = vpop.f32.mrb[0].mxu0
        %v5840 = vadd.f32 %v1260, %v5839
        %v5841 = vpop.f32.mrb[0].mxu0
        %5842 = vmatprep.mubr.bf16.mxu0 0
        %5843 = vmatmul.mubr.bf16.gmra.mrb[0].mxu0 %v4001
        %v5844 = vpop.f32.mrb[0].mxu0
        %v5845 = vadd.f32 %v1260, %v5844
        %v5846 = vpop.f32.mrb[0].mxu0
        %v5847 = vpop.f32.mrb[0].mxu0
        %v5848 = vadd.f32 %v1260, %v5847
        %v5849 = vpop.f32.mrb[0].mxu0
        %5850 = vmatprep.mubr.bf16.mxu0 0
        %5851 = vmatmul.mubr.bf16.gmra.mrb[0].mxu0 %v4004
        %v5852 = vpop.f32.mrb[0].mxu0
        %v5853 = vadd.f32 %v1260, %v5852
        %v5854 = vpop.f32.mrb[0].mxu0
        %v5855 = vpop.f32.mrb[0].mxu0
        %v5856 = vadd.f32 %v1260, %v5855
        %v5857 = vpop.f32.mrb[0].mxu0
        %5858 = vmatprep.mubr.bf16.mxu0 0
        %5859 = vmatmul.mubr.bf16.gmra.mrb[0].mxu0 %v4007
        %v5860 = vpop.f32.mrb[0].mxu0
        %v5861 = vadd.f32 %v1260, %v5860
        %v5862 = vpop.f32.mrb[0].mxu0
        %v5863 = vpop.f32.mrb[0].mxu0
        %v5864 = vadd.f32 %v1260, %v5863
        %v5865 = vpop.f32.mrb[0].mxu0
        %5866 = vmatprep.mubr.bf16.mxu0 0
        %5867 = vmatmul.mubr.bf16.gmra.mrb[0].mxu0 %v4010
        %v5868 = vpop.f32.mrb[0].mxu0
        %v5869 = vadd.f32 %v1260, %v5868
        %v5870 = vpop.f32.mrb[0].mxu0
        %v5871 = vpop.f32.mrb[0].mxu0
        %v5872 = vadd.f32 %v1260, %v5871
        %v5873 = vpop.f32.mrb[0].mxu0
        %5874 = vmatprep.mubr.bf16.mxu0 0
        %5875 = vmatmul.mubr.bf16.gmra.mrb[0].mxu0 %v4013
        %v5876 = vpop.f32.mrb[0].mxu0
        %v5877 = vadd.f32 %v1260, %v5876
        %v5878 = vpop.f32.mrb[0].mxu0
        %v5879 = vpop.f32.mrb[0].mxu0
        %v5880 = vadd.f32 %v1260, %v5879
        %v5881 = vpop.f32.mrb[0].mxu0
        %5882 = vmatprep.mubr.bf16.mxu0 0
        %5883 = vmatmul.mubr.bf16.gmra.mrb[0].mxu0 %v4016
        %v5884 = vpop.f32.mrb[0].mxu0
        %v5885 = vadd.f32 %v1260, %v5884
        %v5886 = vpop.f32.mrb[0].mxu0
        %v5887 = vpop.f32.mrb[0].mxu0
        %v5888 = vadd.f32 %v1260, %v5887
        %v5889 = vpop.f32.mrb[0].mxu0
        %5890 = vmatprep.mubr.bf16.mxu0 0
        %5891 = vmatmul.mubr.bf16.gmra.mrb[0].mxu0 %v4019
        %v5892 = vpop.f32.mrb[0].mxu0
        %v5893 = vadd.f32 %v1260, %v5892
        %v5894 = vpop.f32.mrb[0].mxu0
        %v5895 = vpop.f32.mrb[0].mxu0
        %v5896 = vadd.f32 %v1260, %v5895
        %v5897 = vpop.f32.mrb[0].mxu0
        %5898 = vmatprep.mubr.bf16.mxu0 0
        %5899 = vmatmul.mubr.bf16.gmra.mrb[0].mxu0 %v4022
        %v5900 = vpop.f32.mrb[0].mxu0
        %v5901 = vadd.f32 %v1260, %v5900
        %v5902 = vpop.f32.mrb[0].mxu0
        %v5903 = vpop.f32.mrb[0].mxu0
        %v5904 = vadd.f32 %v1260, %v5903
        %v5905 = vpop.f32.mrb[0].mxu0
        %5906 = vmatprep.mubr.bf16.mxu0 0
        %5907 = vmatmul.mubr.bf16.gmra.mrb[0].mxu0 %v4025
        %v5908 = vpop.f32.mrb[0].mxu0
        %v5909 = vadd.f32 %v1260, %v5908
        %v5910 = vpop.f32.mrb[0].mxu0
        %v5911 = vpop.f32.mrb[0].mxu0
        %v5912 = vadd.f32 %v1260, %v5911
        %v5913 = vpop.f32.mrb[0].mxu0
        %5914 = vmatprep.mubr.bf16.mxu0 0
        %5915 = vmatmul.mubr.bf16.gmra.mrb[0].mxu0 %v4028
        %v5916 = vpop.f32.mrb[0].mxu0
        %v5917 = vadd.f32 %v1260, %v5916
        %v5918 = vpop.f32.mrb[0].mxu0
        %v5919 = vpop.f32.mrb[0].mxu0
        %v5920 = vadd.f32 %v1260, %v5919
        %v5921 = vpop.f32.mrb[0].mxu0
        %5922 = vmatprep.mubr.bf16.mxu0 0
        %5923 = vmatmul.mubr.bf16.gmra.mrb[0].mxu0 %v4031
        %v5924 = vpop.f32.mrb[0].mxu0
        %v5925 = vadd.f32 %v1260, %v5924
        %v5926 = vpop.f32.mrb[0].mxu0
        %v5927 = vpop.f32.mrb[0].mxu0
        %v5928 = vadd.f32 %v1260, %v5927
        %v5929 = vpop.f32.mrb[0].mxu0
        %5930 = vmatprep.mubr.bf16.mxu0 0
        %5931 = vmatmul.mubr.bf16.gmra.mrb[0].mxu0 %v4034
        %v5932 = vpop.f32.mrb[0].mxu0
        %v5933 = vadd.f32 %v1260, %v5932
        %v5934 = vpop.f32.mrb[0].mxu0
        %v5935 = vpop.f32.mrb[0].mxu0
        %v5936 = vadd.f32 %v1260, %v5935
        %v5937 = vpop.f32.mrb[0].mxu0
        %5938 = vmatprep.mubr.bf16.mxu0 0
        %5939 = vmatmul.mubr.bf16.gmra.mrb[0].mxu0 %v4037
        %v5940 = vpop.f32.mrb[0].mxu0
        %v5941 = vadd.f32 %v1260, %v5940
        %v5942 = vpop.f32.mrb[0].mxu0
        %v5943 = vpop.f32.mrb[0].mxu0
        %v5944 = vadd.f32 %v1260, %v5943
        %v5945 = vpop.f32.mrb[0].mxu0
        %5946 = vmatprep.mubr.bf16.mxu0 0
        %5947 = vmatmul.mubr.bf16.gmra.mrb[0].mxu0 %v4040
        %v5948 = vpop.f32.mrb[0].mxu0
        %v5949 = vadd.f32 %v1260, %v5948
        %v5950 = vpop.f32.mrb[0].mxu0
        %v5951 = vpop.f32.mrb[0].mxu0
        %v5952 = vadd.f32 %v1260, %v5951
        %v5953 = vpop.f32.mrb[0].mxu0
        %5954 = vmatprep.mubr.bf16.mxu0 0
        %5955 = vmatmul.mubr.bf16.gmra.mrb[0].mxu0 %v4043
        %v5956 = vpop.f32.mrb[0].mxu0
        %v5957 = vadd.f32 %v1260, %v5956
        %v5958 = vpop.f32.mrb[0].mxu0
        %v5959 = vpop.f32.mrb[0].mxu0
        %v5960 = vadd.f32 %v1260, %v5959
        %v5961 = vpop.f32.mrb[0].mxu0
        %5962 = vmatprep.mubr.bf16.mxu0 0
        %5963 = vmatmul.mubr.bf16.gmra.mrb[0].mxu0 %v4046
        %v5964 = vpop.f32.mrb[0].mxu0
        %v5965 = vadd.f32 %v1260, %v5964
        %v5966 = vpop.f32.mrb[0].mxu0
        %v5967 = vpop.f32.mrb[0].mxu0
        %v5968 = vadd.f32 %v1260, %v5967
        %v5969 = vpop.f32.mrb[0].mxu0
        %5970 = vmatprep.mubr.bf16.mxu0 0
        %5971 = vmatmul.mubr.bf16.gmra.mrb[0].mxu0 %v4049
        %v5972 = vpop.f32.mrb[0].mxu0
        %v5973 = vadd.f32 %v1260, %v5972
        %v5974 = vpop.f32.mrb[0].mxu0
        %v5975 = vpop.f32.mrb[0].mxu0
        %v5976 = vadd.f32 %v1260, %v5975
        %v5977 = vpop.f32.mrb[0].mxu0
        %5978 = vmatprep.mubr.bf16.mxu0 0
        %5979 = vmatmul.mubr.bf16.gmra.mrb[0].mxu0 %v4052
        %v5980 = vpop.f32.mrb[0].mxu0
        %v5981 = vadd.f32 %v1260, %v5980
        %v5982 = vpop.f32.mrb[0].mxu0
        %v5983 = vpop.f32.mrb[0].mxu0
        %v5984 = vadd.f32 %v1260, %v5983
        %v5985 = vpop.f32.mrb[0].mxu0
        %5986 = vmatprep.mubr.bf16.mxu0 0
        %5987 = vmatmul.mubr.bf16.gmra.mrb[0].mxu0 %v4055
        %v5988 = vpop.f32.mrb[0].mxu0
        %v5989 = vadd.f32 %v1260, %v5988
        %v5990 = vpop.f32.mrb[0].mxu0
        %v5991 = vpop.f32.mrb[0].mxu0
        %v5992 = vadd.f32 %v1260, %v5991
        %v5993 = vpop.f32.mrb[0].mxu0
        %5994 = vmatprep.mubr.bf16.mxu0 0
        %5995 = vmatmul.mubr.bf16.gmra.mrb[0].mxu0 %v4058
        %v5996 = vpop.f32.mrb[0].mxu0
        %v5997 = vadd.f32 %v1260, %v5996
        %v5998 = vpop.f32.mrb[0].mxu0
        %v5999 = vpop.f32.mrb[0].mxu0
        %v6000 = vadd.f32 %v1260, %v5999
        %v6001 = vpop.f32.mrb[0].mxu0
        %6002 = vmatprep.mubr.bf16.mxu0 0
        %6003 = vmatmul.mubr.bf16.gmra.mrb[0].mxu0 %v4061
        %v6004 = vpop.f32.mrb[0].mxu0
        %v6005 = vadd.f32 %v1260, %v6004
        %v6006 = vpop.f32.mrb[0].mxu0
        %v6007 = vpop.f32.mrb[0].mxu0
        %v6008 = vadd.f32 %v1260, %v6007
        %v6009 = vpop.f32.mrb[0].mxu0
        %6010 = vmatprep.mubr.bf16.mxu0 0
        %6011 = vmatmul.mubr.bf16.gmra.mrb[0].mxu0 %v4064
        %v6012 = vpop.f32.mrb[0].mxu0
        %v6013 = vadd.f32 %v1260, %v6012
        %v6014 = vpop.f32.mrb[0].mxu0
        %v6015 = vpop.f32.mrb[0].mxu0
        %v6016 = vadd.f32 %v1260, %v6015
        %v6017 = vpop.f32.mrb[0].mxu0
        %6018 = vmatprep.mubr.bf16.mxu0 0
        %6019 = vmatmul.mubr.bf16.gmra.mrb[0].mxu0 %v4067
        %v6020 = vpop.f32.mrb[0].mxu0
        %v6021 = vadd.f32 %v1260, %v6020
        %v6022 = vpop.f32.mrb[0].mxu0
        %v6023 = vpop.f32.mrb[0].mxu0
        %v6024 = vadd.f32 %v1260, %v6023
        %v6025 = vpop.f32.mrb[0].mxu0
        %6026 = vmatprep.mubr.bf16.mxu0 0
        %6027 = vmatmul.mubr.bf16.gmra.mrb[0].mxu0 %v4070
        %v6028 = vpop.f32.mrb[0].mxu0
        %v6029 = vadd.f32 %v1260, %v6028
        %v6030 = vpop.f32.mrb[0].mxu0
        %v6031 = vpop.f32.mrb[0].mxu0
        %v6032 = vadd.f32 %v1260, %v6031
        %v6033 = vpop.f32.mrb[0].mxu0
        %6034 = vmatprep.mubr.bf16.mxu0 0
        %6035 = vmatmul.mubr.bf16.gmra.mrb[0].mxu0 %v4073
        %v6036 = vpop.f32.mrb[0].mxu0
        %v6037 = vadd.f32 %v1260, %v6036
        %v6038 = vpop.f32.mrb[0].mxu0
        %v6039 = vpop.f32.mrb[0].mxu0
        %v6040 = vadd.f32 %v1260, %v6039
        %v6041 = vpop.f32.mrb[0].mxu0
        %6042 = vmatprep.mubr.bf16.mxu0 0
        %6043 = vmatmul.mubr.bf16.gmra.mrb[0].mxu0 %v4076
        %v6044 = vpop.f32.mrb[0].mxu0
        %v6045 = vadd.f32 %v1260, %v6044
        %v6046 = vpop.f32.mrb[0].mxu0
        %v6047 = vpop.f32.mrb[0].mxu0
        %v6048 = vadd.f32 %v1260, %v6047
        %v6049 = vpop.f32.mrb[0].mxu0
        %6050 = vmatprep.mubr.bf16.mxu0 0
        %6051 = vmatmul.mubr.bf16.gmra.mrb[0].mxu0 %v4079
        %v6052 = vpop.f32.mrb[0].mxu0
        %v6053 = vadd.f32 %v1260, %v6052
        %v6054 = vpop.f32.mrb[0].mxu0
        %v6055 = vpop.f32.mrb[0].mxu0
        %v6056 = vadd.f32 %v1260, %v6055
        %v6057 = vpop.f32.mrb[0].mxu0
        %6058 = vmatprep.mubr.bf16.mxu0 0
        %6059 = vmatmul.mubr.bf16.gmra.mrb[0].mxu0 %v4082
        %v6060 = vpop.f32.mrb[0].mxu0
        %v6061 = vadd.f32 %v1260, %v6060
        %v6062 = vpop.f32.mrb[0].mxu0
        %v6063 = vpop.f32.mrb[0].mxu0
        %v6064 = vadd.f32 %v1260, %v6063
        %v6065 = vpop.f32.mrb[0].mxu0
        %6066 = vmatprep.mubr.bf16.mxu0 0
        %6067 = vmatmul.mubr.bf16.gmra.mrb[0].mxu0 %v4085
        %v6068 = vpop.f32.mrb[0].mxu0
        %v6069 = vadd.f32 %v1260, %v6068
        %v6070 = vpop.f32.mrb[0].mxu0
        %v6071 = vpop.f32.mrb[0].mxu0
        %v6072 = vadd.f32 %v1260, %v6071
        %v6073 = vpop.f32.mrb[0].mxu0
        %6074 = vmatprep.mubr.bf16.mxu0 0
        %6075 = vmatmul.mubr.bf16.gmra.mrb[0].mxu0 %v4088
        %v6076 = vpop.f32.mrb[0].mxu0
        %v6077 = vadd.f32 %v1260, %v6076
        %v6078 = vpop.f32.mrb[0].mxu0
        %v6079 = vpop.f32.mrb[0].mxu0
        %v6080 = vadd.f32 %v1260, %v6079
        %v6081 = vpop.f32.mrb[0].mxu0
        %6082 = vmatprep.mubr.bf16.mxu0 0
        %6083 = vmatmul.mubr.bf16.gmra.mrb[0].mxu0 %v4091
        %v6084 = vpop.f32.mrb[0].mxu0
        %v6085 = vadd.f32 %v1260, %v6084
        %v6086 = vpop.f32.mrb[0].mxu0
        %v6087 = vpop.f32.mrb[0].mxu0
        %v6088 = vadd.f32 %v1260, %v6087
        %v6089 = vpop.f32.mrb[0].mxu0
        %6090 = vmatprep.mubr.bf16.mxu0 0
        %6091 = vmatmul.mubr.bf16.gmra.mrb[0].mxu0 %v4094
        %v6092 = vpop.f32.mrb[0].mxu0
        %v6093 = vadd.f32 %v1260, %v6092
        %v6094 = vpop.f32.mrb[0].mxu0
        %v6095 = vpop.f32.mrb[0].mxu0
        %v6096 = vadd.f32 %v1260, %v6095
        %v6097 = vpop.f32.mrb[0].mxu0
        %6098 = vmatprep.mubr.bf16.mxu0 0
        %6099 = vmatmul.mubr.bf16.gmra.mrb[0].mxu0 %v4097
        %v6100 = vpop.f32.mrb[0].mxu0
        %v6101 = vadd.f32 %v1260, %v6100
        %v6102 = vpop.f32.mrb[0].mxu0
        %v6103 = vpop.f32.mrb[0].mxu0
        %v6104 = vadd.f32 %v1260, %v6103
        %v6105 = vpop.f32.mrb[0].mxu0
        %6106 = vmatprep.mubr.bf16.mxu0 0
        %6107 = vmatmul.mubr.bf16.gmra.mrb[0].mxu0 %v4100
        %v6108 = vpop.f32.mrb[0].mxu0
        %v6109 = vadd.f32 %v1260, %v6108
        %v6110 = vpop.f32.mrb[0].mxu0
        %v6111 = vpop.f32.mrb[0].mxu0
        %v6112 = vadd.f32 %v1260, %v6111
        %v6113 = vpop.f32.mrb[0].mxu0
        %6114 = vmatprep.mubr.bf16.mxu0 0
        %6115 = vmatmul.mubr.bf16.gmra.mrb[0].mxu0 %v4103
        %v6116 = vpop.f32.mrb[0].mxu0
        %v6117 = vadd.f32 %v1260, %v6116
        %v6118 = vpop.f32.mrb[0].mxu0
        %v6119 = vpop.f32.mrb[0].mxu0
        %v6120 = vadd.f32 %v1260, %v6119
        %v6121 = vpop.f32.mrb[0].mxu0
        %6122 = vmatprep.mubr.bf16.mxu0 0
        %6123 = vmatmul.mubr.bf16.gmra.mrb[0].mxu0 %v4106
        %v6124 = vpop.f32.mrb[0].mxu0
        %v6125 = vadd.f32 %v1260, %v6124
        %v6126 = vpop.f32.mrb[0].mxu0
        %v6127 = vpop.f32.mrb[0].mxu0
        %v6128 = vadd.f32 %v1260, %v6127
        %v6129 = vpop.f32.mrb[0].mxu0
        %6130 = vmatprep.mubr.bf16.mxu0 0
        %6131 = vmatmul.mubr.bf16.gmra.mrb[0].mxu0 %v4109
        %v6132 = vpop.f32.mrb[0].mxu0
        %v6133 = vadd.f32 %v1260, %v6132
        %v6134 = vpop.f32.mrb[0].mxu0
        %v6135 = vpop.f32.mrb[0].mxu0
        %v6136 = vadd.f32 %v1260, %v6135
        %v6137 = vpop.f32.mrb[0].mxu0
        %6138 = vmatprep.mubr.bf16.mxu0 0
        %6139 = vmatmul.mubr.bf16.gmra.mrb[0].mxu0 %v4112
        %v6140 = vpop.f32.mrb[0].mxu0
        %v6141 = vadd.f32 %v1260, %v6140
        %v6142 = vpop.f32.mrb[0].mxu0
        %v6143 = vpop.f32.mrb[0].mxu0
        %v6144 = vadd.f32 %v1260, %v6143
        %v6145 = vpop.f32.mrb[0].mxu0
        %6146 = vmatprep.mubr.bf16.mxu0 0
        %6147 = vmatmul.mubr.bf16.gmra.mrb[0].mxu0 %v4115
        %v6148 = vpop.f32.mrb[0].mxu0
        %v6149 = vadd.f32 %v1260, %v6148
        %v6150 = vpop.f32.mrb[0].mxu0
        %v6151 = vpop.f32.mrb[0].mxu0
        %v6152 = vadd.f32 %v1260, %v6151
        %v6153 = vpop.f32.mrb[0].mxu0
        %6154 = vmatprep.mubr.bf16.mxu0 0
        %6155 = vmatmul.mubr.bf16.gmra.mrb[0].mxu0 %v4118
        %v6156 = vpop.f32.mrb[0].mxu0
        %v6157 = vadd.f32 %v1260, %v6156
        %v6158 = vpop.f32.mrb[0].mxu0
        %v6159 = vpop.f32.mrb[0].mxu0
        %v6160 = vadd.f32 %v1260, %v6159
        %v6161 = vpop.f32.mrb[0].mxu0
        %6162 = vmatprep.mubr.bf16.mxu0 0
        %6163 = vmatmul.mubr.bf16.gmra.mrb[0].mxu0 %v4121
        %v6164 = vpop.f32.mrb[0].mxu0
        %v6165 = vadd.f32 %v1260, %v6164
        %v6166 = vpop.f32.mrb[0].mxu0
        %v6167 = vpop.f32.mrb[0].mxu0
        %v6168 = vadd.f32 %v1260, %v6167
        %v6169 = vpop.f32.mrb[0].mxu0
        %6170 = vmatprep.mubr.bf16.mxu0 0
        %6171 = vmatmul.mubr.bf16.gmra.mrb[0].mxu0 %v4124
        %v6172 = vpop.f32.mrb[0].mxu0
        %v6173 = vadd.f32 %v1260, %v6172
        %v6174 = vpop.f32.mrb[0].mxu0
        %v6175 = vpop.f32.mrb[0].mxu0
        %v6176 = vadd.f32 %v1260, %v6175
        %v6177 = vpop.f32.mrb[0].mxu0
        %6178 = vmatprep.mubr.bf16.mxu0 0
        %6179 = vmatmul.mubr.bf16.gmra.mrb[0].mxu0 %v4127
        %v6180 = vpop.f32.mrb[0].mxu0
        %v6181 = vadd.f32 %v1260, %v6180
        %v6182 = vpop.f32.mrb[0].mxu0
        %v6183 = vpop.f32.mrb[0].mxu0
        %v6184 = vadd.f32 %v1260, %v6183
        %v6185 = vpop.f32.mrb[0].mxu0
        %6186 = vmatprep.mubr.bf16.mxu0 0
        %6187 = vmatmul.mubr.bf16.gmra.mrb[0].mxu0 %v4130
        %v6188 = vpop.f32.mrb[0].mxu0
        %v6189 = vadd.f32 %v1260, %v6188
        %v6190 = vpop.f32.mrb[0].mxu0
        %v6191 = vpop.f32.mrb[0].mxu0
        %v6192 = vadd.f32 %v1260, %v6191
        %v6193 = vpop.f32.mrb[0].mxu0
        %6194 = vmatprep.mubr.bf16.mxu0 0
        %6195 = vmatmul.mubr.bf16.gmra.mrb[0].mxu0 %v4133
        %v6196 = vpop.f32.mrb[0].mxu0
        %v6197 = vadd.f32 %v1260, %v6196
        %v6198 = vpop.f32.mrb[0].mxu0
        %v6199 = vpop.f32.mrb[0].mxu0
        %v6200 = vadd.f32 %v1260, %v6199
        %v6201 = vpop.f32.mrb[0].mxu0
        %6202 = vmatprep.mubr.bf16.mxu0 0
        %6203 = vmatmul.mubr.bf16.gmra.mrb[0].mxu0 %v4136
        %v6204 = vpop.f32.mrb[0].mxu0
        %v6205 = vadd.f32 %v1260, %v6204
        %v6206 = vpop.f32.mrb[0].mxu0
        %v6207 = vpop.f32.mrb[0].mxu0
        %v6208 = vadd.f32 %v1260, %v6207
        %v6209 = vpop.f32.mrb[0].mxu0
        %6210 = vmatprep.mubr.bf16.mxu0 0
        %6211 = vmatmul.mubr.bf16.gmra.mrb[0].mxu0 %v4139
        %v6212 = vpop.f32.mrb[0].mxu0
        %v6213 = vadd.f32 %v1260, %v6212
        %v6214 = vpop.f32.mrb[0].mxu0
        %v6215 = vpop.f32.mrb[0].mxu0
        %v6216 = vadd.f32 %v1260, %v6215
        %v6217 = vpop.f32.mrb[0].mxu0
        %6218 = vmatprep.mubr.bf16.mxu0 0
        %6219 = vmatmul.mubr.bf16.gmra.mrb[0].mxu0 %v4142
        %v6220 = vpop.f32.mrb[0].mxu0
        %v6221 = vadd.f32 %v1260, %v6220
        %v6222 = vpop.f32.mrb[0].mxu0
        %v6223 = vpop.f32.mrb[0].mxu0
        %v6224 = vadd.f32 %v1260, %v6223
        %v6225 = vpop.f32.mrb[0].mxu0
        %6226 = vmatprep.mubr.bf16.mxu0 0
        %6227 = vmatmul.mubr.bf16.gmra.mrb[0].mxu0 %v4145
        %v6228 = vpop.f32.mrb[0].mxu0
        %v6229 = vadd.f32 %v1260, %v6228
        %v6230 = vpop.f32.mrb[0].mxu0
        %v6231 = vpop.f32.mrb[0].mxu0
        %v6232 = vadd.f32 %v1260, %v6231
        %v6233 = vpop.f32.mrb[0].mxu0
        %6234 = vmatprep.mubr.bf16.mxu0 0
        %6235 = vmatmul.mubr.bf16.gmra.mrb[0].mxu0 %v4148
        %v6236 = vpop.f32.mrb[0].mxu0
        %v6237 = vadd.f32 %v1260, %v6236
        %v6238 = vpop.f32.mrb[0].mxu0
        %v6239 = vpop.f32.mrb[0].mxu0
        %v6240 = vadd.f32 %v1260, %v6239
        %v6241 = vpop.f32.mrb[0].mxu0
        %6242 = vmatprep.mubr.bf16.mxu0 0
        %6243 = vmatmul.mubr.bf16.gmra.mrb[0].mxu0 %v4151
        %v6244 = vpop.f32.mrb[0].mxu0
        %v6245 = vadd.f32 %v1260, %v6244
        %v6246 = vpop.f32.mrb[0].mxu0
        %v6247 = vpop.f32.mrb[0].mxu0
        %v6248 = vadd.f32 %v1260, %v6247
        %v6249 = vpop.f32.mrb[0].mxu0
        %6250 = vmatprep.mubr.bf16.mxu0 0
        %6251 = vmatmul.mubr.bf16.gmra.mrb[0].mxu0 %v4154
        %v6252 = vpop.f32.mrb[0].mxu0
        %v6253 = vadd.f32 %v1260, %v6252
        %v6254 = vpop.f32.mrb[0].mxu0
        %v6255 = vpop.f32.mrb[0].mxu0
        %v6256 = vadd.f32 %v1260, %v6255
        %v6257 = vpop.f32.mrb[0].mxu0
        %6258 = vmatprep.mubr.bf16.mxu0 0
        %6259 = vmatmul.mubr.bf16.gmra.mrb[0].mxu0 %v4157
        %v6260 = vpop.f32.mrb[0].mxu0
        %v6261 = vadd.f32 %v1260, %v6260
        %v6262 = vpop.f32.mrb[0].mxu0
        %v6263 = vpop.f32.mrb[0].mxu0
        %v6264 = vadd.f32 %v1260, %v6263
        %v6265 = vpop.f32.mrb[0].mxu0
        %6266 = vmatprep.mubr.bf16.mxu0 0
        %6267 = vmatmul.mubr.bf16.gmra.mrb[0].mxu0 %v4160
        %v6268 = vpop.f32.mrb[0].mxu0
        %v6269 = vadd.f32 %v1260, %v6268
        %v6270 = vpop.f32.mrb[0].mxu0
        %v6271 = vpop.f32.mrb[0].mxu0
        %v6272 = vadd.f32 %v1260, %v6271
        %v6273 = vpop.f32.mrb[0].mxu0
        %6274 = vmatprep.mubr.bf16.mxu0 0
        %6275 = vmatmul.mubr.bf16.gmra.mrb[0].mxu0 %v4163
        %v6276 = vpop.f32.mrb[0].mxu0
        %v6277 = vadd.f32 %v1260, %v6276
        %v6278 = vpop.f32.mrb[0].mxu0
        %v6279 = vpop.f32.mrb[0].mxu0
        %v6280 = vadd.f32 %v1260, %v6279
        %v6281 = vpop.f32.mrb[0].mxu0
        %6282 = vmatprep.mubr.bf16.mxu0 0
        %6283 = vmatmul.mubr.bf16.gmra.mrb[0].mxu0 %v4166
        %v6284 = vpop.f32.mrb[0].mxu0
        %v6285 = vadd.f32 %v1260, %v6284
        %v6286 = vpop.f32.mrb[0].mxu0
        %v6287 = vpop.f32.mrb[0].mxu0
        %v6288 = vadd.f32 %v1260, %v6287
        %v6289 = vpop.f32.mrb[0].mxu0
        %6290 = vmatprep.mubr.bf16.mxu0 0
        %6291 = vmatmul.mubr.bf16.gmra.mrb[0].mxu0 %v4169
        %v6292 = vpop.f32.mrb[0].mxu0
        %v6293 = vadd.f32 %v1260, %v6292
        %v6294 = vpop.f32.mrb[0].mxu0
        %v6295 = vpop.f32.mrb[0].mxu0
        %v6296 = vadd.f32 %v1260, %v6295
        %v6297 = vpop.f32.mrb[0].mxu0
        %6298 = vmatprep.mubr.bf16.mxu0 0
        %6299 = vmatmul.mubr.bf16.gmra.mrb[0].mxu0 %v4172
        %v6300 = vpop.f32.mrb[0].mxu0
        %v6301 = vadd.f32 %v1260, %v6300
        %v6302 = vpop.f32.mrb[0].mxu0
        %v6303 = vpop.f32.mrb[0].mxu0
        %v6304 = vadd.f32 %v1260, %v6303
        %v6305 = vpop.f32.mrb[0].mxu0
        %6306 = vmatprep.mubr.bf16.mxu0 0
        %6307 = vmatmul.mubr.bf16.gmra.mrb[0].mxu0 %v4175
        %v6308 = vpop.f32.mrb[0].mxu0
        %v6309 = vadd.f32 %v1260, %v6308
        %v6310 = vpop.f32.mrb[0].mxu0
        %v6311 = vpop.f32.mrb[0].mxu0
        %v6312 = vadd.f32 %v1260, %v6311
        %v6313 = vpop.f32.mrb[0].mxu0
        %6314 = vmatprep.mubr.bf16.mxu0 0
        %6315 = vmatmul.mubr.bf16.gmra.mrb[0].mxu0 %v4178
        %v6316 = vpop.f32.mrb[0].mxu0
        %v6317 = vadd.f32 %v1260, %v6316
        %v6318 = vpop.f32.mrb[0].mxu0
        %v6319 = vpop.f32.mrb[0].mxu0
        %v6320 = vadd.f32 %v1260, %v6319
        %v6321 = vpop.f32.mrb[0].mxu0
        %6322 = vmatprep.mubr.bf16.mxu0 0
        %6323 = vmatmul.mubr.bf16.gmra.mrb[0].mxu0 %v4181
        %v6324 = vpop.f32.mrb[0].mxu0
        %v6325 = vadd.f32 %v1260, %v6324
        %v6326 = vpop.f32.mrb[0].mxu0
        %v6327 = vpop.f32.mrb[0].mxu0
        %v6328 = vadd.f32 %v1260, %v6327
        %v6329 = vpop.f32.mrb[0].mxu0
        %6330 = vmatprep.mubr.bf16.mxu0 0
        %6331 = vmatmul.mubr.bf16.gmra.mrb[0].mxu0 %v4184
        %v6332 = vpop.f32.mrb[0].mxu0
        %v6333 = vadd.f32 %v1260, %v6332
        %v6334 = vpop.f32.mrb[0].mxu0
        %v6335 = vpop.f32.mrb[0].mxu0
        %v6336 = vadd.f32 %v1260, %v6335
        %v6337 = vpop.f32.mrb[0].mxu0
        %6338 = vmatprep.mubr.bf16.mxu0 0
        %6339 = vmatmul.mubr.bf16.gmra.mrb[0].mxu0 %v4187
        %v6340 = vpop.f32.mrb[0].mxu0
        %v6341 = vadd.f32 %v1260, %v6340
        %v6342 = vpop.f32.mrb[0].mxu0
        %v6343 = vpop.f32.mrb[0].mxu0
        %v6344 = vadd.f32 %v1260, %v6343
        %v6345 = vpop.f32.mrb[0].mxu0
        %6346 = vmatprep.mubr.bf16.mxu0 0
        %6347 = vmatmul.mubr.bf16.gmra.mrb[0].mxu0 %v4190
        %v6348 = vpop.f32.mrb[0].mxu0
        %v6349 = vadd.f32 %v1260, %v6348
        %v6350 = vpop.f32.mrb[0].mxu0
        %v6351 = vpop.f32.mrb[0].mxu0
        %v6352 = vadd.f32 %v1260, %v6351
        %v6353 = vpop.f32.mrb[0].mxu0
        %6354 = vmatprep.mubr.bf16.mxu0 0
        %6355 = vmatmul.mubr.bf16.gmra.mrb[0].mxu0 %v4193
        %v6356 = vpop.f32.mrb[0].mxu0
        %v6357 = vadd.f32 %v1260, %v6356
        %v6358 = vpop.f32.mrb[0].mxu0
        %v6359 = vpop.f32.mrb[0].mxu0
        %v6360 = vadd.f32 %v1260, %v6359
        %v6361 = vpop.f32.mrb[0].mxu0
        %6362 = vmatprep.mubr.bf16.mxu0 0
        %6363 = vmatmul.mubr.bf16.gmra.mrb[0].mxu0 %v4196
        %v6364 = vpop.f32.mrb[0].mxu0
        %v6365 = vadd.f32 %v1260, %v6364
        %v6366 = vpop.f32.mrb[0].mxu0
        %v6367 = vpop.f32.mrb[0].mxu0
        %v6368 = vadd.f32 %v1260, %v6367
        %v6369 = vpop.f32.mrb[0].mxu0
        %6370 = vmatprep.mubr.bf16.mxu0 0
        %6371 = vmatmul.mubr.bf16.gmra.mrb[0].mxu0 %v4199
        %v6372 = vpop.f32.mrb[0].mxu0
        %v6373 = vadd.f32 %v1260, %v6372
        %v6374 = vpop.f32.mrb[0].mxu0
        %v6375 = vpop.f32.mrb[0].mxu0
        %v6376 = vadd.f32 %v1260, %v6375
        %v6377 = vpop.f32.mrb[0].mxu0
        %6378 = vmatprep.mubr.bf16.mxu0 0
        %6379 = vmatmul.mubr.bf16.gmra.mrb[0].mxu0 %v4202
        %v6380 = vpop.f32.mrb[0].mxu0
        %v6381 = vadd.f32 %v1260, %v6380
        %v6382 = vpop.f32.mrb[0].mxu0
        %v6383 = vpop.f32.mrb[0].mxu0
        %v6384 = vadd.f32 %v1260, %v6383
        %v6385 = vpop.f32.mrb[0].mxu0
        %6386 = vmatprep.mubr.bf16.mxu0 0
        %6387 = vmatmul.mubr.bf16.gmra.mrb[0].mxu0 %v4205
        %v6388 = vpop.f32.mrb[0].mxu0
        %v6389 = vadd.f32 %v1260, %v6388
        %v6390 = vpop.f32.mrb[0].mxu0
        %v6391 = vpop.f32.mrb[0].mxu0
        %v6392 = vadd.f32 %v1260, %v6391
        %v6393 = vpop.f32.mrb[0].mxu0
        %6394 = vmatprep.mubr.bf16.mxu0 0
        %6395 = vmatmul.mubr.bf16.gmra.mrb[0].mxu0 %v4208
        %v6396 = vpop.f32.mrb[0].mxu0
        %v6397 = vadd.f32 %v1260, %v6396
        %v6398 = vpop.f32.mrb[0].mxu0
        %v6399 = vpop.f32.mrb[0].mxu0
        %v6400 = vadd.f32 %v1260, %v6399
        %v6401 = vpop.f32.mrb[0].mxu0
        %6402 = vmatprep.mubr.bf16.mxu0 0
        %6403 = vmatmul.mubr.bf16.gmra.mrb[0].mxu0 %v4211
        %v6404 = vpop.f32.mrb[0].mxu0
        %v6405 = vadd.f32 %v1260, %v6404
        %v6406 = vpop.f32.mrb[0].mxu0
        %v6407 = vpop.f32.mrb[0].mxu0
        %v6408 = vadd.f32 %v1260, %v6407
        %v6409 = vpop.f32.mrb[0].mxu0
        %6410 = vmatprep.mubr.bf16.mxu0 0
        %6411 = vmatmul.mubr.bf16.gmra.mrb[0].mxu0 %v4214
        %v6412 = vpop.f32.mrb[0].mxu0
        %v6413 = vadd.f32 %v1260, %v6412
        %v6414 = vpop.f32.mrb[0].mxu0
        %v6415 = vpop.f32.mrb[0].mxu0
        %v6416 = vadd.f32 %v1260, %v6415
        %v6417 = vpop.f32.mrb[0].mxu0
        %6418 = vmatprep.mubr.bf16.mxu0 0
        %6419 = vmatmul.mubr.bf16.gmra.mrb[0].mxu0 %v4217
        %v6420 = vpop.f32.mrb[0].mxu0
        %v6421 = vadd.f32 %v1260, %v6420
        %v6422 = vpop.f32.mrb[0].mxu0
        %v6423 = vpop.f32.mrb[0].mxu0
        %v6424 = vadd.f32 %v1260, %v6423
        %v6425 = vpop.f32.mrb[0].mxu0
        %6426 = vmatprep.mubr.bf16.mxu0 0
        %6427 = vmatmul.mubr.bf16.gmra.mrb[0].mxu0 %v4220
        %v6428 = vpop.f32.mrb[0].mxu0
        %v6429 = vadd.f32 %v1260, %v6428
        %v6430 = vpop.f32.mrb[0].mxu0
        %v6431 = vpop.f32.mrb[0].mxu0
        %v6432 = vadd.f32 %v1260, %v6431
        %v6433 = vpop.f32.mrb[0].mxu0
        %6434 = vmatprep.mubr.bf16.mxu0 0
        %6435 = vmatmul.mubr.bf16.gmra.mrb[0].mxu0 %v4223
        %v6436 = vpop.f32.mrb[0].mxu0
        %v6437 = vadd.f32 %v1260, %v6436
        %v6438 = vpop.f32.mrb[0].mxu0
        %v6439 = vpop.f32.mrb[0].mxu0
        %v6440 = vadd.f32 %v1260, %v6439
        %v6441 = vpop.f32.mrb[0].mxu0
        %6442 = vmatprep.mubr.bf16.mxu0 0
        %6443 = vmatmul.mubr.bf16.gmra.mrb[0].mxu0 %v4226
        %v6444 = vpop.f32.mrb[0].mxu0
        %v6445 = vadd.f32 %v1260, %v6444
        %v6446 = vpop.f32.mrb[0].mxu0
        %v6447 = vpop.f32.mrb[0].mxu0
        %v6448 = vadd.f32 %v1260, %v6447
        %v6449 = vpop.f32.mrb[0].mxu0
        %6450 = vmatprep.mubr.bf16.mxu0 0
        %6451 = vmatmul.mubr.bf16.gmra.mrb[0].mxu0 %v4229
        %v6452 = vpop.f32.mrb[0].mxu0
        %v6453 = vadd.f32 %v1260, %v6452
        %v6454 = vpop.f32.mrb[0].mxu0
        %v6455 = vpop.f32.mrb[0].mxu0
        %v6456 = vadd.f32 %v1260, %v6455
        %v6457 = vpop.f32.mrb[0].mxu0
        %6458 = vmatprep.mubr.bf16.mxu0 0
        %6459 = vmatmul.mubr.bf16.gmra.mrb[0].mxu0 %v4232
        %v6460 = vpop.f32.mrb[0].mxu0
        %v6461 = vadd.f32 %v1260, %v6460
        %v6462 = vpop.f32.mrb[0].mxu0
        %v6463 = vpop.f32.mrb[0].mxu0
        %v6464 = vadd.f32 %v1260, %v6463
        %v6465 = vpop.f32.mrb[0].mxu0
        %6466 = vmatprep.mubr.bf16.mxu0 0
        %6467 = vmatmul.mubr.bf16.gmra.mrb[0].mxu0 %v4235
        %v6468 = vpop.f32.mrb[0].mxu0
        %v6469 = vadd.f32 %v1260, %v6468
        %v6470 = vpop.f32.mrb[0].mxu0
        %v6471 = vpop.f32.mrb[0].mxu0
        %v6472 = vadd.f32 %v1260, %v6471
        %v6473 = vpop.f32.mrb[0].mxu0
        %6474 = vmatprep.mubr.bf16.mxu0 0
        %6475 = vmatmul.mubr.bf16.gmra.mrb[0].mxu0 %v4238
        %v6476 = vpop.f32.mrb[0].mxu0
        %v6477 = vadd.f32 %v1260, %v6476
        %v6478 = vpop.f32.mrb[0].mxu0
        %v6479 = vpop.f32.mrb[0].mxu0
        %v6480 = vadd.f32 %v1260, %v6479
        %v6481 = vpop.f32.mrb[0].mxu0
        %6482 = vmatprep.mubr.bf16.mxu0 0
        %6483 = vmatmul.mubr.bf16.gmra.mrb[0].mxu0 %v4241
        %v6484 = vpop.f32.mrb[0].mxu0
        %v6485 = vadd.f32 %v1260, %v6484
        %v6486 = vpop.f32.mrb[0].mxu0
        %v6487 = vpop.f32.mrb[0].mxu0
        %v6488 = vadd.f32 %v1260, %v6487
        %v6489 = vpop.f32.mrb[0].mxu0
        %6490 = vmatprep.mubr.bf16.mxu0 0
        %6491 = vmatmul.mubr.bf16.gmra.mrb[0].mxu0 %v4244
        %v6492 = vpop.f32.mrb[0].mxu0
        %v6493 = vadd.f32 %v1260, %v6492
        %v6494 = vpop.f32.mrb[0].mxu0
        %v6495 = vpop.f32.mrb[0].mxu0
        %v6496 = vadd.f32 %v1260, %v6495
        %v6497 = vpop.f32.mrb[0].mxu0
        %6498 = vmatprep.mubr.bf16.mxu0 0
        %6499 = vmatmul.mubr.bf16.gmra.mrb[0].mxu0 %v4247
        %v6500 = vpop.f32.mrb[0].mxu0
        %v6501 = vadd.f32 %v1260, %v6500
        %v6502 = vpop.f32.mrb[0].mxu0
        %v6503 = vpop.f32.mrb[0].mxu0
        %v6504 = vadd.f32 %v1260, %v6503
        %v6505 = vpop.f32.mrb[0].mxu0
        %6506 = vmatprep.mubr.bf16.mxu0 0
        %6507 = vmatmul.mubr.bf16.gmra.mrb[0].mxu0 %v4250
        %v6508 = vpop.f32.mrb[0].mxu0
        %v6509 = vadd.f32 %v1260, %v6508
        %v6510 = vpop.f32.mrb[0].mxu0
        %v6511 = vpop.f32.mrb[0].mxu0
        %v6512 = vadd.f32 %v1260, %v6511
        %v6513 = vpop.f32.mrb[0].mxu0
        %6514 = vmatprep.mubr.bf16.mxu0 0
        %6515 = vmatmul.mubr.bf16.gmra.mrb[0].mxu0 %v4253
        %v6516 = vpop.f32.mrb[0].mxu0
        %v6517 = vadd.f32 %v1260, %v6516
        %v6518 = vpop.f32.mrb[0].mxu0
        %v6519 = vpop.f32.mrb[0].mxu0
        %v6520 = vadd.f32 %v1260, %v6519
        %v6521 = vpop.f32.mrb[0].mxu0
        %6522 = vmatprep.mubr.bf16.mxu0 0
        %6523 = vmatmul.mubr.bf16.gmra.mrb[0].mxu0 %v4256
        %v6524 = vpop.f32.mrb[0].mxu0
        %v6525 = vadd.f32 %v1260, %v6524
        %v6526 = vpop.f32.mrb[0].mxu0
        %v6527 = vpop.f32.mrb[0].mxu0
        %v6528 = vadd.f32 %v1260, %v6527
        %v6529 = vpop.f32.mrb[0].mxu0
        %6530 = vmatprep.mubr.bf16.mxu0 0
        %6531 = vmatmul.mubr.bf16.gmra.mrb[0].mxu0 %v4259
        %v6532 = vpop.f32.mrb[0].mxu0
        %v6533 = vadd.f32 %v1260, %v6532
        %v6534 = vpop.f32.mrb[0].mxu0
        %v6535 = vpop.f32.mrb[0].mxu0
        %v6536 = vadd.f32 %v1260, %v6535
        %v6537 = vpop.f32.mrb[0].mxu0
        %6538 = vmatprep.mubr.bf16.mxu0 0
        %6539 = vmatmul.mubr.bf16.gmra.mrb[0].mxu0 %v4262
        %v6540 = vpop.f32.mrb[0].mxu0
        %v6541 = vadd.f32 %v1260, %v6540
        %v6542 = vpop.f32.mrb[0].mxu0
        %v6543 = vpop.f32.mrb[0].mxu0
        %v6544 = vadd.f32 %v1260, %v6543
        %v6545 = vpop.f32.mrb[0].mxu0
        %6546 = vmatprep.mubr.bf16.mxu0 0
        %6547 = vmatmul.mubr.bf16.gmra.mrb[0].mxu0 %v4265
        %v6548 = vpop.f32.mrb[0].mxu0
        %v6549 = vadd.f32 %v1260, %v6548
        %v6550 = vpop.f32.mrb[0].mxu0
        %v6551 = vpop.f32.mrb[0].mxu0
        %v6552 = vadd.f32 %v1260, %v6551
        %v6553 = vpop.f32.mrb[0].mxu0
        %6554 = vmatprep.mubr.bf16.mxu0 0
        %6555 = vmatmul.mubr.bf16.gmra.mrb[0].mxu0 %v4268
        %v6556 = vpop.f32.mrb[0].mxu0
        %v6557 = vadd.f32 %v1260, %v6556
        %v6558 = vpop.f32.mrb[0].mxu0
        %v6559 = vpop.f32.mrb[0].mxu0
        %v6560 = vadd.f32 %v1260, %v6559
        %v6561 = vpop.f32.mrb[0].mxu0
        %6562 = vmatprep.mubr.bf16.mxu0 0
        %6563 = vmatmul.mubr.bf16.gmra.mrb[0].mxu0 %v4271
        %v6564 = vpop.f32.mrb[0].mxu0
        %v6565 = vadd.f32 %v1260, %v6564
        %v6566 = vpop.f32.mrb[0].mxu0
        %v6567 = vpop.f32.mrb[0].mxu0
        %v6568 = vadd.f32 %v1260, %v6567
        %v6569 = vpop.f32.mrb[0].mxu0
        %6570 = vmatprep.mubr.bf16.mxu0 0
        %6571 = vmatmul.mubr.bf16.gmra.mrb[0].mxu0 %v4274
        %v6572 = vpop.f32.mrb[0].mxu0
        %v6573 = vadd.f32 %v1260, %v6572
        %v6574 = vpop.f32.mrb[0].mxu0
        %v6575 = vpop.f32.mrb[0].mxu0
        %v6576 = vadd.f32 %v1260, %v6575
        %v6577 = vpop.f32.mrb[0].mxu0
        %6578 = vmatprep.mubr.bf16.mxu0 0
        %6579 = vmatmul.mubr.bf16.gmra.mrb[0].mxu0 %v4277
        %v6580 = vpop.f32.mrb[0].mxu0
        %v6581 = vadd.f32 %v1260, %v6580
        %v6582 = vpop.f32.mrb[0].mxu0
        %v6583 = vpop.f32.mrb[0].mxu0
        %v6584 = vadd.f32 %v1260, %v6583
        %v6585 = vpop.f32.mrb[0].mxu0
        %6586 = vmatprep.mubr.bf16.mxu0 0
        %6587 = vmatmul.mubr.bf16.gmra.mrb[0].mxu0 %v4280
        %v6588 = vpop.f32.mrb[0].mxu0
        %v6589 = vadd.f32 %v1260, %v6588
        %v6590 = vpop.f32.mrb[0].mxu0
        %v6591 = vpop.f32.mrb[0].mxu0
        %v6592 = vadd.f32 %v1260, %v6591
        %v6593 = vpop.f32.mrb[0].mxu0
        %6594 = vmatprep.mubr.bf16.mxu0 0
        %6595 = vmatmul.mubr.bf16.gmra.mrb[0].mxu0 %v4283
        %v6596 = vpop.f32.mrb[0].mxu0
        %v6597 = vadd.f32 %v1260, %v6596
        %v6598 = vpop.f32.mrb[0].mxu0
        %v6599 = vpop.f32.mrb[0].mxu0
        %v6600 = vadd.f32 %v1260, %v6599
        %v6601 = vpop.f32.mrb[0].mxu0
        %6602 = vmatprep.mubr.bf16.mxu0 0
        %6603 = vmatmul.mubr.bf16.gmra.mrb[0].mxu0 %v4286
        %v6604 = vpop.f32.mrb[0].mxu0
        %v6605 = vadd.f32 %v1260, %v6604
        %v6606 = vpop.f32.mrb[0].mxu0
        %v6607 = vpop.f32.mrb[0].mxu0
        %v6608 = vadd.f32 %v1260, %v6607
        %v6609 = vpop.f32.mrb[0].mxu0
        %6610 = vmatprep.mubr.bf16.mxu0 0
        %6611 = vmatmul.mubr.bf16.gmra.mrb[0].mxu0 %v4289
        %v6612 = vpop.f32.mrb[0].mxu0
        %v6613 = vadd.f32 %v1260, %v6612
        %v6614 = vpop.f32.mrb[0].mxu0
        %v6615 = vpop.f32.mrb[0].mxu0
        %v6616 = vadd.f32 %v1260, %v6615
        %v6617 = vpop.f32.mrb[0].mxu0
        %6618 = vmatprep.mubr.bf16.mxu0 0
        %6619 = vmatmul.mubr.bf16.gmra.mrb[0].mxu0 %v4292
        %v6620 = vpop.f32.mrb[0].mxu0
        %v6621 = vadd.f32 %v1260, %v6620
        %v6622 = vpop.f32.mrb[0].mxu0
        %v6623 = vpop.f32.mrb[0].mxu0
        %v6624 = vadd.f32 %v1260, %v6623
        %v6625 = vpop.f32.mrb[0].mxu0
        %6626 = vmatprep.mubr.bf16.mxu0 0
        %6627 = vmatmul.mubr.bf16.gmra.mrb[0].mxu0 %v4295
        %v6628 = vpop.f32.mrb[0].mxu0
        %v6629 = vadd.f32 %v1260, %v6628
        %v6630 = vpop.f32.mrb[0].mxu0
        %v6631 = vpop.f32.mrb[0].mxu0
        %v6632 = vadd.f32 %v1260, %v6631
        %v6633 = vpop.f32.mrb[0].mxu0
        %6634 = vmatprep.mubr.bf16.mxu0 0
        %6635 = vmatmul.mubr.bf16.gmra.mrb[0].mxu0 %v4298
        %v6636 = vpop.f32.mrb[0].mxu0
        %v6637 = vadd.f32 %v1260, %v6636
        %v6638 = vpop.f32.mrb[0].mxu0
        %v6639 = vpop.f32.mrb[0].mxu0
        %v6640 = vadd.f32 %v1260, %v6639
        %v6641 = vpop.f32.mrb[0].mxu0
        %6642 = vmatprep.mubr.bf16.mxu0 0
        %6643 = vmatmul.mubr.bf16.gmra.mrb[0].mxu0 %v4301
        %v6644 = vpop.f32.mrb[0].mxu0
        %v6645 = vadd.f32 %v1260, %v6644
        %v6646 = vpop.f32.mrb[0].mxu0
        %v6647 = vpop.f32.mrb[0].mxu0
        %v6648 = vadd.f32 %v1260, %v6647
        %v6649 = vpop.f32.mrb[0].mxu0
        %6650 = vmatprep.mubr.bf16.mxu0 0
        %6651 = vmatmul.mubr.bf16.gmra.mrb[0].mxu0 %v4304
        %v6652 = vpop.f32.mrb[0].mxu0
        %v6653 = vadd.f32 %v1260, %v6652
        %v6654 = vpop.f32.mrb[0].mxu0
        %v6655 = vpop.f32.mrb[0].mxu0
        %v6656 = vadd.f32 %v1260, %v6655
        %v6657 = vpop.f32.mrb[0].mxu0
        %6658 = vmatprep.mubr.bf16.mxu0 0
        %6659 = vmatmul.mubr.bf16.gmra.mrb[0].mxu0 %v4307
        %v6660 = vpop.f32.mrb[0].mxu0
        %v6661 = vadd.f32 %v1260, %v6660
        %v6662 = vpop.f32.mrb[0].mxu0
        %v6663 = vpop.f32.mrb[0].mxu0
        %v6664 = vadd.f32 %v1260, %v6663
        %v6665 = vpop.f32.mrb[0].mxu0
        %6666 = vmatprep.mubr.bf16.mxu0 0
        %6667 = vmatmul.mubr.bf16.gmra.mrb[0].mxu0 %v4310
        %v6668 = vpop.f32.mrb[0].mxu0
        %v6669 = vadd.f32 %v1260, %v6668
        %v6670 = vpop.f32.mrb[0].mxu0
        %v6671 = vpop.f32.mrb[0].mxu0
        %v6672 = vadd.f32 %v1260, %v6671
        %v6673 = vpop.f32.mrb[0].mxu0
        %6674 = vmatprep.mubr.bf16.mxu0 0
        %6675 = vmatmul.mubr.bf16.gmra.mrb[0].mxu0 %v4313
        %v6676 = vpop.f32.mrb[0].mxu0
        %v6677 = vadd.f32 %v1260, %v6676
        %v6678 = vpop.f32.mrb[0].mxu0
        %v6679 = vpop.f32.mrb[0].mxu0
        %v6680 = vadd.f32 %v1260, %v6679
        %v6681 = vpop.f32.mrb[0].mxu0
        %6682 = vmatprep.mubr.bf16.mxu0 0
        %6683 = vmatmul.mubr.bf16.gmra.mrb[0].mxu0 %v4316
        %v6684 = vpop.f32.mrb[0].mxu0
        %v6685 = vadd.f32 %v1260, %v6684
        %v6686 = vpop.f32.mrb[0].mxu0
        %v6687 = vpop.f32.mrb[0].mxu0
        %v6688 = vadd.f32 %v1260, %v6687
        %v6689 = vpop.f32.mrb[0].mxu0
        %6690 = vmatprep.mubr.bf16.mxu0 0
        %6691 = vmatmul.mubr.bf16.gmra.mrb[0].mxu0 %v4319
        %v6692 = vpop.f32.mrb[0].mxu0
        %v6693 = vadd.f32 %v1260, %v6692
        %v6694 = vpop.f32.mrb[0].mxu0
        %v6695 = vpop.f32.mrb[0].mxu0
        %v6696 = vadd.f32 %v1260, %v6695
        %v6697 = vpop.f32.mrb[0].mxu0
        %6698 = vmatprep.mubr.bf16.mxu0 0
        %6699 = vmatmul.mubr.bf16.gmra.mrb[0].mxu0 %v4322
        %v6700 = vpop.f32.mrb[0].mxu0
        %v6701 = vadd.f32 %v1260, %v6700
        %v6702 = vpop.f32.mrb[0].mxu0
        %v6703 = vpop.f32.mrb[0].mxu0
        %v6704 = vadd.f32 %v1260, %v6703
        %v6705 = vpop.f32.mrb[0].mxu0
        %6706 = vmatprep.mubr.bf16.mxu0 0
        %6707 = vmatmul.mubr.bf16.gmra.mrb[0].mxu0 %v4325
        %v6708 = vpop.f32.mrb[0].mxu0
        %v6709 = vadd.f32 %v1260, %v6708
        %v6710 = vpop.f32.mrb[0].mxu0
        %v6711 = vpop.f32.mrb[0].mxu0
        %v6712 = vadd.f32 %v1260, %v6711
        %v6713 = vpop.f32.mrb[0].mxu0
        %6714 = vmatprep.mubr.bf16.mxu0 0
        %6715 = vmatmul.mubr.bf16.gmra.mrb[0].mxu0 %v4328
        %v6716 = vpop.f32.mrb[0].mxu0
        %v6717 = vadd.f32 %v1260, %v6716
        %v6718 = vpop.f32.mrb[0].mxu0
        %v6719 = vpop.f32.mrb[0].mxu0
        %v6720 = vadd.f32 %v1260, %v6719
        %v6721 = vpop.f32.mrb[0].mxu0
        %6722 = vmatprep.mubr.bf16.mxu0 0
        %6723 = vmatmul.mubr.bf16.gmra.mrb[0].mxu0 %v4331
        %v6724 = vpop.f32.mrb[0].mxu0
        %v6725 = vadd.f32 %v1260, %v6724
        %v6726 = vpop.f32.mrb[0].mxu0
        %v6727 = vpop.f32.mrb[0].mxu0
        %v6728 = vadd.f32 %v1260, %v6727
        %v6729 = vpop.f32.mrb[0].mxu0
        %6730 = vmatprep.mubr.bf16.mxu0 0
        %6731 = vmatmul.mubr.bf16.gmra.mrb[0].mxu0 %v4334
        %v6732 = vpop.f32.mrb[0].mxu0
        %v6733 = vadd.f32 %v1260, %v6732
        %v6734 = vpop.f32.mrb[0].mxu0
        %v6735 = vpop.f32.mrb[0].mxu0
        %v6736 = vadd.f32 %v1260, %v6735
        %v6737 = vpop.f32.mrb[0].mxu0
        %6738 = vmatprep.mubr.bf16.mxu0 0
        %6739 = vmatmul.mubr.bf16.gmra.mrb[0].mxu0 %v4337
        %v6740 = vpop.f32.mrb[0].mxu0
        %v6741 = vadd.f32 %v1260, %v6740
        %v6742 = vpop.f32.mrb[0].mxu0
        %v6743 = vpop.f32.mrb[0].mxu0
        %v6744 = vadd.f32 %v1260, %v6743
        %v6745 = vpop.f32.mrb[0].mxu0
        %6746 = vmatprep.mubr.bf16.mxu0 0
        %6747 = vmatmul.mubr.bf16.gmra.mrb[0].mxu0 %v4340
        %v6748 = vpop.f32.mrb[0].mxu0
        %v6749 = vadd.f32 %v1260, %v6748
        %v6750 = vpop.f32.mrb[0].mxu0
        %v6751 = vpop.f32.mrb[0].mxu0
        %v6752 = vadd.f32 %v1260, %v6751
        %v6753 = vpop.f32.mrb[0].mxu0
        %6754 = vmatprep.mubr.bf16.mxu0 0
        %6755 = vmatmul.mubr.bf16.gmra.mrb[0].mxu0 %v4343
        %v6756 = vpop.f32.mrb[0].mxu0
        %v6757 = vadd.f32 %v1260, %v6756
        %v6758 = vpop.f32.mrb[0].mxu0
        %v6759 = vpop.f32.mrb[0].mxu0
        %v6760 = vadd.f32 %v1260, %v6759
        %v6761 = vpop.f32.mrb[0].mxu0
        %6762 = vmatprep.mubr.bf16.mxu0 0
        %6763 = vmatmul.mubr.bf16.gmra.mrb[0].mxu0 %v4346
        %v6764 = vpop.f32.mrb[0].mxu0
        %v6765 = vadd.f32 %v1260, %v6764
        %v6766 = vpop.f32.mrb[0].mxu0
        %v6767 = vpop.f32.mrb[0].mxu0
        %v6768 = vadd.f32 %v1260, %v6767
        %v6769 = vpop.f32.mrb[0].mxu0
        %6770 = vmatprep.mubr.bf16.mxu0 0
        %6771 = vmatmul.mubr.bf16.gmra.mrb[0].mxu0 %v4349
        %v6772 = vpop.f32.mrb[0].mxu0
        %v6773 = vadd.f32 %v1260, %v6772
        %v6774 = vpop.f32.mrb[0].mxu0
        %v6775 = vpop.f32.mrb[0].mxu0
        %v6776 = vadd.f32 %v1260, %v6775
        %v6777 = vpop.f32.mrb[0].mxu0
        %6778 = vmatprep.mubr.bf16.mxu0 0
        %6779 = vmatmul.mubr.bf16.gmra.mrb[0].mxu0 %v4352
        %v6780 = vpop.f32.mrb[0].mxu0
        %v6781 = vadd.f32 %v1260, %v6780
        %v6782 = vpop.f32.mrb[0].mxu0
        %v6783 = vpop.f32.mrb[0].mxu0
        %v6784 = vadd.f32 %v1260, %v6783
        %v6785 = vpop.f32.mrb[0].mxu0
        %6786 = vmatprep.mubr.bf16.mxu0 0
        %6787 = vmatmul.mubr.bf16.gmra.mrb[0].mxu0 %v4355
        %v6788 = vpop.f32.mrb[0].mxu0
        %v6789 = vadd.f32 %v1260, %v6788
        %v6790 = vpop.f32.mrb[0].mxu0
        %v6791 = vpop.f32.mrb[0].mxu0
        %v6792 = vadd.f32 %v1260, %v6791
        %v6793 = vpop.f32.mrb[0].mxu0
        %6794 = vmatprep.mubr.bf16.mxu0 0
        %6795 = vmatmul.mubr.bf16.gmra.mrb[0].mxu0 %v4358
        %v6796 = vpop.f32.mrb[0].mxu0
        %v6797 = vadd.f32 %v1260, %v6796
        %v6798 = vpop.f32.mrb[0].mxu0
        %v6799 = vpop.f32.mrb[0].mxu0
        %v6800 = vadd.f32 %v1260, %v6799
        %v6801 = vpop.f32.mrb[0].mxu0
        %6802 = vmatprep.mubr.bf16.mxu0 0
        %6803 = vmatmul.mubr.bf16.gmra.mrb[0].mxu0 %v4361
        %v6804 = vpop.f32.mrb[0].mxu0
        %v6805 = vadd.f32 %v1260, %v6804
        %v6806 = vpop.f32.mrb[0].mxu0
        %v6807 = vpop.f32.mrb[0].mxu0
        %v6808 = vadd.f32 %v1260, %v6807
        %v6809 = vpop.f32.mrb[0].mxu0
        %6810 = vmatprep.mubr.bf16.mxu0 0
        %6811 = vmatmul.mubr.bf16.gmra.mrb[0].mxu0 %v4364
        %v6812 = vpop.f32.mrb[0].mxu0
        %v6813 = vadd.f32 %v1260, %v6812
        %v6814 = vpop.f32.mrb[0].mxu0
        %v6815 = vpop.f32.mrb[0].mxu0
        %v6816 = vadd.f32 %v1260, %v6815
        %v6817 = vpop.f32.mrb[0].mxu0
        %6818 = vmatprep.mubr.bf16.mxu0 0
        %6819 = vmatmul.mubr.bf16.gmra.mrb[0].mxu0 %v4367
        %v6820 = vpop.f32.mrb[0].mxu0
        %v6821 = vadd.f32 %v1260, %v6820
        %v6822 = vpop.f32.mrb[0].mxu0
        %v6823 = vpop.f32.mrb[0].mxu0
        %v6824 = vadd.f32 %v1260, %v6823
        %v6825 = vpop.f32.mrb[0].mxu0
        %6826 = vmatprep.mubr.bf16.mxu0 0
        %6827 = vmatmul.mubr.bf16.gmra.mrb[0].mxu0 %v4370
        %v6828 = vpop.f32.mrb[0].mxu0
        %v6829 = vadd.f32 %v1260, %v6828
        %v6830 = vpop.f32.mrb[0].mxu0
        %v6831 = vpop.f32.mrb[0].mxu0
        %v6832 = vadd.f32 %v1260, %v6831
        %v6833 = vpop.f32.mrb[0].mxu0
        %6834 = vmatprep.mubr.bf16.mxu0 0
        %6835 = vmatmul.mubr.bf16.gmra.mrb[0].mxu0 %v4373
        %v6836 = vpop.f32.mrb[0].mxu0
        %v6837 = vadd.f32 %v1260, %v6836
        %v6838 = vpop.f32.mrb[0].mxu0
        %v6839 = vpop.f32.mrb[0].mxu0
        %v6840 = vadd.f32 %v1260, %v6839
        %v6841 = vpop.f32.mrb[0].mxu0
        %6842 = vmatprep.mubr.bf16.mxu0 0
        %6843 = vmatmul.mubr.bf16.gmra.mrb[0].mxu0 %v4376
        %v6844 = vpop.f32.mrb[0].mxu0
        %v6845 = vadd.f32 %v1260, %v6844
        %v6846 = vpop.f32.mrb[0].mxu0
        %v6847 = vpop.f32.mrb[0].mxu0
        %v6848 = vadd.f32 %v1260, %v6847
        %v6849 = vpop.f32.mrb[0].mxu0
        %6850 = vmatprep.mubr.bf16.mxu0 0
        %6851 = vmatmul.mubr.bf16.gmra.mrb[0].mxu0 %v4379
        %v6852 = vpop.f32.mrb[0].mxu0
        %v6853 = vadd.f32 %v1260, %v6852
        %v6854 = vpop.f32.mrb[0].mxu0
        %v6855 = vpop.f32.mrb[0].mxu0
        %v6856 = vadd.f32 %v1260, %v6855
        %v6857 = vpop.f32.mrb[0].mxu0
        %6858 = vmatprep.mubr.bf16.mxu0 0
        %6859 = vmatmul.mubr.bf16.gmra.mrb[0].mxu0 %v4382
        %v6860 = vpop.f32.mrb[0].mxu0
        %v6861 = vadd.f32 %v1260, %v6860
        %v6862 = vpop.f32.mrb[0].mxu0
        %v6863 = vpop.f32.mrb[0].mxu0
        %v6864 = vadd.f32 %v1260, %v6863
        %v6865 = vpop.f32.mrb[0].mxu0
        %6866 = vmatprep.mubr.bf16.mxu0 0
        %6867 = vmatmul.mubr.bf16.gmra.mrb[0].mxu0 %v4385
        %v6868 = vpop.f32.mrb[0].mxu0
        %v6869 = vadd.f32 %v1260, %v6868
        %v6870 = vpop.f32.mrb[0].mxu0
        %v6871 = vpop.f32.mrb[0].mxu0
        %v6872 = vadd.f32 %v1260, %v6871
        %v6873 = vpop.f32.mrb[0].mxu0
        %6874 = vmatprep.mubr.bf16.mxu0 0
        %6875 = vmatmul.mubr.bf16.gmra.mrb[0].mxu0 %v4388
        %v6876 = vpop.f32.mrb[0].mxu0
        %v6877 = vadd.f32 %v1260, %v6876
        %v6878 = vpop.f32.mrb[0].mxu0
        %v6879 = vpop.f32.mrb[0].mxu0
        %v6880 = vadd.f32 %v1260, %v6879
        %v6881 = vpop.f32.mrb[0].mxu0
        %6882 = vmatprep.mubr.bf16.mxu0 0
        %6883 = vmatmul.mubr.bf16.gmra.mrb[0].mxu0 %v4391
        %v6884 = vpop.f32.mrb[0].mxu0
        %v6885 = vadd.f32 %v1260, %v6884
        %v6886 = vpop.f32.mrb[0].mxu0
        %v6887 = vpop.f32.mrb[0].mxu0
        %v6888 = vadd.f32 %v1260, %v6887
        %v6889 = vpop.f32.mrb[0].mxu0
        %6890 = vmatprep.mubr.bf16.mxu0 0
        %6891 = vmatmul.mubr.bf16.gmra.mrb[0].mxu0 %v4394
        %v6892 = vpop.f32.mrb[0].mxu0
        %v6893 = vadd.f32 %v1260, %v6892
        %v6894 = vpop.f32.mrb[0].mxu0
        %v6895 = vpop.f32.mrb[0].mxu0
        %v6896 = vadd.f32 %v1260, %v6895
        %v6897 = vpop.f32.mrb[0].mxu0
        %6898 = vmatprep.mubr.bf16.mxu0 0
        %6899 = vmatmul.mubr.bf16.gmra.mrb[0].mxu0 %v4397
        %v6900 = vpop.f32.mrb[0].mxu0
        %v6901 = vadd.f32 %v1260, %v6900
        %v6902 = vpop.f32.mrb[0].mxu0
        %v6903 = vpop.f32.mrb[0].mxu0
        %v6904 = vadd.f32 %v1260, %v6903
        %v6905 = vpop.f32.mrb[0].mxu0
        %6906 = vmatprep.mubr.bf16.mxu0 0
        %6907 = vmatmul.mubr.bf16.gmra.mrb[0].mxu0 %v4400
        %v6908 = vpop.f32.mrb[0].mxu0
        %v6909 = vadd.f32 %v1260, %v6908
        %v6910 = vpop.f32.mrb[0].mxu0
        %v6911 = vpop.f32.mrb[0].mxu0
        %v6912 = vadd.f32 %v1260, %v6911
        %v6913 = vpop.f32.mrb[0].mxu0
        %6914 = vmatprep.mubr.bf16.mxu0 0
        %6915 = vmatmul.mubr.bf16.gmra.mrb[0].mxu0 %v4403
        %v6916 = vpop.f32.mrb[0].mxu0
        %v6917 = vadd.f32 %v1260, %v6916
        %v6918 = vpop.f32.mrb[0].mxu0
        %v6919 = vpop.f32.mrb[0].mxu0
        %v6920 = vadd.f32 %v1260, %v6919
        %v6921 = vpop.f32.mrb[0].mxu0
        %6922 = vmatprep.mubr.bf16.mxu0 0
        %6923 = vmatmul.mubr.bf16.gmra.mrb[0].mxu0 %v4406
        %v6924 = vpop.f32.mrb[0].mxu0
        %v6925 = vadd.f32 %v1260, %v6924
        %v6926 = vpop.f32.mrb[0].mxu0
        %v6927 = vpop.f32.mrb[0].mxu0
        %v6928 = vadd.f32 %v1260, %v6927
        %v6929 = vpop.f32.mrb[0].mxu0
        %6930 = vmatprep.mubr.bf16.mxu0 0
        %6931 = vmatmul.mubr.bf16.gmra.mrb[0].mxu0 %v4409
        %v6932 = vpop.f32.mrb[0].mxu0
        %v6933 = vadd.f32 %v1260, %v6932
        %v6934 = vpop.f32.mrb[0].mxu0
        %v6935 = vpop.f32.mrb[0].mxu0
        %v6936 = vadd.f32 %v1260, %v6935
        %v6937 = vpop.f32.mrb[0].mxu0
        %6938 = vmatprep.mubr.bf16.mxu0 0
        %6939 = vmatmul.mubr.bf16.gmra.mrb[0].mxu0 %v4412
        %v6940 = vpop.f32.mrb[0].mxu0
        %v6941 = vadd.f32 %v1260, %v6940
        %v6942 = vpop.f32.mrb[0].mxu0
        %v6943 = vpop.f32.mrb[0].mxu0
        %v6944 = vadd.f32 %v1260, %v6943
        %v6945 = vpop.f32.mrb[0].mxu0
        %6946 = vmatprep.mubr.bf16.mxu0 0
        %6947 = vmatmul.mubr.bf16.gmra.mrb[0].mxu0 %v4415
        %v6948 = vpop.f32.mrb[0].mxu0
        %v6949 = vadd.f32 %v1260, %v6948
        %v6950 = vpop.f32.mrb[0].mxu0
        %v6951 = vpop.f32.mrb[0].mxu0
        %v6952 = vadd.f32 %v1260, %v6951
        %v6953 = vpop.f32.mrb[0].mxu0
        %6954 = vmatprep.mubr.bf16.mxu0 0
        %6955 = vmatmul.mubr.bf16.gmra.mrb[0].mxu0 %v4418
        %v6956 = vpop.f32.mrb[0].mxu0
        %v6957 = vadd.f32 %v1260, %v6956
        %v6958 = vpop.f32.mrb[0].mxu0
        %v6959 = vpop.f32.mrb[0].mxu0
        %v6960 = vadd.f32 %v1260, %v6959
        %v6961 = vpop.f32.mrb[0].mxu0
        %6962 = vmatprep.mubr.bf16.mxu0 0
        %6963 = vmatmul.mubr.bf16.gmra.mrb[0].mxu0 %v4421
        %v6964 = vpop.f32.mrb[0].mxu0
        %v6965 = vadd.f32 %v1260, %v6964
        %v6966 = vpop.f32.mrb[0].mxu0
        %v6967 = vpop.f32.mrb[0].mxu0
        %v6968 = vadd.f32 %v1260, %v6967
        %v6969 = vpop.f32.mrb[0].mxu0
        %6970 = vmatprep.mubr.bf16.mxu0 0
        %6971 = vmatmul.mubr.bf16.gmra.mrb[0].mxu0 %v4424
        %v6972 = vpop.f32.mrb[0].mxu0
        %v6973 = vadd.f32 %v1260, %v6972
        %v6974 = vpop.f32.mrb[0].mxu0
        %v6975 = vpop.f32.mrb[0].mxu0
        %v6976 = vadd.f32 %v1260, %v6975
        %v6977 = vpop.f32.mrb[0].mxu0
        %6978 = vmatprep.mubr.bf16.mxu0 0
        %6979 = vmatmul.mubr.bf16.gmra.mrb[0].mxu0 %v4427
        %v6980 = vpop.f32.mrb[0].mxu0
        %v6981 = vadd.f32 %v1260, %v6980
        %v6982 = vpop.f32.mrb[0].mxu0
        %v6983 = vpop.f32.mrb[0].mxu0
        %v6984 = vadd.f32 %v1260, %v6983
        %v6985 = vpop.f32.mrb[0].mxu0
        %6986 = vmatprep.mubr.bf16.mxu0 0
        %6987 = vmatmul.mubr.bf16.gmra.mrb[0].mxu0 %v4430
        %v6988 = vpop.f32.mrb[0].mxu0
        %v6989 = vadd.f32 %v1260, %v6988
        %v6990 = vpop.f32.mrb[0].mxu0
        %v6991 = vpop.f32.mrb[0].mxu0
        %v6992 = vadd.f32 %v1260, %v6991
        %v6993 = vpop.f32.mrb[0].mxu0
        %6994 = vmatprep.mubr.bf16.mxu0 0
        %6995 = vmatmul.mubr.bf16.gmra.mrb[0].mxu0 %v4433
        %v6996 = vpop.f32.mrb[0].mxu0
        %v6997 = vadd.f32 %v1260, %v6996
        %v6998 = vpop.f32.mrb[0].mxu0
        %v6999 = vpop.f32.mrb[0].mxu0
        %v7000 = vadd.f32 %v1260, %v6999
        %v7001 = vpop.f32.mrb[0].mxu0
        %7002 = vmatprep.mubr.bf16.mxu0 0
        %7003 = vmatmul.mubr.bf16.gmra.mrb[0].mxu0 %v4436
        %v7004 = vpop.f32.mrb[0].mxu0
        %v7005 = vadd.f32 %v1260, %v7004
        %v7006 = vpop.f32.mrb[0].mxu0
        %v7007 = vpop.f32.mrb[0].mxu0
        %v7008 = vadd.f32 %v1260, %v7007
        %v7009 = vpop.f32.mrb[0].mxu0
        %7010 = vmatprep.mubr.bf16.mxu0 0
        %7011 = vmatmul.mubr.bf16.gmra.mrb[0].mxu0 %v4439
        %v7012 = vpop.f32.mrb[0].mxu0
        %v7013 = vadd.f32 %v1260, %v7012
        %v7014 = vpop.f32.mrb[0].mxu0
        %v7015 = vpop.f32.mrb[0].mxu0
        %v7016 = vadd.f32 %v1260, %v7015
        %v7017 = vpop.f32.mrb[0].mxu0
        %7018 = vmatprep.mubr.bf16.mxu0 0
        %7019 = vmatmul.mubr.bf16.gmra.mrb[0].mxu0 %v4442
        %v7020 = vpop.f32.mrb[0].mxu0
        %v7021 = vadd.f32 %v1260, %v7020
        %v7022 = vpop.f32.mrb[0].mxu0
        %v7023 = vpop.f32.mrb[0].mxu0
        %v7024 = vadd.f32 %v1260, %v7023
        %v7025 = vpop.f32.mrb[0].mxu0
        %7026 = vmatprep.mubr.bf16.mxu0 0
        %7027 = vmatmul.mubr.bf16.gmra.mrb[0].mxu0 %v4445
        %v7028 = vpop.f32.mrb[0].mxu0
        %v7029 = vadd.f32 %v1260, %v7028
        %v7030 = vpop.f32.mrb[0].mxu0
        %v7031 = vpop.f32.mrb[0].mxu0
        %v7032 = vadd.f32 %v1260, %v7031
        %v7033 = vpop.f32.mrb[0].mxu0
        %7034 = vmatprep.mubr.bf16.mxu0 0
        %7035 = vmatmul.mubr.bf16.gmra.mrb[0].mxu0 %v4448
        %v7036 = vpop.f32.mrb[0].mxu0
        %v7037 = vadd.f32 %v1260, %v7036
        %v7038 = vpop.f32.mrb[0].mxu0
        %v7039 = vpop.f32.mrb[0].mxu0
        %v7040 = vadd.f32 %v1260, %v7039
        %v7041 = vpop.f32.mrb[0].mxu0
        %7042 = vmatprep.mubr.bf16.mxu0 0
        %7043 = vmatmul.mubr.bf16.gmra.mrb[0].mxu0 %v4451
        %v7044 = vpop.f32.mrb[0].mxu0
        %v7045 = vadd.f32 %v1260, %v7044
        %v7046 = vpop.f32.mrb[0].mxu0
        %v7047 = vpop.f32.mrb[0].mxu0
        %v7048 = vadd.f32 %v1260, %v7047
        %v7049 = vpop.f32.mrb[0].mxu0
        %7050 = vmatprep.mubr.bf16.mxu0 0
        %7051 = vmatmul.mubr.bf16.gmra.mrb[0].mxu0 %v4454
        %v7052 = vpop.f32.mrb[0].mxu0
        %v7053 = vadd.f32 %v1260, %v7052
        %v7054 = vpop.f32.mrb[0].mxu0
        %v7055 = vpop.f32.mrb[0].mxu0
        %v7056 = vadd.f32 %v1260, %v7055
        %v7057 = vpop.f32.mrb[0].mxu0
        %7058 = vmatprep.mubr.bf16.mxu0 0
        %7059 = vmatmul.mubr.bf16.gmra.mrb[0].mxu0 %v4457
        %v7060 = vpop.f32.mrb[0].mxu0
        %v7061 = vadd.f32 %v1260, %v7060
        %v7062 = vpop.f32.mrb[0].mxu0
        %v7063 = vpop.f32.mrb[0].mxu0
        %v7064 = vadd.f32 %v1260, %v7063
        %v7065 = vpop.f32.mrb[0].mxu0
        %7066 = vmatprep.mubr.bf16.mxu0 0
        %7067 = vmatmul.mubr.bf16.gmra.mrb[0].mxu0 %v4460
        %v7068 = vpop.f32.mrb[0].mxu0
        %v7069 = vadd.f32 %v1260, %v7068
        %v7070 = vpop.f32.mrb[0].mxu0
        %v7071 = vpop.f32.mrb[0].mxu0
        %v7072 = vadd.f32 %v1260, %v7071
        %v7073 = vpop.f32.mrb[0].mxu0
        %7074 = vmatprep.mubr.bf16.mxu0 0
        %7075 = vmatmul.mubr.bf16.gmra.mrb[0].mxu0 %v4463
        %v7076 = vpop.f32.mrb[0].mxu0
        %v7077 = vadd.f32 %v1260, %v7076
        %v7078 = vpop.f32.mrb[0].mxu0
        %v7079 = vpop.f32.mrb[0].mxu0
        %v7080 = vadd.f32 %v1260, %v7079
        %v7081 = vpop.f32.mrb[0].mxu0
        %7082 = vmatprep.mubr.bf16.mxu0 0
        %7083 = vmatmul.mubr.bf16.gmra.mrb[0].mxu0 %v4466
        %v7084 = vpop.f32.mrb[0].mxu0
        %v7085 = vadd.f32 %v1260, %v7084
        %v7086 = vpop.f32.mrb[0].mxu0
        %v7087 = vpop.f32.mrb[0].mxu0
        %v7088 = vadd.f32 %v1260, %v7087
        %v7089 = vpop.f32.mrb[0].mxu0
        %7090 = vmatprep.mubr.bf16.mxu0 0
        %7091 = vmatmul.mubr.bf16.gmra.mrb[0].mxu0 %v4469
        %v7092 = vpop.f32.mrb[0].mxu0
        %v7093 = vadd.f32 %v1260, %v7092
        %v7094 = vpop.f32.mrb[0].mxu0
        %v7095 = vpop.f32.mrb[0].mxu0
        %v7096 = vadd.f32 %v1260, %v7095
        %v7097 = vpop.f32.mrb[0].mxu0
        %7098 = vmatprep.mubr.bf16.mxu0 0
        %7099 = vmatmul.mubr.bf16.gmra.mrb[0].mxu0 %v4472
        %v7100 = vpop.f32.mrb[0].mxu0
        %v7101 = vadd.f32 %v1260, %v7100
        %v7102 = vpop.f32.mrb[0].mxu0
        %v7103 = vpop.f32.mrb[0].mxu0
        %v7104 = vadd.f32 %v1260, %v7103
        %v7105 = vpop.f32.mrb[0].mxu0
        %7106 = vmatprep.mubr.bf16.mxu0 0
        %7107 = vmatmul.mubr.bf16.gmra.mrb[0].mxu0 %v4475
        %v7108 = vpop.f32.mrb[0].mxu0
        %v7109 = vadd.f32 %v1260, %v7108
        %v7110 = vpop.f32.mrb[0].mxu0
        %v7111 = vpop.f32.mrb[0].mxu0
        %v7112 = vadd.f32 %v1260, %v7111
        %v7113 = vpop.f32.mrb[0].mxu0
        %7114 = vmatprep.mubr.bf16.mxu0 0
        %7115 = vmatmul.mubr.bf16.gmra.mrb[0].mxu0 %v4478
        %v7116 = vpop.f32.mrb[0].mxu0
        %v7117 = vadd.f32 %v1260, %v7116
        %v7118 = vpop.f32.mrb[0].mxu0
        %v7119 = vpop.f32.mrb[0].mxu0
        %v7120 = vadd.f32 %v1260, %v7119
        %v7121 = vpop.f32.mrb[0].mxu0
        %7122 = vmatprep.mubr.bf16.mxu0 0
        %7123 = vmatmul.mubr.bf16.gmra.mrb[0].mxu0 %v4481
        %v7124 = vpop.f32.mrb[0].mxu0
        %v7125 = vadd.f32 %v1260, %v7124
        %v7126 = vpop.f32.mrb[0].mxu0
        %v7127 = vpop.f32.mrb[0].mxu0
        %v7128 = vadd.f32 %v1260, %v7127
        %v7129 = vpop.f32.mrb[0].mxu0
        %7130 = vmatprep.mubr.bf16.mxu0 0
        %7131 = vmatmul.mubr.bf16.gmra.mrb[0].mxu0 %v4484
        %v7132 = vpop.f32.mrb[0].mxu0
        %v7133 = vadd.f32 %v1260, %v7132
        %v7134 = vpop.f32.mrb[0].mxu0
        %v7135 = vpop.f32.mrb[0].mxu0
        %v7136 = vadd.f32 %v1260, %v7135
        %v7137 = vpop.f32.mrb[0].mxu0
        %7138 = vmatprep.mubr.bf16.mxu0 0
        %7139 = vmatmul.mubr.bf16.gmra.mrb[0].mxu0 %v4487
        %v7140 = vpop.f32.mrb[0].mxu0
        %v7141 = vadd.f32 %v1260, %v7140
        %v7142 = vpop.f32.mrb[0].mxu0
        %v7143 = vpop.f32.mrb[0].mxu0
        %v7144 = vadd.f32 %v1260, %v7143
        %v7145 = vpop.f32.mrb[0].mxu0
        %7146 = vmatprep.mubr.bf16.mxu0 0
        %7147 = vmatmul.mubr.bf16.gmra.mrb[0].mxu0 %v4490
        %v7148 = vpop.f32.mrb[0].mxu0
        %v7149 = vadd.f32 %v1260, %v7148
        %v7150 = vpop.f32.mrb[0].mxu0
        %v7151 = vpop.f32.mrb[0].mxu0
        %v7152 = vadd.f32 %v1260, %v7151
        %v7153 = vpop.f32.mrb[0].mxu0
        %7154 = vmatprep.mubr.bf16.mxu0 0
        %7155 = vmatmul.mubr.bf16.gmra.mrb[0].mxu0 %v4493
        %v7156 = vpop.f32.mrb[0].mxu0
        %v7157 = vadd.f32 %v1260, %v7156
        %v7158 = vpop.f32.mrb[0].mxu0
        %v7159 = vpop.f32.mrb[0].mxu0
        %v7160 = vadd.f32 %v1260, %v7159
        %v7161 = vpop.f32.mrb[0].mxu0
        %7162 = vmatprep.mubr.bf16.mxu0 0
        %7163 = vmatmul.mubr.bf16.gmra.mrb[0].mxu0 %v4496
        %v7164 = vpop.f32.mrb[0].mxu0
        %v7165 = vadd.f32 %v1260, %v7164
        %v7166 = vpop.f32.mrb[0].mxu0
        %v7167 = vpop.f32.mrb[0].mxu0
        %v7168 = vadd.f32 %v1260, %v7167
        %v7169 = vpop.f32.mrb[0].mxu0
        %7170 = vmatprep.mubr.bf16.mxu0 0
        %7171 = vmatmul.mubr.bf16.gmra.mrb[0].mxu0 %v4499
        %v7172 = vpop.f32.mrb[0].mxu0
        %v7173 = vadd.f32 %v1260, %v7172
        %v7174 = vpop.f32.mrb[0].mxu0
        %v7175 = vpop.f32.mrb[0].mxu0
        %v7176 = vadd.f32 %v1260, %v7175
        %v7177 = vpop.f32.mrb[0].mxu0
        %7178 = vmatprep.mubr.bf16.mxu0 0
        %7179 = vmatmul.mubr.bf16.gmra.mrb[0].mxu0 %v4502
        %v7180 = vpop.f32.mrb[0].mxu0
        %v7181 = vadd.f32 %v1260, %v7180
        %v7182 = vpop.f32.mrb[0].mxu0
        %v7183 = vpop.f32.mrb[0].mxu0
        %v7184 = vadd.f32 %v1260, %v7183
        %v7185 = vpop.f32.mrb[0].mxu0
        %7186 = vmatprep.mubr.bf16.mxu0 0
        %7187 = vmatmul.mubr.bf16.gmra.mrb[0].mxu0 %v4505
        %v7188 = vpop.f32.mrb[0].mxu0
        %v7189 = vadd.f32 %v1260, %v7188
        %v7190 = vpop.f32.mrb[0].mxu0
        %v7191 = vpop.f32.mrb[0].mxu0
        %v7192 = vadd.f32 %v1260, %v7191
        %v7193 = vpop.f32.mrb[0].mxu0
        %7194 = vmatprep.mubr.bf16.mxu0 0
        %7195 = vmatmul.mubr.bf16.gmra.mrb[0].mxu0 %v4508
        %v7196 = vpop.f32.mrb[0].mxu0
        %v7197 = vadd.f32 %v1260, %v7196
        %v7198 = vpop.f32.mrb[0].mxu0
        %v7199 = vpop.f32.mrb[0].mxu0
        %v7200 = vadd.f32 %v1260, %v7199
        %v7201 = vpop.f32.mrb[0].mxu0
        %7202 = vmatprep.mubr.bf16.mxu0 0
        %7203 = vmatmul.mubr.bf16.gmra.mrb[0].mxu0 %v4511
        %v7204 = vpop.f32.mrb[0].mxu0
        %v7205 = vadd.f32 %v1260, %v7204
        %v7206 = vpop.f32.mrb[0].mxu0
        %v7207 = vpop.f32.mrb[0].mxu0
        %v7208 = vadd.f32 %v1260, %v7207
        %v7209 = vpop.f32.mrb[0].mxu0
        %7210 = vmatprep.mubr.bf16.mxu0 0
        %7211 = vmatmul.mubr.bf16.gmra.mrb[0].mxu0 %v4514
        %v7212 = vpop.f32.mrb[0].mxu0
        %v7213 = vadd.f32 %v1260, %v7212
        %v7214 = vpop.f32.mrb[0].mxu0
        %v7215 = vpop.f32.mrb[0].mxu0
        %v7216 = vadd.f32 %v1260, %v7215
        %v7217 = vpop.f32.mrb[0].mxu0
        %7218 = vmatprep.mubr.bf16.mxu0 0
        %7219 = vmatmul.mubr.bf16.gmra.mrb[0].mxu0 %v4517
        %v7220 = vpop.f32.mrb[0].mxu0
        %v7221 = vadd.f32 %v1260, %v7220
        %v7222 = vpop.f32.mrb[0].mxu0
        %v7223 = vpop.f32.mrb[0].mxu0
        %v7224 = vadd.f32 %v1260, %v7223
        %v7225 = vpop.f32.mrb[0].mxu0
        %7226 = vmatprep.mubr.bf16.mxu0 0
        %7227 = vmatmul.mubr.bf16.gmra.mrb[0].mxu0 %v4520
        %v7228 = vpop.f32.mrb[0].mxu0
        %v7229 = vadd.f32 %v1260, %v7228
        %v7230 = vpop.f32.mrb[0].mxu0
        %v7231 = vpop.f32.mrb[0].mxu0
        %v7232 = vadd.f32 %v1260, %v7231
        %v7233 = vpop.f32.mrb[0].mxu0
        %7234 = vmatprep.mubr.bf16.mxu0 0
        %7235 = vmatmul.mubr.bf16.gmra.mrb[0].mxu0 %v4523
        %v7236 = vpop.f32.mrb[0].mxu0
        %v7237 = vadd.f32 %v1260, %v7236
        %v7238 = vpop.f32.mrb[0].mxu0
        %v7239 = vpop.f32.mrb[0].mxu0
        %v7240 = vadd.f32 %v1260, %v7239
        %v7241 = vpop.f32.mrb[0].mxu0
        %7242 = vmatprep.mubr.bf16.mxu0 0
        %7243 = vmatmul.mubr.bf16.gmra.mrb[0].mxu0 %v4526
        %v7244 = vpop.f32.mrb[0].mxu0
        %v7245 = vadd.f32 %v1260, %v7244
        %v7246 = vpop.f32.mrb[0].mxu0
        %v7247 = vpop.f32.mrb[0].mxu0
        %v7248 = vadd.f32 %v1260, %v7247
        %v7249 = vpop.f32.mrb[0].mxu0
        %7250 = vmatprep.mubr.bf16.mxu0 0
        %7251 = vmatmul.mubr.bf16.gmra.mrb[0].mxu0 %v4529
        %v7252 = vpop.f32.mrb[0].mxu0
        %v7253 = vadd.f32 %v1260, %v7252
        %v7254 = vpop.f32.mrb[0].mxu0
        %v7255 = vpop.f32.mrb[0].mxu0
        %v7256 = vadd.f32 %v1260, %v7255
        %v7257 = vpop.f32.mrb[0].mxu0
        %7258 = vmatprep.mubr.bf16.mxu0 0
        %7259 = vmatmul.mubr.bf16.gmra.mrb[0].mxu0 %v4532
        %v7260 = vpop.f32.mrb[0].mxu0
        %v7261 = vadd.f32 %v1260, %v7260
        %v7262 = vpop.f32.mrb[0].mxu0
        %v7263 = vpop.f32.mrb[0].mxu0
        %v7264 = vadd.f32 %v1260, %v7263
        %v7265 = vpop.f32.mrb[0].mxu0
        %7266 = vmatprep.mubr.bf16.mxu0 0
        %7267 = vmatmul.mubr.bf16.gmra.mrb[0].mxu0 %v4535
        %v7268 = vpop.f32.mrb[0].mxu0
        %v7269 = vadd.f32 %v1260, %v7268
        %v7270 = vpop.f32.mrb[0].mxu0
        %v7271 = vpop.f32.mrb[0].mxu0
        %v7272 = vadd.f32 %v1260, %v7271
        %v7273 = vpop.f32.mrb[0].mxu0
        %7274 = vmatprep.mubr.bf16.mxu0 0
        %7275 = vmatmul.mubr.bf16.gmra.mrb[0].mxu0 %v4538
        %v7276 = vpop.f32.mrb[0].mxu0
        %v7277 = vadd.f32 %v1260, %v7276
        %v7278 = vpop.f32.mrb[0].mxu0
        %v7279 = vpop.f32.mrb[0].mxu0
        %v7280 = vadd.f32 %v1260, %v7279
        %v7281 = vpop.f32.mrb[0].mxu0
        %7282 = vmatprep.mubr.bf16.mxu0 0
        %7283 = vmatmul.mubr.bf16.gmra.mrb[0].mxu0 %v4541
        %v7284 = vpop.f32.mrb[0].mxu0
        %v7285 = vadd.f32 %v1260, %v7284
        %v7286 = vpop.f32.mrb[0].mxu0
        %v7287 = vpop.f32.mrb[0].mxu0
        %v7288 = vadd.f32 %v1260, %v7287
        %v7289 = vpop.f32.mrb[0].mxu0
        %7290 = vmatprep.mubr.bf16.mxu0 0
        %7291 = vmatmul.mubr.bf16.gmra.mrb[0].mxu0 %v4544
        %v7292 = vpop.f32.mrb[0].mxu0
        %v7293 = vadd.f32 %v1260, %v7292
        %v7294 = vpop.f32.mrb[0].mxu0
        %v7295 = vpop.f32.mrb[0].mxu0
        %v7296 = vadd.f32 %v1260, %v7295
        %v7297 = vpop.f32.mrb[0].mxu0
        %7298 = vmatprep.mubr.bf16.mxu0 0
        %7299 = vmatmul.mubr.bf16.gmra.mrb[0].mxu0 %v4547
        %v7300 = vpop.f32.mrb[0].mxu0
        %v7301 = vadd.f32 %v1260, %v7300
        %v7302 = vpop.f32.mrb[0].mxu0
        %v7303 = vpop.f32.mrb[0].mxu0
        %v7304 = vadd.f32 %v1260, %v7303
        %v7305 = vpop.f32.mrb[0].mxu0
        %7306 = vmatprep.mubr.bf16.mxu0 0
        %7307 = vmatmul.mubr.bf16.gmra.mrb[0].mxu0 %v4550
        %v7308 = vpop.f32.mrb[0].mxu0
        %v7309 = vadd.f32 %v1260, %v7308
        %v7310 = vpop.f32.mrb[0].mxu0
        %v7311 = vpop.f32.mrb[0].mxu0
        %v7312 = vadd.f32 %v1260, %v7311
        %v7313 = vpop.f32.mrb[0].mxu0
        %7314 = vmatprep.mubr.bf16.mxu0 0
        %7315 = vmatmul.mubr.bf16.gmra.mrb[0].mxu0 %v4553
        %v7316 = vpop.f32.mrb[0].mxu0
        %v7317 = vadd.f32 %v1260, %v7316
        %v7318 = vpop.f32.mrb[0].mxu0
        %v7319 = vpop.f32.mrb[0].mxu0
        %v7320 = vadd.f32 %v1260, %v7319
        %v7321 = vpop.f32.mrb[0].mxu0
        %7322 = vmatprep.mubr.bf16.mxu0 0
        %7323 = vmatmul.mubr.bf16.gmra.mrb[0].mxu0 %v4556
        %v7324 = vpop.f32.mrb[0].mxu0
        %v7325 = vadd.f32 %v1260, %v7324
        %v7326 = vpop.f32.mrb[0].mxu0
        %v7327 = vpop.f32.mrb[0].mxu0
        %v7328 = vadd.f32 %v1260, %v7327
        %v7329 = vpop.f32.mrb[0].mxu0
        %7330 = vmatprep.mubr.bf16.mxu0 0
        %7331 = vmatmul.mubr.bf16.gmra.mrb[0].mxu0 %v4559
        %v7332 = vpop.f32.mrb[0].mxu0
        %v7333 = vadd.f32 %v1260, %v7332
        %v7334 = vpop.f32.mrb[0].mxu0
        %v7335 = vpop.f32.mrb[0].mxu0
        %v7336 = vadd.f32 %v1260, %v7335
        %v7337 = vpop.f32.mrb[0].mxu0
        %7338 = vmatprep.mubr.bf16.mxu0 0
        %7339 = vmatmul.mubr.bf16.gmra.mrb[0].mxu0 %v4562
        %v7340 = vpop.f32.mrb[0].mxu0
        %v7341 = vadd.f32 %v1260, %v7340
        %v7342 = vpop.f32.mrb[0].mxu0
        %v7343 = vpop.f32.mrb[0].mxu0
        %v7344 = vadd.f32 %v1260, %v7343
        %v7345 = vpop.f32.mrb[0].mxu0
        %7346 = vmatprep.mubr.bf16.mxu0 0
        %7347 = vmatmul.mubr.bf16.gmra.mrb[0].mxu0 %v4565
        %v7348 = vpop.f32.mrb[0].mxu0
        %v7349 = vadd.f32 %v1260, %v7348
        %v7350 = vpop.f32.mrb[0].mxu0
        %v7351 = vpop.f32.mrb[0].mxu0
        %v7352 = vadd.f32 %v1260, %v7351
        %v7353 = vpop.f32.mrb[0].mxu0
        %7354 = vmatprep.mubr.bf16.mxu0 0
        %7355 = vmatmul.mubr.bf16.gmra.mrb[0].mxu0 %v4568
        %v7356 = vpop.f32.mrb[0].mxu0
        %v7357 = vadd.f32 %v1260, %v7356
        %v7358 = vpop.f32.mrb[0].mxu0
        %v7359 = vpop.f32.mrb[0].mxu0
        %v7360 = vadd.f32 %v1260, %v7359
        %v7361 = vpop.f32.mrb[0].mxu0
        %7362 = vmatprep.mubr.bf16.mxu0 0
        %7363 = vmatmul.mubr.bf16.gmra.mrb[0].mxu0 %v4571
        %v7364 = vpop.f32.mrb[0].mxu0
        %v7365 = vadd.f32 %v1260, %v7364
        %v7366 = vpop.f32.mrb[0].mxu0
        %v7367 = vpop.f32.mrb[0].mxu0
        %v7368 = vadd.f32 %v1260, %v7367
        %v7369 = vpop.f32.mrb[0].mxu0
        %7370 = vmatprep.mubr.bf16.mxu0 0
        %7371 = vmatmul.mubr.bf16.gmra.mrb[0].mxu0 %v4574
        %v7372 = vpop.f32.mrb[0].mxu0
        %v7373 = vadd.f32 %v1260, %v7372
        %v7374 = vpop.f32.mrb[0].mxu0
        %v7375 = vpop.f32.mrb[0].mxu0
        %v7376 = vadd.f32 %v1260, %v7375
        %v7377 = vpop.f32.mrb[0].mxu0
        %7378 = vmatprep.mubr.bf16.mxu0 0
        %7379 = vmatmul.mubr.bf16.gmra.mrb[0].mxu0 %v4577
        %v7380 = vpop.f32.mrb[0].mxu0
        %v7381 = vadd.f32 %v1260, %v7380
        %v7382 = vpop.f32.mrb[0].mxu0
        %v7383 = vpop.f32.mrb[0].mxu0
        %v7384 = vadd.f32 %v1260, %v7383
        %v7385 = vpop.f32.mrb[0].mxu0
        %7386 = vmatprep.mubr.bf16.mxu0 0
        %7387 = vmatmul.mubr.bf16.gmra.mrb[0].mxu0 %v4580
        %v7388 = vpop.f32.mrb[0].mxu0
        %v7389 = vadd.f32 %v1260, %v7388
        %v7390 = vpop.f32.mrb[0].mxu0
        %v7391 = vpop.f32.mrb[0].mxu0
        %v7392 = vadd.f32 %v1260, %v7391
        %v7393 = vpop.f32.mrb[0].mxu0
        %7394 = vmatprep.mubr.bf16.mxu0 0
        %7395 = vmatmul.mubr.bf16.gmra.mrb[0].mxu0 %v4583
        %v7396 = vpop.f32.mrb[0].mxu0
        %v7397 = vadd.f32 %v1260, %v7396
        %v7398 = vpop.f32.mrb[0].mxu0
        %v7399 = vpop.f32.mrb[0].mxu0
        %v7400 = vadd.f32 %v1260, %v7399
        %v7401 = vpop.f32.mrb[0].mxu0
        %7402 = vmatprep.mubr.bf16.mxu0 0
        %7403 = vmatmul.mubr.bf16.gmra.mrb[0].mxu0 %v4586
        %v7404 = vpop.f32.mrb[0].mxu0
        %v7405 = vadd.f32 %v1260, %v7404
        %v7406 = vpop.f32.mrb[0].mxu0
        %v7407 = vpop.f32.mrb[0].mxu0
        %v7408 = vadd.f32 %v1260, %v7407
        %v7409 = vpop.f32.mrb[0].mxu0
        %7410 = vmatprep.mubr.bf16.mxu0 0
        %7411 = vmatmul.mubr.bf16.gmra.mrb[0].mxu0 %v4589
        %v7412 = vpop.f32.mrb[0].mxu0
        %v7413 = vadd.f32 %v1260, %v7412
        %v7414 = vpop.f32.mrb[0].mxu0
        %v7415 = vpop.f32.mrb[0].mxu0
        %v7416 = vadd.f32 %v1260, %v7415
        %v7417 = vpop.f32.mrb[0].mxu0
        %7418 = vmatprep.mubr.bf16.mxu0 0
        %7419 = vmatmul.mubr.bf16.gmra.mrb[0].mxu0 %v4592
        %v7420 = vpop.f32.mrb[0].mxu0
        %v7421 = vadd.f32 %v1260, %v7420
        %v7422 = vpop.f32.mrb[0].mxu0
        %v7423 = vpop.f32.mrb[0].mxu0
        %v7424 = vadd.f32 %v1260, %v7423
        %v7425 = vpop.f32.mrb[0].mxu0
        %7426 = vmatprep.mubr.bf16.mxu0 0
        %7427 = vmatmul.mubr.bf16.gmra.mrb[0].mxu0 %v4595
        %v7428 = vpop.f32.mrb[0].mxu0
        %v7429 = vadd.f32 %v1260, %v7428
        %v7430 = vpop.f32.mrb[0].mxu0
        %v7431 = vpop.f32.mrb[0].mxu0
        %v7432 = vadd.f32 %v1260, %v7431
        %v7433 = vpop.f32.mrb[0].mxu0
        %7434 = vmatprep.mubr.bf16.mxu0 0
        %7435 = vmatmul.mubr.bf16.gmra.mrb[0].mxu0 %v4598
        %v7436 = vpop.f32.mrb[0].mxu0
        %v7437 = vadd.f32 %v1260, %v7436
        %v7438 = vpop.f32.mrb[0].mxu0
        %v7439 = vpop.f32.mrb[0].mxu0
        %v7440 = vadd.f32 %v1260, %v7439
        %v7441 = vpop.f32.mrb[0].mxu0
        %7442 = vmatprep.mubr.bf16.mxu0 0
        %7443 = vmatmul.mubr.bf16.gmra.mrb[0].mxu0 %v4601
        %v7444 = vpop.f32.mrb[0].mxu0
        %v7445 = vadd.f32 %v1260, %v7444
        %v7446 = vpop.f32.mrb[0].mxu0
        %v7447 = vpop.f32.mrb[0].mxu0
        %v7448 = vadd.f32 %v1260, %v7447
        %v7449 = vpop.f32.mrb[0].mxu0
        %7450 = vmatprep.mubr.bf16.mxu0 0
        %7451 = vmatmul.mubr.bf16.gmra.mrb[0].mxu0 %v4604
        %v7452 = vpop.f32.mrb[0].mxu0
        %v7453 = vadd.f32 %v1260, %v7452
        %v7454 = vpop.f32.mrb[0].mxu0
        %v7455 = vpop.f32.mrb[0].mxu0
        %v7456 = vadd.f32 %v1260, %v7455
        %v7457 = vpop.f32.mrb[0].mxu0
        %7458 = vmatprep.mubr.bf16.mxu0 0
        %7459 = vmatmul.mubr.bf16.gmra.mrb[0].mxu0 %v4607
        %v7460 = vpop.f32.mrb[0].mxu0
        %v7461 = vadd.f32 %v1260, %v7460
        %v7462 = vpop.f32.mrb[0].mxu0
        %v7463 = vpop.f32.mrb[0].mxu0
        %v7464 = vadd.f32 %v1260, %v7463
        %v7465 = vpop.f32.mrb[0].mxu0
        %7466 = vmatprep.mubr.bf16.mxu0 0
        %7467 = vmatmul.mubr.bf16.gmra.mrb[0].mxu0 %v4610
        %v7468 = vpop.f32.mrb[0].mxu0
        %v7469 = vadd.f32 %v1260, %v7468
        %v7470 = vpop.f32.mrb[0].mxu0
        %v7471 = vpop.f32.mrb[0].mxu0
        %v7472 = vadd.f32 %v1260, %v7471
        %v7473 = vpop.f32.mrb[0].mxu0
        %7474 = vmatprep.mubr.bf16.mxu0 0
        %7475 = vmatmul.mubr.bf16.gmra.mrb[0].mxu0 %v4613
        %v7476 = vpop.f32.mrb[0].mxu0
        %v7477 = vadd.f32 %v1260, %v7476
        %v7478 = vpop.f32.mrb[0].mxu0
        %v7479 = vpop.f32.mrb[0].mxu0
        %v7480 = vadd.f32 %v1260, %v7479
        %v7481 = vpop.f32.mrb[0].mxu0
        %7482 = vmatprep.mubr.bf16.mxu0 0
        %7483 = vmatmul.mubr.bf16.gmra.mrb[0].mxu0 %v4616
        %v7484 = vpop.f32.mrb[0].mxu0
        %v7485 = vadd.f32 %v1260, %v7484
        %v7486 = vpop.f32.mrb[0].mxu0
        %v7487 = vpop.f32.mrb[0].mxu0
        %v7488 = vadd.f32 %v1260, %v7487
        %v7489 = vpop.f32.mrb[0].mxu0
        %7490 = vmatprep.mubr.bf16.mxu0 0
        %7491 = vmatmul.mubr.bf16.gmra.mrb[0].mxu0 %v4619
        %v7492 = vpop.f32.mrb[0].mxu0
        %v7493 = vadd.f32 %v1260, %v7492
        %v7494 = vpop.f32.mrb[0].mxu0
        %v7495 = vpop.f32.mrb[0].mxu0
        %v7496 = vadd.f32 %v1260, %v7495
        %v7497 = vpop.f32.mrb[0].mxu0
        %7498 = vmatprep.mubr.bf16.mxu0 0
        %7499 = vmatmul.mubr.bf16.gmra.mrb[0].mxu0 %v4622
        %v7500 = vpop.f32.mrb[0].mxu0
        %v7501 = vadd.f32 %v1260, %v7500
        %v7502 = vpop.f32.mrb[0].mxu0
        %v7503 = vpop.f32.mrb[0].mxu0
        %v7504 = vadd.f32 %v1260, %v7503
        %v7505 = vpop.f32.mrb[0].mxu0
        %7506 = vmatprep.mubr.bf16.mxu0 0
        %7507 = vmatmul.mubr.bf16.gmra.mrb[0].mxu0 %v4625
        %v7508 = vpop.f32.mrb[0].mxu0
        %v7509 = vadd.f32 %v1260, %v7508
        %v7510 = vpop.f32.mrb[0].mxu0
        %v7511 = vpop.f32.mrb[0].mxu0
        %v7512 = vadd.f32 %v1260, %v7511
        %v7513 = vpop.f32.mrb[0].mxu0
        %7514 = vmatprep.mubr.bf16.mxu0 0
        %7515 = vmatmul.mubr.bf16.gmra.mrb[0].mxu0 %v4628
        %v7516 = vpop.f32.mrb[0].mxu0
        %v7517 = vadd.f32 %v1260, %v7516
        %v7518 = vpop.f32.mrb[0].mxu0
        %v7519 = vpop.f32.mrb[0].mxu0
        %v7520 = vadd.f32 %v1260, %v7519
        %v7521 = vpop.f32.mrb[0].mxu0
        %7522 = vmatprep.mubr.bf16.mxu0 0
        %7523 = vmatmul.mubr.bf16.gmra.mrb[0].mxu0 %v4631
        %v7524 = vpop.f32.mrb[0].mxu0
        %v7525 = vadd.f32 %v1260, %v7524
        %v7526 = vpop.f32.mrb[0].mxu0
        %v7527 = vpop.f32.mrb[0].mxu0
        %v7528 = vadd.f32 %v1260, %v7527
        %v7529 = vpop.f32.mrb[0].mxu0
        %7530 = vmatprep.mubr.bf16.mxu0 0
        %7531 = vmatmul.mubr.bf16.gmra.mrb[0].mxu0 %v4634
        %v7532 = vpop.f32.mrb[0].mxu0
        %v7533 = vadd.f32 %v1260, %v7532
        %v7534 = vpop.f32.mrb[0].mxu0
        %v7535 = vpop.f32.mrb[0].mxu0
        %v7536 = vadd.f32 %v1260, %v7535
        %v7537 = vpop.f32.mrb[0].mxu0
        %7538 = vmatprep.mubr.bf16.mxu0 0
        %7539 = vmatmul.mubr.bf16.gmra.mrb[0].mxu0 %v4637
        %v7540 = vpop.f32.mrb[0].mxu0
        %v7541 = vadd.f32 %v1260, %v7540
        %v7542 = vpop.f32.mrb[0].mxu0
        %v7543 = vpop.f32.mrb[0].mxu0
        %v7544 = vadd.f32 %v1260, %v7543
        %v7545 = vpop.f32.mrb[0].mxu0
        %7546 = vmatprep.mubr.bf16.mxu0 0
        %7547 = vmatmul.mubr.bf16.gmra.mrb[0].mxu0 %v4640
        %v7548 = vpop.f32.mrb[0].mxu0
        %v7549 = vadd.f32 %v1260, %v7548
        %v7550 = vpop.f32.mrb[0].mxu0
        %v7551 = vpop.f32.mrb[0].mxu0
        %v7552 = vadd.f32 %v1260, %v7551
        %v7553 = vpop.f32.mrb[0].mxu0
        %7554 = vmatprep.mubr.bf16.mxu0 0
        %7555 = vmatmul.mubr.bf16.gmra.mrb[0].mxu0 %v4643
        %v7556 = vpop.f32.mrb[0].mxu0
        %v7557 = vadd.f32 %v1260, %v7556
        %v7558 = vpop.f32.mrb[0].mxu0
        %v7559 = vpop.f32.mrb[0].mxu0
        %v7560 = vadd.f32 %v1260, %v7559
        %v7561 = vpop.f32.mrb[0].mxu0
        %7562 = vmatprep.mubr.bf16.mxu0 0
        %7563 = vmatmul.mubr.bf16.gmra.mrb[0].mxu0 %v4646
        %v7564 = vpop.f32.mrb[0].mxu0
        %v7565 = vadd.f32 %v1260, %v7564
        %v7566 = vpop.f32.mrb[0].mxu0
        %v7567 = vpop.f32.mrb[0].mxu0
        %v7568 = vadd.f32 %v1260, %v7567
        %v7569 = vpop.f32.mrb[0].mxu0
        %7570 = vmatprep.mubr.bf16.mxu0 0
        %7571 = vmatmul.mubr.bf16.gmra.mrb[0].mxu0 %v4649
        %v7572 = vpop.f32.mrb[0].mxu0
        %v7573 = vadd.f32 %v1260, %v7572
        %v7574 = vpop.f32.mrb[0].mxu0
        %v7575 = vpop.f32.mrb[0].mxu0
        %v7576 = vadd.f32 %v1260, %v7575
        %v7577 = vpop.f32.mrb[0].mxu0
        %7578 = vmatprep.mubr.bf16.mxu0 0
        %7579 = vmatmul.mubr.bf16.gmra.mrb[0].mxu0 %v4652
        %v7580 = vpop.f32.mrb[0].mxu0
        %v7581 = vadd.f32 %v1260, %v7580
        %v7582 = vpop.f32.mrb[0].mxu0
        %v7583 = vpop.f32.mrb[0].mxu0
        %v7584 = vadd.f32 %v1260, %v7583
        %v7585 = vpop.f32.mrb[0].mxu0
        %7586 = vmatprep.mubr.bf16.mxu0 0
        %7587 = vmatmul.mubr.bf16.gmra.mrb[0].mxu0 %v4655
        %v7588 = vpop.f32.mrb[0].mxu0
        %v7589 = vadd.f32 %v1260, %v7588
        %v7590 = vpop.f32.mrb[0].mxu0
        %v7591 = vpop.f32.mrb[0].mxu0
        %v7592 = vadd.f32 %v1260, %v7591
        %v7593 = vpop.f32.mrb[0].mxu0
        %7594 = vmatprep.mubr.bf16.mxu0 0
        %7595 = vmatmul.mubr.bf16.gmra.mrb[0].mxu0 %v4658
        %v7596 = vpop.f32.mrb[0].mxu0
        %v7597 = vadd.f32 %v1260, %v7596
        %v7598 = vpop.f32.mrb[0].mxu0
        %v7599 = vpop.f32.mrb[0].mxu0
        %v7600 = vadd.f32 %v1260, %v7599
        %v7601 = vpop.f32.mrb[0].mxu0
        %7602 = vmatprep.mubr.bf16.mxu0 0
        %7603 = vmatmul.mubr.bf16.gmra.mrb[0].mxu0 %v4661
        %v7604 = vpop.f32.mrb[0].mxu0
        %v7605 = vadd.f32 %v1260, %v7604
        %v7606 = vpop.f32.mrb[0].mxu0
        %v7607 = vpop.f32.mrb[0].mxu0
        %v7608 = vadd.f32 %v1260, %v7607
        %v7609 = vpop.f32.mrb[0].mxu0
        %7610 = vmatprep.mubr.bf16.mxu0 0
        %7611 = vmatmul.mubr.bf16.gmra.mrb[0].mxu0 %v4664
        %v7612 = vpop.f32.mrb[0].mxu0
        %v7613 = vadd.f32 %v1260, %v7612
        %v7614 = vpop.f32.mrb[0].mxu0
        %v7615 = vpop.f32.mrb[0].mxu0
        %v7616 = vadd.f32 %v1260, %v7615
        %v7617 = vpop.f32.mrb[0].mxu0
        %7618 = vmatprep.mubr.bf16.mxu0 0
        %7619 = vmatmul.mubr.bf16.gmra.mrb[0].mxu0 %v4667
        %v7620 = vpop.f32.mrb[0].mxu0
        %v7621 = vadd.f32 %v1260, %v7620
        %v7622 = vpop.f32.mrb[0].mxu0
        %v7623 = vpop.f32.mrb[0].mxu0
        %v7624 = vadd.f32 %v1260, %v7623
        %v7625 = vpop.f32.mrb[0].mxu0
        %7626 = vmatprep.mubr.bf16.mxu0 0
        %7627 = vmatmul.mubr.bf16.gmra.mrb[0].mxu0 %v4670
        %v7628 = vpop.f32.mrb[0].mxu0
        %v7629 = vadd.f32 %v1260, %v7628
        %v7630 = vpop.f32.mrb[0].mxu0
        %v7631 = vpop.f32.mrb[0].mxu0
        %v7632 = vadd.f32 %v1260, %v7631
        %v7633 = vpop.f32.mrb[0].mxu0
        %7634 = vmatprep.mubr.bf16.mxu0 0
        %7635 = vmatmul.mubr.bf16.gmra.mrb[0].mxu0 %v4673
        %v7636 = vpop.f32.mrb[0].mxu0
        %v7637 = vadd.f32 %v1260, %v7636
        %v7638 = vpop.f32.mrb[0].mxu0
        %v7639 = vpop.f32.mrb[0].mxu0
        %v7640 = vadd.f32 %v1260, %v7639
        %v7641 = vpop.f32.mrb[0].mxu0
        %7642 = vmatprep.mubr.bf16.mxu0 0
        %7643 = vmatmul.mubr.bf16.gmra.mrb[0].mxu0 %v4676
        %v7644 = vpop.f32.mrb[0].mxu0
        %v7645 = vadd.f32 %v1260, %v7644
        %v7646 = vpop.f32.mrb[0].mxu0
        %v7647 = vpop.f32.mrb[0].mxu0
        %v7648 = vadd.f32 %v1260, %v7647
        %v7649 = vpop.f32.mrb[0].mxu0
        %7650 = vmatprep.mubr.bf16.mxu0 0
        %7651 = vmatmul.mubr.bf16.gmra.mrb[0].mxu0 %v4679
        %v7652 = vpop.f32.mrb[0].mxu0
        %v7653 = vadd.f32 %v1260, %v7652
        %v7654 = vpop.f32.mrb[0].mxu0
        %v7655 = vpop.f32.mrb[0].mxu0
        %v7656 = vadd.f32 %v1260, %v7655
        %v7657 = vpop.f32.mrb[0].mxu0
        %7658 = vmatprep.mubr.bf16.mxu0 0
        %7659 = vmatmul.mubr.bf16.gmra.mrb[0].mxu0 %v4682
        %v7660 = vpop.f32.mrb[0].mxu0
        %v7661 = vadd.f32 %v1260, %v7660
        %v7662 = vpop.f32.mrb[0].mxu0
        %v7663 = vpop.f32.mrb[0].mxu0
        %v7664 = vadd.f32 %v1260, %v7663
        %v7665 = vpop.f32.mrb[0].mxu0
        %7666 = vmatprep.mubr.bf16.mxu0 0
        %7667 = vmatmul.mubr.bf16.gmra.mrb[0].mxu0 %v4685
        %v7668 = vpop.f32.mrb[0].mxu0
        %v7669 = vadd.f32 %v1260, %v7668
        %v7670 = vpop.f32.mrb[0].mxu0
        %v7671 = vpop.f32.mrb[0].mxu0
        %v7672 = vadd.f32 %v1260, %v7671
        %v7673 = vpop.f32.mrb[0].mxu0
        %7674 = vmatprep.mubr.bf16.mxu0 0
        %7675 = vmatmul.mubr.bf16.gmra.mrb[0].mxu0 %v4688
        %v7676 = vpop.f32.mrb[0].mxu0
        %v7677 = vadd.f32 %v1260, %v7676
        %v7678 = vpop.f32.mrb[0].mxu0
        %v7679 = vpop.f32.mrb[0].mxu0
        %v7680 = vadd.f32 %v1260, %v7679
        %v7681 = vpop.f32.mrb[0].mxu0
        %7682 = vmatprep.mubr.bf16.mxu0 0
        %7683 = vmatmul.mubr.bf16.gmra.mrb[0].mxu0 %v4691
        %v7684 = vpop.f32.mrb[0].mxu0
        %v7685 = vadd.f32 %v1260, %v7684
        %v7686 = vpop.f32.mrb[0].mxu0
        %v7687 = vpop.f32.mrb[0].mxu0
        %v7688 = vadd.f32 %v1260, %v7687
        %v7689 = vpop.f32.mrb[0].mxu0
        %7690 = vmatprep.mubr.bf16.mxu0 0
        %7691 = vmatmul.mubr.bf16.gmra.mrb[0].mxu0 %v4694
        %v7692 = vpop.f32.mrb[0].mxu0
        %v7693 = vadd.f32 %v1260, %v7692
        %v7694 = vpop.f32.mrb[0].mxu0
        %v7695 = vpop.f32.mrb[0].mxu0
        %v7696 = vadd.f32 %v1260, %v7695
        %v7697 = vpop.f32.mrb[0].mxu0
        %7698 = vmatprep.mubr.bf16.mxu0 0
        %7699 = vmatmul.mubr.bf16.gmra.mrb[0].mxu0 %v4697
        %v7700 = vpop.f32.mrb[0].mxu0
        %v7701 = vadd.f32 %v1260, %v7700
        %v7702 = vpop.f32.mrb[0].mxu0
        %v7703 = vpop.f32.mrb[0].mxu0
        %v7704 = vadd.f32 %v1260, %v7703
        %v7705 = vpop.f32.mrb[0].mxu0
        %7706 = vmatprep.mubr.bf16.mxu0 0
        %7707 = vmatmul.mubr.bf16.gmra.mrb[0].mxu0 %v4700
        %v7708 = vpop.f32.mrb[0].mxu0
        %v7709 = vadd.f32 %v1260, %v7708
        %v7710 = vpop.f32.mrb[0].mxu0
        %v7711 = vpop.f32.mrb[0].mxu0
        %v7712 = vadd.f32 %v1260, %v7711
        %v7713 = vpop.f32.mrb[0].mxu0
        %7714 = vmatprep.mubr.bf16.mxu0 0
        %7715 = vmatmul.mubr.bf16.gmra.mrb[0].mxu0 %v4703
        %v7716 = vpop.f32.mrb[0].mxu0
        %v7717 = vadd.f32 %v1260, %v7716
        %v7718 = vpop.f32.mrb[0].mxu0
        %v7719 = vpop.f32.mrb[0].mxu0
        %v7720 = vadd.f32 %v1260, %v7719
        %v7721 = vpop.f32.mrb[0].mxu0
        %7722 = vmatprep.mubr.bf16.mxu0 0
        %7723 = vmatmul.mubr.bf16.gmra.mrb[0].mxu0 %v4706
        %v7724 = vpop.f32.mrb[0].mxu0
        %v7725 = vadd.f32 %v1260, %v7724
        %v7726 = vpop.f32.mrb[0].mxu0
        %v7727 = vpop.f32.mrb[0].mxu0
        %v7728 = vadd.f32 %v1260, %v7727
        %v7729 = vpop.f32.mrb[0].mxu0
        %7730 = vmatprep.mubr.bf16.mxu0 0
        %7731 = vmatmul.mubr.bf16.gmra.mrb[0].mxu0 %v4709
        %v7732 = vpop.f32.mrb[0].mxu0
        %v7733 = vadd.f32 %v1260, %v7732
        %v7734 = vpop.f32.mrb[0].mxu0
        %v7735 = vpop.f32.mrb[0].mxu0
        %v7736 = vadd.f32 %v1260, %v7735
        %v7737 = vpop.f32.mrb[0].mxu0
        %7738 = vmatprep.mubr.bf16.mxu0 0
        %7739 = vmatmul.mubr.bf16.gmra.mrb[0].mxu0 %v4712
        %v7740 = vpop.f32.mrb[0].mxu0
        %v7741 = vadd.f32 %v1260, %v7740
        %v7742 = vpop.f32.mrb[0].mxu0
        %v7743 = vpop.f32.mrb[0].mxu0
        %v7744 = vadd.f32 %v1260, %v7743
        %v7745 = vpop.f32.mrb[0].mxu0
        %7746 = vmatprep.mubr.bf16.mxu0 0
        %7747 = vmatmul.mubr.bf16.gmra.mrb[0].mxu0 %v4715
        %v7748 = vpop.f32.mrb[0].mxu0
        %v7749 = vadd.f32 %v1260, %v7748
        %v7750 = vpop.f32.mrb[0].mxu0
        %v7751 = vpop.f32.mrb[0].mxu0
        %v7752 = vadd.f32 %v1260, %v7751
        %v7753 = vpop.f32.mrb[0].mxu0
        %7754 = vmatprep.mubr.bf16.mxu0 0
        %7755 = vmatmul.mubr.bf16.gmra.mrb[0].mxu0 %v4718
        %v7756 = vpop.f32.mrb[0].mxu0
        %v7757 = vadd.f32 %v1260, %v7756
        %v7758 = vpop.f32.mrb[0].mxu0
        %v7759 = vpop.f32.mrb[0].mxu0
        %v7760 = vadd.f32 %v1260, %v7759
        %v7761 = vpop.f32.mrb[0].mxu0
        %7762 = vmatprep.mubr.bf16.mxu0 0
        %7763 = vmatmul.mubr.bf16.gmra.mrb[0].mxu0 %v4721
        %v7764 = vpop.f32.mrb[0].mxu0
        %v7765 = vadd.f32 %v1260, %v7764
        %v7766 = vpop.f32.mrb[0].mxu0
        %v7767 = vpop.f32.mrb[0].mxu0
        %v7768 = vadd.f32 %v1260, %v7767
        %v7769 = vpop.f32.mrb[0].mxu0
        %7770 = vmatprep.mubr.bf16.mxu0 0
        %7771 = vmatmul.mubr.bf16.gmra.mrb[0].mxu0 %v4724
        %v7772 = vpop.f32.mrb[0].mxu0
        %v7773 = vadd.f32 %v1260, %v7772
        %v7774 = vpop.f32.mrb[0].mxu0
        %v7775 = vpop.f32.mrb[0].mxu0
        %v7776 = vadd.f32 %v1260, %v7775
        %v7777 = vpop.f32.mrb[0].mxu0
        %7778 = vmatprep.mubr.bf16.mxu0 0
        %7779 = vmatmul.mubr.bf16.gmra.mrb[0].mxu0 %v4727
        %v7780 = vpop.f32.mrb[0].mxu0
        %v7781 = vadd.f32 %v1260, %v7780
        %v7782 = vpop.f32.mrb[0].mxu0
        %v7783 = vpop.f32.mrb[0].mxu0
        %v7784 = vadd.f32 %v1260, %v7783
        %v7785 = vpop.f32.mrb[0].mxu0
        %7786 = vmatprep.mubr.bf16.mxu0 0
        %7787 = vmatmul.mubr.bf16.gmra.mrb[0].mxu0 %v4730
        %v7788 = vpop.f32.mrb[0].mxu0
        %v7789 = vadd.f32 %v1260, %v7788
        %v7790 = vpop.f32.mrb[0].mxu0
        %v7791 = vpop.f32.mrb[0].mxu0
        %v7792 = vadd.f32 %v1260, %v7791
        %v7793 = vpop.f32.mrb[0].mxu0
        %7794 = vmatprep.mubr.bf16.mxu0 0
        %7795 = vmatmul.mubr.bf16.gmra.mrb[0].mxu0 %v4733
        %v7796 = vpop.f32.mrb[0].mxu0
        %v7797 = vadd.f32 %v1260, %v7796
        %v7798 = vpop.f32.mrb[0].mxu0
        %v7799 = vpop.f32.mrb[0].mxu0
        %v7800 = vadd.f32 %v1260, %v7799
        %v7801 = vpop.f32.mrb[0].mxu0
        %7802 = vmatprep.mubr.bf16.mxu0 0
        %7803 = vmatmul.mubr.bf16.gmra.mrb[0].mxu0 %v4736
        %v7804 = vpop.f32.mrb[0].mxu0
        %v7805 = vadd.f32 %v1260, %v7804
        %v7806 = vpop.f32.mrb[0].mxu0
        %v7807 = vpop.f32.mrb[0].mxu0
        %v7808 = vadd.f32 %v1260, %v7807
        %v7809 = vpop.f32.mrb[0].mxu0
        %7810 = vmatprep.mubr.bf16.mxu0 0
        %7811 = vmatmul.mubr.bf16.gmra.mrb[0].mxu0 %v4739
        %v7812 = vpop.f32.mrb[0].mxu0
        %v7813 = vadd.f32 %v1260, %v7812
        %v7814 = vpop.f32.mrb[0].mxu0
        %v7815 = vpop.f32.mrb[0].mxu0
        %v7816 = vadd.f32 %v1260, %v7815
        %v7817 = vpop.f32.mrb[0].mxu0
        %7818 = vmatprep.mubr.bf16.mxu0 0
        %7819 = vmatmul.mubr.bf16.gmra.mrb[0].mxu0 %v4742
        %v7820 = vpop.f32.mrb[0].mxu0
        %v7821 = vadd.f32 %v1260, %v7820
        %v7822 = vpop.f32.mrb[0].mxu0
        %v7823 = vpop.f32.mrb[0].mxu0
        %v7824 = vadd.f32 %v1260, %v7823
        %v7825 = vpop.f32.mrb[0].mxu0
        %7826 = vmatprep.mubr.bf16.mxu0 0
        %7827 = vmatmul.mubr.bf16.gmra.mrb[0].mxu0 %v4745
        %v7828 = vpop.f32.mrb[0].mxu0
        %v7829 = vadd.f32 %v1260, %v7828
        %v7830 = vpop.f32.mrb[0].mxu0
        %v7831 = vpop.f32.mrb[0].mxu0
        %v7832 = vadd.f32 %v1260, %v7831
        %v7833 = vpop.f32.mrb[0].mxu0
        %7834 = vmatprep.mubr.bf16.mxu0 0
        %7835 = vmatmul.mubr.bf16.gmra.mrb[0].mxu0 %v4748
        %v7836 = vpop.f32.mrb[0].mxu0
        %v7837 = vadd.f32 %v1260, %v7836
        %v7838 = vpop.f32.mrb[0].mxu0
        %v7839 = vpop.f32.mrb[0].mxu0
        %v7840 = vadd.f32 %v1260, %v7839
        %v7841 = vpop.f32.mrb[0].mxu0
        %7842 = vmatprep.mubr.bf16.mxu0 0
        %7843 = vmatmul.mubr.bf16.gmra.mrb[0].mxu0 %v4751
        %v7844 = vpop.f32.mrb[0].mxu0
        %v7845 = vadd.f32 %v1260, %v7844
        %v7846 = vpop.f32.mrb[0].mxu0
        %v7847 = vpop.f32.mrb[0].mxu0
        %v7848 = vadd.f32 %v1260, %v7847
        %v7849 = vpop.f32.mrb[0].mxu0
        %7850 = vmatprep.mubr.bf16.mxu0 0
        %7851 = vmatmul.mubr.bf16.gmra.mrb[0].mxu0 %v4754
        %v7852 = vpop.f32.mrb[0].mxu0
        %v7853 = vadd.f32 %v1260, %v7852
        %v7854 = vpop.f32.mrb[0].mxu0
        %v7855 = vpop.f32.mrb[0].mxu0
        %v7856 = vadd.f32 %v1260, %v7855
        %v7857 = vpop.f32.mrb[0].mxu0
        %7858 = vmatprep.mubr.bf16.mxu0 0
        %7859 = vmatmul.mubr.bf16.gmra.mrb[0].mxu0 %v4757
        %v7860 = vpop.f32.mrb[0].mxu0
        %v7861 = vadd.f32 %v1260, %v7860
        %v7862 = vpop.f32.mrb[0].mxu0
        %v7863 = vpop.f32.mrb[0].mxu0
        %v7864 = vadd.f32 %v1260, %v7863
        %v7865 = vpop.f32.mrb[0].mxu0
        %7866 = vmatprep.mubr.bf16.mxu0 0
        %7867 = vmatmul.mubr.bf16.gmra.mrb[0].mxu0 %v4760
        %v7868 = vpop.f32.mrb[0].mxu0
        %v7869 = vadd.f32 %v1260, %v7868
        %v7870 = vpop.f32.mrb[0].mxu0
        %v7871 = vpop.f32.mrb[0].mxu0
        %v7872 = vadd.f32 %v1260, %v7871
        %v7873 = vpop.f32.mrb[0].mxu0
        %7874 = vmatprep.mubr.bf16.mxu0 0
        %7875 = vmatmul.mubr.bf16.gmra.mrb[0].mxu0 %v4763
        %v7876 = vpop.f32.mrb[0].mxu0
        %v7877 = vadd.f32 %v1260, %v7876
        %v7878 = vpop.f32.mrb[0].mxu0
        %v7879 = vpop.f32.mrb[0].mxu0
        %v7880 = vadd.f32 %v1260, %v7879
        %v7881 = vpop.f32.mrb[0].mxu0
        %7882 = vmatprep.mubr.bf16.mxu0 0
        %7883 = vmatmul.mubr.bf16.gmra.mrb[0].mxu0 %v4766
        %v7884 = vpop.f32.mrb[0].mxu0
        %v7885 = vadd.f32 %v1260, %v7884
        %v7886 = vpop.f32.mrb[0].mxu0
        %v7887 = vpop.f32.mrb[0].mxu0
        %v7888 = vadd.f32 %v1260, %v7887
        %v7889 = vpop.f32.mrb[0].mxu0
        %7890 = vmatprep.mubr.bf16.mxu0 0
        %7891 = vmatmul.mubr.bf16.gmra.mrb[0].mxu0 %v4769
        %v7892 = vpop.f32.mrb[0].mxu0
        %v7893 = vadd.f32 %v1260, %v7892
        %v7894 = vpop.f32.mrb[0].mxu0
        %v7895 = vpop.f32.mrb[0].mxu0
        %v7896 = vadd.f32 %v1260, %v7895
        %v7897 = vpop.f32.mrb[0].mxu0
        %7898 = vmatprep.mubr.bf16.mxu0 0
        %7899 = vmatmul.mubr.bf16.gmra.mrb[0].mxu0 %v4772
        %v7900 = vpop.f32.mrb[0].mxu0
        %v7901 = vadd.f32 %v1260, %v7900
        %v7902 = vpop.f32.mrb[0].mxu0
        %v7903 = vpop.f32.mrb[0].mxu0
        %v7904 = vadd.f32 %v1260, %v7903
        %v7905 = vpop.f32.mrb[0].mxu0
        %7906 = vmatprep.mubr.bf16.mxu0 0
        %7907 = vmatmul.mubr.bf16.gmra.mrb[0].mxu0 %v4775
        %v7908 = vpop.f32.mrb[0].mxu0
        %v7909 = vadd.f32 %v1260, %v7908
        %v7910 = vpop.f32.mrb[0].mxu0
        %v7911 = vpop.f32.mrb[0].mxu0
        %v7912 = vadd.f32 %v1260, %v7911
        %v7913 = vpop.f32.mrb[0].mxu0
        %7914 = vmatprep.mubr.bf16.mxu0 0
        %7915 = vmatmul.mubr.bf16.gmra.mrb[0].mxu0 %v4778
        %v7916 = vpop.f32.mrb[0].mxu0
        %v7917 = vadd.f32 %v1260, %v7916
        %v7918 = vpop.f32.mrb[0].mxu0
        %v7919 = vpop.f32.mrb[0].mxu0
        %v7920 = vadd.f32 %v1260, %v7919
        %v7921 = vpop.f32.mrb[0].mxu0
        %7922 = vmatprep.mubr.bf16.mxu0 0
        %7923 = vmatmul.mubr.bf16.gmra.mrb[0].mxu0 %v4781
        %v7924 = vpop.f32.mrb[0].mxu0
        %v7925 = vadd.f32 %v1260, %v7924
        %v7926 = vpop.f32.mrb[0].mxu0
        %v7927 = vpop.f32.mrb[0].mxu0
        %v7928 = vadd.f32 %v1260, %v7927
        %v7929 = vpop.f32.mrb[0].mxu0
        %7930 = vmatprep.mubr.bf16.mxu0 0
        %7931 = vmatmul.mubr.bf16.gmra.mrb[0].mxu0 %v4784
        %v7932 = vpop.f32.mrb[0].mxu0
        %v7933 = vadd.f32 %v1260, %v7932
        %v7934 = vpop.f32.mrb[0].mxu0
        %v7935 = vpop.f32.mrb[0].mxu0
        %v7936 = vadd.f32 %v1260, %v7935
        %v7937 = vpop.f32.mrb[0].mxu0
        %7938 = vmatprep.mubr.bf16.mxu0 0
        %7939 = vmatmul.mubr.bf16.gmra.mrb[0].mxu0 %v4787
        %v7940 = vpop.f32.mrb[0].mxu0
        %v7941 = vadd.f32 %v1260, %v7940
        %v7942 = vpop.f32.mrb[0].mxu0
        %v7943 = vpop.f32.mrb[0].mxu0
        %v7944 = vadd.f32 %v1260, %v7943
        %v7945 = vpop.f32.mrb[0].mxu0
        %7946 = vmatprep.mubr.bf16.mxu0 0
        %7947 = vmatmul.mubr.bf16.gmra.mrb[0].mxu0 %v4790
        %v7948 = vpop.f32.mrb[0].mxu0
        %v7949 = vadd.f32 %v1260, %v7948
        %v7950 = vpop.f32.mrb[0].mxu0
        %v7951 = vpop.f32.mrb[0].mxu0
        %v7952 = vadd.f32 %v1260, %v7951
        %v7953 = vpop.f32.mrb[0].mxu0
        %7954 = vmatprep.mubr.bf16.mxu0 0
        %7955 = vmatmul.mubr.bf16.gmra.mrb[0].mxu0 %v4793
        %v7956 = vpop.f32.mrb[0].mxu0
        %v7957 = vadd.f32 %v1260, %v7956
        %v7958 = vpop.f32.mrb[0].mxu0
        %v7959 = vpop.f32.mrb[0].mxu0
        %v7960 = vadd.f32 %v1260, %v7959
        %v7961 = vpop.f32.mrb[0].mxu0
        %7962 = vmatprep.mubr.bf16.mxu0 0
        %7963 = vmatmul.mubr.bf16.gmra.mrb[0].mxu0 %v4796
        %v7964 = vpop.f32.mrb[0].mxu0
        %v7965 = vadd.f32 %v1260, %v7964
        %v7966 = vpop.f32.mrb[0].mxu0
        %v7967 = vpop.f32.mrb[0].mxu0
        %v7968 = vadd.f32 %v1260, %v7967
        %v7969 = vpop.f32.mrb[0].mxu0
        %7970 = vmatprep.mubr.bf16.mxu0 0
        %7971 = vmatmul.mubr.bf16.gmra.mrb[0].mxu0 %v4799
        %v7972 = vpop.f32.mrb[0].mxu0
        %v7973 = vadd.f32 %v1260, %v7972
        %v7974 = vpop.f32.mrb[0].mxu0
        %v7975 = vpop.f32.mrb[0].mxu0
        %v7976 = vadd.f32 %v1260, %v7975
        %v7977 = vpop.f32.mrb[0].mxu0
        %7978 = vmatprep.mubr.bf16.mxu0 0
        %7979 = vmatmul.mubr.bf16.gmra.mrb[0].mxu0 %v4802
        %v7980 = vpop.f32.mrb[0].mxu0
        %v7981 = vadd.f32 %v1260, %v7980
        %v7982 = vpop.f32.mrb[0].mxu0
        %v7983 = vpop.f32.mrb[0].mxu0
        %v7984 = vadd.f32 %v1260, %v7983
        %v7985 = vpop.f32.mrb[0].mxu0
        %7986 = vmatprep.mubr.bf16.mxu0 0
        %7987 = vmatmul.mubr.bf16.gmra.mrb[0].mxu0 %v4805
        %v7988 = vpop.f32.mrb[0].mxu0
        %v7989 = vadd.f32 %v1260, %v7988
        %v7990 = vpop.f32.mrb[0].mxu0
        %v7991 = vpop.f32.mrb[0].mxu0
        %v7992 = vadd.f32 %v1260, %v7991
        %v7993 = vpop.f32.mrb[0].mxu0
        %7994 = vmatprep.mubr.bf16.mxu0 0
        %7995 = vmatmul.mubr.bf16.gmra.mrb[0].mxu0 %v4808
        %v7996 = vpop.f32.mrb[0].mxu0
        %v7997 = vadd.f32 %v1260, %v7996
        %v7998 = vpop.f32.mrb[0].mxu0
        %v7999 = vpop.f32.mrb[0].mxu0
        %v8000 = vadd.f32 %v1260, %v7999
        %v8001 = vpop.f32.mrb[0].mxu0
        %8002 = vmatprep.mubr.bf16.mxu0 0
        %8003 = vmatmul.mubr.bf16.gmra.mrb[0].mxu0 %v4811
        %v8004 = vpop.f32.mrb[0].mxu0
        %v8005 = vadd.f32 %v1260, %v8004
        %v8006 = vpop.f32.mrb[0].mxu0
        %v8007 = vpop.f32.mrb[0].mxu0
        %v8008 = vadd.f32 %v1260, %v8007
        %v8009 = vpop.f32.mrb[0].mxu0
        %8010 = vmatprep.mubr.bf16.mxu0 0
        %8011 = vmatmul.mubr.bf16.gmra.mrb[0].mxu0 %v4814
        %v8012 = vpop.f32.mrb[0].mxu0
        %v8013 = vadd.f32 %v1260, %v8012
        %v8014 = vpop.f32.mrb[0].mxu0
        %v8015 = vpop.f32.mrb[0].mxu0
        %v8016 = vadd.f32 %v1260, %v8015
        %v8017 = vpop.f32.mrb[0].mxu0
        %8018 = vmatprep.mubr.bf16.mxu0 0
        %8019 = vmatmul.mubr.bf16.gmra.mrb[0].mxu0 %v4817
        %v8020 = vpop.f32.mrb[0].mxu0
        %v8021 = vadd.f32 %v1260, %v8020
        %v8022 = vpop.f32.mrb[0].mxu0
        %v8023 = vpop.f32.mrb[0].mxu0
        %v8024 = vadd.f32 %v1260, %v8023
        %v8025 = vpop.f32.mrb[0].mxu0
        %8026 = vmatprep.mubr.bf16.mxu0 0
        %8027 = vmatmul.mubr.bf16.gmra.mrb[0].mxu0 %v4820
        %v8028 = vpop.f32.mrb[0].mxu0
        %v8029 = vadd.f32 %v1260, %v8028
        %v8030 = vpop.f32.mrb[0].mxu0
        %v8031 = vpop.f32.mrb[0].mxu0
        %v8032 = vadd.f32 %v1260, %v8031
        %v8033 = vpop.f32.mrb[0].mxu0
        %8034 = vmatprep.mubr.bf16.mxu0 0
        %8035 = vmatmul.mubr.bf16.gmra.mrb[0].mxu0 %v4823
        %v8036 = vpop.f32.mrb[0].mxu0
        %v8037 = vadd.f32 %v1260, %v8036
        %v8038 = vpop.f32.mrb[0].mxu0
        %v8039 = vpop.f32.mrb[0].mxu0
        %v8040 = vadd.f32 %v1260, %v8039
        %v8041 = vpop.f32.mrb[0].mxu0
        %8042 = vmatprep.mubr.bf16.mxu0 0
        %8043 = vmatmul.mubr.bf16.gmra.mrb[0].mxu0 %v4826
        %v8044 = vpop.f32.mrb[0].mxu0
        %v8045 = vadd.f32 %v1260, %v8044
        %v8046 = vpop.f32.mrb[0].mxu0
        %v8047 = vpop.f32.mrb[0].mxu0
        %v8048 = vadd.f32 %v1260, %v8047
        %v8049 = vpop.f32.mrb[0].mxu0
        %8050 = vmatprep.mubr.bf16.mxu0 0
        %8051 = vmatmul.mubr.bf16.gmra.mrb[0].mxu0 %v4829
        %v8052 = vpop.f32.mrb[0].mxu0
        %v8053 = vadd.f32 %v1260, %v8052
        %v8054 = vpop.f32.mrb[0].mxu0
        %v8055 = vpop.f32.mrb[0].mxu0
        %v8056 = vadd.f32 %v1260, %v8055
        %v8057 = vpop.f32.mrb[0].mxu0
        %8058 = vmatprep.mubr.bf16.mxu0 0
        %8059 = vmatmul.mubr.bf16.gmra.mrb[0].mxu0 %v4832
        %v8060 = vpop.f32.mrb[0].mxu0
        %v8061 = vadd.f32 %v1260, %v8060
        %v8062 = vpop.f32.mrb[0].mxu0
        %v8063 = vpop.f32.mrb[0].mxu0
        %v8064 = vadd.f32 %v1260, %v8063
        %v8065 = vpop.f32.mrb[0].mxu0
        %8066 = vmatprep.mubr.bf16.mxu0 0
        %8067 = vmatmul.mubr.bf16.gmra.mrb[0].mxu0 %v4835
        %v8068 = vpop.f32.mrb[0].mxu0
        %v8069 = vadd.f32 %v1260, %v8068
        %v8070 = vpop.f32.mrb[0].mxu0
        %v8071 = vpop.f32.mrb[0].mxu0
        %v8072 = vadd.f32 %v1260, %v8071
        %v8073 = vpop.f32.mrb[0].mxu0
        %8074 = vmatprep.mubr.bf16.mxu0 0
        %8075 = vmatmul.mubr.bf16.gmra.mrb[0].mxu0 %v4838
        %v8076 = vpop.f32.mrb[0].mxu0
        %v8077 = vadd.f32 %v1260, %v8076
        %v8078 = vpop.f32.mrb[0].mxu0
        %v8079 = vpop.f32.mrb[0].mxu0
        %v8080 = vadd.f32 %v1260, %v8079
        %v8081 = vpop.f32.mrb[0].mxu0
        %8082 = vmatprep.mubr.bf16.mxu0 0
        %8083 = vmatmul.mubr.bf16.gmra.mrb[0].mxu0 %v4841
        %v8084 = vpop.f32.mrb[0].mxu0
        %v8085 = vadd.f32 %v1260, %v8084
        %v8086 = vpop.f32.mrb[0].mxu0
        %v8087 = vpop.f32.mrb[0].mxu0
        %v8088 = vadd.f32 %v1260, %v8087
        %v8089 = vpop.f32.mrb[0].mxu0
        %8090 = vmatprep.mubr.bf16.mxu0 0
        %8091 = vmatmul.mubr.bf16.gmra.mrb[0].mxu0 %v4844
        %v8092 = vpop.f32.mrb[0].mxu0
        %v8093 = vadd.f32 %v1260, %v8092
        %v8094 = vpop.f32.mrb[0].mxu0
        %v8095 = vpop.f32.mrb[0].mxu0
        %v8096 = vadd.f32 %v1260, %v8095
        %v8097 = vpop.f32.mrb[0].mxu0
        %8098 = vmatprep.mubr.bf16.mxu0 0
        %8099 = vmatmul.mubr.bf16.gmra.mrb[0].mxu0 %v4847
        %v8100 = vpop.f32.mrb[0].mxu0
        %v8101 = vadd.f32 %v1260, %v8100
        %v8102 = vpop.f32.mrb[0].mxu0
        %v8103 = vpop.f32.mrb[0].mxu0
        %v8104 = vadd.f32 %v1260, %v8103
        %v8105 = vpop.f32.mrb[0].mxu0
        %8106 = vmatprep.mubr.bf16.mxu0 0
        %8107 = vmatmul.mubr.bf16.gmra.mrb[0].mxu0 %v4850
        %v8108 = vpop.f32.mrb[0].mxu0
        %v8109 = vadd.f32 %v1260, %v8108
        %v8110 = vpop.f32.mrb[0].mxu0
        %v8111 = vpop.f32.mrb[0].mxu0
        %v8112 = vadd.f32 %v1260, %v8111
        %v8113 = vpop.f32.mrb[0].mxu0
        %8114 = vmatprep.mubr.bf16.mxu0 0
        %8115 = vmatmul.mubr.bf16.gmra.mrb[0].mxu0 %v4853
        %v8116 = vpop.f32.mrb[0].mxu0
        %v8117 = vadd.f32 %v1260, %v8116
        %v8118 = vpop.f32.mrb[0].mxu0
        %v8119 = vpop.f32.mrb[0].mxu0
        %v8120 = vadd.f32 %v1260, %v8119
        %v8121 = vpop.f32.mrb[0].mxu0
        %8122 = vmatprep.mubr.bf16.mxu0 0
        %8123 = vmatmul.mubr.bf16.gmra.mrb[0].mxu0 %v4856
        %v8124 = vpop.f32.mrb[0].mxu0
        %v8125 = vadd.f32 %v1260, %v8124
        %v8126 = vpop.f32.mrb[0].mxu0
        %v8127 = vpop.f32.mrb[0].mxu0
        %v8128 = vadd.f32 %v1260, %v8127
        %v8129 = vpop.f32.mrb[0].mxu0
        %8130 = vmatprep.mubr.bf16.mxu0 0
        %8131 = vmatmul.mubr.bf16.gmra.mrb[0].mxu0 %v4859
        %v8132 = vpop.f32.mrb[0].mxu0
        %v8133 = vadd.f32 %v1260, %v8132
        %v8134 = vpop.f32.mrb[0].mxu0
        %v8135 = vpop.f32.mrb[0].mxu0
        %v8136 = vadd.f32 %v1260, %v8135
        %v8137 = vpop.f32.mrb[0].mxu0
        %8138 = vmatprep.mubr.bf16.mxu0 0
        %8139 = vmatmul.mubr.bf16.gmra.mrb[0].mxu0 %v4862
        %v8140 = vpop.f32.mrb[0].mxu0
        %v8141 = vadd.f32 %v1260, %v8140
        %v8142 = vpop.f32.mrb[0].mxu0
        %v8143 = vpop.f32.mrb[0].mxu0
        %v8144 = vadd.f32 %v1260, %v8143
        %v8145 = vpop.f32.mrb[0].mxu0
        %8146 = vmatprep.mubr.bf16.mxu0 0
        %8147 = vmatmul.mubr.bf16.gmra.mrb[0].mxu0 %v4865
        %v8148 = vpop.f32.mrb[0].mxu0
        %v8149 = vadd.f32 %v1260, %v8148
        %v8150 = vpop.f32.mrb[0].mxu0
        %v8151 = vpop.f32.mrb[0].mxu0
        %v8152 = vadd.f32 %v1260, %v8151
        %v8153 = vpop.f32.mrb[0].mxu0
        %8154 = vmatprep.mubr.bf16.mxu0 0
        %8155 = vmatmul.mubr.bf16.gmra.mrb[0].mxu0 %v4868
        %v8156 = vpop.f32.mrb[0].mxu0
        %v8157 = vadd.f32 %v1260, %v8156
        %v8158 = vpop.f32.mrb[0].mxu0
        %v8159 = vpop.f32.mrb[0].mxu0
        %v8160 = vadd.f32 %v1260, %v8159
        %v8161 = vpop.f32.mrb[0].mxu0
        %8162 = vmatprep.mubr.bf16.mxu0 0
        %8163 = vmatmul.mubr.bf16.gmra.mrb[0].mxu0 %v4871
        %v8164 = vpop.f32.mrb[0].mxu0
        %v8165 = vadd.f32 %v1260, %v8164
        %v8166 = vpop.f32.mrb[0].mxu0
        %v8167 = vpop.f32.mrb[0].mxu0
        %v8168 = vadd.f32 %v1260, %v8167
        %v8169 = vpop.f32.mrb[0].mxu0
        %8170 = vmatprep.mubr.bf16.mxu0 0
        %8171 = vmatmul.mubr.bf16.gmra.mrb[0].mxu0 %v4874
        %v8172 = vpop.f32.mrb[0].mxu0
        %v8173 = vadd.f32 %v1260, %v8172
        %v8174 = vpop.f32.mrb[0].mxu0
        %v8175 = vpop.f32.mrb[0].mxu0
        %v8176 = vadd.f32 %v1260, %v8175
        %v8177 = vpop.f32.mrb[0].mxu0
        %8178 = vmatprep.mubr.bf16.mxu0 0
        %8179 = vmatmul.mubr.bf16.gmra.mrb[0].mxu0 %v4877
        %v8180 = vpop.f32.mrb[0].mxu0
        %v8181 = vadd.f32 %v1260, %v8180
        %v8182 = vpop.f32.mrb[0].mxu0
        %v8183 = vpop.f32.mrb[0].mxu0
        %v8184 = vadd.f32 %v1260, %v8183
        %v8185 = vpop.f32.mrb[0].mxu0
        %8186 = vmatprep.mubr.bf16.mxu0 0
        %8187 = vmatmul.mubr.bf16.gmra.mrb[0].mxu0 %v4880
        %v8188 = vpop.f32.mrb[0].mxu0
        %v8189 = vadd.f32 %v1260, %v8188
        %v8190 = vpop.f32.mrb[0].mxu0
        %v8191 = vpop.f32.mrb[0].mxu0
        %v8192 = vadd.f32 %v1260, %v8191
        %v8193 = vpop.f32.mrb[0].mxu0
        %8194 = vmatprep.mubr.bf16.mxu0 0
        %8195 = vmatmul.mubr.bf16.gmra.mrb[0].mxu0 %v4883
        %v8196 = vpop.f32.mrb[0].mxu0
        %v8197 = vadd.f32 %v1260, %v8196
        %v8198 = vpop.f32.mrb[0].mxu0
        %v8199 = vpop.f32.mrb[0].mxu0
        %v8200 = vadd.f32 %v1260, %v8199
        %v8201 = vpop.f32.mrb[0].mxu0
        %8202 = vmatprep.mubr.bf16.mxu0 0
        %8203 = vmatmul.mubr.bf16.gmra.mrb[0].mxu0 %v4886
        %v8204 = vpop.f32.mrb[0].mxu0
        %v8205 = vadd.f32 %v1260, %v8204
        %v8206 = vpop.f32.mrb[0].mxu0
        %v8207 = vpop.f32.mrb[0].mxu0
        %v8208 = vadd.f32 %v1260, %v8207
        %v8209 = vpop.f32.mrb[0].mxu0
        %8210 = vmatprep.mubr.bf16.mxu0 0
        %8211 = vmatmul.mubr.bf16.gmra.mrb[0].mxu0 %v4889
        %v8212 = vpop.f32.mrb[0].mxu0
        %v8213 = vadd.f32 %v1260, %v8212
        %v8214 = vpop.f32.mrb[0].mxu0
        %v8215 = vpop.f32.mrb[0].mxu0
        %v8216 = vadd.f32 %v1260, %v8215
        %v8217 = vpop.f32.mrb[0].mxu0
        %8218 = vmatprep.mubr.bf16.mxu0 0
        %8219 = vmatmul.mubr.bf16.gmra.mrb[0].mxu0 %v4892
        %v8220 = vpop.f32.mrb[0].mxu0
        %v8221 = vadd.f32 %v1260, %v8220
        %v8222 = vpop.f32.mrb[0].mxu0
        %v8223 = vpop.f32.mrb[0].mxu0
        %v8224 = vadd.f32 %v1260, %v8223
        %v8225 = vpop.f32.mrb[0].mxu0
        %8226 = vmatprep.mubr.bf16.mxu0 0
        %8227 = vmatmul.mubr.bf16.gmra.mrb[0].mxu0 %v4895
        %v8228 = vpop.f32.mrb[0].mxu0
        %v8229 = vadd.f32 %v1260, %v8228
        %v8230 = vpop.f32.mrb[0].mxu0
        %v8231 = vpop.f32.mrb[0].mxu0
        %v8232 = vadd.f32 %v1260, %v8231
        %v8233 = vpop.f32.mrb[0].mxu0
        %8234 = vmatprep.mubr.bf16.mxu0 0
        %8235 = vmatmul.mubr.bf16.gmra.mrb[0].mxu0 %v4898
        %v8236 = vpop.f32.mrb[0].mxu0
        %v8237 = vadd.f32 %v1260, %v8236
        %v8238 = vpop.f32.mrb[0].mxu0
        %v8239 = vpop.f32.mrb[0].mxu0
        %v8240 = vadd.f32 %v1260, %v8239
        %v8241 = vpop.f32.mrb[0].mxu0
        %8242 = vmatprep.mubr.bf16.mxu0 0
        %8243 = vmatmul.mubr.bf16.gmra.mrb[0].mxu0 %v4901
        %v8244 = vpop.f32.mrb[0].mxu0
        %v8245 = vadd.f32 %v1260, %v8244
        %v8246 = vpop.f32.mrb[0].mxu0
        %v8247 = vpop.f32.mrb[0].mxu0
        %v8248 = vadd.f32 %v1260, %v8247
        %v8249 = vpop.f32.mrb[0].mxu0
        %8250 = vmatprep.mubr.bf16.mxu0 0
        %8251 = vmatmul.mubr.bf16.gmra.mrb[0].mxu0 %v4904
        %v8252 = vpop.f32.mrb[0].mxu0
        %v8253 = vadd.f32 %v1260, %v8252
        %v8254 = vpop.f32.mrb[0].mxu0
        %v8255 = vpop.f32.mrb[0].mxu0
        %v8256 = vadd.f32 %v1260, %v8255
        %v8257 = vpop.f32.mrb[0].mxu0
        %8258 = vmatprep.mubr.bf16.mxu0 0
        %8259 = vmatmul.mubr.bf16.gmra.mrb[0].mxu0 %v4907
        %v8260 = vpop.f32.mrb[0].mxu0
        %v8261 = vadd.f32 %v1260, %v8260
        %v8262 = vpop.f32.mrb[0].mxu0
        %v8263 = vpop.f32.mrb[0].mxu0
        %v8264 = vadd.f32 %v1260, %v8263
        %v8265 = vpop.f32.mrb[0].mxu0
        %8266 = vmatprep.mubr.bf16.mxu0 0
        %8267 = vmatmul.mubr.bf16.gmra.mrb[0].mxu0 %v4910
        %v8268 = vpop.f32.mrb[0].mxu0
        %v8269 = vadd.f32 %v1260, %v8268
        %v8270 = vpop.f32.mrb[0].mxu0
        %v8271 = vpop.f32.mrb[0].mxu0
        %v8272 = vadd.f32 %v1260, %v8271
        %v8273 = vpop.f32.mrb[0].mxu0
        %8274 = vmatprep.mubr.bf16.mxu0 0
        %8275 = vmatmul.mubr.bf16.gmra.mrb[0].mxu0 %v4913
        %v8276 = vpop.f32.mrb[0].mxu0
        %v8277 = vadd.f32 %v1260, %v8276
        %v8278 = vpop.f32.mrb[0].mxu0
        %v8279 = vpop.f32.mrb[0].mxu0
        %v8280 = vadd.f32 %v1260, %v8279
        %v8281 = vpop.f32.mrb[0].mxu0
        %8282 = vmatprep.mubr.bf16.mxu0 0
        %8283 = vmatmul.mubr.bf16.gmra.mrb[0].mxu0 %v4916
        %v8284 = vpop.f32.mrb[0].mxu0
        %v8285 = vadd.f32 %v1260, %v8284
        %v8286 = vpop.f32.mrb[0].mxu0
        %v8287 = vpop.f32.mrb[0].mxu0
        %v8288 = vadd.f32 %v1260, %v8287
        %v8289 = vpop.f32.mrb[0].mxu0
        %8290 = vmatprep.mubr.bf16.mxu0 0
        %8291 = vmatmul.mubr.bf16.gmra.mrb[0].mxu0 %v4919
        %v8292 = vpop.f32.mrb[0].mxu0
        %v8293 = vadd.f32 %v1260, %v8292
        %v8294 = vpop.f32.mrb[0].mxu0
        %v8295 = vpop.f32.mrb[0].mxu0
        %v8296 = vadd.f32 %v1260, %v8295
        %v8297 = vpop.f32.mrb[0].mxu0
        %8298 = vmatprep.mubr.bf16.mxu0 0
        %8299 = vmatmul.mubr.bf16.gmra.mrb[0].mxu0 %v4922
        %v8300 = vpop.f32.mrb[0].mxu0
        %v8301 = vadd.f32 %v1260, %v8300
        %v8302 = vpop.f32.mrb[0].mxu0
        %v8303 = vpop.f32.mrb[0].mxu0
        %v8304 = vadd.f32 %v1260, %v8303
        %v8305 = vpop.f32.mrb[0].mxu0
        %8306 = vmatprep.mubr.bf16.mxu0 0
        %8307 = vmatmul.mubr.bf16.gmra.mrb[0].mxu0 %v4925
        %v8308 = vpop.f32.mrb[0].mxu0
        %v8309 = vadd.f32 %v1260, %v8308
        %v8310 = vpop.f32.mrb[0].mxu0
        %v8311 = vpop.f32.mrb[0].mxu0
        %v8312 = vadd.f32 %v1260, %v8311
        %v8313 = vpop.f32.mrb[0].mxu0
        %8314 = vmatprep.mubr.bf16.mxu0 0
        %8315 = vmatmul.mubr.bf16.gmra.mrb[0].mxu0 %v4928
        %v8316 = vpop.f32.mrb[0].mxu0
        %v8317 = vadd.f32 %v1260, %v8316
        %v8318 = vpop.f32.mrb[0].mxu0
        %v8319 = vpop.f32.mrb[0].mxu0
        %v8320 = vadd.f32 %v1260, %v8319
        %v8321 = vpop.f32.mrb[0].mxu0
        %8322 = vmatprep.mubr.bf16.mxu0 0
        %8323 = vmatmul.mubr.bf16.gmra.mrb[0].mxu0 %v4931
        %v8324 = vpop.f32.mrb[0].mxu0
        %v8325 = vadd.f32 %v1260, %v8324
        %v8326 = vpop.f32.mrb[0].mxu0
        %v8327 = vpop.f32.mrb[0].mxu0
        %v8328 = vadd.f32 %v1260, %v8327
        %v8329 = vpop.f32.mrb[0].mxu0
        %8330 = vmatprep.mubr.bf16.mxu0 0
        %8331 = vmatmul.mubr.bf16.gmra.mrb[0].mxu0 %v4934
        %v8332 = vpop.f32.mrb[0].mxu0
        %v8333 = vadd.f32 %v1260, %v8332
        %v8334 = vpop.f32.mrb[0].mxu0
        %v8335 = vpop.f32.mrb[0].mxu0
        %v8336 = vadd.f32 %v1260, %v8335
        %v8337 = vpop.f32.mrb[0].mxu0
        %8338 = vmatprep.mubr.bf16.mxu0 0
        %8339 = vmatmul.mubr.bf16.gmra.mrb[0].mxu0 %v4937
        %v8340 = vpop.f32.mrb[0].mxu0
        %v8341 = vadd.f32 %v1260, %v8340
        %v8342 = vpop.f32.mrb[0].mxu0
        %v8343 = vpop.f32.mrb[0].mxu0
        %v8344 = vadd.f32 %v1260, %v8343
        %v8345 = vpop.f32.mrb[0].mxu0
        %8346 = vmatprep.mubr.bf16.mxu0 0
        %8347 = vmatmul.mubr.bf16.gmra.mrb[0].mxu0 %v4940
        %v8348 = vpop.f32.mrb[0].mxu0
        %v8349 = vadd.f32 %v1260, %v8348
        %v8350 = vpop.f32.mrb[0].mxu0
        %v8351 = vpop.f32.mrb[0].mxu0
        %v8352 = vadd.f32 %v1260, %v8351
        %v8353 = vpop.f32.mrb[0].mxu0
        %8354 = vmatprep.mubr.bf16.mxu0 0
        %8355 = vmatmul.mubr.bf16.gmra.mrb[0].mxu0 %v4943
        %v8356 = vpop.f32.mrb[0].mxu0
        %v8357 = vadd.f32 %v1260, %v8356
        %v8358 = vpop.f32.mrb[0].mxu0
        %v8359 = vpop.f32.mrb[0].mxu0
        %v8360 = vadd.f32 %v1260, %v8359
        %v8361 = vpop.f32.mrb[0].mxu0
        %8362 = vmatprep.mubr.bf16.mxu0 0
        %8363 = vmatmul.mubr.bf16.gmra.mrb[0].mxu0 %v4946
        %v8364 = vpop.f32.mrb[0].mxu0
        %v8365 = vadd.f32 %v1260, %v8364
        %v8366 = vpop.f32.mrb[0].mxu0
        %v8367 = vpop.f32.mrb[0].mxu0
        %v8368 = vadd.f32 %v1260, %v8367
        %v8369 = vpop.f32.mrb[0].mxu0
        %8370 = vmatprep.mubr.bf16.mxu0 0
        %8371 = vmatmul.mubr.bf16.gmra.mrb[0].mxu0 %v4949
        %v8372 = vpop.f32.mrb[0].mxu0
        %v8373 = vadd.f32 %v1260, %v8372
        %v8374 = vpop.f32.mrb[0].mxu0
        %v8375 = vpop.f32.mrb[0].mxu0
        %v8376 = vadd.f32 %v1260, %v8375
        %v8377 = vpop.f32.mrb[0].mxu0
        %8378 = vmatprep.mubr.bf16.mxu0 0
        %8379 = vmatmul.mubr.bf16.gmra.mrb[0].mxu0 %v4952
        %v8380 = vpop.f32.mrb[0].mxu0
        %v8381 = vadd.f32 %v1260, %v8380
        %v8382 = vpop.f32.mrb[0].mxu0
        %v8383 = vpop.f32.mrb[0].mxu0
        %v8384 = vadd.f32 %v1260, %v8383
        %v8385 = vpop.f32.mrb[0].mxu0
        %8386 = vmatprep.mubr.bf16.mxu0 0
        %8387 = vmatmul.mubr.bf16.gmra.mrb[0].mxu0 %v4955
        %v8388 = vpop.f32.mrb[0].mxu0
        %v8389 = vadd.f32 %v1260, %v8388
        %v8390 = vpop.f32.mrb[0].mxu0
        %v8391 = vpop.f32.mrb[0].mxu0
        %v8392 = vadd.f32 %v1260, %v8391
        %v8393 = vpop.f32.mrb[0].mxu0
        %8394 = vmatprep.mubr.bf16.mxu0 0
        %8395 = vmatmul.mubr.bf16.gmra.mrb[0].mxu0 %v4958
        %v8396 = vpop.f32.mrb[0].mxu0
        %v8397 = vadd.f32 %v1260, %v8396
        %v8398 = vpop.f32.mrb[0].mxu0
        %v8399 = vpop.f32.mrb[0].mxu0
        %v8400 = vadd.f32 %v1260, %v8399
        %v8401 = vpop.f32.mrb[0].mxu0
        %8402 = vmatprep.mubr.bf16.mxu0 0
        %8403 = vmatmul.mubr.bf16.gmra.mrb[0].mxu0 %v4961
        %v8404 = vpop.f32.mrb[0].mxu0
        %v8405 = vadd.f32 %v1260, %v8404
        %v8406 = vpop.f32.mrb[0].mxu0
        %v8407 = vpop.f32.mrb[0].mxu0
        %v8408 = vadd.f32 %v1260, %v8407
        %v8409 = vpop.f32.mrb[0].mxu0
        %8410 = vmatprep.mubr.bf16.mxu0 0
        %8411 = vmatmul.mubr.bf16.gmra.mrb[0].mxu0 %v4964
        %v8412 = vpop.f32.mrb[0].mxu0
        %v8413 = vadd.f32 %v1260, %v8412
        %v8414 = vpop.f32.mrb[0].mxu0
        %v8415 = vpop.f32.mrb[0].mxu0
        %v8416 = vadd.f32 %v1260, %v8415
        %v8417 = vpop.f32.mrb[0].mxu0
        %8418 = vmatprep.mubr.bf16.mxu0 0
        %8419 = vmatmul.mubr.bf16.gmra.mrb[0].mxu0 %v4967
        %v8420 = vpop.f32.mrb[0].mxu0
        %v8421 = vadd.f32 %v1260, %v8420
        %v8422 = vpop.f32.mrb[0].mxu0
        %v8423 = vpop.f32.mrb[0].mxu0
        %v8424 = vadd.f32 %v1260, %v8423
        %v8425 = vpop.f32.mrb[0].mxu0
        %8426 = vmatprep.mubr.bf16.mxu0 0
        %8427 = vmatmul.mubr.bf16.gmra.mrb[0].mxu0 %v4970
        %v8428 = vpop.f32.mrb[0].mxu0
        %v8429 = vadd.f32 %v1260, %v8428
        %v8430 = vpop.f32.mrb[0].mxu0
        %v8431 = vpop.f32.mrb[0].mxu0
        %v8432 = vadd.f32 %v1260, %v8431
        %v8433 = vpop.f32.mrb[0].mxu0
        %8434 = vmatprep.mubr.bf16.mxu0 0
        %8435 = vmatmul.mubr.bf16.gmra.mrb[0].mxu0 %v4973
        %v8436 = vpop.f32.mrb[0].mxu0
        %v8437 = vadd.f32 %v1260, %v8436
        %v8438 = vpop.f32.mrb[0].mxu0
        %v8439 = vpop.f32.mrb[0].mxu0
        %v8440 = vadd.f32 %v1260, %v8439
        %v8441 = vpop.f32.mrb[0].mxu0
        %8442 = vmatprep.mubr.bf16.mxu0 0
        %8443 = vmatmul.mubr.bf16.gmra.mrb[0].mxu0 %v4976
        %v8444 = vpop.f32.mrb[0].mxu0
        %v8445 = vadd.f32 %v1260, %v8444
        %v8446 = vpop.f32.mrb[0].mxu0
        %v8447 = vpop.f32.mrb[0].mxu0
        %v8448 = vadd.f32 %v1260, %v8447
        %v8449 = vpop.f32.mrb[0].mxu0
        %8450 = vmatprep.mubr.bf16.mxu0 0
        %8451 = vmatmul.mubr.bf16.gmra.mrb[0].mxu0 %v4979
        %v8452 = vpop.f32.mrb[0].mxu0
        %v8453 = vadd.f32 %v1260, %v8452
        %v8454 = vpop.f32.mrb[0].mxu0
        %v8455 = vpop.f32.mrb[0].mxu0
        %v8456 = vadd.f32 %v1260, %v8455
        %v8457 = vpop.f32.mrb[0].mxu0
        %8458 = vmatprep.mubr.bf16.mxu0 0
        %8459 = vmatmul.mubr.bf16.gmra.mrb[0].mxu0 %v4982
        %v8460 = vpop.f32.mrb[0].mxu0
        %v8461 = vadd.f32 %v1260, %v8460
        %v8462 = vpop.f32.mrb[0].mxu0
        %v8463 = vpop.f32.mrb[0].mxu0
        %v8464 = vadd.f32 %v1260, %v8463
        %v8465 = vpop.f32.mrb[0].mxu0
        %8466 = vmatprep.mubr.bf16.mxu0 0
        %8467 = vmatmul.mubr.bf16.gmra.mrb[0].mxu0 %v4985
        %v8468 = vpop.f32.mrb[0].mxu0
        %v8469 = vadd.f32 %v1260, %v8468
        %v8470 = vpop.f32.mrb[0].mxu0
        %v8471 = vpop.f32.mrb[0].mxu0
        %v8472 = vadd.f32 %v1260, %v8471
        %v8473 = vpop.f32.mrb[0].mxu0
        %8474 = vmatprep.mubr.bf16.mxu0 0
        %8475 = vmatmul.mubr.bf16.gmra.mrb[0].mxu0 %v4988
        %v8476 = vpop.f32.mrb[0].mxu0
        %v8477 = vadd.f32 %v1260, %v8476
        %v8478 = vpop.f32.mrb[0].mxu0
        %v8479 = vpop.f32.mrb[0].mxu0
        %v8480 = vadd.f32 %v1260, %v8479
        %v8481 = vpop.f32.mrb[0].mxu0
        %8482 = vmatprep.mubr.bf16.mxu0 0
        %8483 = vmatmul.mubr.bf16.gmra.mrb[0].mxu0 %v4991
        %v8484 = vpop.f32.mrb[0].mxu0
        %v8485 = vadd.f32 %v1260, %v8484
        %v8486 = vpop.f32.mrb[0].mxu0
        %v8487 = vpop.f32.mrb[0].mxu0
        %v8488 = vadd.f32 %v1260, %v8487
        %v8489 = vpop.f32.mrb[0].mxu0
        %8490 = vmatprep.mubr.bf16.mxu0 0
        %8491 = vmatmul.mubr.bf16.gmra.mrb[0].mxu0 %v4994
        %v8492 = vpop.f32.mrb[0].mxu0
        %v8493 = vadd.f32 %v1260, %v8492
        %v8494 = vpop.f32.mrb[0].mxu0
        %v8495 = vpop.f32.mrb[0].mxu0
        %v8496 = vadd.f32 %v1260, %v8495
        %v8497 = vpop.f32.mrb[0].mxu0
        %8498 = vmatprep.mubr.bf16.mxu0 0
        %8499 = vmatmul.mubr.bf16.gmra.mrb[0].mxu0 %v4997
        %v8500 = vpop.f32.mrb[0].mxu0
        %v8501 = vadd.f32 %v1260, %v8500
        %v8502 = vpop.f32.mrb[0].mxu0
        %v8503 = vpop.f32.mrb[0].mxu0
        %v8504 = vadd.f32 %v1260, %v8503
        %v8505 = vpop.f32.mrb[0].mxu0
        %8506 = vmatprep.mubr.bf16.mxu0 0
        %8507 = vmatmul.mubr.bf16.gmra.mrb[0].mxu0 %v5000
        %v8508 = vpop.f32.mrb[0].mxu0
        %v8509 = vadd.f32 %v1260, %v8508
        %v8510 = vpop.f32.mrb[0].mxu0
        %v8511 = vpop.f32.mrb[0].mxu0
        %v8512 = vadd.f32 %v1260, %v8511
        %v8513 = vpop.f32.mrb[0].mxu0
        %8514 = vmatprep.mubr.bf16.mxu0 0
        %8515 = vmatmul.mubr.bf16.gmra.mrb[0].mxu0 %v5003
        %v8516 = vpop.f32.mrb[0].mxu0
        %v8517 = vadd.f32 %v1260, %v8516
        %v8518 = vpop.f32.mrb[0].mxu0
        %v8519 = vpop.f32.mrb[0].mxu0
        %v8520 = vadd.f32 %v1260, %v8519
        %v8521 = vpop.f32.mrb[0].mxu0
        %8522 = vmatprep.mubr.bf16.mxu0 0
        %8523 = vmatmul.mubr.bf16.gmra.mrb[0].mxu0 %v5006
        %v8524 = vpop.f32.mrb[0].mxu0
        %v8525 = vadd.f32 %v1260, %v8524
        %v8526 = vpop.f32.mrb[0].mxu0
        %v8527 = vpop.f32.mrb[0].mxu0
        %v8528 = vadd.f32 %v1260, %v8527
        %v8529 = vpop.f32.mrb[0].mxu0
        %8530 = vmatprep.mubr.bf16.mxu0 0
        %8531 = vmatmul.mubr.bf16.gmra.mrb[0].mxu0 %v5009
        %v8532 = vpop.f32.mrb[0].mxu0
        %v8533 = vadd.f32 %v1260, %v8532
        %v8534 = vpop.f32.mrb[0].mxu0
        %v8535 = vpop.f32.mrb[0].mxu0
        %v8536 = vadd.f32 %v1260, %v8535
        %v8537 = vpop.f32.mrb[0].mxu0
        %8538 = vmatprep.mubr.bf16.mxu0 0
        %8539 = vmatmul.mubr.bf16.gmra.mrb[0].mxu0 %v5012
        %v8540 = vpop.f32.mrb[0].mxu0
        %v8541 = vadd.f32 %v1260, %v8540
        %v8542 = vpop.f32.mrb[0].mxu0
        %v8543 = vpop.f32.mrb[0].mxu0
        %v8544 = vadd.f32 %v1260, %v8543
        %v8545 = vpop.f32.mrb[0].mxu0
        %8546 = vmatprep.mubr.bf16.mxu0 0
        %8547 = vmatmul.mubr.bf16.gmra.mrb[0].mxu0 %v5015
        %v8548 = vpop.f32.mrb[0].mxu0
        %v8549 = vadd.f32 %v1260, %v8548
        %v8550 = vpop.f32.mrb[0].mxu0
        %v8551 = vpop.f32.mrb[0].mxu0
        %v8552 = vadd.f32 %v1260, %v8551
        %v8553 = vpop.f32.mrb[0].mxu0
        %8554 = vmatprep.mubr.bf16.mxu0 0
        %8555 = vmatmul.mubr.bf16.gmra.mrb[0].mxu0 %v5018
        %v8556 = vpop.f32.mrb[0].mxu0
        %v8557 = vadd.f32 %v1260, %v8556
        %v8558 = vpop.f32.mrb[0].mxu0
        %v8559 = vpop.f32.mrb[0].mxu0
        %v8560 = vadd.f32 %v1260, %v8559
        %v8561 = vpop.f32.mrb[0].mxu0
        %8562 = vmatprep.mubr.bf16.mxu0 0
        %8563 = vmatmul.mubr.bf16.gmra.mrb[0].mxu0 %v5021
        %v8564 = vpop.f32.mrb[0].mxu0
        %v8565 = vadd.f32 %v1260, %v8564
        %v8566 = vpop.f32.mrb[0].mxu0
        %v8567 = vpop.f32.mrb[0].mxu0
        %v8568 = vadd.f32 %v1260, %v8567
        %v8569 = vpop.f32.mrb[0].mxu0
        %8570 = vmatprep.mubr.bf16.mxu0 0
        %8571 = vmatmul.mubr.bf16.gmra.mrb[0].mxu0 %v5024
        %v8572 = vpop.f32.mrb[0].mxu0
        %v8573 = vadd.f32 %v1260, %v8572
        %v8574 = vpop.f32.mrb[0].mxu0
        %v8575 = vpop.f32.mrb[0].mxu0
        %v8576 = vadd.f32 %v1260, %v8575
        %v8577 = vpop.f32.mrb[0].mxu0
        %8578 = vmatprep.mubr.bf16.mxu0 0
        %8579 = vmatmul.mubr.bf16.gmra.mrb[0].mxu0 %v5027
        %v8580 = vpop.f32.mrb[0].mxu0
        %v8581 = vadd.f32 %v1260, %v8580
        %v8582 = vpop.f32.mrb[0].mxu0
        %v8583 = vpop.f32.mrb[0].mxu0
        %v8584 = vadd.f32 %v1260, %v8583
        %v8585 = vpop.f32.mrb[0].mxu0
        %8586 = vmatprep.mubr.bf16.mxu0 0
        %8587 = vmatmul.mubr.bf16.gmra.mrb[0].mxu0 %v5030
        %v8588 = vpop.f32.mrb[0].mxu0
        %v8589 = vadd.f32 %v1260, %v8588
        %v8590 = vpop.f32.mrb[0].mxu0
        %v8591 = vpop.f32.mrb[0].mxu0
        %v8592 = vadd.f32 %v1260, %v8591
        %v8593 = vpop.f32.mrb[0].mxu0
        %8594 = vmatprep.mubr.bf16.mxu0 0
        %8595 = vmatmul.mubr.bf16.gmra.mrb[0].mxu0 %v5033
        %v8596 = vpop.f32.mrb[0].mxu0
        %v8597 = vadd.f32 %v1260, %v8596
        %v8598 = vpop.f32.mrb[0].mxu0
        %v8599 = vpop.f32.mrb[0].mxu0
        %v8600 = vadd.f32 %v1260, %v8599
        %v8601 = vpop.f32.mrb[0].mxu0
        %8602 = vmatprep.mubr.bf16.mxu0 0
        %8603 = vmatmul.mubr.bf16.gmra.mrb[0].mxu0 %v5036
        %v8604 = vpop.f32.mrb[0].mxu0
        %v8605 = vadd.f32 %v1260, %v8604
        %v8606 = vpop.f32.mrb[0].mxu0
        %v8607 = vpop.f32.mrb[0].mxu0
        %v8608 = vadd.f32 %v1260, %v8607
        %v8609 = vpop.f32.mrb[0].mxu0
        %8610 = vmatprep.mubr.bf16.mxu0 0
        %8611 = vmatmul.mubr.bf16.gmra.mrb[0].mxu0 %v5039
        %v8612 = vpop.f32.mrb[0].mxu0
        %v8613 = vadd.f32 %v1260, %v8612
        %v8614 = vpop.f32.mrb[0].mxu0
        %v8615 = vpop.f32.mrb[0].mxu0
        %v8616 = vadd.f32 %v1260, %v8615
        %v8617 = vpop.f32.mrb[0].mxu0
        %8618 = vmatprep.mubr.bf16.mxu0 0
        %8619 = vmatmul.mubr.bf16.gmra.mrb[0].mxu0 %v5042
        %v8620 = vpop.f32.mrb[0].mxu0
        %v8621 = vadd.f32 %v1260, %v8620
        %v8622 = vpop.f32.mrb[0].mxu0
        %v8623 = vpop.f32.mrb[0].mxu0
        %v8624 = vadd.f32 %v1260, %v8623
        %v8625 = vpop.f32.mrb[0].mxu0
        %8626 = vmatprep.mubr.bf16.mxu0 0
        %8627 = vmatmul.mubr.bf16.gmra.mrb[0].mxu0 %v5045
        %v8628 = vpop.f32.mrb[0].mxu0
        %v8629 = vadd.f32 %v1260, %v8628
        %v8630 = vpop.f32.mrb[0].mxu0
        %v8631 = vpop.f32.mrb[0].mxu0
        %v8632 = vadd.f32 %v1260, %v8631
        %v8633 = vpop.f32.mrb[0].mxu0
        %8634 = vmatprep.mubr.bf16.mxu0 0
        %8635 = vmatmul.mubr.bf16.gmra.mrb[0].mxu0 %v5048
        %v8636 = vpop.f32.mrb[0].mxu0
        %v8637 = vadd.f32 %v1260, %v8636
        %v8638 = vpop.f32.mrb[0].mxu0
        %v8639 = vpop.f32.mrb[0].mxu0
        %v8640 = vadd.f32 %v1260, %v8639
        %v8641 = vpop.f32.mrb[0].mxu0
        %8642 = vmatprep.mubr.bf16.mxu0 0
        %8643 = vmatmul.mubr.bf16.gmra.mrb[0].mxu0 %v5051
        %v8644 = vpop.f32.mrb[0].mxu0
        %v8645 = vadd.f32 %v1260, %v8644
        %v8646 = vpop.f32.mrb[0].mxu0
        %v8647 = vpop.f32.mrb[0].mxu0
        %v8648 = vadd.f32 %v1260, %v8647
        %v8649 = vpop.f32.mrb[0].mxu0
        %8650 = vmatprep.mubr.bf16.mxu0 0
        %8651 = vmatmul.mubr.bf16.gmra.mrb[0].mxu0 %v5054
        %v8652 = vpop.f32.mrb[0].mxu0
        %v8653 = vadd.f32 %v1260, %v8652
        %v8654 = vpop.f32.mrb[0].mxu0
        %v8655 = vpop.f32.mrb[0].mxu0
        %v8656 = vadd.f32 %v1260, %v8655
        %v8657 = vpop.f32.mrb[0].mxu0
        %8658 = vmatprep.mubr.bf16.mxu0 0
        %8659 = vmatmul.mubr.bf16.gmra.mrb[0].mxu0 %v5057
        %v8660 = vpop.f32.mrb[0].mxu0
        %v8661 = vadd.f32 %v1260, %v8660
        %v8662 = vpop.f32.mrb[0].mxu0
        %v8663 = vpop.f32.mrb[0].mxu0
        %v8664 = vadd.f32 %v1260, %v8663
        %v8665 = vpop.f32.mrb[0].mxu0
        %8666 = vmatprep.mubr.bf16.mxu0 0
        %8667 = vmatmul.mubr.bf16.gmra.mrb[0].mxu0 %v5060
        %v8668 = vpop.f32.mrb[0].mxu0
        %v8669 = vadd.f32 %v1260, %v8668
        %v8670 = vpop.f32.mrb[0].mxu0
        %v8671 = vpop.f32.mrb[0].mxu0
        %v8672 = vadd.f32 %v1260, %v8671
        %v8673 = vpop.f32.mrb[0].mxu0
        %8674 = vmatprep.mubr.bf16.mxu0 0
        %8675 = vmatmul.mubr.bf16.gmra.mrb[0].mxu0 %v5063
        %v8676 = vpop.f32.mrb[0].mxu0
        %v8677 = vadd.f32 %v1260, %v8676
        %v8678 = vpop.f32.mrb[0].mxu0
        %v8679 = vpop.f32.mrb[0].mxu0
        %v8680 = vadd.f32 %v1260, %v8679
        %v8681 = vpop.f32.mrb[0].mxu0
        %8682 = vmatprep.mubr.bf16.mxu0 0
        %8683 = vmatmul.mubr.bf16.gmra.mrb[0].mxu0 %v5066
        %v8684 = vpop.f32.mrb[0].mxu0
        %v8685 = vadd.f32 %v1260, %v8684
        %v8686 = vpop.f32.mrb[0].mxu0
        %v8687 = vpop.f32.mrb[0].mxu0
        %v8688 = vadd.f32 %v1260, %v8687
        %v8689 = vpop.f32.mrb[0].mxu0
        %8690 = vmatprep.mubr.bf16.mxu0 0
        %8691 = vmatmul.mubr.bf16.gmra.mrb[0].mxu0 %v5069
        %v8692 = vpop.f32.mrb[0].mxu0
        %v8693 = vadd.f32 %v1260, %v8692
        %v8694 = vpop.f32.mrb[0].mxu0
        %v8695 = vpop.f32.mrb[0].mxu0
        %v8696 = vadd.f32 %v1260, %v8695
        %v8697 = vpop.f32.mrb[0].mxu0
        %8698 = vmatprep.mubr.bf16.mxu0 0
        %8699 = vmatmul.mubr.bf16.gmra.mrb[0].mxu0 %v5072
        %v8700 = vpop.f32.mrb[0].mxu0
        %v8701 = vadd.f32 %v1260, %v8700
        %v8702 = vpop.f32.mrb[0].mxu0
        %v8703 = vpop.f32.mrb[0].mxu0
        %v8704 = vadd.f32 %v1260, %v8703
        %v8705 = vpop.f32.mrb[0].mxu0
        %8706 = vmatprep.mubr.bf16.mxu0 0
        %8707 = vmatmul.mubr.bf16.gmra.mrb[0].mxu0 %v5075
        %v8708 = vpop.f32.mrb[0].mxu0
        %v8709 = vadd.f32 %v1260, %v8708
        %v8710 = vpop.f32.mrb[0].mxu0
        %v8711 = vpop.f32.mrb[0].mxu0
        %v8712 = vadd.f32 %v1260, %v8711
        %v8713 = vpop.f32.mrb[0].mxu0
        %8714 = vmatprep.mubr.bf16.mxu0 0
        %8715 = vmatmul.mubr.bf16.gmra.mrb[0].mxu0 %v5078
        %v8716 = vpop.f32.mrb[0].mxu0
        %v8717 = vadd.f32 %v1260, %v8716
        %v8718 = vpop.f32.mrb[0].mxu0
        %v8719 = vpop.f32.mrb[0].mxu0
        %v8720 = vadd.f32 %v1260, %v8719
        %v8721 = vpop.f32.mrb[0].mxu0
        %8722 = vmatprep.mubr.bf16.mxu0 0
        %8723 = vmatmul.mubr.bf16.gmra.mrb[0].mxu0 %v5081
        %v8724 = vpop.f32.mrb[0].mxu0
        %v8725 = vadd.f32 %v1260, %v8724
        %v8726 = vpop.f32.mrb[0].mxu0
        %v8727 = vpop.f32.mrb[0].mxu0
        %v8728 = vadd.f32 %v1260, %v8727
        %v8729 = vpop.f32.mrb[0].mxu0
        %8730 = vmatprep.mubr.bf16.mxu0 0
        %8731 = vmatmul.mubr.bf16.gmra.mrb[0].mxu0 %v5084
        %v8732 = vpop.f32.mrb[0].mxu0
        %v8733 = vadd.f32 %v1260, %v8732
        %v8734 = vpop.f32.mrb[0].mxu0
        %v8735 = vpop.f32.mrb[0].mxu0
        %v8736 = vadd.f32 %v1260, %v8735
        %v8737 = vpop.f32.mrb[0].mxu0
        %8738 = vmatprep.mubr.bf16.mxu0 0
        %8739 = vmatmul.mubr.bf16.gmra.mrb[0].mxu0 %v5087
        %v8740 = vpop.f32.mrb[0].mxu0
        %v8741 = vadd.f32 %v1260, %v8740
        %v8742 = vpop.f32.mrb[0].mxu0
        %v8743 = vpop.f32.mrb[0].mxu0
        %v8744 = vadd.f32 %v1260, %v8743
        %v8745 = vpop.f32.mrb[0].mxu0
        %8746 = vmatprep.mubr.bf16.mxu0 0
        %8747 = vmatmul.mubr.bf16.gmra.mrb[0].mxu0 %v5090
        %v8748 = vpop.f32.mrb[0].mxu0
        %v8749 = vadd.f32 %v1260, %v8748
        %v8750 = vpop.f32.mrb[0].mxu0
        %v8751 = vpop.f32.mrb[0].mxu0
        %v8752 = vadd.f32 %v1260, %v8751
        %v8753 = vpop.f32.mrb[0].mxu0
        %8754 = vmatprep.mubr.bf16.mxu0 0
        %8755 = vmatmul.mubr.bf16.gmra.mrb[0].mxu0 %v5093
        %v8756 = vpop.f32.mrb[0].mxu0
        %v8757 = vadd.f32 %v1260, %v8756
        %v8758 = vpop.f32.mrb[0].mxu0
        %v8759 = vpop.f32.mrb[0].mxu0
        %v8760 = vadd.f32 %v1260, %v8759
        %v8761 = vpop.f32.mrb[0].mxu0
        %8762 = vmatprep.mubr.bf16.mxu0 0
        %8763 = vmatmul.mubr.bf16.gmra.mrb[0].mxu0 %v5096
        %v8764 = vpop.f32.mrb[0].mxu0
        %v8765 = vadd.f32 %v1260, %v8764
        %v8766 = vpop.f32.mrb[0].mxu0
        %v8767 = vpop.f32.mrb[0].mxu0
        %v8768 = vadd.f32 %v1260, %v8767
        %v8769 = vpop.f32.mrb[0].mxu0
        %8770 = vmatprep.mubr.bf16.mxu0 0
        %8771 = vmatmul.mubr.bf16.gmra.mrb[0].mxu0 %v5099
        %v8772 = vpop.f32.mrb[0].mxu0
        %v8773 = vadd.f32 %v1260, %v8772
        %v8774 = vpop.f32.mrb[0].mxu0
        %v8775 = vpop.f32.mrb[0].mxu0
        %v8776 = vadd.f32 %v1260, %v8775
        %v8777 = vpop.f32.mrb[0].mxu0
        %8778 = vmatprep.mubr.bf16.mxu0 0
        %8779 = vmatmul.mubr.bf16.gmra.mrb[0].mxu0 %v5102
        %v8780 = vpop.f32.mrb[0].mxu0
        %v8781 = vadd.f32 %v1260, %v8780
        %v8782 = vpop.f32.mrb[0].mxu0
        %v8783 = vpop.f32.mrb[0].mxu0
        %v8784 = vadd.f32 %v1260, %v8783
        %v8785 = vpop.f32.mrb[0].mxu0
        %8786 = vmatprep.mubr.bf16.mxu0 0
        %8787 = vmatmul.mubr.bf16.gmra.mrb[0].mxu0 %v5105
        %v8788 = vpop.f32.mrb[0].mxu0
        %v8789 = vadd.f32 %v1260, %v8788
        %v8790 = vpop.f32.mrb[0].mxu0
        %v8791 = vpop.f32.mrb[0].mxu0
        %v8792 = vadd.f32 %v1260, %v8791
        %v8793 = vpop.f32.mrb[0].mxu0
        %8794 = vmatprep.mubr.bf16.mxu0 0
        %8795 = vmatmul.mubr.bf16.gmra.mrb[0].mxu0 %v5108
        %v8796 = vpop.f32.mrb[0].mxu0
        %v8797 = vadd.f32 %v1260, %v8796
        %v8798 = vpop.f32.mrb[0].mxu0
        %v8799 = vpop.f32.mrb[0].mxu0
        %v8800 = vadd.f32 %v1260, %v8799
        %v8801 = vpop.f32.mrb[0].mxu0
        %8802 = vmatprep.mubr.bf16.mxu0 0
        %8803 = vmatmul.mubr.bf16.gmra.mrb[0].mxu0 %v5111
        %v8804 = vpop.f32.mrb[0].mxu0
        %v8805 = vadd.f32 %v1260, %v8804
        %v8806 = vpop.f32.mrb[0].mxu0
        %v8807 = vpop.f32.mrb[0].mxu0
        %v8808 = vadd.f32 %v1260, %v8807
        %v8809 = vpop.f32.mrb[0].mxu0
        %8810 = vmatprep.mubr.bf16.mxu0 0
        %8811 = vmatmul.mubr.bf16.gmra.mrb[0].mxu0 %v5114
        %v8812 = vpop.f32.mrb[0].mxu0
        %v8813 = vadd.f32 %v1260, %v8812
        %v8814 = vpop.f32.mrb[0].mxu0
        %v8815 = vpop.f32.mrb[0].mxu0
        %v8816 = vadd.f32 %v1260, %v8815
        %v8817 = vpop.f32.mrb[0].mxu0
        %8818 = vmatprep.mubr.bf16.mxu0 0
        %8819 = vmatmul.mubr.bf16.gmra.mrb[0].mxu0 %v5117
        %v8820 = vpop.f32.mrb[0].mxu0
        %v8821 = vadd.f32 %v1260, %v8820
        %v8822 = vpop.f32.mrb[0].mxu0
        %v8823 = vpop.f32.mrb[0].mxu0
        %v8824 = vadd.f32 %v1260, %v8823
        %v8825 = vpop.f32.mrb[0].mxu0
        %8826 = vmatprep.mubr.bf16.mxu0 0
        %8827 = vmatmul.mubr.bf16.gmra.mrb[0].mxu0 %v5120
        %v8828 = vpop.f32.mrb[0].mxu0
        %v8829 = vadd.f32 %v1260, %v8828
        %v8830 = vpop.f32.mrb[0].mxu0
        %v8831 = vpop.f32.mrb[0].mxu0
        %v8832 = vadd.f32 %v1260, %v8831
        %v8833 = vpop.f32.mrb[0].mxu0
        %8834 = vmatprep.mubr.bf16.mxu0 0
        %8835 = vmatmul.mubr.bf16.gmra.mrb[0].mxu0 %v5123
        %v8836 = vpop.f32.mrb[0].mxu0
        %v8837 = vadd.f32 %v1260, %v8836
        %v8838 = vpop.f32.mrb[0].mxu0
        %v8839 = vpop.f32.mrb[0].mxu0
        %v8840 = vadd.f32 %v1260, %v8839
        %v8841 = vpop.f32.mrb[0].mxu0
        %8842 = vmatprep.mubr.bf16.mxu0 0
        %8843 = vmatmul.mubr.bf16.gmra.mrb[0].mxu0 %v5126
        %v8844 = vpop.f32.mrb[0].mxu0
        %v8845 = vadd.f32 %v1260, %v8844
        %v8846 = vpop.f32.mrb[0].mxu0
        %v8847 = vpop.f32.mrb[0].mxu0
        %v8848 = vadd.f32 %v1260, %v8847
        %v8849 = vpop.f32.mrb[0].mxu0
        %8850 = vmatprep.mubr.bf16.mxu0 0
        %8851 = vmatmul.mubr.bf16.gmra.mrb[0].mxu0 %v5129
        %v8852 = vpop.f32.mrb[0].mxu0
        %v8853 = vadd.f32 %v1260, %v8852
        %v8854 = vpop.f32.mrb[0].mxu0
        %v8855 = vpop.f32.mrb[0].mxu0
        %v8856 = vadd.f32 %v1260, %v8855
        %v8857 = vpop.f32.mrb[0].mxu0
        %8858 = vmatprep.mubr.bf16.mxu0 0
        %8859 = vmatmul.mubr.bf16.gmra.mrb[0].mxu0 %v5132
        %v8860 = vpop.f32.mrb[0].mxu0
        %v8861 = vadd.f32 %v1260, %v8860
        %v8862 = vpop.f32.mrb[0].mxu0
        %v8863 = vpop.f32.mrb[0].mxu0
        %v8864 = vadd.f32 %v1260, %v8863
        %v8865 = vpop.f32.mrb[0].mxu0
        %8866 = vmatprep.mubr.bf16.mxu0 0
        %8867 = vmatmul.mubr.bf16.gmra.mrb[0].mxu0 %v5135
        %v8868 = vpop.f32.mrb[0].mxu0
        %v8869 = vadd.f32 %v1260, %v8868
        %v8870 = vpop.f32.mrb[0].mxu0
        %v8871 = vpop.f32.mrb[0].mxu0
        %v8872 = vadd.f32 %v1260, %v8871
        %v8873 = vpop.f32.mrb[0].mxu0
        %8874 = vmatprep.mubr.bf16.mxu0 0
        %8875 = vmatmul.mubr.bf16.gmra.mrb[0].mxu0 %v5138
        %v8876 = vpop.f32.mrb[0].mxu0
        %v8877 = vadd.f32 %v1260, %v8876
        %v8878 = vpop.f32.mrb[0].mxu0
        %v8879 = vpop.f32.mrb[0].mxu0
        %v8880 = vadd.f32 %v1260, %v8879
        %v8881 = vpop.f32.mrb[0].mxu0
        %8882 = vmatprep.mubr.bf16.mxu0 0
        %8883 = vmatmul.mubr.bf16.gmra.mrb[0].mxu0 %v5141
        %v8884 = vpop.f32.mrb[0].mxu0
        %v8885 = vadd.f32 %v1260, %v8884
        %v8886 = vpop.f32.mrb[0].mxu0
        %v8887 = vpop.f32.mrb[0].mxu0
        %v8888 = vadd.f32 %v1260, %v8887
        %v8889 = vpop.f32.mrb[0].mxu0
        %8890 = vmatprep.mubr.bf16.mxu0 0
        %8891 = vmatmul.mubr.bf16.gmra.mrb[0].mxu0 %v5144
        %v8892 = vpop.f32.mrb[0].mxu0
        %v8893 = vadd.f32 %v1260, %v8892
        %v8894 = vpop.f32.mrb[0].mxu0
        %v8895 = vpop.f32.mrb[0].mxu0
        %v8896 = vadd.f32 %v1260, %v8895
        %v8897 = vpop.f32.mrb[0].mxu0
        %8898 = vmatprep.mubr.bf16.mxu0 0
        %8899 = vmatmul.mubr.bf16.gmra.mrb[0].mxu0 %v5147
        %v8900 = vpop.f32.mrb[0].mxu0
        %v8901 = vadd.f32 %v1260, %v8900
        %v8902 = vpop.f32.mrb[0].mxu0
        %v8903 = vpop.f32.mrb[0].mxu0
        %v8904 = vadd.f32 %v1260, %v8903
        %v8905 = vpop.f32.mrb[0].mxu0
        %8906 = vmatprep.mubr.bf16.mxu0 0
        %8907 = vmatmul.mubr.bf16.gmra.mrb[0].mxu0 %v5150
        %v8908 = vpop.f32.mrb[0].mxu0
        %v8909 = vadd.f32 %v1260, %v8908
        %v8910 = vpop.f32.mrb[0].mxu0
        %v8911 = vpop.f32.mrb[0].mxu0
        %v8912 = vadd.f32 %v1260, %v8911
        %v8913 = vpop.f32.mrb[0].mxu0
        %8914 = vmatprep.mubr.bf16.mxu0 0
        %8915 = vmatmul.mubr.bf16.gmra.mrb[0].mxu0 %v5153
        %v8916 = vpop.f32.mrb[0].mxu0
        %v8917 = vadd.f32 %v1260, %v8916
        %v8918 = vpop.f32.mrb[0].mxu0
        %v8919 = vpop.f32.mrb[0].mxu0
        %v8920 = vadd.f32 %v1260, %v8919
        %v8921 = vpop.f32.mrb[0].mxu0
        %8922 = vmatprep.mubr.bf16.mxu0 0
        %8923 = vmatmul.mubr.bf16.gmra.mrb[0].mxu0 %v5156
        %v8924 = vpop.f32.mrb[0].mxu0
        %v8925 = vadd.f32 %v1260, %v8924
        %v8926 = vpop.f32.mrb[0].mxu0
        %v8927 = vpop.f32.mrb[0].mxu0
        %v8928 = vadd.f32 %v1260, %v8927
        %v8929 = vpop.f32.mrb[0].mxu0
        %8930 = vmatprep.mubr.bf16.mxu0 0
        %8931 = vmatmul.mubr.bf16.gmra.mrb[0].mxu0 %v5159
        %v8932 = vpop.f32.mrb[0].mxu0
        %v8933 = vadd.f32 %v1260, %v8932
        %v8934 = vpop.f32.mrb[0].mxu0
        %v8935 = vpop.f32.mrb[0].mxu0
        %v8936 = vadd.f32 %v1260, %v8935
        %v8937 = vpop.f32.mrb[0].mxu0
        %8938 = vmatprep.mubr.bf16.mxu0 0
        %8939 = vmatmul.mubr.bf16.gmra.mrb[0].mxu0 %v5162
        %v8940 = vpop.f32.mrb[0].mxu0
        %v8941 = vadd.f32 %v1260, %v8940
        %v8942 = vpop.f32.mrb[0].mxu0
        %v8943 = vpop.f32.mrb[0].mxu0
        %v8944 = vadd.f32 %v1260, %v8943
        %v8945 = vpop.f32.mrb[0].mxu0
        %8946 = vmatprep.mubr.bf16.mxu0 0
        %8947 = vmatmul.mubr.bf16.gmra.mrb[0].mxu0 %v5165
        %v8948 = vpop.f32.mrb[0].mxu0
        %v8949 = vadd.f32 %v1260, %v8948
        %v8950 = vpop.f32.mrb[0].mxu0
        %v8951 = vpop.f32.mrb[0].mxu0
        %v8952 = vadd.f32 %v1260, %v8951
        %v8953 = vpop.f32.mrb[0].mxu0
        %8954 = vmatprep.mubr.bf16.mxu0 0
        %8955 = vmatmul.mubr.bf16.gmra.mrb[0].mxu0 %v5168
        %v8956 = vpop.f32.mrb[0].mxu0
        %v8957 = vadd.f32 %v1260, %v8956
        %v8958 = vpop.f32.mrb[0].mxu0
        %v8959 = vpop.f32.mrb[0].mxu0
        %v8960 = vadd.f32 %v1260, %v8959
        %v8961 = vpop.f32.mrb[0].mxu0
        %8962 = vmatprep.mubr.bf16.mxu0 0
        %8963 = vmatmul.mubr.bf16.gmra.mrb[0].mxu0 %v5171
        %v8964 = vpop.f32.mrb[0].mxu0
        %v8965 = vadd.f32 %v1260, %v8964
        %v8966 = vpop.f32.mrb[0].mxu0
        %v8967 = vpop.f32.mrb[0].mxu0
        %v8968 = vadd.f32 %v1260, %v8967
        %v8969 = vpop.f32.mrb[0].mxu0
        %8970 = vmatprep.mubr.bf16.mxu0 0
        %8971 = vmatmul.mubr.bf16.gmra.mrb[0].mxu0 %v5174
        %v8972 = vpop.f32.mrb[0].mxu0
        %v8973 = vadd.f32 %v1260, %v8972
        %v8974 = vpop.f32.mrb[0].mxu0
        %v8975 = vpop.f32.mrb[0].mxu0
        %v8976 = vadd.f32 %v1260, %v8975
        %v8977 = vpop.f32.mrb[0].mxu0
        %8978 = vmatprep.mubr.bf16.mxu0 0
        %8979 = vmatmul.mubr.bf16.gmra.mrb[0].mxu0 %v5177
        %v8980 = vpop.f32.mrb[0].mxu0
        %v8981 = vadd.f32 %v1260, %v8980
        %v8982 = vpop.f32.mrb[0].mxu0
        %v8983 = vpop.f32.mrb[0].mxu0
        %v8984 = vadd.f32 %v1260, %v8983
        %v8985 = vpop.f32.mrb[0].mxu0
        %8986 = vmatprep.mubr.bf16.mxu0 0
        %8987 = vmatmul.mubr.bf16.gmra.mrb[0].mxu0 %v5180
        %v8988 = vpop.f32.mrb[0].mxu0
        %v8989 = vadd.f32 %v1260, %v8988
        %v8990 = vpop.f32.mrb[0].mxu0
        %v8991 = vpop.f32.mrb[0].mxu0
        %v8992 = vadd.f32 %v1260, %v8991
        %v8993 = vpop.f32.mrb[0].mxu0
        %8994 = vmatprep.mubr.bf16.mxu0 0
        %8995 = vmatmul.mubr.bf16.gmra.mrb[0].mxu0 %v5183
        %v8996 = vpop.f32.mrb[0].mxu0
        %v8997 = vadd.f32 %v1260, %v8996
        %v8998 = vpop.f32.mrb[0].mxu0
        %v8999 = vpop.f32.mrb[0].mxu0
        %v9000 = vadd.f32 %v1260, %v8999
        %v9001 = vpop.f32.mrb[0].mxu0
        %9002 = vmatprep.mubr.bf16.mxu0 0
        %9003 = vmatmul.mubr.bf16.gmra.mrb[0].mxu0 %v5186
        %v9004 = vpop.f32.mrb[0].mxu0
        %v9005 = vadd.f32 %v1260, %v9004
        %v9006 = vpop.f32.mrb[0].mxu0
        %v9007 = vpop.f32.mrb[0].mxu0
        %v9008 = vadd.f32 %v1260, %v9007
        %v9009 = vpop.f32.mrb[0].mxu0
        %9010 = vmatprep.mubr.bf16.mxu0 0
        %9011 = vmatmul.mubr.bf16.gmra.mrb[0].mxu0 %v5189
        %v9012 = vpop.f32.mrb[0].mxu0
        %v9013 = vadd.f32 %v1260, %v9012
        %v9014 = vpop.f32.mrb[0].mxu0
        %v9015 = vpop.f32.mrb[0].mxu0
        %v9016 = vadd.f32 %v1260, %v9015
        %v9017 = vpop.f32.mrb[0].mxu0
        %9018 = vmatprep.mubr.bf16.mxu0 0
        %9019 = vmatmul.mubr.bf16.gmra.mrb[0].mxu0 %v5192
        %v9020 = vpop.f32.mrb[0].mxu0
        %v9021 = vadd.f32 %v1260, %v9020
        %v9022 = vpop.f32.mrb[0].mxu0
        %v9023 = vpop.f32.mrb[0].mxu0
        %v9024 = vadd.f32 %v1260, %v9023
        %v9025 = vpop.f32.mrb[0].mxu0
        %9026 = vmatprep.mubr.bf16.mxu0 0
        %9027 = vmatmul.mubr.bf16.gmra.mrb[0].mxu0 %v5195
        %v9028 = vpop.f32.mrb[0].mxu0
        %v9029 = vadd.f32 %v1260, %v9028
        %v9030 = vpop.f32.mrb[0].mxu0
        %v9031 = vpop.f32.mrb[0].mxu0
        %v9032 = vadd.f32 %v1260, %v9031
        %v9033 = vpop.f32.mrb[0].mxu0
        %9034 = vmatprep.mubr.bf16.mxu0 0
        %9035 = vmatmul.mubr.bf16.gmra.mrb[0].mxu0 %v5198
        %v9036 = vpop.f32.mrb[0].mxu0
        %v9037 = vadd.f32 %v1260, %v9036
        %v9038 = vpop.f32.mrb[0].mxu0
        %v9039 = vpop.f32.mrb[0].mxu0
        %v9040 = vadd.f32 %v1260, %v9039
        %v9041 = vpop.f32.mrb[0].mxu0
        %9042 = vmatprep.mubr.bf16.mxu0 0
        %9043 = vmatmul.mubr.bf16.gmra.mrb[0].mxu0 %v5201
        %v9044 = vpop.f32.mrb[0].mxu0
        %v9045 = vadd.f32 %v1260, %v9044
        %v9046 = vpop.f32.mrb[0].mxu0
        %v9047 = vpop.f32.mrb[0].mxu0
        %v9048 = vadd.f32 %v1260, %v9047
        %v9049 = vpop.f32.mrb[0].mxu0
        %9050 = vmatprep.mubr.bf16.mxu0 0
        %9051 = vmatmul.mubr.bf16.gmra.mrb[0].mxu0 %v5204
        %v9052 = vpop.f32.mrb[0].mxu0
        %v9053 = vadd.f32 %v1260, %v9052
        %v9054 = vpop.f32.mrb[0].mxu0
        %v9055 = vpop.f32.mrb[0].mxu0
        %v9056 = vadd.f32 %v1260, %v9055
        %v9057 = vpop.f32.mrb[0].mxu0
        %9058 = vmatprep.mubr.bf16.mxu0 0
        %9059 = vmatmul.mubr.bf16.gmra.mrb[0].mxu0 %v5207
        %v9060 = vpop.f32.mrb[0].mxu0
        %v9061 = vadd.f32 %v1260, %v9060
        %v9062 = vpop.f32.mrb[0].mxu0
        %v9063 = vpop.f32.mrb[0].mxu0
        %v9064 = vadd.f32 %v1260, %v9063
        %v9065 = vpop.f32.mrb[0].mxu0
        %9066 = vmatprep.mubr.bf16.mxu0 0
        %9067 = vmatmul.mubr.bf16.gmra.mrb[0].mxu0 %v5210
        %v9068 = vpop.f32.mrb[0].mxu0
        %v9069 = vadd.f32 %v1260, %v9068
        %v9070 = vpop.f32.mrb[0].mxu0
        %v9071 = vpop.f32.mrb[0].mxu0
        %v9072 = vadd.f32 %v1260, %v9071
        %v9073 = vpop.f32.mrb[0].mxu0
        %9074 = vmatprep.mubr.bf16.mxu0 0
        %9075 = vmatmul.mubr.bf16.gmra.mrb[0].mxu0 %v5213
        %v9076 = vpop.f32.mrb[0].mxu0
        %v9077 = vadd.f32 %v1260, %v9076
        %v9078 = vpop.f32.mrb[0].mxu0
        %v9079 = vpop.f32.mrb[0].mxu0
        %v9080 = vadd.f32 %v1260, %v9079
        %v9081 = vpop.f32.mrb[0].mxu0
        %9082 = vmatprep.mubr.bf16.mxu0 0
        %9083 = vmatmul.mubr.bf16.gmra.mrb[0].mxu0 %v5216
        %v9084 = vpop.f32.mrb[0].mxu0
        %v9085 = vadd.f32 %v1260, %v9084
        %v9086 = vpop.f32.mrb[0].mxu0
        %v9087 = vpop.f32.mrb[0].mxu0
        %v9088 = vadd.f32 %v1260, %v9087
        %v9089 = vpop.f32.mrb[0].mxu0
        %9090 = vmatprep.mubr.bf16.mxu0 0
        %9091 = vmatmul.mubr.bf16.gmra.mrb[0].mxu0 %v5219
        %v9092 = vpop.f32.mrb[0].mxu0
        %v9093 = vadd.f32 %v1260, %v9092
        %v9094 = vpop.f32.mrb[0].mxu0
        %v9095 = vpop.f32.mrb[0].mxu0
        %v9096 = vadd.f32 %v1260, %v9095
        %v9097 = vpop.f32.mrb[0].mxu0
        %9098 = vmatprep.mubr.bf16.mxu0 0
        %9099 = vmatmul.mubr.bf16.gmra.mrb[0].mxu0 %v5222
        %v9100 = vpop.f32.mrb[0].mxu0
        %v9101 = vadd.f32 %v1260, %v9100
        %v9102 = vpop.f32.mrb[0].mxu0
        %v9103 = vpop.f32.mrb[0].mxu0
        %v9104 = vadd.f32 %v1260, %v9103
        %v9105 = vpop.f32.mrb[0].mxu0
        %9106 = vmatprep.mubr.bf16.mxu0 0
        %9107 = vmatmul.mubr.bf16.gmra.mrb[0].mxu0 %v5225
        %v9108 = vpop.f32.mrb[0].mxu0
        %v9109 = vadd.f32 %v1260, %v9108
        %v9110 = vpop.f32.mrb[0].mxu0
        %v9111 = vpop.f32.mrb[0].mxu0
        %v9112 = vadd.f32 %v1260, %v9111
        %v9113 = vpop.f32.mrb[0].mxu0
        %9114 = vmatprep.mubr.bf16.mxu0 0
        %9115 = vmatmul.mubr.bf16.gmra.mrb[0].mxu0 %v5228
        %v9116 = vpop.f32.mrb[0].mxu0
        %v9117 = vadd.f32 %v1260, %v9116
        %v9118 = vpop.f32.mrb[0].mxu0
        %v9119 = vpop.f32.mrb[0].mxu0
        %v9120 = vadd.f32 %v1260, %v9119
        %v9121 = vpop.f32.mrb[0].mxu0
        %9122 = vmatprep.mubr.bf16.mxu0 0
        %9123 = vmatmul.mubr.bf16.gmra.mrb[0].mxu0 %v5231
        %v9124 = vpop.f32.mrb[0].mxu0
        %v9125 = vadd.f32 %v1260, %v9124
        %v9126 = vpop.f32.mrb[0].mxu0
        %v9127 = vpop.f32.mrb[0].mxu0
        %v9128 = vadd.f32 %v1260, %v9127
        %v9129 = vpop.f32.mrb[0].mxu0
        %9130 = vmatprep.mubr.bf16.mxu0 0
        %9131 = vmatmul.mubr.bf16.gmra.mrb[0].mxu0 %v5234
        %v9132 = vpop.f32.mrb[0].mxu0
        %v9133 = vadd.f32 %v1260, %v9132
        %v9134 = vpop.f32.mrb[0].mxu0
        %v9135 = vpop.f32.mrb[0].mxu0
        %v9136 = vadd.f32 %v1260, %v9135
        %v9137 = vpop.f32.mrb[0].mxu0
        %9138 = vmatprep.mubr.bf16.mxu0 0
        %9139 = vmatmul.mubr.bf16.gmra.mrb[0].mxu0 %v5237
        %v9140 = vpop.f32.mrb[0].mxu0
        %v9141 = vadd.f32 %v1260, %v9140
        %v9142 = vpop.f32.mrb[0].mxu0
        %v9143 = vpop.f32.mrb[0].mxu0
        %v9144 = vadd.f32 %v1260, %v9143
        %v9145 = vpop.f32.mrb[0].mxu0
        %9146 = vmatprep.mubr.bf16.mxu0 0
        %9147 = vmatmul.mubr.bf16.gmra.mrb[0].mxu0 %v5240
        %v9148 = vpop.f32.mrb[0].mxu0
        %v9149 = vadd.f32 %v1260, %v9148
        %v9150 = vpop.f32.mrb[0].mxu0
        %v9151 = vpop.f32.mrb[0].mxu0
        %v9152 = vadd.f32 %v1260, %v9151
        %v9153 = vpop.f32.mrb[0].mxu0
        %9154 = vmatprep.mubr.bf16.mxu0 0
        %9155 = vmatmul.mubr.bf16.gmra.mrb[0].mxu0 %v5243
        %v9156 = vpop.f32.mrb[0].mxu0
        %v9157 = vadd.f32 %v1260, %v9156
        %v9158 = vpop.f32.mrb[0].mxu0
        %v9159 = vpop.f32.mrb[0].mxu0
        %v9160 = vadd.f32 %v1260, %v9159
        %v9161 = vpop.f32.mrb[0].mxu0
        %9162 = vmatprep.mubr.bf16.mxu0 0
        %9163 = vmatmul.mubr.bf16.gmra.mrb[0].mxu0 %v5246
        %v9164 = vpop.f32.mrb[0].mxu0
        %v9165 = vadd.f32 %v1260, %v9164
        %v9166 = vpop.f32.mrb[0].mxu0
        %v9167 = vpop.f32.mrb[0].mxu0
        %v9168 = vadd.f32 %v1260, %v9167
        %v9169 = vpop.f32.mrb[0].mxu0
        %9170 = vmatprep.mubr.bf16.mxu0 0
        %9171 = vmatmul.mubr.bf16.gmra.mrb[0].mxu0 %v5249
        %v9172 = vpop.f32.mrb[0].mxu0
        %v9173 = vadd.f32 %v1260, %v9172
        %v9174 = vpop.f32.mrb[0].mxu0
        %v9175 = vpop.f32.mrb[0].mxu0
        %v9176 = vadd.f32 %v1260, %v9175
        %v9177 = vpop.f32.mrb[0].mxu0
        %9178 = vmatprep.mubr.bf16.mxu0 0
        %9179 = vmatmul.mubr.bf16.gmra.mrb[0].mxu0 %v5252
        %v9180 = vpop.f32.mrb[0].mxu0
        %v9181 = vadd.f32 %v1260, %v9180
        %v9182 = vpop.f32.mrb[0].mxu0
        %v9183 = vpop.f32.mrb[0].mxu0
        %v9184 = vadd.f32 %v1260, %v9183
        %v9185 = vpop.f32.mrb[0].mxu0
        %9186 = vmatprep.mubr.bf16.mxu0 0
        %9187 = vmatmul.mubr.bf16.gmra.mrb[0].mxu0 %v5255
        %v9188 = vpop.f32.mrb[0].mxu0
        %v9189 = vadd.f32 %v1260, %v9188
        %v9190 = vpop.f32.mrb[0].mxu0
        %v9191 = vpop.f32.mrb[0].mxu0
        %v9192 = vadd.f32 %v1260, %v9191
        %v9193 = vpop.f32.mrb[0].mxu0
        %9194 = vmatprep.mubr.bf16.mxu0 0
        %9195 = vmatmul.mubr.bf16.gmra.mrb[0].mxu0 %v5258
        %v9196 = vpop.f32.mrb[0].mxu0
        %v9197 = vadd.f32 %v1260, %v9196
        %v9198 = vpop.f32.mrb[0].mxu0
        %v9199 = vpop.f32.mrb[0].mxu0
        %v9200 = vadd.f32 %v1260, %v9199
        %v9201 = vpop.f32.mrb[0].mxu0
        %9202 = vmatprep.mubr.bf16.mxu0 0
        %9203 = vmatmul.mubr.bf16.gmra.mrb[0].mxu0 %v5261
        %v9204 = vpop.f32.mrb[0].mxu0
        %v9205 = vadd.f32 %v1260, %v9204
        %v9206 = vpop.f32.mrb[0].mxu0
        %v9207 = vpop.f32.mrb[0].mxu0
        %v9208 = vadd.f32 %v1260, %v9207
        %v9209 = vpop.f32.mrb[0].mxu0
        %9210 = vmatprep.mubr.bf16.mxu0 0
        %9211 = vmatmul.mubr.bf16.gmra.mrb[0].mxu0 %v5264
        %v9212 = vpop.f32.mrb[0].mxu0
        %v9213 = vadd.f32 %v1260, %v9212
        %v9214 = vpop.f32.mrb[0].mxu0
        %v9215 = vpop.f32.mrb[0].mxu0
        %v9216 = vadd.f32 %v1260, %v9215
        %v9217 = vpop.f32.mrb[0].mxu0
        %9218 = vmatprep.mubr.bf16.mxu0 0
        %9219 = vmatmul.mubr.bf16.gmra.mrb[0].mxu0 %v5267
        %v9220 = vpop.f32.mrb[0].mxu0
        %v9221 = vadd.f32 %v1260, %v9220
        %v9222 = vpop.f32.mrb[0].mxu0
        %v9223 = vpop.f32.mrb[0].mxu0
        %v9224 = vadd.f32 %v1260, %v9223
        %v9225 = vpop.f32.mrb[0].mxu0
        %9226 = vmatprep.mubr.bf16.mxu0 0
        %9227 = vmatmul.mubr.bf16.gmra.mrb[0].mxu0 %v5270
        %v9228 = vpop.f32.mrb[0].mxu0
        %v9229 = vadd.f32 %v1260, %v9228
        %v9230 = vpop.f32.mrb[0].mxu0
        %v9231 = vpop.f32.mrb[0].mxu0
        %v9232 = vadd.f32 %v1260, %v9231
        %v9233 = vpop.f32.mrb[0].mxu0
        %9234 = vmatprep.mubr.bf16.mxu0 0
        %9235 = vmatmul.mubr.bf16.gmra.mrb[0].mxu0 %v5273
        %v9236 = vpop.f32.mrb[0].mxu0
        %v9237 = vadd.f32 %v1260, %v9236
        %v9238 = vpop.f32.mrb[0].mxu0
        %v9239 = vpop.f32.mrb[0].mxu0
        %v9240 = vadd.f32 %v1260, %v9239
        %v9241 = vpop.f32.mrb[0].mxu0
        %9242 = vmatprep.mubr.bf16.mxu0 0
        %9243 = vmatmul.mubr.bf16.gmra.mrb[0].mxu0 %v5276
        %v9244 = vpop.f32.mrb[0].mxu0
        %v9245 = vadd.f32 %v1260, %v9244
        %v9246 = vpop.f32.mrb[0].mxu0
        %v9247 = vpop.f32.mrb[0].mxu0
        %v9248 = vadd.f32 %v1260, %v9247
        %v9249 = vpop.f32.mrb[0].mxu0
        %9250 = vmatprep.mubr.bf16.mxu0 0
        %9251 = vmatmul.mubr.bf16.gmra.mrb[0].mxu0 %v5279
        %v9252 = vpop.f32.mrb[0].mxu0
        %v9253 = vadd.f32 %v1260, %v9252
        %v9254 = vpop.f32.mrb[0].mxu0
        %v9255 = vpop.f32.mrb[0].mxu0
        %v9256 = vadd.f32 %v1260, %v9255
        %v9257 = vpop.f32.mrb[0].mxu0
        %9258 = vmatprep.mubr.bf16.mxu0 0
        %9259 = vmatmul.mubr.bf16.gmra.mrb[0].mxu0 %v5282
        %v9260 = vpop.f32.mrb[0].mxu0
        %v9261 = vadd.f32 %v1260, %v9260
        %v9262 = vpop.f32.mrb[0].mxu0
        %v9263 = vpop.f32.mrb[0].mxu0
        %v9264 = vadd.f32 %v1260, %v9263
        %v9265 = vpop.f32.mrb[0].mxu0
        %9266 = vmatprep.mubr.bf16.mxu0 0
        %9267 = vmatmul.mubr.bf16.gmra.mrb[0].mxu0 %v5285
        %v9268 = vpop.f32.mrb[0].mxu0
        %v9269 = vadd.f32 %v1260, %v9268
        %v9270 = vpop.f32.mrb[0].mxu0
        %v9271 = vpop.f32.mrb[0].mxu0
        %v9272 = vadd.f32 %v1260, %v9271
        %v9273 = vpop.f32.mrb[0].mxu0
        %9274 = vmatprep.mubr.bf16.mxu0 0
        %9275 = vmatmul.mubr.bf16.gmra.mrb[0].mxu0 %v5288
        %v9276 = vpop.f32.mrb[0].mxu0
        %v9277 = vadd.f32 %v1260, %v9276
        %v9278 = vpop.f32.mrb[0].mxu0
        %v9279 = vpop.f32.mrb[0].mxu0
        %v9280 = vadd.f32 %v1260, %v9279
        %v9281 = vpop.f32.mrb[0].mxu0
        %9282 = vmatprep.mubr.bf16.mxu0 0
        %9283 = vmatmul.mubr.bf16.gmra.mrb[0].mxu0 %v5291
        %v9284 = vpop.f32.mrb[0].mxu0
        %v9285 = vadd.f32 %v1260, %v9284
        %v9286 = vpop.f32.mrb[0].mxu0
        %v9287 = vpop.f32.mrb[0].mxu0
        %v9288 = vadd.f32 %v1260, %v9287
        %v9289 = vpop.f32.mrb[0].mxu0
        %9290 = vmatprep.mubr.bf16.mxu0 0
        %9291 = vmatmul.mubr.bf16.gmra.mrb[0].mxu0 %v5294
        %v9292 = vpop.f32.mrb[0].mxu0
        %v9293 = vadd.f32 %v1260, %v9292
        %v9294 = vpop.f32.mrb[0].mxu0
        %v9295 = vpop.f32.mrb[0].mxu0
        %v9296 = vadd.f32 %v1260, %v9295
        %v9297 = vpop.f32.mrb[0].mxu0
        %9298 = vmatprep.mubr.bf16.mxu0 0
        %9299 = vmatmul.mubr.bf16.gmra.mrb[0].mxu0 %v5297
        %v9300 = vpop.f32.mrb[0].mxu0
        %v9301 = vadd.f32 %v1260, %v9300
        %v9302 = vpop.f32.mrb[0].mxu0
        %v9303 = vpop.f32.mrb[0].mxu0
        %v9304 = vadd.f32 %v1260, %v9303
        %v9305 = vpop.f32.mrb[0].mxu0
        %9306 = vmatprep.mubr.bf16.mxu0 0
        %9307 = vmatmul.mubr.bf16.gmra.mrb[0].mxu0 %v5300
        %v9308 = vpop.f32.mrb[0].mxu0
        %v9309 = vadd.f32 %v1260, %v9308
        %v9310 = vpop.f32.mrb[0].mxu0
        %v9311 = vpop.f32.mrb[0].mxu0
        %v9312 = vadd.f32 %v1260, %v9311
        %v9313 = vpop.f32.mrb[0].mxu0
        %9314 = vmatprep.mubr.bf16.mxu0 0
        %9315 = vmatmul.mubr.bf16.gmra.mrb[0].mxu0 %v5303
        %v9316 = vpop.f32.mrb[0].mxu0
        %v9317 = vadd.f32 %v1260, %v9316
        %v9318 = vpop.f32.mrb[0].mxu0
        %v9319 = vpop.f32.mrb[0].mxu0
        %v9320 = vadd.f32 %v1260, %v9319
        %v9321 = vpop.f32.mrb[0].mxu0
        %9322 = vmatprep.mubr.bf16.mxu0 0
        %9323 = vmatmul.mubr.bf16.gmra.mrb[0].mxu0 %v5306
        %v9324 = vpop.f32.mrb[0].mxu0
        %v9325 = vadd.f32 %v1260, %v9324
        %v9326 = vpop.f32.mrb[0].mxu0
        %v9327 = vpop.f32.mrb[0].mxu0
        %v9328 = vadd.f32 %v1260, %v9327
        %v9329 = vpop.f32.mrb[0].mxu0
        %9330 = vmatprep.mubr.bf16.mxu0 0
        %9331 = vmatmul.mubr.bf16.gmra.mrb[0].mxu0 %v5309
        %v9332 = vpop.f32.mrb[0].mxu0
        %v9333 = vadd.f32 %v1260, %v9332
        %v9334 = vpop.f32.mrb[0].mxu0
        %v9335 = vpop.f32.mrb[0].mxu0
        %v9336 = vadd.f32 %v1260, %v9335
        %v9337 = vpop.f32.mrb[0].mxu0
        %9338 = vmatprep.mubr.bf16.mxu0 0
        %9339 = vmatmul.mubr.bf16.gmra.mrb[0].mxu0 %v5312
        %v9340 = vpop.f32.mrb[0].mxu0
        %v9341 = vadd.f32 %v1260, %v9340
        %v9342 = vpop.f32.mrb[0].mxu0
        %v9343 = vpop.f32.mrb[0].mxu0
        %v9344 = vadd.f32 %v1260, %v9343
        %v9345 = vpop.f32.mrb[0].mxu0
        %9346 = vmatprep.mubr.bf16.mxu0 0
        %9347 = vmatmul.mubr.bf16.gmra.mrb[0].mxu0 %v5315
        %v9348 = vpop.f32.mrb[0].mxu0
        %v9349 = vadd.f32 %v1260, %v9348
        %v9350 = vpop.f32.mrb[0].mxu0
        %v9351 = vpop.f32.mrb[0].mxu0
        %v9352 = vadd.f32 %v1260, %v9351
        %v9353 = vpop.f32.mrb[0].mxu0
        %9354 = vmatprep.mubr.bf16.mxu0 0
        %9355 = vmatmul.mubr.bf16.gmra.mrb[0].mxu0 %v5318
        %v9356 = vpop.f32.mrb[0].mxu0
        %v9357 = vadd.f32 %v1260, %v9356
        %v9358 = vpop.f32.mrb[0].mxu0
        %v9359 = vpop.f32.mrb[0].mxu0
        %v9360 = vadd.f32 %v1260, %v9359
        %v9361 = vpop.f32.mrb[0].mxu0
        %9362 = vmatprep.mubr.bf16.mxu0 0
        %9363 = vmatmul.mubr.bf16.gmra.mrb[0].mxu0 %v5321
        %v9364 = vpop.f32.mrb[0].mxu0
        %v9365 = vadd.f32 %v1260, %v9364
        %v9366 = vpop.f32.mrb[0].mxu0
        %v9367 = vpop.f32.mrb[0].mxu0
        %v9368 = vadd.f32 %v1260, %v9367
        %v9369 = vpop.f32.mrb[0].mxu0
        %9370 = vmatprep.mubr.bf16.mxu0 0
        %9371 = vmatmul.mubr.bf16.gmra.mrb[0].mxu0 %v5324
        %v9372 = vpop.f32.mrb[0].mxu0
        %v9373 = vadd.f32 %v1260, %v9372
        %v9374 = vpop.f32.mrb[0].mxu0
        %v9375 = vpop.f32.mrb[0].mxu0
        %v9376 = vadd.f32 %v1260, %v9375
        %v9377 = vpop.f32.mrb[0].mxu0
        %9378 = vmatprep.mubr.bf16.mxu0 0
        %9379 = vmatmul.mubr.bf16.gmra.mrb[0].mxu0 %v5327
        %v9380 = vpop.f32.mrb[0].mxu0
        %v9381 = vadd.f32 %v1260, %v9380
        %v9382 = vpop.f32.mrb[0].mxu0
        %v9383 = vpop.f32.mrb[0].mxu0
        %v9384 = vadd.f32 %v1260, %v9383
        %v9385 = vpop.f32.mrb[0].mxu0
        %9386 = vmatprep.mubr.bf16.mxu0 0
        %9387 = vmatmul.mubr.bf16.gmra.mrb[0].mxu0 %v5330
        %v9388 = vpop.f32.mrb[0].mxu0
        %v9389 = vadd.f32 %v1260, %v9388
        %v9390 = vpop.f32.mrb[0].mxu0
        %v9391 = vpop.f32.mrb[0].mxu0
        %v9392 = vadd.f32 %v1260, %v9391
        %v9393 = vpop.f32.mrb[0].mxu0
        %9394 = vmatprep.mubr.bf16.mxu0 0
        %9395 = vmatmul.mubr.bf16.gmra.mrb[0].mxu0 %v5333
        %v9396 = vpop.f32.mrb[0].mxu0
        %v9397 = vadd.f32 %v1260, %v9396
        %v9398 = vpop.f32.mrb[0].mxu0
        %v9399 = vpop.f32.mrb[0].mxu0
        %v9400 = vadd.f32 %v1260, %v9399
        %v9401 = vpop.f32.mrb[0].mxu0
        %9402 = vmatprep.mubr.bf16.mxu0 0
        %9403 = vmatmul.mubr.bf16.gmra.mrb[0].mxu0 %v5336
        %v9404 = vpop.f32.mrb[0].mxu0
        %v9405 = vadd.f32 %v1260, %v9404
        %v9406 = vpop.f32.mrb[0].mxu0
        %v9407 = vpop.f32.mrb[0].mxu0
        %v9408 = vadd.f32 %v1260, %v9407
        %v9409 = vpop.f32.mrb[0].mxu0
        %9410 = vmatprep.mubr.bf16.mxu0 0
        %9411 = vmatmul.mubr.bf16.gmra.mrb[0].mxu0 %v5339
        %v9412 = vpop.f32.mrb[0].mxu0
        %v9413 = vadd.f32 %v1260, %v9412
        %v9414 = vpop.f32.mrb[0].mxu0
        %v9415 = vpop.f32.mrb[0].mxu0
        %v9416 = vadd.f32 %v1260, %v9415
        %v9417 = vpop.f32.mrb[0].mxu0
        %9418 = vmatprep.mubr.bf16.mxu0 0
        %9419 = vmatmul.mubr.bf16.gmra.mrb[0].mxu0 %v5342
        %v9420 = vpop.f32.mrb[0].mxu0
        %v9421 = vadd.f32 %v1260, %v9420
        %v9422 = vpop.f32.mrb[0].mxu0
        %v9423 = vpop.f32.mrb[0].mxu0
        %v9424 = vadd.f32 %v1260, %v9423
        %v9425 = vpop.f32.mrb[0].mxu0
        %9426 = vmatprep.mubr.bf16.mxu0 0
        %9427 = vmatmul.mubr.bf16.gmra.mrb[0].mxu0 %v5345
        %v9428 = vpop.f32.mrb[0].mxu0
        %v9429 = vadd.f32 %v1260, %v9428
        %v9430 = vpop.f32.mrb[0].mxu0
        %v9431 = vpop.f32.mrb[0].mxu0
        %v9432 = vadd.f32 %v1260, %v9431
        %v9433 = vpop.f32.mrb[0].mxu0
        %9434 = vmatprep.mubr.bf16.mxu0 0
        %9435 = vmatmul.mubr.bf16.gmra.mrb[0].mxu0 %v5348
        %v9436 = vpop.f32.mrb[0].mxu0
        %v9437 = vadd.f32 %v1260, %v9436
        %v9438 = vpop.f32.mrb[0].mxu0
        %v9439 = vpop.f32.mrb[0].mxu0
        %v9440 = vadd.f32 %v1260, %v9439
        %v9441 = vpop.f32.mrb[0].mxu0
        %9442 = vmatprep.mubr.bf16.mxu0 0
        %9443 = vmatmul.mubr.bf16.gmra.mrb[0].mxu0 %v5351
        %v9444 = vpop.f32.mrb[0].mxu0
        %v9445 = vadd.f32 %v1260, %v9444
        %v9446 = vpop.f32.mrb[0].mxu0
        %v9447 = vpop.f32.mrb[0].mxu0
        %v9448 = vadd.f32 %v1260, %v9447
        %v9449 = vpop.f32.mrb[0].mxu0
        %9450 = vmatprep.mubr.bf16.mxu0 0
        %9451 = vmatmul.mubr.bf16.gmra.mrb[0].mxu0 %v5354
        %v9452 = vpop.f32.mrb[0].mxu0
        %v9453 = vadd.f32 %v1260, %v9452
        %v9454 = vpop.f32.mrb[0].mxu0
        %v9455 = vpop.f32.mrb[0].mxu0
        %v9456 = vadd.f32 %v1260, %v9455
        %v9457 = vpop.f32.mrb[0].mxu0
        %9458 = vmatprep.mubr.bf16.mxu0 0
        %9459 = vmatmul.mubr.bf16.gmra.mrb[0].mxu0 %v5357
        %v9460 = vpop.f32.mrb[0].mxu0
        %v9461 = vadd.f32 %v1260, %v9460
        %v9462 = vpop.f32.mrb[0].mxu0
        %v9463 = vpop.f32.mrb[0].mxu0
        %v9464 = vadd.f32 %v1260, %v9463
        %v9465 = vpop.f32.mrb[0].mxu0
        %9466 = vmatprep.mubr.bf16.mxu0 0
        %9467 = vmatmul.mubr.bf16.gmra.mrb[0].mxu0 %v5360
        %v9468 = vpop.f32.mrb[0].mxu0
        %v9469 = vadd.f32 %v1260, %v9468
        %v9470 = vpop.f32.mrb[0].mxu0
        %v9471 = vpop.f32.mrb[0].mxu0
        %v9472 = vadd.f32 %v1260, %v9471
        %v9473 = vpop.f32.mrb[0].mxu0
        %9474 = vmatprep.mubr.bf16.mxu0 0
        %9475 = vmatmul.mubr.bf16.gmra.mrb[0].mxu0 %v5363
        %v9476 = vpop.f32.mrb[0].mxu0
        %v9477 = vadd.f32 %v1260, %v9476
        %v9478 = vpop.f32.mrb[0].mxu0
        %v9479 = vpop.f32.mrb[0].mxu0
        %v9480 = vadd.f32 %v1260, %v9479
        %v9481 = vpop.f32.mrb[0].mxu0
        %9482 = vmatprep.mubr.bf16.mxu0 0
        %9483 = vmatmul.mubr.bf16.gmra.mrb[0].mxu0 %v5366
        %v9484 = vpop.f32.mrb[0].mxu0
        %v9485 = vadd.f32 %v1260, %v9484
        %v9486 = vpop.f32.mrb[0].mxu0
        %v9487 = vpop.f32.mrb[0].mxu0
        %v9488 = vadd.f32 %v1260, %v9487
        %v9489 = vpop.f32.mrb[0].mxu0
        %9490 = vmatprep.mubr.bf16.mxu0 0
        %9491 = vmatmul.mubr.bf16.gmra.mrb[0].mxu0 %v5369
        %v9492 = vpop.f32.mrb[0].mxu0
        %v9493 = vadd.f32 %v1260, %v9492
        %v9494 = vpop.f32.mrb[0].mxu0
        %v9495 = vpop.f32.mrb[0].mxu0
        %v9496 = vadd.f32 %v1260, %v9495
        %v9497 = vpop.f32.mrb[0].mxu0
        %9498 = vmatprep.mubr.bf16.mxu0 0
        %9499 = vmatmul.mubr.bf16.gmra.mrb[0].mxu0 %v5372
        %v9500 = vpop.f32.mrb[0].mxu0
        %v9501 = vadd.f32 %v1260, %v9500
        %v9502 = vpop.f32.mrb[0].mxu0
        %v9503 = vpop.f32.mrb[0].mxu0
        %v9504 = vadd.f32 %v1260, %v9503
        %v9505 = vpop.f32.mrb[0].mxu0
        %9506 = vdwg.mxu0
        %v9507 = vmax.f32 %v5413, 0.0
        %v9508 = vmax.f32 %v5416, 0.0
        %v9509 = vmax.f32 %v5421, 0.0
        %v9510 = vmax.f32 %v5424, 0.0
        %v9511 = vmax.f32 %v5429, 0.0
        %v9512 = vmax.f32 %v5432, 0.0
        %v9513 = vmax.f32 %v5437, 0.0
        %v9514 = vmax.f32 %v5440, 0.0
        %v9515 = vmax.f32 %v5445, 0.0
        %v9516 = vmax.f32 %v5448, 0.0
        %v9517 = vmax.f32 %v5453, 0.0
        %v9518 = vmax.f32 %v5456, 0.0
        %v9519 = vmax.f32 %v5461, 0.0
        %v9520 = vmax.f32 %v5464, 0.0
        %v9521 = vmax.f32 %v5469, 0.0
        %v9522 = vmax.f32 %v5472, 0.0
        %v9523 = vmax.f32 %v5477, 0.0
        %v9524 = vmax.f32 %v5480, 0.0
        %v9525 = vmax.f32 %v5485, 0.0
        %v9526 = vmax.f32 %v5488, 0.0
        %v9527 = vmax.f32 %v5493, 0.0
        %v9528 = vmax.f32 %v5496, 0.0
        %v9529 = vmax.f32 %v5501, 0.0
        %v9530 = vmax.f32 %v5504, 0.0
        %v9531 = vmax.f32 %v5509, 0.0
        %v9532 = vmax.f32 %v5512, 0.0
        %v9533 = vmax.f32 %v5517, 0.0
        %v9534 = vmax.f32 %v5520, 0.0
        %v9535 = vmax.f32 %v5525, 0.0
        %v9536 = vmax.f32 %v5528, 0.0
        %v9537 = vmax.f32 %v5533, 0.0
        %v9538 = vmax.f32 %v5536, 0.0
        %v9539 = vmax.f32 %v5541, 0.0
        %v9540 = vmax.f32 %v5544, 0.0
        %v9541 = vmax.f32 %v5549, 0.0
        %v9542 = vmax.f32 %v5552, 0.0
        %v9543 = vmax.f32 %v5557, 0.0
        %v9544 = vmax.f32 %v5560, 0.0
        %v9545 = vmax.f32 %v5565, 0.0
        %v9546 = vmax.f32 %v5568, 0.0
        %v9547 = vmax.f32 %v5573, 0.0
        %v9548 = vmax.f32 %v5576, 0.0
        %v9549 = vmax.f32 %v5581, 0.0
        %v9550 = vmax.f32 %v5584, 0.0
        %v9551 = vmax.f32 %v5589, 0.0
        %v9552 = vmax.f32 %v5592, 0.0
        %v9553 = vmax.f32 %v5597, 0.0
        %v9554 = vmax.f32 %v5600, 0.0
        %v9555 = vmax.f32 %v5605, 0.0
        %v9556 = vmax.f32 %v5608, 0.0
        %v9557 = vmax.f32 %v5613, 0.0
        %v9558 = vmax.f32 %v5616, 0.0
        %v9559 = vmax.f32 %v5621, 0.0
        %v9560 = vmax.f32 %v5624, 0.0
        %v9561 = vmax.f32 %v5629, 0.0
        %v9562 = vmax.f32 %v5632, 0.0
        %v9563 = vmax.f32 %v5637, 0.0
        %v9564 = vmax.f32 %v5640, 0.0
        %v9565 = vmax.f32 %v5645, 0.0
        %v9566 = vmax.f32 %v5648, 0.0
        %v9567 = vmax.f32 %v5653, 0.0
        %v9568 = vmax.f32 %v5656, 0.0
        %v9569 = vmax.f32 %v5661, 0.0
        %v9570 = vmax.f32 %v5664, 0.0
        %v9571 = vmax.f32 %v5669, 0.0
        %v9572 = vmax.f32 %v5672, 0.0
        %v9573 = vmax.f32 %v5677, 0.0
        %v9574 = vmax.f32 %v5680, 0.0
        %v9575 = vmax.f32 %v5685, 0.0
        %v9576 = vmax.f32 %v5688, 0.0
        %v9577 = vmax.f32 %v5693, 0.0
        %v9578 = vmax.f32 %v5696, 0.0
        %v9579 = vmax.f32 %v5701, 0.0
        %v9580 = vmax.f32 %v5704, 0.0
        %v9581 = vmax.f32 %v5709, 0.0
        %v9582 = vmax.f32 %v5712, 0.0
        %v9583 = vmax.f32 %v5717, 0.0
        %v9584 = vmax.f32 %v5720, 0.0
        %v9585 = vmax.f32 %v5725, 0.0
        %v9586 = vmax.f32 %v5728, 0.0
        %v9587 = vmax.f32 %v5733, 0.0
        %v9588 = vmax.f32 %v5736, 0.0
        %v9589 = vmax.f32 %v5741, 0.0
        %v9590 = vmax.f32 %v5744, 0.0
        %v9591 = vmax.f32 %v5749, 0.0
        %v9592 = vmax.f32 %v5752, 0.0
        %v9593 = vmax.f32 %v5757, 0.0
        %v9594 = vmax.f32 %v5760, 0.0
        %v9595 = vmax.f32 %v5765, 0.0
        %v9596 = vmax.f32 %v5768, 0.0
        %v9597 = vmax.f32 %v5773, 0.0
        %v9598 = vmax.f32 %v5776, 0.0
        %v9599 = vmax.f32 %v5781, 0.0
        %v9600 = vmax.f32 %v5784, 0.0
        %v9601 = vmax.f32 %v5789, 0.0
        %v9602 = vmax.f32 %v5792, 0.0
        %v9603 = vmax.f32 %v5797, 0.0
        %v9604 = vmax.f32 %v5800, 0.0
        %v9605 = vmax.f32 %v5805, 0.0
        %v9606 = vmax.f32 %v5808, 0.0
        %v9607 = vmax.f32 %v5813, 0.0
        %v9608 = vmax.f32 %v5816, 0.0
        %v9609 = vmax.f32 %v5821, 0.0
        %v9610 = vmax.f32 %v5824, 0.0
        %v9611 = vmax.f32 %v5829, 0.0
        %v9612 = vmax.f32 %v5832, 0.0
        %v9613 = vmax.f32 %v5837, 0.0
        %v9614 = vmax.f32 %v5840, 0.0
        %v9615 = vmax.f32 %v5845, 0.0
        %v9616 = vmax.f32 %v5848, 0.0
        %v9617 = vmax.f32 %v5853, 0.0
        %v9618 = vmax.f32 %v5856, 0.0
        %v9619 = vmax.f32 %v5861, 0.0
        %v9620 = vmax.f32 %v5864, 0.0
        %v9621 = vmax.f32 %v5869, 0.0
        %v9622 = vmax.f32 %v5872, 0.0
        %v9623 = vmax.f32 %v5877, 0.0
        %v9624 = vmax.f32 %v5880, 0.0
        %v9625 = vmax.f32 %v5885, 0.0
        %v9626 = vmax.f32 %v5888, 0.0
        %v9627 = vmax.f32 %v5893, 0.0
        %v9628 = vmax.f32 %v5896, 0.0
        %v9629 = vmax.f32 %v5901, 0.0
        %v9630 = vmax.f32 %v5904, 0.0
        %v9631 = vmax.f32 %v5909, 0.0
        %v9632 = vmax.f32 %v5912, 0.0
        %v9633 = vmax.f32 %v5917, 0.0
        %v9634 = vmax.f32 %v5920, 0.0
        %v9635 = vmax.f32 %v5925, 0.0
        %v9636 = vmax.f32 %v5928, 0.0
        %v9637 = vmax.f32 %v5933, 0.0
        %v9638 = vmax.f32 %v5936, 0.0
        %v9639 = vmax.f32 %v5941, 0.0
        %v9640 = vmax.f32 %v5944, 0.0
        %v9641 = vmax.f32 %v5949, 0.0
        %v9642 = vmax.f32 %v5952, 0.0
        %v9643 = vmax.f32 %v5957, 0.0
        %v9644 = vmax.f32 %v5960, 0.0
        %v9645 = vmax.f32 %v5965, 0.0
        %v9646 = vmax.f32 %v5968, 0.0
        %v9647 = vmax.f32 %v5973, 0.0
        %v9648 = vmax.f32 %v5976, 0.0
        %v9649 = vmax.f32 %v5981, 0.0
        %v9650 = vmax.f32 %v5984, 0.0
        %v9651 = vmax.f32 %v5989, 0.0
        %v9652 = vmax.f32 %v5992, 0.0
        %v9653 = vmax.f32 %v5997, 0.0
        %v9654 = vmax.f32 %v6000, 0.0
        %v9655 = vmax.f32 %v6005, 0.0
        %v9656 = vmax.f32 %v6008, 0.0
        %v9657 = vmax.f32 %v6013, 0.0
        %v9658 = vmax.f32 %v6016, 0.0
        %v9659 = vmax.f32 %v6021, 0.0
        %v9660 = vmax.f32 %v6024, 0.0
        %v9661 = vmax.f32 %v6029, 0.0
        %v9662 = vmax.f32 %v6032, 0.0
        %v9663 = vmax.f32 %v6037, 0.0
        %v9664 = vmax.f32 %v6040, 0.0
        %v9665 = vmax.f32 %v6045, 0.0
        %v9666 = vmax.f32 %v6048, 0.0
        %v9667 = vmax.f32 %v6053, 0.0
        %v9668 = vmax.f32 %v6056, 0.0
        %v9669 = vmax.f32 %v6061, 0.0
        %v9670 = vmax.f32 %v6064, 0.0
        %v9671 = vmax.f32 %v6069, 0.0
        %v9672 = vmax.f32 %v6072, 0.0
        %v9673 = vmax.f32 %v6077, 0.0
        %v9674 = vmax.f32 %v6080, 0.0
        %v9675 = vmax.f32 %v6085, 0.0
        %v9676 = vmax.f32 %v6088, 0.0
        %v9677 = vmax.f32 %v6093, 0.0
        %v9678 = vmax.f32 %v6096, 0.0
        %v9679 = vmax.f32 %v6101, 0.0
        %v9680 = vmax.f32 %v6104, 0.0
        %v9681 = vmax.f32 %v6109, 0.0
        %v9682 = vmax.f32 %v6112, 0.0
        %v9683 = vmax.f32 %v6117, 0.0
        %v9684 = vmax.f32 %v6120, 0.0
        %v9685 = vmax.f32 %v6125, 0.0
        %v9686 = vmax.f32 %v6128, 0.0
        %v9687 = vmax.f32 %v6133, 0.0
        %v9688 = vmax.f32 %v6136, 0.0
        %v9689 = vmax.f32 %v6141, 0.0
        %v9690 = vmax.f32 %v6144, 0.0
        %v9691 = vmax.f32 %v6149, 0.0
        %v9692 = vmax.f32 %v6152, 0.0
        %v9693 = vmax.f32 %v6157, 0.0
        %v9694 = vmax.f32 %v6160, 0.0
        %v9695 = vmax.f32 %v6165, 0.0
        %v9696 = vmax.f32 %v6168, 0.0
        %v9697 = vmax.f32 %v6173, 0.0
        %v9698 = vmax.f32 %v6176, 0.0
        %v9699 = vmax.f32 %v6181, 0.0
        %v9700 = vmax.f32 %v6184, 0.0
        %v9701 = vmax.f32 %v6189, 0.0
        %v9702 = vmax.f32 %v6192, 0.0
        %v9703 = vmax.f32 %v6197, 0.0
        %v9704 = vmax.f32 %v6200, 0.0
        %v9705 = vmax.f32 %v6205, 0.0
        %v9706 = vmax.f32 %v6208, 0.0
        %v9707 = vmax.f32 %v6213, 0.0
        %v9708 = vmax.f32 %v6216, 0.0
        %v9709 = vmax.f32 %v6221, 0.0
        %v9710 = vmax.f32 %v6224, 0.0
        %v9711 = vmax.f32 %v6229, 0.0
        %v9712 = vmax.f32 %v6232, 0.0
        %v9713 = vmax.f32 %v6237, 0.0
        %v9714 = vmax.f32 %v6240, 0.0
        %v9715 = vmax.f32 %v6245, 0.0
        %v9716 = vmax.f32 %v6248, 0.0
        %v9717 = vmax.f32 %v6253, 0.0
        %v9718 = vmax.f32 %v6256, 0.0
        %v9719 = vmax.f32 %v6261, 0.0
        %v9720 = vmax.f32 %v6264, 0.0
        %v9721 = vmax.f32 %v6269, 0.0
        %v9722 = vmax.f32 %v6272, 0.0
        %v9723 = vmax.f32 %v6277, 0.0
        %v9724 = vmax.f32 %v6280, 0.0
        %v9725 = vmax.f32 %v6285, 0.0
        %v9726 = vmax.f32 %v6288, 0.0
        %v9727 = vmax.f32 %v6293, 0.0
        %v9728 = vmax.f32 %v6296, 0.0
        %v9729 = vmax.f32 %v6301, 0.0
        %v9730 = vmax.f32 %v6304, 0.0
        %v9731 = vmax.f32 %v6309, 0.0
        %v9732 = vmax.f32 %v6312, 0.0
        %v9733 = vmax.f32 %v6317, 0.0
        %v9734 = vmax.f32 %v6320, 0.0
        %v9735 = vmax.f32 %v6325, 0.0
        %v9736 = vmax.f32 %v6328, 0.0
        %v9737 = vmax.f32 %v6333, 0.0
        %v9738 = vmax.f32 %v6336, 0.0
        %v9739 = vmax.f32 %v6341, 0.0
        %v9740 = vmax.f32 %v6344, 0.0
        %v9741 = vmax.f32 %v6349, 0.0
        %v9742 = vmax.f32 %v6352, 0.0
        %v9743 = vmax.f32 %v6357, 0.0
        %v9744 = vmax.f32 %v6360, 0.0
        %v9745 = vmax.f32 %v6365, 0.0
        %v9746 = vmax.f32 %v6368, 0.0
        %v9747 = vmax.f32 %v6373, 0.0
        %v9748 = vmax.f32 %v6376, 0.0
        %v9749 = vmax.f32 %v6381, 0.0
        %v9750 = vmax.f32 %v6384, 0.0
        %v9751 = vmax.f32 %v6389, 0.0
        %v9752 = vmax.f32 %v6392, 0.0
        %v9753 = vmax.f32 %v6397, 0.0
        %v9754 = vmax.f32 %v6400, 0.0
        %v9755 = vmax.f32 %v6405, 0.0
        %v9756 = vmax.f32 %v6408, 0.0
        %v9757 = vmax.f32 %v6413, 0.0
        %v9758 = vmax.f32 %v6416, 0.0
        %v9759 = vmax.f32 %v6421, 0.0
        %v9760 = vmax.f32 %v6424, 0.0
        %v9761 = vmax.f32 %v6429, 0.0
        %v9762 = vmax.f32 %v6432, 0.0
        %v9763 = vmax.f32 %v6437, 0.0
        %v9764 = vmax.f32 %v6440, 0.0
        %v9765 = vmax.f32 %v6445, 0.0
        %v9766 = vmax.f32 %v6448, 0.0
        %v9767 = vmax.f32 %v6453, 0.0
        %v9768 = vmax.f32 %v6456, 0.0
        %v9769 = vmax.f32 %v6461, 0.0
        %v9770 = vmax.f32 %v6464, 0.0
        %v9771 = vmax.f32 %v6469, 0.0
        %v9772 = vmax.f32 %v6472, 0.0
        %v9773 = vmax.f32 %v6477, 0.0
        %v9774 = vmax.f32 %v6480, 0.0
        %v9775 = vmax.f32 %v6485, 0.0
        %v9776 = vmax.f32 %v6488, 0.0
        %v9777 = vmax.f32 %v6493, 0.0
        %v9778 = vmax.f32 %v6496, 0.0
        %v9779 = vmax.f32 %v6501, 0.0
        %v9780 = vmax.f32 %v6504, 0.0
        %v9781 = vmax.f32 %v6509, 0.0
        %v9782 = vmax.f32 %v6512, 0.0
        %v9783 = vmax.f32 %v6517, 0.0
        %v9784 = vmax.f32 %v6520, 0.0
        %v9785 = vmax.f32 %v6525, 0.0
        %v9786 = vmax.f32 %v6528, 0.0
        %v9787 = vmax.f32 %v6533, 0.0
        %v9788 = vmax.f32 %v6536, 0.0
        %v9789 = vmax.f32 %v6541, 0.0
        %v9790 = vmax.f32 %v6544, 0.0
        %v9791 = vmax.f32 %v6549, 0.0
        %v9792 = vmax.f32 %v6552, 0.0
        %v9793 = vmax.f32 %v6557, 0.0
        %v9794 = vmax.f32 %v6560, 0.0
        %v9795 = vmax.f32 %v6565, 0.0
        %v9796 = vmax.f32 %v6568, 0.0
        %v9797 = vmax.f32 %v6573, 0.0
        %v9798 = vmax.f32 %v6576, 0.0
        %v9799 = vmax.f32 %v6581, 0.0
        %v9800 = vmax.f32 %v6584, 0.0
        %v9801 = vmax.f32 %v6589, 0.0
        %v9802 = vmax.f32 %v6592, 0.0
        %v9803 = vmax.f32 %v6597, 0.0
        %v9804 = vmax.f32 %v6600, 0.0
        %v9805 = vmax.f32 %v6605, 0.0
        %v9806 = vmax.f32 %v6608, 0.0
        %v9807 = vmax.f32 %v6613, 0.0
        %v9808 = vmax.f32 %v6616, 0.0
        %v9809 = vmax.f32 %v6621, 0.0
        %v9810 = vmax.f32 %v6624, 0.0
        %v9811 = vmax.f32 %v6629, 0.0
        %v9812 = vmax.f32 %v6632, 0.0
        %v9813 = vmax.f32 %v6637, 0.0
        %v9814 = vmax.f32 %v6640, 0.0
        %v9815 = vmax.f32 %v6645, 0.0
        %v9816 = vmax.f32 %v6648, 0.0
        %v9817 = vmax.f32 %v6653, 0.0
        %v9818 = vmax.f32 %v6656, 0.0
        %v9819 = vmax.f32 %v6661, 0.0
        %v9820 = vmax.f32 %v6664, 0.0
        %v9821 = vmax.f32 %v6669, 0.0
        %v9822 = vmax.f32 %v6672, 0.0
        %v9823 = vmax.f32 %v6677, 0.0
        %v9824 = vmax.f32 %v6680, 0.0
        %v9825 = vmax.f32 %v6685, 0.0
        %v9826 = vmax.f32 %v6688, 0.0
        %v9827 = vmax.f32 %v6693, 0.0
        %v9828 = vmax.f32 %v6696, 0.0
        %v9829 = vmax.f32 %v6701, 0.0
        %v9830 = vmax.f32 %v6704, 0.0
        %v9831 = vmax.f32 %v6709, 0.0
        %v9832 = vmax.f32 %v6712, 0.0
        %v9833 = vmax.f32 %v6717, 0.0
        %v9834 = vmax.f32 %v6720, 0.0
        %v9835 = vmax.f32 %v6725, 0.0
        %v9836 = vmax.f32 %v6728, 0.0
        %v9837 = vmax.f32 %v6733, 0.0
        %v9838 = vmax.f32 %v6736, 0.0
        %v9839 = vmax.f32 %v6741, 0.0
        %v9840 = vmax.f32 %v6744, 0.0
        %v9841 = vmax.f32 %v6749, 0.0
        %v9842 = vmax.f32 %v6752, 0.0
        %v9843 = vmax.f32 %v6757, 0.0
        %v9844 = vmax.f32 %v6760, 0.0
        %v9845 = vmax.f32 %v6765, 0.0
        %v9846 = vmax.f32 %v6768, 0.0
        %v9847 = vmax.f32 %v6773, 0.0
        %v9848 = vmax.f32 %v6776, 0.0
        %v9849 = vmax.f32 %v6781, 0.0
        %v9850 = vmax.f32 %v6784, 0.0
        %v9851 = vmax.f32 %v6789, 0.0
        %v9852 = vmax.f32 %v6792, 0.0
        %v9853 = vmax.f32 %v6797, 0.0
        %v9854 = vmax.f32 %v6800, 0.0
        %v9855 = vmax.f32 %v6805, 0.0
        %v9856 = vmax.f32 %v6808, 0.0
        %v9857 = vmax.f32 %v6813, 0.0
        %v9858 = vmax.f32 %v6816, 0.0
        %v9859 = vmax.f32 %v6821, 0.0
        %v9860 = vmax.f32 %v6824, 0.0
        %v9861 = vmax.f32 %v6829, 0.0
        %v9862 = vmax.f32 %v6832, 0.0
        %v9863 = vmax.f32 %v6837, 0.0
        %v9864 = vmax.f32 %v6840, 0.0
        %v9865 = vmax.f32 %v6845, 0.0
        %v9866 = vmax.f32 %v6848, 0.0
        %v9867 = vmax.f32 %v6853, 0.0
        %v9868 = vmax.f32 %v6856, 0.0
        %v9869 = vmax.f32 %v6861, 0.0
        %v9870 = vmax.f32 %v6864, 0.0
        %v9871 = vmax.f32 %v6869, 0.0
        %v9872 = vmax.f32 %v6872, 0.0
        %v9873 = vmax.f32 %v6877, 0.0
        %v9874 = vmax.f32 %v6880, 0.0
        %v9875 = vmax.f32 %v6885, 0.0
        %v9876 = vmax.f32 %v6888, 0.0
        %v9877 = vmax.f32 %v6893, 0.0
        %v9878 = vmax.f32 %v6896, 0.0
        %v9879 = vmax.f32 %v6901, 0.0
        %v9880 = vmax.f32 %v6904, 0.0
        %v9881 = vmax.f32 %v6909, 0.0
        %v9882 = vmax.f32 %v6912, 0.0
        %v9883 = vmax.f32 %v6917, 0.0
        %v9884 = vmax.f32 %v6920, 0.0
        %v9885 = vmax.f32 %v6925, 0.0
        %v9886 = vmax.f32 %v6928, 0.0
        %v9887 = vmax.f32 %v6933, 0.0
        %v9888 = vmax.f32 %v6936, 0.0
        %v9889 = vmax.f32 %v6941, 0.0
        %v9890 = vmax.f32 %v6944, 0.0
        %v9891 = vmax.f32 %v6949, 0.0
        %v9892 = vmax.f32 %v6952, 0.0
        %v9893 = vmax.f32 %v6957, 0.0
        %v9894 = vmax.f32 %v6960, 0.0
        %v9895 = vmax.f32 %v6965, 0.0
        %v9896 = vmax.f32 %v6968, 0.0
        %v9897 = vmax.f32 %v6973, 0.0
        %v9898 = vmax.f32 %v6976, 0.0
        %v9899 = vmax.f32 %v6981, 0.0
        %v9900 = vmax.f32 %v6984, 0.0
        %v9901 = vmax.f32 %v6989, 0.0
        %v9902 = vmax.f32 %v6992, 0.0
        %v9903 = vmax.f32 %v6997, 0.0
        %v9904 = vmax.f32 %v7000, 0.0
        %v9905 = vmax.f32 %v7005, 0.0
        %v9906 = vmax.f32 %v7008, 0.0
        %v9907 = vmax.f32 %v7013, 0.0
        %v9908 = vmax.f32 %v7016, 0.0
        %v9909 = vmax.f32 %v7021, 0.0
        %v9910 = vmax.f32 %v7024, 0.0
        %v9911 = vmax.f32 %v7029, 0.0
        %v9912 = vmax.f32 %v7032, 0.0
        %v9913 = vmax.f32 %v7037, 0.0
        %v9914 = vmax.f32 %v7040, 0.0
        %v9915 = vmax.f32 %v7045, 0.0
        %v9916 = vmax.f32 %v7048, 0.0
        %v9917 = vmax.f32 %v7053, 0.0
        %v9918 = vmax.f32 %v7056, 0.0
        %v9919 = vmax.f32 %v7061, 0.0
        %v9920 = vmax.f32 %v7064, 0.0
        %v9921 = vmax.f32 %v7069, 0.0
        %v9922 = vmax.f32 %v7072, 0.0
        %v9923 = vmax.f32 %v7077, 0.0
        %v9924 = vmax.f32 %v7080, 0.0
        %v9925 = vmax.f32 %v7085, 0.0
        %v9926 = vmax.f32 %v7088, 0.0
        %v9927 = vmax.f32 %v7093, 0.0
        %v9928 = vmax.f32 %v7096, 0.0
        %v9929 = vmax.f32 %v7101, 0.0
        %v9930 = vmax.f32 %v7104, 0.0
        %v9931 = vmax.f32 %v7109, 0.0
        %v9932 = vmax.f32 %v7112, 0.0
        %v9933 = vmax.f32 %v7117, 0.0
        %v9934 = vmax.f32 %v7120, 0.0
        %v9935 = vmax.f32 %v7125, 0.0
        %v9936 = vmax.f32 %v7128, 0.0
        %v9937 = vmax.f32 %v7133, 0.0
        %v9938 = vmax.f32 %v7136, 0.0
        %v9939 = vmax.f32 %v7141, 0.0
        %v9940 = vmax.f32 %v7144, 0.0
        %v9941 = vmax.f32 %v7149, 0.0
        %v9942 = vmax.f32 %v7152, 0.0
        %v9943 = vmax.f32 %v7157, 0.0
        %v9944 = vmax.f32 %v7160, 0.0
        %v9945 = vmax.f32 %v7165, 0.0
        %v9946 = vmax.f32 %v7168, 0.0
        %v9947 = vmax.f32 %v7173, 0.0
        %v9948 = vmax.f32 %v7176, 0.0
        %v9949 = vmax.f32 %v7181, 0.0
        %v9950 = vmax.f32 %v7184, 0.0
        %v9951 = vmax.f32 %v7189, 0.0
        %v9952 = vmax.f32 %v7192, 0.0
        %v9953 = vmax.f32 %v7197, 0.0
        %v9954 = vmax.f32 %v7200, 0.0
        %v9955 = vmax.f32 %v7205, 0.0
        %v9956 = vmax.f32 %v7208, 0.0
        %v9957 = vmax.f32 %v7213, 0.0
        %v9958 = vmax.f32 %v7216, 0.0
        %v9959 = vmax.f32 %v7221, 0.0
        %v9960 = vmax.f32 %v7224, 0.0
        %v9961 = vmax.f32 %v7229, 0.0
        %v9962 = vmax.f32 %v7232, 0.0
        %v9963 = vmax.f32 %v7237, 0.0
        %v9964 = vmax.f32 %v7240, 0.0
        %v9965 = vmax.f32 %v7245, 0.0
        %v9966 = vmax.f32 %v7248, 0.0
        %v9967 = vmax.f32 %v7253, 0.0
        %v9968 = vmax.f32 %v7256, 0.0
        %v9969 = vmax.f32 %v7261, 0.0
        %v9970 = vmax.f32 %v7264, 0.0
        %v9971 = vmax.f32 %v7269, 0.0
        %v9972 = vmax.f32 %v7272, 0.0
        %v9973 = vmax.f32 %v7277, 0.0
        %v9974 = vmax.f32 %v7280, 0.0
        %v9975 = vmax.f32 %v7285, 0.0
        %v9976 = vmax.f32 %v7288, 0.0
        %v9977 = vmax.f32 %v7293, 0.0
        %v9978 = vmax.f32 %v7296, 0.0
        %v9979 = vmax.f32 %v7301, 0.0
        %v9980 = vmax.f32 %v7304, 0.0
        %v9981 = vmax.f32 %v7309, 0.0
        %v9982 = vmax.f32 %v7312, 0.0
        %v9983 = vmax.f32 %v7317, 0.0
        %v9984 = vmax.f32 %v7320, 0.0
        %v9985 = vmax.f32 %v7325, 0.0
        %v9986 = vmax.f32 %v7328, 0.0
        %v9987 = vmax.f32 %v7333, 0.0
        %v9988 = vmax.f32 %v7336, 0.0
        %v9989 = vmax.f32 %v7341, 0.0
        %v9990 = vmax.f32 %v7344, 0.0
        %v9991 = vmax.f32 %v7349, 0.0
        %v9992 = vmax.f32 %v7352, 0.0
        %v9993 = vmax.f32 %v7357, 0.0
        %v9994 = vmax.f32 %v7360, 0.0
        %v9995 = vmax.f32 %v7365, 0.0
        %v9996 = vmax.f32 %v7368, 0.0
        %v9997 = vmax.f32 %v7373, 0.0
        %v9998 = vmax.f32 %v7376, 0.0
        %v9999 = vmax.f32 %v7381, 0.0
        %v10000 = vmax.f32 %v7384, 0.0
        %v10001 = vmax.f32 %v7389, 0.0
        %v10002 = vmax.f32 %v7392, 0.0
        %v10003 = vmax.f32 %v7397, 0.0
        %v10004 = vmax.f32 %v7400, 0.0
        %v10005 = vmax.f32 %v7405, 0.0
        %v10006 = vmax.f32 %v7408, 0.0
        %v10007 = vmax.f32 %v7413, 0.0
        %v10008 = vmax.f32 %v7416, 0.0
        %v10009 = vmax.f32 %v7421, 0.0
        %v10010 = vmax.f32 %v7424, 0.0
        %v10011 = vmax.f32 %v7429, 0.0
        %v10012 = vmax.f32 %v7432, 0.0
        %v10013 = vmax.f32 %v7437, 0.0
        %v10014 = vmax.f32 %v7440, 0.0
        %v10015 = vmax.f32 %v7445, 0.0
        %v10016 = vmax.f32 %v7448, 0.0
        %v10017 = vmax.f32 %v7453, 0.0
        %v10018 = vmax.f32 %v7456, 0.0
        %v10019 = vmax.f32 %v7461, 0.0
        %v10020 = vmax.f32 %v7464, 0.0
        %v10021 = vmax.f32 %v7469, 0.0
        %v10022 = vmax.f32 %v7472, 0.0
        %v10023 = vmax.f32 %v7477, 0.0
        %v10024 = vmax.f32 %v7480, 0.0
        %v10025 = vmax.f32 %v7485, 0.0
        %v10026 = vmax.f32 %v7488, 0.0
        %v10027 = vmax.f32 %v7493, 0.0
        %v10028 = vmax.f32 %v7496, 0.0
        %v10029 = vmax.f32 %v7501, 0.0
        %v10030 = vmax.f32 %v7504, 0.0
        %v10031 = vmax.f32 %v7509, 0.0
        %v10032 = vmax.f32 %v7512, 0.0
        %v10033 = vmax.f32 %v7517, 0.0
        %v10034 = vmax.f32 %v7520, 0.0
        %v10035 = vmax.f32 %v7525, 0.0
        %v10036 = vmax.f32 %v7528, 0.0
        %v10037 = vmax.f32 %v7533, 0.0
        %v10038 = vmax.f32 %v7536, 0.0
        %v10039 = vmax.f32 %v7541, 0.0
        %v10040 = vmax.f32 %v7544, 0.0
        %v10041 = vmax.f32 %v7549, 0.0
        %v10042 = vmax.f32 %v7552, 0.0
        %v10043 = vmax.f32 %v7557, 0.0
        %v10044 = vmax.f32 %v7560, 0.0
        %v10045 = vmax.f32 %v7565, 0.0
        %v10046 = vmax.f32 %v7568, 0.0
        %v10047 = vmax.f32 %v7573, 0.0
        %v10048 = vmax.f32 %v7576, 0.0
        %v10049 = vmax.f32 %v7581, 0.0
        %v10050 = vmax.f32 %v7584, 0.0
        %v10051 = vmax.f32 %v7589, 0.0
        %v10052 = vmax.f32 %v7592, 0.0
        %v10053 = vmax.f32 %v7597, 0.0
        %v10054 = vmax.f32 %v7600, 0.0
        %v10055 = vmax.f32 %v7605, 0.0
        %v10056 = vmax.f32 %v7608, 0.0
        %v10057 = vmax.f32 %v7613, 0.0
        %v10058 = vmax.f32 %v7616, 0.0
        %v10059 = vmax.f32 %v7621, 0.0
        %v10060 = vmax.f32 %v7624, 0.0
        %v10061 = vmax.f32 %v7629, 0.0
        %v10062 = vmax.f32 %v7632, 0.0
        %v10063 = vmax.f32 %v7637, 0.0
        %v10064 = vmax.f32 %v7640, 0.0
        %v10065 = vmax.f32 %v7645, 0.0
        %v10066 = vmax.f32 %v7648, 0.0
        %v10067 = vmax.f32 %v7653, 0.0
        %v10068 = vmax.f32 %v7656, 0.0
        %v10069 = vmax.f32 %v7661, 0.0
        %v10070 = vmax.f32 %v7664, 0.0
        %v10071 = vmax.f32 %v7669, 0.0
        %v10072 = vmax.f32 %v7672, 0.0
        %v10073 = vmax.f32 %v7677, 0.0
        %v10074 = vmax.f32 %v7680, 0.0
        %v10075 = vmax.f32 %v7685, 0.0
        %v10076 = vmax.f32 %v7688, 0.0
        %v10077 = vmax.f32 %v7693, 0.0
        %v10078 = vmax.f32 %v7696, 0.0
        %v10079 = vmax.f32 %v7701, 0.0
        %v10080 = vmax.f32 %v7704, 0.0
        %v10081 = vmax.f32 %v7709, 0.0
        %v10082 = vmax.f32 %v7712, 0.0
        %v10083 = vmax.f32 %v7717, 0.0
        %v10084 = vmax.f32 %v7720, 0.0
        %v10085 = vmax.f32 %v7725, 0.0
        %v10086 = vmax.f32 %v7728, 0.0
        %v10087 = vmax.f32 %v7733, 0.0
        %v10088 = vmax.f32 %v7736, 0.0
        %v10089 = vmax.f32 %v7741, 0.0
        %v10090 = vmax.f32 %v7744, 0.0
        %v10091 = vmax.f32 %v7749, 0.0
        %v10092 = vmax.f32 %v7752, 0.0
        %v10093 = vmax.f32 %v7757, 0.0
        %v10094 = vmax.f32 %v7760, 0.0
        %v10095 = vmax.f32 %v7765, 0.0
        %v10096 = vmax.f32 %v7768, 0.0
        %v10097 = vmax.f32 %v7773, 0.0
        %v10098 = vmax.f32 %v7776, 0.0
        %v10099 = vmax.f32 %v7781, 0.0
        %v10100 = vmax.f32 %v7784, 0.0
        %v10101 = vmax.f32 %v7789, 0.0
        %v10102 = vmax.f32 %v7792, 0.0
        %v10103 = vmax.f32 %v7797, 0.0
        %v10104 = vmax.f32 %v7800, 0.0
        %v10105 = vmax.f32 %v7805, 0.0
        %v10106 = vmax.f32 %v7808, 0.0
        %v10107 = vmax.f32 %v7813, 0.0
        %v10108 = vmax.f32 %v7816, 0.0
        %v10109 = vmax.f32 %v7821, 0.0
        %v10110 = vmax.f32 %v7824, 0.0
        %v10111 = vmax.f32 %v7829, 0.0
        %v10112 = vmax.f32 %v7832, 0.0
        %v10113 = vmax.f32 %v7837, 0.0
        %v10114 = vmax.f32 %v7840, 0.0
        %v10115 = vmax.f32 %v7845, 0.0
        %v10116 = vmax.f32 %v7848, 0.0
        %v10117 = vmax.f32 %v7853, 0.0
        %v10118 = vmax.f32 %v7856, 0.0
        %v10119 = vmax.f32 %v7861, 0.0
        %v10120 = vmax.f32 %v7864, 0.0
        %v10121 = vmax.f32 %v7869, 0.0
        %v10122 = vmax.f32 %v7872, 0.0
        %v10123 = vmax.f32 %v7877, 0.0
        %v10124 = vmax.f32 %v7880, 0.0
        %v10125 = vmax.f32 %v7885, 0.0
        %v10126 = vmax.f32 %v7888, 0.0
        %v10127 = vmax.f32 %v7893, 0.0
        %v10128 = vmax.f32 %v7896, 0.0
        %v10129 = vmax.f32 %v7901, 0.0
        %v10130 = vmax.f32 %v7904, 0.0
        %v10131 = vmax.f32 %v7909, 0.0
        %v10132 = vmax.f32 %v7912, 0.0
        %v10133 = vmax.f32 %v7917, 0.0
        %v10134 = vmax.f32 %v7920, 0.0
        %v10135 = vmax.f32 %v7925, 0.0
        %v10136 = vmax.f32 %v7928, 0.0
        %v10137 = vmax.f32 %v7933, 0.0
        %v10138 = vmax.f32 %v7936, 0.0
        %v10139 = vmax.f32 %v7941, 0.0
        %v10140 = vmax.f32 %v7944, 0.0
        %v10141 = vmax.f32 %v7949, 0.0
        %v10142 = vmax.f32 %v7952, 0.0
        %v10143 = vmax.f32 %v7957, 0.0
        %v10144 = vmax.f32 %v7960, 0.0
        %v10145 = vmax.f32 %v7965, 0.0
        %v10146 = vmax.f32 %v7968, 0.0
        %v10147 = vmax.f32 %v7973, 0.0
        %v10148 = vmax.f32 %v7976, 0.0
        %v10149 = vmax.f32 %v7981, 0.0
        %v10150 = vmax.f32 %v7984, 0.0
        %v10151 = vmax.f32 %v7989, 0.0
        %v10152 = vmax.f32 %v7992, 0.0
        %v10153 = vmax.f32 %v7997, 0.0
        %v10154 = vmax.f32 %v8000, 0.0
        %v10155 = vmax.f32 %v8005, 0.0
        %v10156 = vmax.f32 %v8008, 0.0
        %v10157 = vmax.f32 %v8013, 0.0
        %v10158 = vmax.f32 %v8016, 0.0
        %v10159 = vmax.f32 %v8021, 0.0
        %v10160 = vmax.f32 %v8024, 0.0
        %v10161 = vmax.f32 %v8029, 0.0
        %v10162 = vmax.f32 %v8032, 0.0
        %v10163 = vmax.f32 %v8037, 0.0
        %v10164 = vmax.f32 %v8040, 0.0
        %v10165 = vmax.f32 %v8045, 0.0
        %v10166 = vmax.f32 %v8048, 0.0
        %v10167 = vmax.f32 %v8053, 0.0
        %v10168 = vmax.f32 %v8056, 0.0
        %v10169 = vmax.f32 %v8061, 0.0
        %v10170 = vmax.f32 %v8064, 0.0
        %v10171 = vmax.f32 %v8069, 0.0
        %v10172 = vmax.f32 %v8072, 0.0
        %v10173 = vmax.f32 %v8077, 0.0
        %v10174 = vmax.f32 %v8080, 0.0
        %v10175 = vmax.f32 %v8085, 0.0
        %v10176 = vmax.f32 %v8088, 0.0
        %v10177 = vmax.f32 %v8093, 0.0
        %v10178 = vmax.f32 %v8096, 0.0
        %v10179 = vmax.f32 %v8101, 0.0
        %v10180 = vmax.f32 %v8104, 0.0
        %v10181 = vmax.f32 %v8109, 0.0
        %v10182 = vmax.f32 %v8112, 0.0
        %v10183 = vmax.f32 %v8117, 0.0
        %v10184 = vmax.f32 %v8120, 0.0
        %v10185 = vmax.f32 %v8125, 0.0
        %v10186 = vmax.f32 %v8128, 0.0
        %v10187 = vmax.f32 %v8133, 0.0
        %v10188 = vmax.f32 %v8136, 0.0
        %v10189 = vmax.f32 %v8141, 0.0
        %v10190 = vmax.f32 %v8144, 0.0
        %v10191 = vmax.f32 %v8149, 0.0
        %v10192 = vmax.f32 %v8152, 0.0
        %v10193 = vmax.f32 %v8157, 0.0
        %v10194 = vmax.f32 %v8160, 0.0
        %v10195 = vmax.f32 %v8165, 0.0
        %v10196 = vmax.f32 %v8168, 0.0
        %v10197 = vmax.f32 %v8173, 0.0
        %v10198 = vmax.f32 %v8176, 0.0
        %v10199 = vmax.f32 %v8181, 0.0
        %v10200 = vmax.f32 %v8184, 0.0
        %v10201 = vmax.f32 %v8189, 0.0
        %v10202 = vmax.f32 %v8192, 0.0
        %v10203 = vmax.f32 %v8197, 0.0
        %v10204 = vmax.f32 %v8200, 0.0
        %v10205 = vmax.f32 %v8205, 0.0
        %v10206 = vmax.f32 %v8208, 0.0
        %v10207 = vmax.f32 %v8213, 0.0
        %v10208 = vmax.f32 %v8216, 0.0
        %v10209 = vmax.f32 %v8221, 0.0
        %v10210 = vmax.f32 %v8224, 0.0
        %v10211 = vmax.f32 %v8229, 0.0
        %v10212 = vmax.f32 %v8232, 0.0
        %v10213 = vmax.f32 %v8237, 0.0
        %v10214 = vmax.f32 %v8240, 0.0
        %v10215 = vmax.f32 %v8245, 0.0
        %v10216 = vmax.f32 %v8248, 0.0
        %v10217 = vmax.f32 %v8253, 0.0
        %v10218 = vmax.f32 %v8256, 0.0
        %v10219 = vmax.f32 %v8261, 0.0
        %v10220 = vmax.f32 %v8264, 0.0
        %v10221 = vmax.f32 %v8269, 0.0
        %v10222 = vmax.f32 %v8272, 0.0
        %v10223 = vmax.f32 %v8277, 0.0
        %v10224 = vmax.f32 %v8280, 0.0
        %v10225 = vmax.f32 %v8285, 0.0
        %v10226 = vmax.f32 %v8288, 0.0
        %v10227 = vmax.f32 %v8293, 0.0
        %v10228 = vmax.f32 %v8296, 0.0
        %v10229 = vmax.f32 %v8301, 0.0
        %v10230 = vmax.f32 %v8304, 0.0
        %v10231 = vmax.f32 %v8309, 0.0
        %v10232 = vmax.f32 %v8312, 0.0
        %v10233 = vmax.f32 %v8317, 0.0
        %v10234 = vmax.f32 %v8320, 0.0
        %v10235 = vmax.f32 %v8325, 0.0
        %v10236 = vmax.f32 %v8328, 0.0
        %v10237 = vmax.f32 %v8333, 0.0
        %v10238 = vmax.f32 %v8336, 0.0
        %v10239 = vmax.f32 %v8341, 0.0
        %v10240 = vmax.f32 %v8344, 0.0
        %v10241 = vmax.f32 %v8349, 0.0
        %v10242 = vmax.f32 %v8352, 0.0
        %v10243 = vmax.f32 %v8357, 0.0
        %v10244 = vmax.f32 %v8360, 0.0
        %v10245 = vmax.f32 %v8365, 0.0
        %v10246 = vmax.f32 %v8368, 0.0
        %v10247 = vmax.f32 %v8373, 0.0
        %v10248 = vmax.f32 %v8376, 0.0
        %v10249 = vmax.f32 %v8381, 0.0
        %v10250 = vmax.f32 %v8384, 0.0
        %v10251 = vmax.f32 %v8389, 0.0
        %v10252 = vmax.f32 %v8392, 0.0
        %v10253 = vmax.f32 %v8397, 0.0
        %v10254 = vmax.f32 %v8400, 0.0
        %v10255 = vmax.f32 %v8405, 0.0
        %v10256 = vmax.f32 %v8408, 0.0
        %v10257 = vmax.f32 %v8413, 0.0
        %v10258 = vmax.f32 %v8416, 0.0
        %v10259 = vmax.f32 %v8421, 0.0
        %v10260 = vmax.f32 %v8424, 0.0
        %v10261 = vmax.f32 %v8429, 0.0
        %v10262 = vmax.f32 %v8432, 0.0
        %v10263 = vmax.f32 %v8437, 0.0
        %v10264 = vmax.f32 %v8440, 0.0
        %v10265 = vmax.f32 %v8445, 0.0
        %v10266 = vmax.f32 %v8448, 0.0
        %v10267 = vmax.f32 %v8453, 0.0
        %v10268 = vmax.f32 %v8456, 0.0
        %v10269 = vmax.f32 %v8461, 0.0
        %v10270 = vmax.f32 %v8464, 0.0
        %v10271 = vmax.f32 %v8469, 0.0
        %v10272 = vmax.f32 %v8472, 0.0
        %v10273 = vmax.f32 %v8477, 0.0
        %v10274 = vmax.f32 %v8480, 0.0
        %v10275 = vmax.f32 %v8485, 0.0
        %v10276 = vmax.f32 %v8488, 0.0
        %v10277 = vmax.f32 %v8493, 0.0
        %v10278 = vmax.f32 %v8496, 0.0
        %v10279 = vmax.f32 %v8501, 0.0
        %v10280 = vmax.f32 %v8504, 0.0
        %v10281 = vmax.f32 %v8509, 0.0
        %v10282 = vmax.f32 %v8512, 0.0
        %v10283 = vmax.f32 %v8517, 0.0
        %v10284 = vmax.f32 %v8520, 0.0
        %v10285 = vmax.f32 %v8525, 0.0
        %v10286 = vmax.f32 %v8528, 0.0
        %v10287 = vmax.f32 %v8533, 0.0
        %v10288 = vmax.f32 %v8536, 0.0
        %v10289 = vmax.f32 %v8541, 0.0
        %v10290 = vmax.f32 %v8544, 0.0
        %v10291 = vmax.f32 %v8549, 0.0
        %v10292 = vmax.f32 %v8552, 0.0
        %v10293 = vmax.f32 %v8557, 0.0
        %v10294 = vmax.f32 %v8560, 0.0
        %v10295 = vmax.f32 %v8565, 0.0
        %v10296 = vmax.f32 %v8568, 0.0
        %v10297 = vmax.f32 %v8573, 0.0
        %v10298 = vmax.f32 %v8576, 0.0
        %v10299 = vmax.f32 %v8581, 0.0
        %v10300 = vmax.f32 %v8584, 0.0
        %v10301 = vmax.f32 %v8589, 0.0
        %v10302 = vmax.f32 %v8592, 0.0
        %v10303 = vmax.f32 %v8597, 0.0
        %v10304 = vmax.f32 %v8600, 0.0
        %v10305 = vmax.f32 %v8605, 0.0
        %v10306 = vmax.f32 %v8608, 0.0
        %v10307 = vmax.f32 %v8613, 0.0
        %v10308 = vmax.f32 %v8616, 0.0
        %v10309 = vmax.f32 %v8621, 0.0
        %v10310 = vmax.f32 %v8624, 0.0
        %v10311 = vmax.f32 %v8629, 0.0
        %v10312 = vmax.f32 %v8632, 0.0
        %v10313 = vmax.f32 %v8637, 0.0
        %v10314 = vmax.f32 %v8640, 0.0
        %v10315 = vmax.f32 %v8645, 0.0
        %v10316 = vmax.f32 %v8648, 0.0
        %v10317 = vmax.f32 %v8653, 0.0
        %v10318 = vmax.f32 %v8656, 0.0
        %v10319 = vmax.f32 %v8661, 0.0
        %v10320 = vmax.f32 %v8664, 0.0
        %v10321 = vmax.f32 %v8669, 0.0
        %v10322 = vmax.f32 %v8672, 0.0
        %v10323 = vmax.f32 %v8677, 0.0
        %v10324 = vmax.f32 %v8680, 0.0
        %v10325 = vmax.f32 %v8685, 0.0
        %v10326 = vmax.f32 %v8688, 0.0
        %v10327 = vmax.f32 %v8693, 0.0
        %v10328 = vmax.f32 %v8696, 0.0
        %v10329 = vmax.f32 %v8701, 0.0
        %v10330 = vmax.f32 %v8704, 0.0
        %v10331 = vmax.f32 %v8709, 0.0
        %v10332 = vmax.f32 %v8712, 0.0
        %v10333 = vmax.f32 %v8717, 0.0
        %v10334 = vmax.f32 %v8720, 0.0
        %v10335 = vmax.f32 %v8725, 0.0
        %v10336 = vmax.f32 %v8728, 0.0
        %v10337 = vmax.f32 %v8733, 0.0
        %v10338 = vmax.f32 %v8736, 0.0
        %v10339 = vmax.f32 %v8741, 0.0
        %v10340 = vmax.f32 %v8744, 0.0
        %v10341 = vmax.f32 %v8749, 0.0
        %v10342 = vmax.f32 %v8752, 0.0
        %v10343 = vmax.f32 %v8757, 0.0
        %v10344 = vmax.f32 %v8760, 0.0
        %v10345 = vmax.f32 %v8765, 0.0
        %v10346 = vmax.f32 %v8768, 0.0
        %v10347 = vmax.f32 %v8773, 0.0
        %v10348 = vmax.f32 %v8776, 0.0
        %v10349 = vmax.f32 %v8781, 0.0
        %v10350 = vmax.f32 %v8784, 0.0
        %v10351 = vmax.f32 %v8789, 0.0
        %v10352 = vmax.f32 %v8792, 0.0
        %v10353 = vmax.f32 %v8797, 0.0
        %v10354 = vmax.f32 %v8800, 0.0
        %v10355 = vmax.f32 %v8805, 0.0
        %v10356 = vmax.f32 %v8808, 0.0
        %v10357 = vmax.f32 %v8813, 0.0
        %v10358 = vmax.f32 %v8816, 0.0
        %v10359 = vmax.f32 %v8821, 0.0
        %v10360 = vmax.f32 %v8824, 0.0
        %v10361 = vmax.f32 %v8829, 0.0
        %v10362 = vmax.f32 %v8832, 0.0
        %v10363 = vmax.f32 %v8837, 0.0
        %v10364 = vmax.f32 %v8840, 0.0
        %v10365 = vmax.f32 %v8845, 0.0
        %v10366 = vmax.f32 %v8848, 0.0
        %v10367 = vmax.f32 %v8853, 0.0
        %v10368 = vmax.f32 %v8856, 0.0
        %v10369 = vmax.f32 %v8861, 0.0
        %v10370 = vmax.f32 %v8864, 0.0
        %v10371 = vmax.f32 %v8869, 0.0
        %v10372 = vmax.f32 %v8872, 0.0
        %v10373 = vmax.f32 %v8877, 0.0
        %v10374 = vmax.f32 %v8880, 0.0
        %v10375 = vmax.f32 %v8885, 0.0
        %v10376 = vmax.f32 %v8888, 0.0
        %v10377 = vmax.f32 %v8893, 0.0
        %v10378 = vmax.f32 %v8896, 0.0
        %v10379 = vmax.f32 %v8901, 0.0
        %v10380 = vmax.f32 %v8904, 0.0
        %v10381 = vmax.f32 %v8909, 0.0
        %v10382 = vmax.f32 %v8912, 0.0
        %v10383 = vmax.f32 %v8917, 0.0
        %v10384 = vmax.f32 %v8920, 0.0
        %v10385 = vmax.f32 %v8925, 0.0
        %v10386 = vmax.f32 %v8928, 0.0
        %v10387 = vmax.f32 %v8933, 0.0
        %v10388 = vmax.f32 %v8936, 0.0
        %v10389 = vmax.f32 %v8941, 0.0
        %v10390 = vmax.f32 %v8944, 0.0
        %v10391 = vmax.f32 %v8949, 0.0
        %v10392 = vmax.f32 %v8952, 0.0
        %v10393 = vmax.f32 %v8957, 0.0
        %v10394 = vmax.f32 %v8960, 0.0
        %v10395 = vmax.f32 %v8965, 0.0
        %v10396 = vmax.f32 %v8968, 0.0
        %v10397 = vmax.f32 %v8973, 0.0
        %v10398 = vmax.f32 %v8976, 0.0
        %v10399 = vmax.f32 %v8981, 0.0
        %v10400 = vmax.f32 %v8984, 0.0
        %v10401 = vmax.f32 %v8989, 0.0
        %v10402 = vmax.f32 %v8992, 0.0
        %v10403 = vmax.f32 %v8997, 0.0
        %v10404 = vmax.f32 %v9000, 0.0
        %v10405 = vmax.f32 %v9005, 0.0
        %v10406 = vmax.f32 %v9008, 0.0
        %v10407 = vmax.f32 %v9013, 0.0
        %v10408 = vmax.f32 %v9016, 0.0
        %v10409 = vmax.f32 %v9021, 0.0
        %v10410 = vmax.f32 %v9024, 0.0
        %v10411 = vmax.f32 %v9029, 0.0
        %v10412 = vmax.f32 %v9032, 0.0
        %v10413 = vmax.f32 %v9037, 0.0
        %v10414 = vmax.f32 %v9040, 0.0
        %v10415 = vmax.f32 %v9045, 0.0
        %v10416 = vmax.f32 %v9048, 0.0
        %v10417 = vmax.f32 %v9053, 0.0
        %v10418 = vmax.f32 %v9056, 0.0
        %v10419 = vmax.f32 %v9061, 0.0
        %v10420 = vmax.f32 %v9064, 0.0
        %v10421 = vmax.f32 %v9069, 0.0
        %v10422 = vmax.f32 %v9072, 0.0
        %v10423 = vmax.f32 %v9077, 0.0
        %v10424 = vmax.f32 %v9080, 0.0
        %v10425 = vmax.f32 %v9085, 0.0
        %v10426 = vmax.f32 %v9088, 0.0
        %v10427 = vmax.f32 %v9093, 0.0
        %v10428 = vmax.f32 %v9096, 0.0
        %v10429 = vmax.f32 %v9101, 0.0
        %v10430 = vmax.f32 %v9104, 0.0
        %v10431 = vmax.f32 %v9109, 0.0
        %v10432 = vmax.f32 %v9112, 0.0
        %v10433 = vmax.f32 %v9117, 0.0
        %v10434 = vmax.f32 %v9120, 0.0
        %v10435 = vmax.f32 %v9125, 0.0
        %v10436 = vmax.f32 %v9128, 0.0
        %v10437 = vmax.f32 %v9133, 0.0
        %v10438 = vmax.f32 %v9136, 0.0
        %v10439 = vmax.f32 %v9141, 0.0
        %v10440 = vmax.f32 %v9144, 0.0
        %v10441 = vmax.f32 %v9149, 0.0
        %v10442 = vmax.f32 %v9152, 0.0
        %v10443 = vmax.f32 %v9157, 0.0
        %v10444 = vmax.f32 %v9160, 0.0
        %v10445 = vmax.f32 %v9165, 0.0
        %v10446 = vmax.f32 %v9168, 0.0
        %v10447 = vmax.f32 %v9173, 0.0
        %v10448 = vmax.f32 %v9176, 0.0
        %v10449 = vmax.f32 %v9181, 0.0
        %v10450 = vmax.f32 %v9184, 0.0
        %v10451 = vmax.f32 %v9189, 0.0
        %v10452 = vmax.f32 %v9192, 0.0
        %v10453 = vmax.f32 %v9197, 0.0
        %v10454 = vmax.f32 %v9200, 0.0
        %v10455 = vmax.f32 %v9205, 0.0
        %v10456 = vmax.f32 %v9208, 0.0
        %v10457 = vmax.f32 %v9213, 0.0
        %v10458 = vmax.f32 %v9216, 0.0
        %v10459 = vmax.f32 %v9221, 0.0
        %v10460 = vmax.f32 %v9224, 0.0
        %v10461 = vmax.f32 %v9229, 0.0
        %v10462 = vmax.f32 %v9232, 0.0
        %v10463 = vmax.f32 %v9237, 0.0
        %v10464 = vmax.f32 %v9240, 0.0
        %v10465 = vmax.f32 %v9245, 0.0
        %v10466 = vmax.f32 %v9248, 0.0
        %v10467 = vmax.f32 %v9253, 0.0
        %v10468 = vmax.f32 %v9256, 0.0
        %v10469 = vmax.f32 %v9261, 0.0
        %v10470 = vmax.f32 %v9264, 0.0
        %v10471 = vmax.f32 %v9269, 0.0
        %v10472 = vmax.f32 %v9272, 0.0
        %v10473 = vmax.f32 %v9277, 0.0
        %v10474 = vmax.f32 %v9280, 0.0
        %v10475 = vmax.f32 %v9285, 0.0
        %v10476 = vmax.f32 %v9288, 0.0
        %v10477 = vmax.f32 %v9293, 0.0
        %v10478 = vmax.f32 %v9296, 0.0
        %v10479 = vmax.f32 %v9301, 0.0
        %v10480 = vmax.f32 %v9304, 0.0
        %v10481 = vmax.f32 %v9309, 0.0
        %v10482 = vmax.f32 %v9312, 0.0
        %v10483 = vmax.f32 %v9317, 0.0
        %v10484 = vmax.f32 %v9320, 0.0
        %v10485 = vmax.f32 %v9325, 0.0
        %v10486 = vmax.f32 %v9328, 0.0
        %v10487 = vmax.f32 %v9333, 0.0
        %v10488 = vmax.f32 %v9336, 0.0
        %v10489 = vmax.f32 %v9341, 0.0
        %v10490 = vmax.f32 %v9344, 0.0
        %v10491 = vmax.f32 %v9349, 0.0
        %v10492 = vmax.f32 %v9352, 0.0
        %v10493 = vmax.f32 %v9357, 0.0
        %v10494 = vmax.f32 %v9360, 0.0
        %v10495 = vmax.f32 %v9365, 0.0
        %v10496 = vmax.f32 %v9368, 0.0
        %v10497 = vmax.f32 %v9373, 0.0
        %v10498 = vmax.f32 %v9376, 0.0
        %v10499 = vmax.f32 %v9381, 0.0
        %v10500 = vmax.f32 %v9384, 0.0
        %v10501 = vmax.f32 %v9389, 0.0
        %v10502 = vmax.f32 %v9392, 0.0
        %v10503 = vmax.f32 %v9397, 0.0
        %v10504 = vmax.f32 %v9400, 0.0
        %v10505 = vmax.f32 %v9405, 0.0
        %v10506 = vmax.f32 %v9408, 0.0
        %v10507 = vmax.f32 %v9413, 0.0
        %v10508 = vmax.f32 %v9416, 0.0
        %v10509 = vmax.f32 %v9421, 0.0
        %v10510 = vmax.f32 %v9424, 0.0
        %v10511 = vmax.f32 %v9429, 0.0
        %v10512 = vmax.f32 %v9432, 0.0
        %v10513 = vmax.f32 %v9437, 0.0
        %v10514 = vmax.f32 %v9440, 0.0
        %v10515 = vmax.f32 %v9445, 0.0
        %v10516 = vmax.f32 %v9448, 0.0
        %v10517 = vmax.f32 %v9453, 0.0
        %v10518 = vmax.f32 %v9456, 0.0
        %v10519 = vmax.f32 %v9461, 0.0
        %v10520 = vmax.f32 %v9464, 0.0
        %v10521 = vmax.f32 %v9469, 0.0
        %v10522 = vmax.f32 %v9472, 0.0
        %v10523 = vmax.f32 %v9477, 0.0
        %v10524 = vmax.f32 %v9480, 0.0
        %v10525 = vmax.f32 %v9485, 0.0
        %v10526 = vmax.f32 %v9488, 0.0
        %v10527 = vmax.f32 %v9493, 0.0
        %v10528 = vmax.f32 %v9496, 0.0
        %v10529 = vmax.f32 %v9501, 0.0
        %v10530 = vmax.f32 %v9504, 0.0
        %v10531 = vadd.f32 %v9507, %v9508
        %v10532 = vadd.f32 %v10531, %v9509
        %v10533 = vadd.f32 %v10532, %v9510
        %v10534 = vadd.f32 %v10533, %v9511
        %v10535 = vadd.f32 %v10534, %v9512
        %v10536 = vadd.f32 %v10535, %v9513
        %v10537 = vadd.f32 %v10536, %v9514
        %v10538 = vadd.f32 %v10537, %v9515
        %v10539 = vadd.f32 %v10538, %v9516
        %v10540 = vadd.f32 %v10539, %v9517
        %v10541 = vadd.f32 %v10540, %v9518
        %v10542 = vadd.f32 %v10541, %v9519
        %v10543 = vadd.f32 %v10542, %v9520
        %v10544 = vadd.f32 %v10543, %v9521
        %v10545 = vadd.f32 %v10544, %v9522
        %v10546 = vadd.f32 %v10545, %v9523
        %v10547 = vadd.f32 %v10546, %v9524
        %v10548 = vadd.f32 %v10547, %v9525
        %v10549 = vadd.f32 %v10548, %v9526
        %v10550 = vadd.f32 %v10549, %v9527
        %v10551 = vadd.f32 %v10550, %v9528
        %v10552 = vadd.f32 %v10551, %v9529
        %v10553 = vadd.f32 %v10552, %v9530
        %v10554 = vadd.f32 %v10553, %v9531
        %v10555 = vadd.f32 %v10554, %v9532
        %v10556 = vadd.f32 %v10555, %v9533
        %v10557 = vadd.f32 %v10556, %v9534
        %v10558 = vadd.f32 %v10557, %v9535
        %v10559 = vadd.f32 %v10558, %v9536
        %v10560 = vadd.f32 %v10559, %v9537
        %v10561 = vadd.f32 %v10560, %v9538
        %v10562 = vrot.slane %v10561, 4
        %v10563 = vadd.f32 %v10561, %v10562
        %v10564 = vrot.slane %v10563, 2
        %v10565 = vadd.f32 %v10563, %v10564
        %v10566 = vrot.slane %v10565, 1
        %v10567 = vadd.f32 %v10565, %v10566
        %v10568 = vadd.f32 %v9539, %v9540
        %v10569 = vadd.f32 %v10568, %v9541
        %v10570 = vadd.f32 %v10569, %v9542
        %v10571 = vadd.f32 %v10570, %v9543
        %v10572 = vadd.f32 %v10571, %v9544
        %v10573 = vadd.f32 %v10572, %v9545
        %v10574 = vadd.f32 %v10573, %v9546
        %v10575 = vadd.f32 %v10574, %v9547
        %v10576 = vadd.f32 %v10575, %v9548
        %v10577 = vadd.f32 %v10576, %v9549
        %v10578 = vadd.f32 %v10577, %v9550
        %v10579 = vadd.f32 %v10578, %v9551
        %v10580 = vadd.f32 %v10579, %v9552
        %v10581 = vadd.f32 %v10580, %v9553
        %v10582 = vadd.f32 %v10581, %v9554
        %v10583 = vadd.f32 %v10582, %v9555
        %v10584 = vadd.f32 %v10583, %v9556
        %v10585 = vadd.f32 %v10584, %v9557
        %v10586 = vadd.f32 %v10585, %v9558
        %v10587 = vadd.f32 %v10586, %v9559
        %v10588 = vadd.f32 %v10587, %v9560
        %v10589 = vadd.f32 %v10588, %v9561
        %v10590 = vadd.f32 %v10589, %v9562
        %v10591 = vadd.f32 %v10590, %v9563
        %v10592 = vadd.f32 %v10591, %v9564
        %v10593 = vadd.f32 %v10592, %v9565
        %v10594 = vadd.f32 %v10593, %v9566
        %v10595 = vadd.f32 %v10594, %v9567
        %v10596 = vadd.f32 %v10595, %v9568
        %v10597 = vadd.f32 %v10596, %v9569
        %v10598 = vadd.f32 %v10597, %v9570
        %v10599 = vrot.slane %v10598, 4
        %v10600 = vadd.f32 %v10598, %v10599
        %v10601 = vrot.slane %v10600, 2
        %v10602 = vadd.f32 %v10600, %v10601
        %v10603 = vrot.slane %v10602, 1
        %v10604 = vadd.f32 %v10602, %v10603
        %v10605 = vadd.f32 %v9571, %v9572
        %v10606 = vadd.f32 %v10605, %v9573
        %v10607 = vadd.f32 %v10606, %v9574
        %v10608 = vadd.f32 %v10607, %v9575
        %v10609 = vadd.f32 %v10608, %v9576
        %v10610 = vadd.f32 %v10609, %v9577
        %v10611 = vadd.f32 %v10610, %v9578
        %v10612 = vadd.f32 %v10611, %v9579
        %v10613 = vadd.f32 %v10612, %v9580
        %v10614 = vadd.f32 %v10613, %v9581
        %v10615 = vadd.f32 %v10614, %v9582
        %v10616 = vadd.f32 %v10615, %v9583
        %v10617 = vadd.f32 %v10616, %v9584
        %v10618 = vadd.f32 %v10617, %v9585
        %v10619 = vadd.f32 %v10618, %v9586
        %v10620 = vadd.f32 %v10619, %v9587
        %v10621 = vadd.f32 %v10620, %v9588
        %v10622 = vadd.f32 %v10621, %v9589
        %v10623 = vadd.f32 %v10622, %v9590
        %v10624 = vadd.f32 %v10623, %v9591
        %v10625 = vadd.f32 %v10624, %v9592
        %v10626 = vadd.f32 %v10625, %v9593
        %v10627 = vadd.f32 %v10626, %v9594
        %v10628 = vadd.f32 %v10627, %v9595
        %v10629 = vadd.f32 %v10628, %v9596
        %v10630 = vadd.f32 %v10629, %v9597
        %v10631 = vadd.f32 %v10630, %v9598
        %v10632 = vadd.f32 %v10631, %v9599
        %v10633 = vadd.f32 %v10632, %v9600
        %v10634 = vadd.f32 %v10633, %v9601
        %v10635 = vadd.f32 %v10634, %v9602
        %v10636 = vrot.slane %v10635, 4
        %v10637 = vadd.f32 %v10635, %v10636
        %v10638 = vrot.slane %v10637, 2
        %v10639 = vadd.f32 %v10637, %v10638
        %v10640 = vrot.slane %v10639, 1
        %v10641 = vadd.f32 %v10639, %v10640
        %v10642 = vadd.f32 %v9603, %v9604
        %v10643 = vadd.f32 %v10642, %v9605
        %v10644 = vadd.f32 %v10643, %v9606
        %v10645 = vadd.f32 %v10644, %v9607
        %v10646 = vadd.f32 %v10645, %v9608
        %v10647 = vadd.f32 %v10646, %v9609
        %v10648 = vadd.f32 %v10647, %v9610
        %v10649 = vadd.f32 %v10648, %v9611
        %v10650 = vadd.f32 %v10649, %v9612
        %v10651 = vadd.f32 %v10650, %v9613
        %v10652 = vadd.f32 %v10651, %v9614
        %v10653 = vadd.f32 %v10652, %v9615
        %v10654 = vadd.f32 %v10653, %v9616
        %v10655 = vadd.f32 %v10654, %v9617
        %v10656 = vadd.f32 %v10655, %v9618
        %v10657 = vadd.f32 %v10656, %v9619
        %v10658 = vadd.f32 %v10657, %v9620
        %v10659 = vadd.f32 %v10658, %v9621
        %v10660 = vadd.f32 %v10659, %v9622
        %v10661 = vadd.f32 %v10660, %v9623
        %v10662 = vadd.f32 %v10661, %v9624
        %v10663 = vadd.f32 %v10662, %v9625
        %v10664 = vadd.f32 %v10663, %v9626
        %v10665 = vadd.f32 %v10664, %v9627
        %v10666 = vadd.f32 %v10665, %v9628
        %v10667 = vadd.f32 %v10666, %v9629
        %v10668 = vadd.f32 %v10667, %v9630
        %v10669 = vadd.f32 %v10668, %v9631
        %v10670 = vadd.f32 %v10669, %v9632
        %v10671 = vadd.f32 %v10670, %v9633
        %v10672 = vadd.f32 %v10671, %v9634
        %v10673 = vrot.slane %v10672, 4
        %v10674 = vadd.f32 %v10672, %v10673
        %v10675 = vrot.slane %v10674, 2
        %v10676 = vadd.f32 %v10674, %v10675
        %v10677 = vrot.slane %v10676, 1
        %v10678 = vadd.f32 %v10676, %v10677
        %v10679 = vadd.f32 %v9635, %v9636
        %v10680 = vadd.f32 %v10679, %v9637
        %v10681 = vadd.f32 %v10680, %v9638
        %v10682 = vadd.f32 %v10681, %v9639
        %v10683 = vadd.f32 %v10682, %v9640
        %v10684 = vadd.f32 %v10683, %v9641
        %v10685 = vadd.f32 %v10684, %v9642
        %v10686 = vadd.f32 %v10685, %v9643
        %v10687 = vadd.f32 %v10686, %v9644
        %v10688 = vadd.f32 %v10687, %v9645
        %v10689 = vadd.f32 %v10688, %v9646
        %v10690 = vadd.f32 %v10689, %v9647
        %v10691 = vadd.f32 %v10690, %v9648
        %v10692 = vadd.f32 %v10691, %v9649
        %v10693 = vadd.f32 %v10692, %v9650
        %v10694 = vadd.f32 %v10693, %v9651
        %v10695 = vadd.f32 %v10694, %v9652
        %v10696 = vadd.f32 %v10695, %v9653
        %v10697 = vadd.f32 %v10696, %v9654
        %v10698 = vadd.f32 %v10697, %v9655
        %v10699 = vadd.f32 %v10698, %v9656
        %v10700 = vadd.f32 %v10699, %v9657
        %v10701 = vadd.f32 %v10700, %v9658
        %v10702 = vadd.f32 %v10701, %v9659
        %v10703 = vadd.f32 %v10702, %v9660
        %v10704 = vadd.f32 %v10703, %v9661
        %v10705 = vadd.f32 %v10704, %v9662
        %v10706 = vadd.f32 %v10705, %v9663
        %v10707 = vadd.f32 %v10706, %v9664
        %v10708 = vadd.f32 %v10707, %v9665
        %v10709 = vadd.f32 %v10708, %v9666
        %v10710 = vrot.slane %v10709, 4
        %v10711 = vadd.f32 %v10709, %v10710
        %v10712 = vrot.slane %v10711, 2
        %v10713 = vadd.f32 %v10711, %v10712
        %v10714 = vrot.slane %v10713, 1
        %v10715 = vadd.f32 %v10713, %v10714
        %v10716 = vadd.f32 %v9667, %v9668
        %v10717 = vadd.f32 %v10716, %v9669
        %v10718 = vadd.f32 %v10717, %v9670
        %v10719 = vadd.f32 %v10718, %v9671
        %v10720 = vadd.f32 %v10719, %v9672
        %v10721 = vadd.f32 %v10720, %v9673
        %v10722 = vadd.f32 %v10721, %v9674
        %v10723 = vadd.f32 %v10722, %v9675
        %v10724 = vadd.f32 %v10723, %v9676
        %v10725 = vadd.f32 %v10724, %v9677
        %v10726 = vadd.f32 %v10725, %v9678
        %v10727 = vadd.f32 %v10726, %v9679
        %v10728 = vadd.f32 %v10727, %v9680
        %v10729 = vadd.f32 %v10728, %v9681
        %v10730 = vadd.f32 %v10729, %v9682
        %v10731 = vadd.f32 %v10730, %v9683
        %v10732 = vadd.f32 %v10731, %v9684
        %v10733 = vadd.f32 %v10732, %v9685
        %v10734 = vadd.f32 %v10733, %v9686
        %v10735 = vadd.f32 %v10734, %v9687
        %v10736 = vadd.f32 %v10735, %v9688
        %v10737 = vadd.f32 %v10736, %v9689
        %v10738 = vadd.f32 %v10737, %v9690
        %v10739 = vadd.f32 %v10738, %v9691
        %v10740 = vadd.f32 %v10739, %v9692
        %v10741 = vadd.f32 %v10740, %v9693
        %v10742 = vadd.f32 %v10741, %v9694
        %v10743 = vadd.f32 %v10742, %v9695
        %v10744 = vadd.f32 %v10743, %v9696
        %v10745 = vadd.f32 %v10744, %v9697
        %v10746 = vadd.f32 %v10745, %v9698
        %v10747 = vrot.slane %v10746, 4
        %v10748 = vadd.f32 %v10746, %v10747
        %v10749 = vrot.slane %v10748, 2
        %v10750 = vadd.f32 %v10748, %v10749
        %v10751 = vrot.slane %v10750, 1
        %v10752 = vadd.f32 %v10750, %v10751
        %v10753 = vadd.f32 %v9699, %v9700
        %v10754 = vadd.f32 %v10753, %v9701
        %v10755 = vadd.f32 %v10754, %v9702
        %v10756 = vadd.f32 %v10755, %v9703
        %v10757 = vadd.f32 %v10756, %v9704
        %v10758 = vadd.f32 %v10757, %v9705
        %v10759 = vadd.f32 %v10758, %v9706
        %v10760 = vadd.f32 %v10759, %v9707
        %v10761 = vadd.f32 %v10760, %v9708
        %v10762 = vadd.f32 %v10761, %v9709
        %v10763 = vadd.f32 %v10762, %v9710
        %v10764 = vadd.f32 %v10763, %v9711
        %v10765 = vadd.f32 %v10764, %v9712
        %v10766 = vadd.f32 %v10765, %v9713
        %v10767 = vadd.f32 %v10766, %v9714
        %v10768 = vadd.f32 %v10767, %v9715
        %v10769 = vadd.f32 %v10768, %v9716
        %v10770 = vadd.f32 %v10769, %v9717
        %v10771 = vadd.f32 %v10770, %v9718
        %v10772 = vadd.f32 %v10771, %v9719
        %v10773 = vadd.f32 %v10772, %v9720
        %v10774 = vadd.f32 %v10773, %v9721
        %v10775 = vadd.f32 %v10774, %v9722
        %v10776 = vadd.f32 %v10775, %v9723
        %v10777 = vadd.f32 %v10776, %v9724
        %v10778 = vadd.f32 %v10777, %v9725
        %v10779 = vadd.f32 %v10778, %v9726
        %v10780 = vadd.f32 %v10779, %v9727
        %v10781 = vadd.f32 %v10780, %v9728
        %v10782 = vadd.f32 %v10781, %v9729
        %v10783 = vadd.f32 %v10782, %v9730
        %v10784 = vrot.slane %v10783, 4
        %v10785 = vadd.f32 %v10783, %v10784
        %v10786 = vrot.slane %v10785, 2
        %v10787 = vadd.f32 %v10785, %v10786
        %v10788 = vrot.slane %v10787, 1
        %v10789 = vadd.f32 %v10787, %v10788
        %v10790 = vadd.f32 %v9731, %v9732
        %v10791 = vadd.f32 %v10790, %v9733
        %v10792 = vadd.f32 %v10791, %v9734
        %v10793 = vadd.f32 %v10792, %v9735
        %v10794 = vadd.f32 %v10793, %v9736
        %v10795 = vadd.f32 %v10794, %v9737
        %v10796 = vadd.f32 %v10795, %v9738
        %v10797 = vadd.f32 %v10796, %v9739
        %v10798 = vadd.f32 %v10797, %v9740
        %v10799 = vadd.f32 %v10798, %v9741
        %v10800 = vadd.f32 %v10799, %v9742
        %v10801 = vadd.f32 %v10800, %v9743
        %v10802 = vadd.f32 %v10801, %v9744
        %v10803 = vadd.f32 %v10802, %v9745
        %v10804 = vadd.f32 %v10803, %v9746
        %v10805 = vadd.f32 %v10804, %v9747
        %v10806 = vadd.f32 %v10805, %v9748
        %v10807 = vadd.f32 %v10806, %v9749
        %v10808 = vadd.f32 %v10807, %v9750
        %v10809 = vadd.f32 %v10808, %v9751
        %v10810 = vadd.f32 %v10809, %v9752
        %v10811 = vadd.f32 %v10810, %v9753
        %v10812 = vadd.f32 %v10811, %v9754
        %v10813 = vadd.f32 %v10812, %v9755
        %v10814 = vadd.f32 %v10813, %v9756
        %v10815 = vadd.f32 %v10814, %v9757
        %v10816 = vadd.f32 %v10815, %v9758
        %v10817 = vadd.f32 %v10816, %v9759
        %v10818 = vadd.f32 %v10817, %v9760
        %v10819 = vadd.f32 %v10818, %v9761
        %v10820 = vadd.f32 %v10819, %v9762
        %v10821 = vrot.slane %v10820, 4
        %v10822 = vadd.f32 %v10820, %v10821
        %v10823 = vrot.slane %v10822, 2
        %v10824 = vadd.f32 %v10822, %v10823
        %v10825 = vrot.slane %v10824, 1
        %v10826 = vadd.f32 %v10824, %v10825
        %v10827 = vadd.f32 %v9763, %v9764
        %v10828 = vadd.f32 %v10827, %v9765
        %v10829 = vadd.f32 %v10828, %v9766
        %v10830 = vadd.f32 %v10829, %v9767
        %v10831 = vadd.f32 %v10830, %v9768
        %v10832 = vadd.f32 %v10831, %v9769
        %v10833 = vadd.f32 %v10832, %v9770
        %v10834 = vadd.f32 %v10833, %v9771
        %v10835 = vadd.f32 %v10834, %v9772
        %v10836 = vadd.f32 %v10835, %v9773
        %v10837 = vadd.f32 %v10836, %v9774
        %v10838 = vadd.f32 %v10837, %v9775
        %v10839 = vadd.f32 %v10838, %v9776
        %v10840 = vadd.f32 %v10839, %v9777
        %v10841 = vadd.f32 %v10840, %v9778
        %v10842 = vadd.f32 %v10841, %v9779
        %v10843 = vadd.f32 %v10842, %v9780
        %v10844 = vadd.f32 %v10843, %v9781
        %v10845 = vadd.f32 %v10844, %v9782
        %v10846 = vadd.f32 %v10845, %v9783
        %v10847 = vadd.f32 %v10846, %v9784
        %v10848 = vadd.f32 %v10847, %v9785
        %v10849 = vadd.f32 %v10848, %v9786
        %v10850 = vadd.f32 %v10849, %v9787
        %v10851 = vadd.f32 %v10850, %v9788
        %v10852 = vadd.f32 %v10851, %v9789
        %v10853 = vadd.f32 %v10852, %v9790
        %v10854 = vadd.f32 %v10853, %v9791
        %v10855 = vadd.f32 %v10854, %v9792
        %v10856 = vadd.f32 %v10855, %v9793
        %v10857 = vadd.f32 %v10856, %v9794
        %v10858 = vrot.slane %v10857, 4
        %v10859 = vadd.f32 %v10857, %v10858
        %v10860 = vrot.slane %v10859, 2
        %v10861 = vadd.f32 %v10859, %v10860
        %v10862 = vrot.slane %v10861, 1
        %v10863 = vadd.f32 %v10861, %v10862
        %v10864 = vadd.f32 %v9795, %v9796
        %v10865 = vadd.f32 %v10864, %v9797
        %v10866 = vadd.f32 %v10865, %v9798
        %v10867 = vadd.f32 %v10866, %v9799
        %v10868 = vadd.f32 %v10867, %v9800
        %v10869 = vadd.f32 %v10868, %v9801
        %v10870 = vadd.f32 %v10869, %v9802
        %v10871 = vadd.f32 %v10870, %v9803
        %v10872 = vadd.f32 %v10871, %v9804
        %v10873 = vadd.f32 %v10872, %v9805
        %v10874 = vadd.f32 %v10873, %v9806
        %v10875 = vadd.f32 %v10874, %v9807
        %v10876 = vadd.f32 %v10875, %v9808
        %v10877 = vadd.f32 %v10876, %v9809
        %v10878 = vadd.f32 %v10877, %v9810
        %v10879 = vadd.f32 %v10878, %v9811
        %v10880 = vadd.f32 %v10879, %v9812
        %v10881 = vadd.f32 %v10880, %v9813
        %v10882 = vadd.f32 %v10881, %v9814
        %v10883 = vadd.f32 %v10882, %v9815
        %v10884 = vadd.f32 %v10883, %v9816
        %v10885 = vadd.f32 %v10884, %v9817
        %v10886 = vadd.f32 %v10885, %v9818
        %v10887 = vadd.f32 %v10886, %v9819
        %v10888 = vadd.f32 %v10887, %v9820
        %v10889 = vadd.f32 %v10888, %v9821
        %v10890 = vadd.f32 %v10889, %v9822
        %v10891 = vadd.f32 %v10890, %v9823
        %v10892 = vadd.f32 %v10891, %v9824
        %v10893 = vadd.f32 %v10892, %v9825
        %v10894 = vadd.f32 %v10893, %v9826
        %v10895 = vrot.slane %v10894, 4
        %v10896 = vadd.f32 %v10894, %v10895
        %v10897 = vrot.slane %v10896, 2
        %v10898 = vadd.f32 %v10896, %v10897
        %v10899 = vrot.slane %v10898, 1
        %v10900 = vadd.f32 %v10898, %v10899
        %v10901 = vadd.f32 %v9827, %v9828
        %v10902 = vadd.f32 %v10901, %v9829
        %v10903 = vadd.f32 %v10902, %v9830
        %v10904 = vadd.f32 %v10903, %v9831
        %v10905 = vadd.f32 %v10904, %v9832
        %v10906 = vadd.f32 %v10905, %v9833
        %v10907 = vadd.f32 %v10906, %v9834
        %v10908 = vadd.f32 %v10907, %v9835
        %v10909 = vadd.f32 %v10908, %v9836
        %v10910 = vadd.f32 %v10909, %v9837
        %v10911 = vadd.f32 %v10910, %v9838
        %v10912 = vadd.f32 %v10911, %v9839
        %v10913 = vadd.f32 %v10912, %v9840
        %v10914 = vadd.f32 %v10913, %v9841
        %v10915 = vadd.f32 %v10914, %v9842
        %v10916 = vadd.f32 %v10915, %v9843
        %v10917 = vadd.f32 %v10916, %v9844
        %v10918 = vadd.f32 %v10917, %v9845
        %v10919 = vadd.f32 %v10918, %v9846
        %v10920 = vadd.f32 %v10919, %v9847
        %v10921 = vadd.f32 %v10920, %v9848
        %v10922 = vadd.f32 %v10921, %v9849
        %v10923 = vadd.f32 %v10922, %v9850
        %v10924 = vadd.f32 %v10923, %v9851
        %v10925 = vadd.f32 %v10924, %v9852
        %v10926 = vadd.f32 %v10925, %v9853
        %v10927 = vadd.f32 %v10926, %v9854
        %v10928 = vadd.f32 %v10927, %v9855
        %v10929 = vadd.f32 %v10928, %v9856
        %v10930 = vadd.f32 %v10929, %v9857
        %v10931 = vadd.f32 %v10930, %v9858
        %v10932 = vrot.slane %v10931, 4
        %v10933 = vadd.f32 %v10931, %v10932
        %v10934 = vrot.slane %v10933, 2
        %v10935 = vadd.f32 %v10933, %v10934
        %v10936 = vrot.slane %v10935, 1
        %v10937 = vadd.f32 %v10935, %v10936
        %v10938 = vadd.f32 %v9859, %v9860
        %v10939 = vadd.f32 %v10938, %v9861
        %v10940 = vadd.f32 %v10939, %v9862
        %v10941 = vadd.f32 %v10940, %v9863
        %v10942 = vadd.f32 %v10941, %v9864
        %v10943 = vadd.f32 %v10942, %v9865
        %v10944 = vadd.f32 %v10943, %v9866
        %v10945 = vadd.f32 %v10944, %v9867
        %v10946 = vadd.f32 %v10945, %v9868
        %v10947 = vadd.f32 %v10946, %v9869
        %v10948 = vadd.f32 %v10947, %v9870
        %v10949 = vadd.f32 %v10948, %v9871
        %v10950 = vadd.f32 %v10949, %v9872
        %v10951 = vadd.f32 %v10950, %v9873
        %v10952 = vadd.f32 %v10951, %v9874
        %v10953 = vadd.f32 %v10952, %v9875
        %v10954 = vadd.f32 %v10953, %v9876
        %v10955 = vadd.f32 %v10954, %v9877
        %v10956 = vadd.f32 %v10955, %v9878
        %v10957 = vadd.f32 %v10956, %v9879
        %v10958 = vadd.f32 %v10957, %v9880
        %v10959 = vadd.f32 %v10958, %v9881
        %v10960 = vadd.f32 %v10959, %v9882
        %v10961 = vadd.f32 %v10960, %v9883
        %v10962 = vadd.f32 %v10961, %v9884
        %v10963 = vadd.f32 %v10962, %v9885
        %v10964 = vadd.f32 %v10963, %v9886
        %v10965 = vadd.f32 %v10964, %v9887
        %v10966 = vadd.f32 %v10965, %v9888
        %v10967 = vadd.f32 %v10966, %v9889
        %v10968 = vadd.f32 %v10967, %v9890
        %v10969 = vrot.slane %v10968, 4
        %v10970 = vadd.f32 %v10968, %v10969
        %v10971 = vrot.slane %v10970, 2
        %v10972 = vadd.f32 %v10970, %v10971
        %v10973 = vrot.slane %v10972, 1
        %v10974 = vadd.f32 %v10972, %v10973
        %v10975 = vadd.f32 %v9891, %v9892
        %v10976 = vadd.f32 %v10975, %v9893
        %v10977 = vadd.f32 %v10976, %v9894
        %v10978 = vadd.f32 %v10977, %v9895
        %v10979 = vadd.f32 %v10978, %v9896
        %v10980 = vadd.f32 %v10979, %v9897
        %v10981 = vadd.f32 %v10980, %v9898
        %v10982 = vadd.f32 %v10981, %v9899
        %v10983 = vadd.f32 %v10982, %v9900
        %v10984 = vadd.f32 %v10983, %v9901
        %v10985 = vadd.f32 %v10984, %v9902
        %v10986 = vadd.f32 %v10985, %v9903
        %v10987 = vadd.f32 %v10986, %v9904
        %v10988 = vadd.f32 %v10987, %v9905
        %v10989 = vadd.f32 %v10988, %v9906
        %v10990 = vadd.f32 %v10989, %v9907
        %v10991 = vadd.f32 %v10990, %v9908
        %v10992 = vadd.f32 %v10991, %v9909
        %v10993 = vadd.f32 %v10992, %v9910
        %v10994 = vadd.f32 %v10993, %v9911
        %v10995 = vadd.f32 %v10994, %v9912
        %v10996 = vadd.f32 %v10995, %v9913
        %v10997 = vadd.f32 %v10996, %v9914
        %v10998 = vadd.f32 %v10997, %v9915
        %v10999 = vadd.f32 %v10998, %v9916
        %v11000 = vadd.f32 %v10999, %v9917
        %v11001 = vadd.f32 %v11000, %v9918
        %v11002 = vadd.f32 %v11001, %v9919
        %v11003 = vadd.f32 %v11002, %v9920
        %v11004 = vadd.f32 %v11003, %v9921
        %v11005 = vadd.f32 %v11004, %v9922
        %v11006 = vrot.slane %v11005, 4
        %v11007 = vadd.f32 %v11005, %v11006
        %v11008 = vrot.slane %v11007, 2
        %v11009 = vadd.f32 %v11007, %v11008
        %v11010 = vrot.slane %v11009, 1
        %v11011 = vadd.f32 %v11009, %v11010
        %v11012 = vadd.f32 %v9923, %v9924
        %v11013 = vadd.f32 %v11012, %v9925
        %v11014 = vadd.f32 %v11013, %v9926
        %v11015 = vadd.f32 %v11014, %v9927
        %v11016 = vadd.f32 %v11015, %v9928
        %v11017 = vadd.f32 %v11016, %v9929
        %v11018 = vadd.f32 %v11017, %v9930
        %v11019 = vadd.f32 %v11018, %v9931
        %v11020 = vadd.f32 %v11019, %v9932
        %v11021 = vadd.f32 %v11020, %v9933
        %v11022 = vadd.f32 %v11021, %v9934
        %v11023 = vadd.f32 %v11022, %v9935
        %v11024 = vadd.f32 %v11023, %v9936
        %v11025 = vadd.f32 %v11024, %v9937
        %v11026 = vadd.f32 %v11025, %v9938
        %v11027 = vadd.f32 %v11026, %v9939
        %v11028 = vadd.f32 %v11027, %v9940
        %v11029 = vadd.f32 %v11028, %v9941
        %v11030 = vadd.f32 %v11029, %v9942
        %v11031 = vadd.f32 %v11030, %v9943
        %v11032 = vadd.f32 %v11031, %v9944
        %v11033 = vadd.f32 %v11032, %v9945
        %v11034 = vadd.f32 %v11033, %v9946
        %v11035 = vadd.f32 %v11034, %v9947
        %v11036 = vadd.f32 %v11035, %v9948
        %v11037 = vadd.f32 %v11036, %v9949
        %v11038 = vadd.f32 %v11037, %v9950
        %v11039 = vadd.f32 %v11038, %v9951
        %v11040 = vadd.f32 %v11039, %v9952
        %v11041 = vadd.f32 %v11040, %v9953
        %v11042 = vadd.f32 %v11041, %v9954
        %v11043 = vrot.slane %v11042, 4
        %v11044 = vadd.f32 %v11042, %v11043
        %v11045 = vrot.slane %v11044, 2
        %v11046 = vadd.f32 %v11044, %v11045
        %v11047 = vrot.slane %v11046, 1
        %v11048 = vadd.f32 %v11046, %v11047
        %v11049 = vadd.f32 %v9955, %v9956
        %v11050 = vadd.f32 %v11049, %v9957
        %v11051 = vadd.f32 %v11050, %v9958
        %v11052 = vadd.f32 %v11051, %v9959
        %v11053 = vadd.f32 %v11052, %v9960
        %v11054 = vadd.f32 %v11053, %v9961
        %v11055 = vadd.f32 %v11054, %v9962
        %v11056 = vadd.f32 %v11055, %v9963
        %v11057 = vadd.f32 %v11056, %v9964
        %v11058 = vadd.f32 %v11057, %v9965
        %v11059 = vadd.f32 %v11058, %v9966
        %v11060 = vadd.f32 %v11059, %v9967
        %v11061 = vadd.f32 %v11060, %v9968
        %v11062 = vadd.f32 %v11061, %v9969
        %v11063 = vadd.f32 %v11062, %v9970
        %v11064 = vadd.f32 %v11063, %v9971
        %v11065 = vadd.f32 %v11064, %v9972
        %v11066 = vadd.f32 %v11065, %v9973
        %v11067 = vadd.f32 %v11066, %v9974
        %v11068 = vadd.f32 %v11067, %v9975
        %v11069 = vadd.f32 %v11068, %v9976
        %v11070 = vadd.f32 %v11069, %v9977
        %v11071 = vadd.f32 %v11070, %v9978
        %v11072 = vadd.f32 %v11071, %v9979
        %v11073 = vadd.f32 %v11072, %v9980
        %v11074 = vadd.f32 %v11073, %v9981
        %v11075 = vadd.f32 %v11074, %v9982
        %v11076 = vadd.f32 %v11075, %v9983
        %v11077 = vadd.f32 %v11076, %v9984
        %v11078 = vadd.f32 %v11077, %v9985
        %v11079 = vadd.f32 %v11078, %v9986
        %v11080 = vrot.slane %v11079, 4
        %v11081 = vadd.f32 %v11079, %v11080
        %v11082 = vrot.slane %v11081, 2
        %v11083 = vadd.f32 %v11081, %v11082
        %v11084 = vrot.slane %v11083, 1
        %v11085 = vadd.f32 %v11083, %v11084
        %v11086 = vadd.f32 %v9987, %v9988
        %v11087 = vadd.f32 %v11086, %v9989
        %v11088 = vadd.f32 %v11087, %v9990
        %v11089 = vadd.f32 %v11088, %v9991
        %v11090 = vadd.f32 %v11089, %v9992
        %v11091 = vadd.f32 %v11090, %v9993
        %v11092 = vadd.f32 %v11091, %v9994
        %v11093 = vadd.f32 %v11092, %v9995
        %v11094 = vadd.f32 %v11093, %v9996
        %v11095 = vadd.f32 %v11094, %v9997
        %v11096 = vadd.f32 %v11095, %v9998
        %v11097 = vadd.f32 %v11096, %v9999
        %v11098 = vadd.f32 %v11097, %v10000
        %v11099 = vadd.f32 %v11098, %v10001
        %v11100 = vadd.f32 %v11099, %v10002
        %v11101 = vadd.f32 %v11100, %v10003
        %v11102 = vadd.f32 %v11101, %v10004
        %v11103 = vadd.f32 %v11102, %v10005
        %v11104 = vadd.f32 %v11103, %v10006
        %v11105 = vadd.f32 %v11104, %v10007
        %v11106 = vadd.f32 %v11105, %v10008
        %v11107 = vadd.f32 %v11106, %v10009
        %v11108 = vadd.f32 %v11107, %v10010
        %v11109 = vadd.f32 %v11108, %v10011
        %v11110 = vadd.f32 %v11109, %v10012
        %v11111 = vadd.f32 %v11110, %v10013
        %v11112 = vadd.f32 %v11111, %v10014
        %v11113 = vadd.f32 %v11112, %v10015
        %v11114 = vadd.f32 %v11113, %v10016
        %v11115 = vadd.f32 %v11114, %v10017
        %v11116 = vadd.f32 %v11115, %v10018
        %v11117 = vrot.slane %v11116, 4
        %v11118 = vadd.f32 %v11116, %v11117
        %v11119 = vrot.slane %v11118, 2
        %v11120 = vadd.f32 %v11118, %v11119
        %v11121 = vrot.slane %v11120, 1
        %v11122 = vadd.f32 %v11120, %v11121
        %v11123 = vadd.f32 %v10019, %v10020
        %v11124 = vadd.f32 %v11123, %v10021
        %v11125 = vadd.f32 %v11124, %v10022
        %v11126 = vadd.f32 %v11125, %v10023
        %v11127 = vadd.f32 %v11126, %v10024
        %v11128 = vadd.f32 %v11127, %v10025
        %v11129 = vadd.f32 %v11128, %v10026
        %v11130 = vadd.f32 %v11129, %v10027
        %v11131 = vadd.f32 %v11130, %v10028
        %v11132 = vadd.f32 %v11131, %v10029
        %v11133 = vadd.f32 %v11132, %v10030
        %v11134 = vadd.f32 %v11133, %v10031
        %v11135 = vadd.f32 %v11134, %v10032
        %v11136 = vadd.f32 %v11135, %v10033
        %v11137 = vadd.f32 %v11136, %v10034
        %v11138 = vadd.f32 %v11137, %v10035
        %v11139 = vadd.f32 %v11138, %v10036
        %v11140 = vadd.f32 %v11139, %v10037
        %v11141 = vadd.f32 %v11140, %v10038
        %v11142 = vadd.f32 %v11141, %v10039
        %v11143 = vadd.f32 %v11142, %v10040
        %v11144 = vadd.f32 %v11143, %v10041
        %v11145 = vadd.f32 %v11144, %v10042
        %v11146 = vadd.f32 %v11145, %v10043
        %v11147 = vadd.f32 %v11146, %v10044
        %v11148 = vadd.f32 %v11147, %v10045
        %v11149 = vadd.f32 %v11148, %v10046
        %v11150 = vadd.f32 %v11149, %v10047
        %v11151 = vadd.f32 %v11150, %v10048
        %v11152 = vadd.f32 %v11151, %v10049
        %v11153 = vadd.f32 %v11152, %v10050
        %v11154 = vrot.slane %v11153, 4
        %v11155 = vadd.f32 %v11153, %v11154
        %v11156 = vrot.slane %v11155, 2
        %v11157 = vadd.f32 %v11155, %v11156
        %v11158 = vrot.slane %v11157, 1
        %v11159 = vadd.f32 %v11157, %v11158
        %v11160 = vadd.f32 %v10051, %v10052
        %v11161 = vadd.f32 %v11160, %v10053
        %v11162 = vadd.f32 %v11161, %v10054
        %v11163 = vadd.f32 %v11162, %v10055
        %v11164 = vadd.f32 %v11163, %v10056
        %v11165 = vadd.f32 %v11164, %v10057
        %v11166 = vadd.f32 %v11165, %v10058
        %v11167 = vadd.f32 %v11166, %v10059
        %v11168 = vadd.f32 %v11167, %v10060
        %v11169 = vadd.f32 %v11168, %v10061
        %v11170 = vadd.f32 %v11169, %v10062
        %v11171 = vadd.f32 %v11170, %v10063
        %v11172 = vadd.f32 %v11171, %v10064
        %v11173 = vadd.f32 %v11172, %v10065
        %v11174 = vadd.f32 %v11173, %v10066
        %v11175 = vadd.f32 %v11174, %v10067
        %v11176 = vadd.f32 %v11175, %v10068
        %v11177 = vadd.f32 %v11176, %v10069
        %v11178 = vadd.f32 %v11177, %v10070
        %v11179 = vadd.f32 %v11178, %v10071
        %v11180 = vadd.f32 %v11179, %v10072
        %v11181 = vadd.f32 %v11180, %v10073
        %v11182 = vadd.f32 %v11181, %v10074
        %v11183 = vadd.f32 %v11182, %v10075
        %v11184 = vadd.f32 %v11183, %v10076
        %v11185 = vadd.f32 %v11184, %v10077
        %v11186 = vadd.f32 %v11185, %v10078
        %v11187 = vadd.f32 %v11186, %v10079
        %v11188 = vadd.f32 %v11187, %v10080
        %v11189 = vadd.f32 %v11188, %v10081
        %v11190 = vadd.f32 %v11189, %v10082
        %v11191 = vrot.slane %v11190, 4
        %v11192 = vadd.f32 %v11190, %v11191
        %v11193 = vrot.slane %v11192, 2
        %v11194 = vadd.f32 %v11192, %v11193
        %v11195 = vrot.slane %v11194, 1
        %v11196 = vadd.f32 %v11194, %v11195
        %v11197 = vadd.f32 %v10083, %v10084
        %v11198 = vadd.f32 %v11197, %v10085
        %v11199 = vadd.f32 %v11198, %v10086
        %v11200 = vadd.f32 %v11199, %v10087
        %v11201 = vadd.f32 %v11200, %v10088
        %v11202 = vadd.f32 %v11201, %v10089
        %v11203 = vadd.f32 %v11202, %v10090
        %v11204 = vadd.f32 %v11203, %v10091
        %v11205 = vadd.f32 %v11204, %v10092
        %v11206 = vadd.f32 %v11205, %v10093
        %v11207 = vadd.f32 %v11206, %v10094
        %v11208 = vadd.f32 %v11207, %v10095
        %v11209 = vadd.f32 %v11208, %v10096
        %v11210 = vadd.f32 %v11209, %v10097
        %v11211 = vadd.f32 %v11210, %v10098
        %v11212 = vadd.f32 %v11211, %v10099
        %v11213 = vadd.f32 %v11212, %v10100
        %v11214 = vadd.f32 %v11213, %v10101
        %v11215 = vadd.f32 %v11214, %v10102
        %v11216 = vadd.f32 %v11215, %v10103
        %v11217 = vadd.f32 %v11216, %v10104
        %v11218 = vadd.f32 %v11217, %v10105
        %v11219 = vadd.f32 %v11218, %v10106
        %v11220 = vadd.f32 %v11219, %v10107
        %v11221 = vadd.f32 %v11220, %v10108
        %v11222 = vadd.f32 %v11221, %v10109
        %v11223 = vadd.f32 %v11222, %v10110
        %v11224 = vadd.f32 %v11223, %v10111
        %v11225 = vadd.f32 %v11224, %v10112
        %v11226 = vadd.f32 %v11225, %v10113
        %v11227 = vadd.f32 %v11226, %v10114
        %v11228 = vrot.slane %v11227, 4
        %v11229 = vadd.f32 %v11227, %v11228
        %v11230 = vrot.slane %v11229, 2
        %v11231 = vadd.f32 %v11229, %v11230
        %v11232 = vrot.slane %v11231, 1
        %v11233 = vadd.f32 %v11231, %v11232
        %v11234 = vadd.f32 %v10115, %v10116
        %v11235 = vadd.f32 %v11234, %v10117
        %v11236 = vadd.f32 %v11235, %v10118
        %v11237 = vadd.f32 %v11236, %v10119
        %v11238 = vadd.f32 %v11237, %v10120
        %v11239 = vadd.f32 %v11238, %v10121
        %v11240 = vadd.f32 %v11239, %v10122
        %v11241 = vadd.f32 %v11240, %v10123
        %v11242 = vadd.f32 %v11241, %v10124
        %v11243 = vadd.f32 %v11242, %v10125
        %v11244 = vadd.f32 %v11243, %v10126
        %v11245 = vadd.f32 %v11244, %v10127
        %v11246 = vadd.f32 %v11245, %v10128
        %v11247 = vadd.f32 %v11246, %v10129
        %v11248 = vadd.f32 %v11247, %v10130
        %v11249 = vadd.f32 %v11248, %v10131
        %v11250 = vadd.f32 %v11249, %v10132
        %v11251 = vadd.f32 %v11250, %v10133
        %v11252 = vadd.f32 %v11251, %v10134
        %v11253 = vadd.f32 %v11252, %v10135
        %v11254 = vadd.f32 %v11253, %v10136
        %v11255 = vadd.f32 %v11254, %v10137
        %v11256 = vadd.f32 %v11255, %v10138
        %v11257 = vadd.f32 %v11256, %v10139
        %v11258 = vadd.f32 %v11257, %v10140
        %v11259 = vadd.f32 %v11258, %v10141
        %v11260 = vadd.f32 %v11259, %v10142
        %v11261 = vadd.f32 %v11260, %v10143
        %v11262 = vadd.f32 %v11261, %v10144
        %v11263 = vadd.f32 %v11262, %v10145
        %v11264 = vadd.f32 %v11263, %v10146
        %v11265 = vrot.slane %v11264, 4
        %v11266 = vadd.f32 %v11264, %v11265
        %v11267 = vrot.slane %v11266, 2
        %v11268 = vadd.f32 %v11266, %v11267
        %v11269 = vrot.slane %v11268, 1
        %v11270 = vadd.f32 %v11268, %v11269
        %v11271 = vadd.f32 %v10147, %v10148
        %v11272 = vadd.f32 %v11271, %v10149
        %v11273 = vadd.f32 %v11272, %v10150
        %v11274 = vadd.f32 %v11273, %v10151
        %v11275 = vadd.f32 %v11274, %v10152
        %v11276 = vadd.f32 %v11275, %v10153
        %v11277 = vadd.f32 %v11276, %v10154
        %v11278 = vadd.f32 %v11277, %v10155
        %v11279 = vadd.f32 %v11278, %v10156
        %v11280 = vadd.f32 %v11279, %v10157
        %v11281 = vadd.f32 %v11280, %v10158
        %v11282 = vadd.f32 %v11281, %v10159
        %v11283 = vadd.f32 %v11282, %v10160
        %v11284 = vadd.f32 %v11283, %v10161
        %v11285 = vadd.f32 %v11284, %v10162
        %v11286 = vadd.f32 %v11285, %v10163
        %v11287 = vadd.f32 %v11286, %v10164
        %v11288 = vadd.f32 %v11287, %v10165
        %v11289 = vadd.f32 %v11288, %v10166
        %v11290 = vadd.f32 %v11289, %v10167
        %v11291 = vadd.f32 %v11290, %v10168
        %v11292 = vadd.f32 %v11291, %v10169
        %v11293 = vadd.f32 %v11292, %v10170
        %v11294 = vadd.f32 %v11293, %v10171
        %v11295 = vadd.f32 %v11294, %v10172
        %v11296 = vadd.f32 %v11295, %v10173
        %v11297 = vadd.f32 %v11296, %v10174
        %v11298 = vadd.f32 %v11297, %v10175
        %v11299 = vadd.f32 %v11298, %v10176
        %v11300 = vadd.f32 %v11299, %v10177
        %v11301 = vadd.f32 %v11300, %v10178
        %v11302 = vrot.slane %v11301, 4
        %v11303 = vadd.f32 %v11301, %v11302
        %v11304 = vrot.slane %v11303, 2
        %v11305 = vadd.f32 %v11303, %v11304
        %v11306 = vrot.slane %v11305, 1
        %v11307 = vadd.f32 %v11305, %v11306
        %v11308 = vadd.f32 %v10179, %v10180
        %v11309 = vadd.f32 %v11308, %v10181
        %v11310 = vadd.f32 %v11309, %v10182
        %v11311 = vadd.f32 %v11310, %v10183
        %v11312 = vadd.f32 %v11311, %v10184
        %v11313 = vadd.f32 %v11312, %v10185
        %v11314 = vadd.f32 %v11313, %v10186
        %v11315 = vadd.f32 %v11314, %v10187
        %v11316 = vadd.f32 %v11315, %v10188
        %v11317 = vadd.f32 %v11316, %v10189
        %v11318 = vadd.f32 %v11317, %v10190
        %v11319 = vadd.f32 %v11318, %v10191
        %v11320 = vadd.f32 %v11319, %v10192
        %v11321 = vadd.f32 %v11320, %v10193
        %v11322 = vadd.f32 %v11321, %v10194
        %v11323 = vadd.f32 %v11322, %v10195
        %v11324 = vadd.f32 %v11323, %v10196
        %v11325 = vadd.f32 %v11324, %v10197
        %v11326 = vadd.f32 %v11325, %v10198
        %v11327 = vadd.f32 %v11326, %v10199
        %v11328 = vadd.f32 %v11327, %v10200
        %v11329 = vadd.f32 %v11328, %v10201
        %v11330 = vadd.f32 %v11329, %v10202
        %v11331 = vadd.f32 %v11330, %v10203
        %v11332 = vadd.f32 %v11331, %v10204
        %v11333 = vadd.f32 %v11332, %v10205
        %v11334 = vadd.f32 %v11333, %v10206
        %v11335 = vadd.f32 %v11334, %v10207
        %v11336 = vadd.f32 %v11335, %v10208
        %v11337 = vadd.f32 %v11336, %v10209
        %v11338 = vadd.f32 %v11337, %v10210
        %v11339 = vrot.slane %v11338, 4
        %v11340 = vadd.f32 %v11338, %v11339
        %v11341 = vrot.slane %v11340, 2
        %v11342 = vadd.f32 %v11340, %v11341
        %v11343 = vrot.slane %v11342, 1
        %v11344 = vadd.f32 %v11342, %v11343
        %v11345 = vadd.f32 %v10211, %v10212
        %v11346 = vadd.f32 %v11345, %v10213
        %v11347 = vadd.f32 %v11346, %v10214
        %v11348 = vadd.f32 %v11347, %v10215
        %v11349 = vadd.f32 %v11348, %v10216
        %v11350 = vadd.f32 %v11349, %v10217
        %v11351 = vadd.f32 %v11350, %v10218
        %v11352 = vadd.f32 %v11351, %v10219
        %v11353 = vadd.f32 %v11352, %v10220
        %v11354 = vadd.f32 %v11353, %v10221
        %v11355 = vadd.f32 %v11354, %v10222
        %v11356 = vadd.f32 %v11355, %v10223
        %v11357 = vadd.f32 %v11356, %v10224
        %v11358 = vadd.f32 %v11357, %v10225
        %v11359 = vadd.f32 %v11358, %v10226
        %v11360 = vadd.f32 %v11359, %v10227
        %v11361 = vadd.f32 %v11360, %v10228
        %v11362 = vadd.f32 %v11361, %v10229
        %v11363 = vadd.f32 %v11362, %v10230
        %v11364 = vadd.f32 %v11363, %v10231
        %v11365 = vadd.f32 %v11364, %v10232
        %v11366 = vadd.f32 %v11365, %v10233
        %v11367 = vadd.f32 %v11366, %v10234
        %v11368 = vadd.f32 %v11367, %v10235
        %v11369 = vadd.f32 %v11368, %v10236
        %v11370 = vadd.f32 %v11369, %v10237
        %v11371 = vadd.f32 %v11370, %v10238
        %v11372 = vadd.f32 %v11371, %v10239
        %v11373 = vadd.f32 %v11372, %v10240
        %v11374 = vadd.f32 %v11373, %v10241
        %v11375 = vadd.f32 %v11374, %v10242
        %v11376 = vrot.slane %v11375, 4
        %v11377 = vadd.f32 %v11375, %v11376
        %v11378 = vrot.slane %v11377, 2
        %v11379 = vadd.f32 %v11377, %v11378
        %v11380 = vrot.slane %v11379, 1
        %v11381 = vadd.f32 %v11379, %v11380
        %v11382 = vadd.f32 %v10243, %v10244
        %v11383 = vadd.f32 %v11382, %v10245
        %v11384 = vadd.f32 %v11383, %v10246
        %v11385 = vadd.f32 %v11384, %v10247
        %v11386 = vadd.f32 %v11385, %v10248
        %v11387 = vadd.f32 %v11386, %v10249
        %v11388 = vadd.f32 %v11387, %v10250
        %v11389 = vadd.f32 %v11388, %v10251
        %v11390 = vadd.f32 %v11389, %v10252
        %v11391 = vadd.f32 %v11390, %v10253
        %v11392 = vadd.f32 %v11391, %v10254
        %v11393 = vadd.f32 %v11392, %v10255
        %v11394 = vadd.f32 %v11393, %v10256
        %v11395 = vadd.f32 %v11394, %v10257
        %v11396 = vadd.f32 %v11395, %v10258
        %v11397 = vadd.f32 %v11396, %v10259
        %v11398 = vadd.f32 %v11397, %v10260
        %v11399 = vadd.f32 %v11398, %v10261
        %v11400 = vadd.f32 %v11399, %v10262
        %v11401 = vadd.f32 %v11400, %v10263
        %v11402 = vadd.f32 %v11401, %v10264
        %v11403 = vadd.f32 %v11402, %v10265
        %v11404 = vadd.f32 %v11403, %v10266
        %v11405 = vadd.f32 %v11404, %v10267
        %v11406 = vadd.f32 %v11405, %v10268
        %v11407 = vadd.f32 %v11406, %v10269
        %v11408 = vadd.f32 %v11407, %v10270
        %v11409 = vadd.f32 %v11408, %v10271
        %v11410 = vadd.f32 %v11409, %v10272
        %v11411 = vadd.f32 %v11410, %v10273
        %v11412 = vadd.f32 %v11411, %v10274
        %v11413 = vrot.slane %v11412, 4
        %v11414 = vadd.f32 %v11412, %v11413
        %v11415 = vrot.slane %v11414, 2
        %v11416 = vadd.f32 %v11414, %v11415
        %v11417 = vrot.slane %v11416, 1
        %v11418 = vadd.f32 %v11416, %v11417
        %v11419 = vadd.f32 %v10275, %v10276
        %v11420 = vadd.f32 %v11419, %v10277
        %v11421 = vadd.f32 %v11420, %v10278
        %v11422 = vadd.f32 %v11421, %v10279
        %v11423 = vadd.f32 %v11422, %v10280
        %v11424 = vadd.f32 %v11423, %v10281
        %v11425 = vadd.f32 %v11424, %v10282
        %v11426 = vadd.f32 %v11425, %v10283
        %v11427 = vadd.f32 %v11426, %v10284
        %v11428 = vadd.f32 %v11427, %v10285
        %v11429 = vadd.f32 %v11428, %v10286
        %v11430 = vadd.f32 %v11429, %v10287
        %v11431 = vadd.f32 %v11430, %v10288
        %v11432 = vadd.f32 %v11431, %v10289
        %v11433 = vadd.f32 %v11432, %v10290
        %v11434 = vadd.f32 %v11433, %v10291
        %v11435 = vadd.f32 %v11434, %v10292
        %v11436 = vadd.f32 %v11435, %v10293
        %v11437 = vadd.f32 %v11436, %v10294
        %v11438 = vadd.f32 %v11437, %v10295
        %v11439 = vadd.f32 %v11438, %v10296
        %v11440 = vadd.f32 %v11439, %v10297
        %v11441 = vadd.f32 %v11440, %v10298
        %v11442 = vadd.f32 %v11441, %v10299
        %v11443 = vadd.f32 %v11442, %v10300
        %v11444 = vadd.f32 %v11443, %v10301
        %v11445 = vadd.f32 %v11444, %v10302
        %v11446 = vadd.f32 %v11445, %v10303
        %v11447 = vadd.f32 %v11446, %v10304
        %v11448 = vadd.f32 %v11447, %v10305
        %v11449 = vadd.f32 %v11448, %v10306
        %v11450 = vrot.slane %v11449, 4
        %v11451 = vadd.f32 %v11449, %v11450
        %v11452 = vrot.slane %v11451, 2
        %v11453 = vadd.f32 %v11451, %v11452
        %v11454 = vrot.slane %v11453, 1
        %v11455 = vadd.f32 %v11453, %v11454
        %v11456 = vadd.f32 %v10307, %v10308
        %v11457 = vadd.f32 %v11456, %v10309
        %v11458 = vadd.f32 %v11457, %v10310
        %v11459 = vadd.f32 %v11458, %v10311
        %v11460 = vadd.f32 %v11459, %v10312
        %v11461 = vadd.f32 %v11460, %v10313
        %v11462 = vadd.f32 %v11461, %v10314
        %v11463 = vadd.f32 %v11462, %v10315
        %v11464 = vadd.f32 %v11463, %v10316
        %v11465 = vadd.f32 %v11464, %v10317
        %v11466 = vadd.f32 %v11465, %v10318
        %v11467 = vadd.f32 %v11466, %v10319
        %v11468 = vadd.f32 %v11467, %v10320
        %v11469 = vadd.f32 %v11468, %v10321
        %v11470 = vadd.f32 %v11469, %v10322
        %v11471 = vadd.f32 %v11470, %v10323
        %v11472 = vadd.f32 %v11471, %v10324
        %v11473 = vadd.f32 %v11472, %v10325
        %v11474 = vadd.f32 %v11473, %v10326
        %v11475 = vadd.f32 %v11474, %v10327
        %v11476 = vadd.f32 %v11475, %v10328
        %v11477 = vadd.f32 %v11476, %v10329
        %v11478 = vadd.f32 %v11477, %v10330
        %v11479 = vadd.f32 %v11478, %v10331
        %v11480 = vadd.f32 %v11479, %v10332
        %v11481 = vadd.f32 %v11480, %v10333
        %v11482 = vadd.f32 %v11481, %v10334
        %v11483 = vadd.f32 %v11482, %v10335
        %v11484 = vadd.f32 %v11483, %v10336
        %v11485 = vadd.f32 %v11484, %v10337
        %v11486 = vadd.f32 %v11485, %v10338
        %v11487 = vrot.slane %v11486, 4
        %v11488 = vadd.f32 %v11486, %v11487
        %v11489 = vrot.slane %v11488, 2
        %v11490 = vadd.f32 %v11488, %v11489
        %v11491 = vrot.slane %v11490, 1
        %v11492 = vadd.f32 %v11490, %v11491
        %v11493 = vadd.f32 %v10339, %v10340
        %v11494 = vadd.f32 %v11493, %v10341
        %v11495 = vadd.f32 %v11494, %v10342
        %v11496 = vadd.f32 %v11495, %v10343
        %v11497 = vadd.f32 %v11496, %v10344
        %v11498 = vadd.f32 %v11497, %v10345
        %v11499 = vadd.f32 %v11498, %v10346
        %v11500 = vadd.f32 %v11499, %v10347
        %v11501 = vadd.f32 %v11500, %v10348
        %v11502 = vadd.f32 %v11501, %v10349
        %v11503 = vadd.f32 %v11502, %v10350
        %v11504 = vadd.f32 %v11503, %v10351
        %v11505 = vadd.f32 %v11504, %v10352
        %v11506 = vadd.f32 %v11505, %v10353
        %v11507 = vadd.f32 %v11506, %v10354
        %v11508 = vadd.f32 %v11507, %v10355
        %v11509 = vadd.f32 %v11508, %v10356
        %v11510 = vadd.f32 %v11509, %v10357
        %v11511 = vadd.f32 %v11510, %v10358
        %v11512 = vadd.f32 %v11511, %v10359
        %v11513 = vadd.f32 %v11512, %v10360
        %v11514 = vadd.f32 %v11513, %v10361
        %v11515 = vadd.f32 %v11514, %v10362
        %v11516 = vadd.f32 %v11515, %v10363
        %v11517 = vadd.f32 %v11516, %v10364
        %v11518 = vadd.f32 %v11517, %v10365
        %v11519 = vadd.f32 %v11518, %v10366
        %v11520 = vadd.f32 %v11519, %v10367
        %v11521 = vadd.f32 %v11520, %v10368
        %v11522 = vadd.f32 %v11521, %v10369
        %v11523 = vadd.f32 %v11522, %v10370
        %v11524 = vrot.slane %v11523, 4
        %v11525 = vadd.f32 %v11523, %v11524
        %v11526 = vrot.slane %v11525, 2
        %v11527 = vadd.f32 %v11525, %v11526
        %v11528 = vrot.slane %v11527, 1
        %v11529 = vadd.f32 %v11527, %v11528
        %v11530 = vadd.f32 %v10371, %v10372
        %v11531 = vadd.f32 %v11530, %v10373
        %v11532 = vadd.f32 %v11531, %v10374
        %v11533 = vadd.f32 %v11532, %v10375
        %v11534 = vadd.f32 %v11533, %v10376
        %v11535 = vadd.f32 %v11534, %v10377
        %v11536 = vadd.f32 %v11535, %v10378
        %v11537 = vadd.f32 %v11536, %v10379
        %v11538 = vadd.f32 %v11537, %v10380
        %v11539 = vadd.f32 %v11538, %v10381
        %v11540 = vadd.f32 %v11539, %v10382
        %v11541 = vadd.f32 %v11540, %v10383
        %v11542 = vadd.f32 %v11541, %v10384
        %v11543 = vadd.f32 %v11542, %v10385
        %v11544 = vadd.f32 %v11543, %v10386
        %v11545 = vadd.f32 %v11544, %v10387
        %v11546 = vadd.f32 %v11545, %v10388
        %v11547 = vadd.f32 %v11546, %v10389
        %v11548 = vadd.f32 %v11547, %v10390
        %v11549 = vadd.f32 %v11548, %v10391
        %v11550 = vadd.f32 %v11549, %v10392
        %v11551 = vadd.f32 %v11550, %v10393
        %v11552 = vadd.f32 %v11551, %v10394
        %v11553 = vadd.f32 %v11552, %v10395
        %v11554 = vadd.f32 %v11553, %v10396
        %v11555 = vadd.f32 %v11554, %v10397
        %v11556 = vadd.f32 %v11555, %v10398
        %v11557 = vadd.f32 %v11556, %v10399
        %v11558 = vadd.f32 %v11557, %v10400
        %v11559 = vadd.f32 %v11558, %v10401
        %v11560 = vadd.f32 %v11559, %v10402
        %v11561 = vrot.slane %v11560, 4
        %v11562 = vadd.f32 %v11560, %v11561
        %v11563 = vrot.slane %v11562, 2
        %v11564 = vadd.f32 %v11562, %v11563
        %v11565 = vrot.slane %v11564, 1
        %v11566 = vadd.f32 %v11564, %v11565
        %v11567 = vadd.f32 %v10403, %v10404
        %v11568 = vadd.f32 %v11567, %v10405
        %v11569 = vadd.f32 %v11568, %v10406
        %v11570 = vadd.f32 %v11569, %v10407
        %v11571 = vadd.f32 %v11570, %v10408
        %v11572 = vadd.f32 %v11571, %v10409
        %v11573 = vadd.f32 %v11572, %v10410
        %v11574 = vadd.f32 %v11573, %v10411
        %v11575 = vadd.f32 %v11574, %v10412
        %v11576 = vadd.f32 %v11575, %v10413
        %v11577 = vadd.f32 %v11576, %v10414
        %v11578 = vadd.f32 %v11577, %v10415
        %v11579 = vadd.f32 %v11578, %v10416
        %v11580 = vadd.f32 %v11579, %v10417
        %v11581 = vadd.f32 %v11580, %v10418
        %v11582 = vadd.f32 %v11581, %v10419
        %v11583 = vadd.f32 %v11582, %v10420
        %v11584 = vadd.f32 %v11583, %v10421
        %v11585 = vadd.f32 %v11584, %v10422
        %v11586 = vadd.f32 %v11585, %v10423
        %v11587 = vadd.f32 %v11586, %v10424
        %v11588 = vadd.f32 %v11587, %v10425
        %v11589 = vadd.f32 %v11588, %v10426
        %v11590 = vadd.f32 %v11589, %v10427
        %v11591 = vadd.f32 %v11590, %v10428
        %v11592 = vadd.f32 %v11591, %v10429
        %v11593 = vadd.f32 %v11592, %v10430
        %v11594 = vadd.f32 %v11593, %v10431
        %v11595 = vadd.f32 %v11594, %v10432
        %v11596 = vadd.f32 %v11595, %v10433
        %v11597 = vadd.f32 %v11596, %v10434
        %v11598 = vrot.slane %v11597, 4
        %v11599 = vadd.f32 %v11597, %v11598
        %v11600 = vrot.slane %v11599, 2
        %v11601 = vadd.f32 %v11599, %v11600
        %v11602 = vrot.slane %v11601, 1
        %v11603 = vadd.f32 %v11601, %v11602
        %v11604 = vadd.f32 %v10435, %v10436
        %v11605 = vadd.f32 %v11604, %v10437
        %v11606 = vadd.f32 %v11605, %v10438
        %v11607 = vadd.f32 %v11606, %v10439
        %v11608 = vadd.f32 %v11607, %v10440
        %v11609 = vadd.f32 %v11608, %v10441
        %v11610 = vadd.f32 %v11609, %v10442
        %v11611 = vadd.f32 %v11610, %v10443
        %v11612 = vadd.f32 %v11611, %v10444
        %v11613 = vadd.f32 %v11612, %v10445
        %v11614 = vadd.f32 %v11613, %v10446
        %v11615 = vadd.f32 %v11614, %v10447
        %v11616 = vadd.f32 %v11615, %v10448
        %v11617 = vadd.f32 %v11616, %v10449
        %v11618 = vadd.f32 %v11617, %v10450
        %v11619 = vadd.f32 %v11618, %v10451
        %v11620 = vadd.f32 %v11619, %v10452
        %v11621 = vadd.f32 %v11620, %v10453
        %v11622 = vadd.f32 %v11621, %v10454
        %v11623 = vadd.f32 %v11622, %v10455
        %v11624 = vadd.f32 %v11623, %v10456
        %v11625 = vadd.f32 %v11624, %v10457
        %v11626 = vadd.f32 %v11625, %v10458
        %v11627 = vadd.f32 %v11626, %v10459
        %v11628 = vadd.f32 %v11627, %v10460
        %v11629 = vadd.f32 %v11628, %v10461
        %v11630 = vadd.f32 %v11629, %v10462
        %v11631 = vadd.f32 %v11630, %v10463
        %v11632 = vadd.f32 %v11631, %v10464
        %v11633 = vadd.f32 %v11632, %v10465
        %v11634 = vadd.f32 %v11633, %v10466
        %v11635 = vrot.slane %v11634, 4
        %v11636 = vadd.f32 %v11634, %v11635
        %v11637 = vrot.slane %v11636, 2
        %v11638 = vadd.f32 %v11636, %v11637
        %v11639 = vrot.slane %v11638, 1
        %v11640 = vadd.f32 %v11638, %v11639
        %v11641 = vadd.f32 %v10467, %v10468
        %v11642 = vadd.f32 %v11641, %v10469
        %v11643 = vadd.f32 %v11642, %v10470
        %v11644 = vadd.f32 %v11643, %v10471
        %v11645 = vadd.f32 %v11644, %v10472
        %v11646 = vadd.f32 %v11645, %v10473
        %v11647 = vadd.f32 %v11646, %v10474
        %v11648 = vadd.f32 %v11647, %v10475
        %v11649 = vadd.f32 %v11648, %v10476
        %v11650 = vadd.f32 %v11649, %v10477
        %v11651 = vadd.f32 %v11650, %v10478
        %v11652 = vadd.f32 %v11651, %v10479
        %v11653 = vadd.f32 %v11652, %v10480
        %v11654 = vadd.f32 %v11653, %v10481
        %v11655 = vadd.f32 %v11654, %v10482
        %v11656 = vadd.f32 %v11655, %v10483
        %v11657 = vadd.f32 %v11656, %v10484
        %v11658 = vadd.f32 %v11657, %v10485
        %v11659 = vadd.f32 %v11658, %v10486
        %v11660 = vadd.f32 %v11659, %v10487
        %v11661 = vadd.f32 %v11660, %v10488
        %v11662 = vadd.f32 %v11661, %v10489
        %v11663 = vadd.f32 %v11662, %v10490
        %v11664 = vadd.f32 %v11663, %v10491
        %v11665 = vadd.f32 %v11664, %v10492
        %v11666 = vadd.f32 %v11665, %v10493
        %v11667 = vadd.f32 %v11666, %v10494
        %v11668 = vadd.f32 %v11667, %v10495
        %v11669 = vadd.f32 %v11668, %v10496
        %v11670 = vadd.f32 %v11669, %v10497
        %v11671 = vadd.f32 %v11670, %v10498
        %v11672 = vrot.slane %v11671, 4
        %v11673 = vadd.f32 %v11671, %v11672
        %v11674 = vrot.slane %v11673, 2
        %v11675 = vadd.f32 %v11673, %v11674
        %v11676 = vrot.slane %v11675, 1
        %v11677 = vadd.f32 %v11675, %v11676
        %v11678 = vadd.f32 %v10499, %v10500
        %v11679 = vadd.f32 %v11678, %v10501
        %v11680 = vadd.f32 %v11679, %v10502
        %v11681 = vadd.f32 %v11680, %v10503
        %v11682 = vadd.f32 %v11681, %v10504
        %v11683 = vadd.f32 %v11682, %v10505
        %v11684 = vadd.f32 %v11683, %v10506
        %v11685 = vadd.f32 %v11684, %v10507
        %v11686 = vadd.f32 %v11685, %v10508
        %v11687 = vadd.f32 %v11686, %v10509
        %v11688 = vadd.f32 %v11687, %v10510
        %v11689 = vadd.f32 %v11688, %v10511
        %v11690 = vadd.f32 %v11689, %v10512
        %v11691 = vadd.f32 %v11690, %v10513
        %v11692 = vadd.f32 %v11691, %v10514
        %v11693 = vadd.f32 %v11692, %v10515
        %v11694 = vadd.f32 %v11693, %v10516
        %v11695 = vadd.f32 %v11694, %v10517
        %v11696 = vadd.f32 %v11695, %v10518
        %v11697 = vadd.f32 %v11696, %v10519
        %v11698 = vadd.f32 %v11697, %v10520
        %v11699 = vadd.f32 %v11698, %v10521
        %v11700 = vadd.f32 %v11699, %v10522
        %v11701 = vadd.f32 %v11700, %v10523
        %v11702 = vadd.f32 %v11701, %v10524
        %v11703 = vadd.f32 %v11702, %v10525
        %v11704 = vadd.f32 %v11703, %v10526
        %v11705 = vadd.f32 %v11704, %v10527
        %v11706 = vadd.f32 %v11705, %v10528
        %v11707 = vadd.f32 %v11706, %v10529
        %v11708 = vadd.f32 %v11707, %v10530
        %v11709 = vrot.slane %v11708, 4
        %v11710 = vadd.f32 %v11708, %v11709
        %v11711 = vrot.slane %v11710, 2
        %v11712 = vadd.f32 %v11710, %v11711
        %v11713 = vrot.slane %v11712, 1
        %v11714 = vadd.f32 %v11712, %v11713
        %v11715 = vmax.f32 %v10567, %v10604
        %v11716 = vmax.f32 %v11715, %v10641
        %v11717 = vmax.f32 %v11716, %v10678
        %v11718 = vmax.f32 %v10715, %v10752
        %v11719 = vmax.f32 %v11718, %v10789
        %v11720 = vmax.f32 %v11719, %v10826
        %v11721 = vmax.f32 %v10863, %v10900
        %v11722 = vmax.f32 %v11721, %v10937
        %v11723 = vmax.f32 %v11722, %v10974
        %v11724 = vmax.f32 %v11011, %v11048
        %v11725 = vmax.f32 %v11724, %v11085
        %v11726 = vmax.f32 %v11725, %v11122
        %v11727 = vmax.f32 %v11159, %v11196
        %v11728 = vmax.f32 %v11727, %v11233
        %v11729 = vmax.f32 %v11728, %v11270
        %v11730 = vmax.f32 %v11307, %v11344
        %v11731 = vmax.f32 %v11730, %v11381
        %v11732 = vmax.f32 %v11731, %v11418
        %v11733 = vmax.f32 %v11455, %v11492
        %v11734 = vmax.f32 %v11733, %v11529
        %v11735 = vmax.f32 %v11734, %v11566
        %v11736 = vmax.f32 %v11603, %v11640
        %v11737 = vmax.f32 %v11736, %v11677
        %v11738 = vmax.f32 %v11737, %v11714
        %v11739 = vpack.c.bf16 %v11717, %v11717
        %v11740 = vpack.c.bf16 %v11720, %v11720
        %v11741 = vpack.c.bf16 %v11723, %v11723
        %v11742 = vpack.c.bf16 %v11726, %v11726
        %v11743 = vpack.c.bf16 %v11729, %v11729
        %v11744 = vpack.c.bf16 %v11732, %v11732
        %v11745 = vpack.c.bf16 %v11735, %v11735
        %v11746 = vpack.c.bf16 %v11738, %v11738
        %v11747 = vld [vmem:[%s3] sm:$0xf]
        %v11748 = vld [vmem:[%s3 + $0x4] sm:$0xf]
        %v11749 = vld [vmem:[%s3 + $0x8] sm:$0xf]
        %v11750 = vld [vmem:[%s3 + $0xc] sm:$0xf]
        %v11751 = vld [vmem:[%s3 + $0x10] sm:$0xf]
        %v11752 = vld [vmem:[%s3 + $0x14] sm:$0xf]
        %v11753 = vld [vmem:[%s3 + $0x18] sm:$0xf]
        %v11754 = vld [vmem:[%s3 + $0x1c] sm:$0xf]
        %v11755 = vld [vmem:[%s3 + $0x20] sm:$0xf]
        %v11756 = vld [vmem:[%s3 + $0x24] sm:$0xf]
        %v11757 = vld [vmem:[%s3 + $0x28] sm:$0xf]
        %v11758 = vld [vmem:[%s3 + $0x2c] sm:$0xf]
        %v11759 = vld [vmem:[%s3 + $0x30] sm:$0xf]
        %v11760 = vld [vmem:[%s3 + $0x34] sm:$0xf]
        %v11761 = vld [vmem:[%s3 + $0x38] sm:$0xf]
        %v11762 = vld [vmem:[%s3 + $0x3c] sm:$0xf]
        %v11763 = vld [vmem:[%s4] sm:$0x1]
        %v11765 = vlaneseq
        %v11766 = vshrl.u32 %v11765, 7
        %v11767 = vsub.s32 0, %v11766
        %v11768 = vrot.slane %v11763, %v11767
        %v11778 = vunpack.c.l.b16 %v11739
        %v11779 = vunpack.c.l.b16 %v11740
        %v11780 = vunpack.c.l.b16 %v11741
        %v11781 = vunpack.c.l.b16 %v11742
        %v11782 = vunpack.c.l.b16 %v11743
        %v11783 = vunpack.c.l.b16 %v11744
        %v11784 = vunpack.c.l.b16 %v11745
        %v11785 = vunpack.c.l.b16 %v11746
        %vm11786 = vcmask 1041409
        %v11787 = vsel %vm11786, %v11779, %v11778
        %vm11788 = vcmask 1042434
        %v11789 = vsel %vm11788, %v11780, %v11787
        %vm11790 = vcmask 1043459
        %v11791 = vsel %vm11790, %v11781, %v11789
        %vm11792 = vcmask 1044484
        %v11793 = vsel %vm11792, %v11782, %v11791
        %vm11794 = vcmask 1045509
        %v11795 = vsel %vm11794, %v11783, %v11793
        %vm11796 = vcmask 1046534
        %v11797 = vsel %vm11796, %v11784, %v11795
        %vm11798 = vcmask 1047559
        %v11799 = vsel %vm11798, %v11785, %v11797
        %v11800 = vpack.c.b16 %v11799, %v11799
        %v11818 = vunpack.c.l.b16 %v11747
        %v11819 = vunpack.c.l.b16 %v11748
        %v11820 = vunpack.c.l.b16 %v11749
        %v11821 = vunpack.c.l.b16 %v11750
        %v11822 = vunpack.c.l.b16 %v11751
        %v11823 = vunpack.c.l.b16 %v11752
        %v11824 = vunpack.c.l.b16 %v11753
        %v11825 = vunpack.c.l.b16 %v11754
        %v11826 = vunpack.c.l.b16 %v11755
        %v11827 = vunpack.c.l.b16 %v11756
        %v11828 = vunpack.c.l.b16 %v11757
        %v11829 = vunpack.c.l.b16 %v11758
        %v11830 = vunpack.c.l.b16 %v11759
        %v11831 = vunpack.c.l.b16 %v11760
        %v11832 = vunpack.c.l.b16 %v11761
        %v11833 = vunpack.c.l.b16 %v11762
        %v11834 = vpack.c.b16 %v11819, %v11818
        %v11835 = vpack.c.b16 %v11821, %v11820
        %v11836 = vpack.c.b16 %v11823, %v11822
        %v11837 = vpack.c.b16 %v11825, %v11824
        %v11838 = vpack.c.b16 %v11827, %v11826
        %v11839 = vpack.c.b16 %v11829, %v11828
        %v11840 = vpack.c.b16 %v11831, %v11830
        %v11841 = vpack.c.b16 %v11833, %v11832
        %11850 = vmatprep.subr.bf16.mxu0 0
        %11851 = vmatpush1.bf16.msra.mxu0 %v11834
        %11852 = vmatprep.subr.bf16.mxu0 0
        %11853 = vmatpush1.bf16.msra.mxu0 %v11835
        %11854 = vmatprep.subr.bf16.mxu0 0
        %11855 = vmatpush1.bf16.msra.mxu0 %v11836
        %11856 = vmatprep.subr.bf16.mxu0 0
        %11857 = vmatpush1.bf16.msra.mxu0 %v11837
        %11858 = vmatprep.subr.bf16.mxu0 0
        %11859 = vmatpush1.bf16.msra.mxu0 %v11838
        %11860 = vmatprep.subr.bf16.mxu0 0
        %11861 = vmatpush1.bf16.msra.mxu0 %v11839
        %11862 = vmatprep.subr.bf16.mxu0 0
        %11863 = vmatpush1.bf16.msra.mxu0 %v11840
        %11864 = vmatprep.subr.bf16.mxu0 0
        %11865 = vmatpush1.bf16.msra.mxu0 %v11841
        %11866 = vmatprep.subr.bf16.mxu0 0
        %11867 = vmatpush1.bf16.msra.mxu0 0
        %11868 = vmatprep.subr.bf16.mxu0 0
        %11869 = vmatpush1.bf16.msra.mxu0 0
        %11870 = vmatprep.subr.bf16.mxu0 0
        %11871 = vmatpush1.bf16.msra.mxu0 0
        %11872 = vmatprep.subr.bf16.mxu0 0
        %11873 = vmatpush1.bf16.msra.mxu0 0
        %11874 = vmatprep.subr.bf16.mxu0 0
        %11875 = vmatpush1.bf16.msra.mxu0 0
        %11876 = vmatprep.subr.bf16.mxu0 0
        %11877 = vmatpush1.bf16.msra.mxu0 0
        %11878 = vmatprep.subr.bf16.mxu0 0
        %11879 = vmatpush1.bf16.msra.mxu0 0
        %11880 = vmatprep.subr.bf16.mxu0 0
        %11881 = vmatpush1.bf16.msra.mxu0 0
        %11882 = vmatprep.mubr.bf16.mxu0 0
        %11883 = vmatmul.mubr.bf16.gmra.mrb[0].mxu0 %v11800
        %v11884 = vpop.f32.mrb[0].mxu0
        %v11885 = vadd.f32 %v11768, %v11884
        %v11886 = vpop.f32.mrb[0].mxu0
        %v11887 = vpop.f32.mrb[0].mxu0
        %v11888 = vpop.f32.mrb[0].mxu0
        %11889 = vdwg.mxu0
        %11890 = vst [vmem:[%s218] sm:$0xff] %v11885
        %s11891 = sand.u32 %s137, 1
        %s11892 = scalar_lea.sflag [#allocation3], %s11891
        %s11893 = sand.u32 %s137, 1
        %s11894 = smul.addr %s11893, 8
        %s11895 = scalar_lea.vmem [#allocation2], %s11894
        // Predicated region
        $region41: #{mvcnn_forward.1} parent=39 // pred_check
          %p11896 = pneg %p147
        $region42: #{mvcnn_forward.1} parent=39 // pred_check_branch
          %11898 = sbr.rel (%p11896) target = $region44
        $region43: #{mvcnn_forward.1} parent=39 // pred_region
          %s11900 = ssub.s32 128, 128
          %11901 = vsyncadd %s11892, %s11900
          %s11902 = smul.addr %s19, 128
          %s11903 = scalar_lea.hbm %s5, %s11902
          %s11905 = sshll.u32 %s11895, 4
          %s11906 = int_to_ptr.vmem [resolvable:$true] %s11905
          %11908 = dma.vmem_to_hbm [thread:$0]  %s11906, 128, %s11903, %s11892
        $region44: #{mvcnn_forward.1} parent=39 // pred_fallthru
          _
      $region40: #{mvcnn_forward.1} parent=5 // pred_fallthru
        _
      %p11909 = scmp.le.s32.totalorder 2, %s14
      // Predicated region
      $region45: #{mvcnn_forward.1} parent=5 // pred_check
        %p11910 = pneg %p11909
      $region46: #{mvcnn_forward.1} parent=5 // pred_check_branch
        %11912 = sbr.rel (%p11910) target = $region48
      $region47: #{mvcnn_forward.1} parent=5 // pred_region
        %s11913 = ssub.s32 %s14, 2
        // Predicated region
        $region49: #{mvcnn_forward.1} parent=47 // pred_check
          %p11914 = pneg %p153
        $region50: #{mvcnn_forward.1} parent=47 // pred_check_branch
          %11916 = sbr.rel (%p11914) target = $region52
        $region51: #{mvcnn_forward.1} parent=47 // pred_region
          %s11917 = sand.u32 %s138, 1
          %s11918 = scalar_lea.sflag [#allocation3], %s11917
          %s11919 = sand.u32 %s138, 1
          %s11920 = smul.addr %s11919, 8
          %s11921 = scalar_lea.vmem [#allocation2], %s11920
          %11922 = dma.done %s11918, 128
        $region52: #{mvcnn_forward.1} parent=47 // pred_fallthru
          _
      $region48: #{mvcnn_forward.1} parent=5 // pred_fallthru
        _
    $region6: #{mvcnn_forward.1} parent=1 // loop_footer
      %s18 = sadd.s32 1, %s14
    $region7: #{mvcnn_forward.1} parent=1 // loop_footer_branch
      %13 = sbr.rel target = $region3
    $region8: #{mvcnn_forward.1} parent=1 // loop_exit
      _
    %11923 = vsyncpa [#allocation3], 1
    %s11924 = scalar_lea.sflag [#allocation3], 1
    %11925 = vsyncpa %s11924, 1

</llo_original>
